<compile_context>
chip_gen: v7x
topology: tpu7x:2x2x1
jax: 0.10.0
libtpu: 0.0.40
codegen_flags: <defaults>
</compile_context>

<pallas_src>
import functools

import jax
import jax.numpy as jnp
from jax import lax
from jax.experimental import pallas as pl
from jax.experimental.pallas import tpu as pltpu

_BN_EPS = 1e-5
_TM = 512          # rows per M-tile for the 1x1-matmul stages (HBM-bound)
_LANE = 128        # channel dims padded to multiples of the 128-lane vreg width


def _rup(x, m):
    return ((x + m - 1) // m) * m


@functools.lru_cache(maxsize=None)
def _compiler_params():
    # Adapt the explicit VMEM budget: ~48 MiB on v7x (64 MiB VMEM),
    # ~112 MiB on v5e/v6e (128 MiB VMEM).
    try:
        cap = int(pltpu.get_tpu_info().vmem_capacity_bytes)
    except Exception:
        cap = 64 * 1024 * 1024
    limit = max(32 * 1024 * 1024, min(cap - 16 * 1024 * 1024, 112 * 1024 * 1024))
    return pltpu.CompilerParams(
        dimension_semantics=("parallel",),
        vmem_limit_bytes=int(limit),
    )


# ----------------------------------------------------------------------------
# Kernels
# ----------------------------------------------------------------------------
def mm_stats_kernel(x_ref, w_ref, z_ref, st_ref):
    """z = x @ w (bf16 operands, f32 acc); emit per-tile (sum, sum_sq) over rows."""
    acc = jnp.dot(x_ref[...], w_ref[...], preferred_element_type=jnp.float32)
    z_ref[...] = acc.astype(z_ref.dtype)
    st_ref[0] = jnp.concatenate(
        [jnp.sum(acc, axis=0, keepdims=True),
         jnp.sum(acc * acc, axis=0, keepdims=True)], axis=0)


def conv2_kernel(ph_ref, w_ref, sc_ref, sh_ref, z_ref, st_ref, act_ref,
                 *, H, W, H2, W2, C, row_chunk):
    """Fused BN1-apply+ReLU and 3x3 stride-2 conv for one image.

    ph_ref holds the 4 stride-2 phase planes (raw bf16, spatially zero-padded).
    The BN1/ReLU epilogue is applied ONCE per plane (hoisted out of the 9-tap
    loop) into a VMEM scratch; the conv padding border stays exactly zero
    because only the valid interior rectangle of each plane is activated and
    written.  The 9 taps are then static scratch-ref windows fed to the MXU,
    row-chunked so the f32 accumulator stays near register size.
    """
    sc = sc_ref[...].reshape(1, 1, C)
    sh = sh_ref[...].reshape(1, 1, C)

    # ---- hoisted epilogue: BN1 + ReLU once per phase plane (4x, not 9x) ----
    act_ref[...] = jnp.zeros_like(act_ref)
    for ph in range(2):
        for pw in range(2):
            p = ph * 2 + pw
            i0, i1 = 1 - ph, (H - ph) // 2        # inclusive valid plane rows
            j0, j1 = 1 - pw, (W - pw) // 2        # inclusive valid plane cols
            xwin = ph_ref[p, i0:i1 + 1, j0:j1 + 1, :].astype(jnp.float32)
            act_ref[p, i0:i1 + 1, j0:j1 + 1, :] = (
                jnp.maximum(xwin * sc + sh, 0.0).astype(act_ref.dtype))

    # ---- 9-tap conv as MXU matmuls over bounded row chunks ----
    # TODO(synk): on v6e/v7x pack the 3 kw taps along K (K = 3*Cw) per kh to
    # better fill the 256-wide MXU when Cw == 128.
    s1 = jnp.zeros((1, C), jnp.float32)
    s2 = jnp.zeros((1, C), jnp.float32)
    for r0 in range(0, H2, row_chunk):
        nr = min(row_chunk, H2 - r0)
        acc = jnp.zeros((nr * W2, C), jnp.float32)
        for kh in range(3):
            for kw in range(3):
                p = (kh % 2) * 2 + (kw % 2)
                dr, dc = kh // 2, kw // 2
                win = act_ref[p, r0 + dr:r0 + dr + nr, dc:dc + W2, :]
                acc = acc + jnp.dot(win.reshape(nr * W2, C), w_ref[kh * 3 + kw],
                                    preferred_element_type=jnp.float32)
        z_ref[0, r0 * W2:(r0 + nr) * W2, :] = acc.astype(z_ref.dtype)
        s1 = s1 + jnp.sum(acc, axis=0, keepdims=True)
        s2 = s2 + jnp.sum(acc * acc, axis=0, keepdims=True)
    st_ref[0] = jnp.concatenate([s1, s2], axis=0)


def bn_mm_ds_kernel(z2_ref, sc_ref, sh_ref, w3_ref, xs_ref, wd_ref,
                    z3_ref, zd_ref, st3_ref, std_ref, *, m_true, tm):
    """Fused BN2-apply+ReLU -> conv3 matmul, PLUS the stride-2 1x1 downsample
    matmul (only the kept quarter of spatial positions); partial stats of both
    branches ride along."""
    row = pl.program_id(0) * tm + lax.broadcasted_iota(jnp.int32, (tm, 1), 0)
    y = jnp.maximum(z2_ref[...].astype(jnp.float32) * sc_ref[...] + sh_ref[...], 0.0)
    y = jnp.where(row < m_true, y, 0.0)            # padded rows must stay zero
    z3 = jnp.dot(y.astype(jnp.bfloat16), w3_ref[...],
                 preferred_element_type=jnp.float32)
    z3_ref[...] = z3.astype(z3_ref.dtype)
    st3_ref[0] = jnp.concatenate(
        [jnp.sum(z3, axis=0, keepdims=True),
         jnp.sum(z3 * z3, axis=0, keepdims=True)], axis=0)

    # downsample branch: xs is zero in padded rows, so no mask is needed.
    zd = jnp.dot(xs_ref[...], wd_ref[...], preferred_element_type=jnp.float32)
    zd_ref[...] = zd.astype(zd_ref.dtype)
    std_ref[0] = jnp.concatenate(
        [jnp.sum(zd, axis=0, keepdims=True),
         jnp.sum(zd * zd, axis=0, keepdims=True)], axis=0)


def final_apply_kernel(z3_ref, zd_ref, s3_ref, sd_ref, b_ref, o_ref):
    """out = relu(BN3(z3) + BN_down(zd)) with the two shifts pre-folded."""
    main = z3_ref[...].astype(jnp.float32) * s3_ref[...]
    down = zd_ref[...].astype(jnp.float32) * sd_ref[...]
    o_ref[...] = jnp.maximum(main + down + b_ref[...], 0.0)


# ----------------------------------------------------------------------------
# BN stats folding (tiny per-channel math; wrapper-side glue)
# ----------------------------------------------------------------------------
def _fold_bn(total, total_sq, count, gamma, beta):
    mean = total / count
    var = jnp.maximum(total_sq / count - mean * mean, 0.0)   # biased (torch train)
    scale = gamma * lax.rsqrt(var + _BN_EPS)
    shift = beta - mean * scale
    return (scale.reshape(1, -1).astype(jnp.float32),
            shift.reshape(1, -1).astype(jnp.float32))


# ----------------------------------------------------------------------------
# EncoderBottleneck forward (NCHW in / NCHW out, like the PyTorch module)
# ----------------------------------------------------------------------------
def encoder_bottleneck_forward(x_nchw, params, stride=2):
    # conv2 hard-codes stride 2, so stride=2 is the only shape-consistent config.
    assert stride == 2, "EncoderBottleneck requires stride=2"
    cp = _compiler_params()

    N, Cin, H, W = x_nchw.shape
    width = params["w_conv1"].shape[-1]
    Cout = params["w_conv3"].shape[-1]
    H2, W2 = (H + 1) // 2, (W + 1) // 2
    Hp, Wp = H2 + 1, W2 + 1
    M, M2 = N * H * W, N * H2 * W2

    Ci, Cw, Co = (_rup(c, _LANE) for c in (Cin, width, Cout))
    Mp, M2p = _rup(M, _TM), _rup(M2, _TM)
    T1, T2 = Mp // _TM, M2p // _TM
    f32, bf16 = jnp.float32, jnp.bfloat16

    # lane-dense channel padding (padded channels have gamma=beta=0 -> stay 0)
    x = jnp.transpose(x_nchw, (0, 2, 3, 1)).astype(bf16)             # NHWC bf16
    x2d = jnp.pad(x.reshape(M, Cin), ((0, Mp - M), (0, Ci - Cin)))
    xs = x[:, ::2, ::2, :]                      # stride-2 subset for downsample
    xs2d = jnp.pad(xs.reshape(M2, Cin), ((0, M2p - M2), (0, Ci - Cin)))

    pad_m = lambda w, r, c: jnp.pad(
        w, ((0, r - w.shape[0]), (0, c - w.shape[1]))).astype(bf16)
    pad_v = lambda v, c: jnp.pad(v.astype(f32), (0, c - v.shape[0]))

    w1 = pad_m(params["w_conv1"].reshape(Cin, width), Ci, Cw)
    wd = pad_m(params["w_down"].reshape(Cin, Cout), Ci, Co)
    w2 = jnp.pad(params["w_conv2"],
                 ((0, 0), (0, 0), (0, Cw - width), (0, Cw - width))
                 ).astype(bf16).reshape(9, Cw, Cw)
    w3 = pad_m(params["w_conv3"].reshape(width, Cout), Cw, Co)
    g1, b1 = pad_v(params["g1"], Cw), pad_v(params["b1"], Cw)
    g2, b2 = pad_v(params["g2"], Cw), pad_v(params["b2"], Cw)
    g3, b3 = pad_v(params["g3"], Co), pad_v(params["b3"], Co)
    gd, bd = pad_v(params["g_down"], Co), pad_v(params["b_down"], Co)

    # ---- Stage A: conv1 (1x1) matmul + BN1 partial stats --------------------
    # TODO(synk): on v7x, single-buffer the constant-index weight blocks
    # (pipeline_mode=pl.Buffered(1)) to halve their VMEM footprint.
    z1, st1 = pl.pallas_call(
        mm_stats_kernel,
        grid=(T1,),
        in_specs=[pl.BlockSpec((_TM, Ci), lambda i: (i, 0)),
                  pl.BlockSpec((Ci, Cw), lambda i: (0, 0))],
        out_specs=[pl.BlockSpec((_TM, Cw), lambda i: (i, 0)),
                   pl.BlockSpec((1, 2, Cw), lambda i: (i, 0, 0))],
        out_shape=[jax.ShapeDtypeStruct((Mp, Cw), bf16),
                   jax.ShapeDtypeStruct((T1, 2, Cw), f32)],
        compiler_params=cp,
    )(x2d, w1)
    sc1, sh1 = _fold_bn(jnp.sum(st1[:, 0], 0), jnp.sum(st1[:, 1], 0), M, g1, b1)

    # ---- Stage B: BN1-apply + 3x3/s2 conv via stride-2 phase planes ---------
    # TODO(synk): emit the phase layout directly from a row-tiled producer
    # kernel to drop this XLA pad/reshape/transpose pass over z1.
    z1n = z1[:M].reshape(N, H, W, Cw)
    z1p = jnp.pad(z1n, ((0, 0), (1, 2 * Hp - (H + 1)),
                        (1, 2 * Wp - (W + 1)), (0, 0)))
    phases = z1p.reshape(N, Hp, 2, Wp, 2, Cw)
    phases = phases.transpose(0, 2, 4, 1, 3, 5).reshape(N * 4, Hp, Wp, Cw)

    # row chunk so the per-chunk f32 accumulator stays ~<=256 KiB
    row_chunk = max(1, min(H2, (256 * 1024) // max(W2 * Cw * 4, 1)))

    z2, st2 = pl.pallas_call(
        functools.partial(conv2_kernel, H=H, W=W, H2=H2, W2=W2, C=Cw,
                          row_chunk=row_chunk),
        grid=(N,),
        in_specs=[pl.BlockSpec((4, Hp, Wp, Cw), lambda n: (n, 0, 0, 0)),
                  pl.BlockSpec((9, Cw, Cw), lambda n: (0, 0, 0)),
                  pl.BlockSpec((1, Cw), lambda n: (0, 0)),
                  pl.BlockSpec((1, Cw), lambda n: (0, 0))],
        out_specs=[pl.BlockSpec((1, H2 * W2, Cw), lambda n: (n, 0, 0)),
                   pl.BlockSpec((1, 2, Cw), lambda n: (n, 0, 0))],
        out_shape=[jax.ShapeDtypeStruct((N, H2 * W2, Cw), bf16),
                   jax.ShapeDtypeStruct((N, 2, Cw), f32)],
        scratch_shapes=[pltpu.VMEM((4, Hp, Wp, Cw), bf16)],
        compiler_params=cp,
    )(phases, w2, sc1, sh1)
    sc2, sh2 = _fold_bn(jnp.sum(st2[:, 0], 0), jnp.sum(st2[:, 1], 0), M2, g2, b2)

    z2f = jnp.pad(z2.reshape(M2, Cw), ((0, M2p - M2), (0, 0)))

    # ---- Stage C: BN2+ReLU -> conv3; fused stride-2 downsample; stats -------
    z3, zd, st3, std = pl.pallas_call(
        functools.partial(bn_mm_ds_kernel, m_true=M2, tm=_TM),
        grid=(T2,),
        in_specs=[pl.BlockSpec((_TM, Cw), lambda i: (i, 0)),
                  pl.BlockSpec((1, Cw), lambda i: (0, 0)),
                  pl.BlockSpec((1, Cw), lambda i: (0, 0)),
                  pl.BlockSpec((Cw, Co), lambda i: (0, 0)),
                  pl.BlockSpec((_TM, Ci), lambda i: (i, 0)),
                  pl.BlockSpec((Ci, Co), lambda i: (0, 0))],
        out_specs=[pl.BlockSpec((_TM, Co), lambda i: (i, 0)),
                   pl.BlockSpec((_TM, Co), lambda i: (i, 0)),
                   pl.BlockSpec((1, 2, Co), lambda i: (i, 0, 0)),
                   pl.BlockSpec((1, 2, Co), lambda i: (i, 0, 0))],
        out_shape=[jax.ShapeDtypeStruct((M2p, Co), bf16),
                   jax.ShapeDtypeStruct((M2p, Co), bf16),
                   jax.ShapeDtypeStruct((T2, 2, Co), f32),
                   jax.ShapeDtypeStruct((T2, 2, Co), f32)],
        compiler_params=cp,
    )(z2f, sc2, sh2, w3, xs2d, wd)
    sc3, sh3 = _fold_bn(jnp.sum(st3[:, 0], 0), jnp.sum(st3[:, 1], 0), M2, g3, b3)
    scd, shd = _fold_bn(jnp.sum(std[:, 0], 0), jnp.sum(std[:, 1], 0), M2, gd, bd)
    sh_comb = sh3 + shd                       # pre-folded shift (one add saved)

    # ---- Stage D: BN3 + BN_down apply, residual add, ReLU -------------------
    # TODO(synk): emit a channel-blocked layout (and bf16 if the consumer
    # tolerates it) to make the trailing NHWC->NCHW transpose cheap.
    out = pl.pallas_call(
        final_apply_kernel,
        grid=(T2,),
        in_specs=[pl.BlockSpec((_TM, Co), lambda i: (i, 0)),
                  pl.BlockSpec((_TM, Co), lambda i: (i, 0)),
                  pl.BlockSpec((1, Co), lambda i: (0, 0)),
                  pl.BlockSpec((1, Co), lambda i: (0, 0)),
                  pl.BlockSpec((1, Co), lambda i: (0, 0))],
        out_specs=pl.BlockSpec((_TM, Co), lambda i: (i, 0)),
        out_shape=jax.ShapeDtypeStruct((M2p, Co), f32),
        compiler_params=cp,
    )(z3, zd, sc3, scd, sh_comb)

    out = out[:M2, :Cout].reshape(N, H2, W2, Cout)
    return jnp.transpose(out, (0, 3, 1, 2))  # -> NCHW


# ----------------------------------------------------------------------------
# Pure-JAX f32 reference (PyTorch train-mode semantics) for self-check
# ----------------------------------------------------------------------------
def _ref_forward(x_nchw, params, stride=2):
    x = jnp.transpose(x_nchw, (0, 2, 3, 1))

    def conv(inp, w, s, pad):
        return lax.conv_general_dilated(
            inp, w, (s, s), pad,
            dimension_numbers=("NHWC", "HWIO", "NHWC"),
            precision=lax.Precision.HIGHEST)

    def bn(v, g, b):
        mean = jnp.mean(v, axis=(0, 1, 2), keepdims=True)
        var = jnp.mean((v - mean) ** 2, axis=(0, 1, 2), keepdims=True)
        return (v - mean) * lax.rsqrt(var + _BN_EPS) * g + b

    xd = bn(conv(x, params["w_down"], stride, "VALID"),
            params["g_down"], params["b_down"])
    y = jax.nn.relu(bn(conv(x, params["w_conv1"], 1, "VALID"),
                       params["g1"], params["b1"]))
    y = jax.nn.relu(bn(conv(y, params["w_conv2"], 2, [(1, 1), (1, 1)]),
                       params["g2"], params["b2"]))
    y = bn(conv(y, params["w_conv3"], 1, "VALID"), params["g3"], params["b3"])
    y = jax.nn.relu(y + xd)
    return jnp.transpose(y, (0, 3, 1, 2))


# ----------------------------------------------------------------------------
# Deterministic parameter construction + demo
# ----------------------------------------------------------------------------
def init_params(key, in_channels, out_channels, base_width=64):
    width = int(out_channels * (base_width / 64))
    ks = jax.random.split(key, 12)
    n = lambda k, shape, s=0.2: (s * jax.random.normal(k, shape)).astype(jnp.float32)
    return {
        "w_down":  n(ks[0], (1, 1, in_channels, out_channels)),
        "g_down":  1.0 + n(ks[1], (out_channels,), 0.1),
        "b_down":  n(ks[2], (out_channels,), 0.1),
        "w_conv1": n(ks[3], (1, 1, in_channels, width)),
        "g1":      1.0 + n(ks[4], (width,), 0.1),
        "b1":      n(ks[5], (width,), 0.1),
        "w_conv2": n(ks[6], (3, 3, width, width)),
        "g2":      1.0 + n(ks[7], (width,), 0.1),
        "b2":      n(ks[8], (width,), 0.1),
        "w_conv3": n(ks[9], (1, 1, width, out_channels)),
        "g3":      1.0 + n(ks[10], (out_channels,), 0.1),
        "b3":      n(ks[11], (out_channels,), 0.1),
    }


if __name__ == "__main__":
    key = jax.random.PRNGKey(0)
    N, Cin, H, W = 2, 4, 16, 16
    Cout, base_width, stride = 8, 64, 2   # stride=2 required for residual shapes

    pkey, xkey = jax.random.split(key)
    params = init_params(pkey, Cin, Cout, base_width)
    x = jax.random.normal(xkey, (N, Cin, H, W), dtype=jnp.float32)

    fwd = jax.jit(functools.partial(encoder_bottleneck_forward, stride=stride))
    out = jax.block_until_ready(fwd(x, params))
    assert out.shape == (N, Cout, (H + 1) // 2, (W + 1) // 2), out.shape

    ref = _ref_forward(x, params, stride=stride)
    err_max = float(jnp.max(jnp.abs(out - ref)))
    err_mean = float(jnp.mean(jnp.abs(out - ref)))
    # bf16 MXU operands / bf16 intermediates vs. a pure-f32 reference.
    assert err_max < 1e-1 and err_mean < 2e-2, (err_max, err_mean)

    print("KERNEL_OK")
</pallas_src>

<mosaic_0001>
module attributes {stable_mosaic.version = 11 : i64} {
  func.func @mm_stats_kernel(%arg0: i32, %arg1: memref<512x128xbf16, #tpu.memory_space<vmem>>, %arg2: memref<128x128xbf16, #tpu.memory_space<vmem>>, %arg3: memref<512x128xbf16, #tpu.memory_space<vmem>>, %arg4: memref<1x2x128xf32, #tpu.memory_space<vmem>>) attributes {dimension_semantics = [#tpu.dimension_semantics<parallel>], iteration_bounds = array<i64: 1>, scalar_prefetch = 0 : i64, scratch_operands = 0 : i64, tpu.core_type = #tpu.core_type<tc>, window_params = [{transform_indices = @transform_0, window_bounds = array<i64: 512, 128>}, {pipeline_mode = #tpu.pipeline_mode<synchronous>, transform_indices = @transform_1, window_bounds = array<i64: 128, 128>}, {transform_indices = @transform_2, window_bounds = array<i64: 512, 128>}, {transform_indices = @transform_3, window_bounds = array<i64: 1, 2, 128>}]} {
    %c0 = arith.constant 0 : index
    %c0_0 = arith.constant 0 : index
    %0 = vector.load %arg1[%c0, %c0_0] : memref<512x128xbf16, #tpu.memory_space<vmem>>, vector<512x128xbf16>
    %c0_1 = arith.constant 0 : index
    %c0_2 = arith.constant 0 : index
    %1 = vector.load %arg2[%c0_1, %c0_2] : memref<128x128xbf16, #tpu.memory_space<vmem>>, vector<128x128xbf16>
    %cst = arith.constant dense<0.000000e+00> : vector<512x128xf32>
    %2 = tpu.matmul %0, %1, %cst {dimension_numbers = #tpu.dot_dimension_numbers<[1], [0], [0], [1], [0, 0, 1, 1], [], []>} : vector<512x128xbf16>, vector<128x128xbf16>, vector<512x128xf32> -> vector<512x128xf32>
    %3 = arith.truncf %2 : vector<512x128xf32> to vector<512x128xbf16>
    %c0_3 = arith.constant 0 : index
    %c0_4 = arith.constant 0 : index
    %4 = vector.load %arg3[%c0_3, %c0_4] : memref<512x128xbf16, #tpu.memory_space<vmem>>, vector<512x128xbf16>
    tpu.vector_store %arg3[%c0_3, %c0_4], %3 {strides = array<i32>} : memref<512x128xbf16, #tpu.memory_space<vmem>>, vector<512x128xbf16>,
    %cst_5 = arith.constant dense<0.000000e+00> : vector<128xf32>
    %5 = vector.multi_reduction <add>, %2, %cst_5 [0] : vector<512x128xf32> to vector<128xf32>
    %6 = vector.shape_cast %5 : vector<128xf32> to vector<1x128xf32>
    %7 = arith.mulf %2, %2 : vector<512x128xf32>
    %cst_6 = arith.constant dense<0.000000e+00> : vector<128xf32>
    %8 = vector.multi_reduction <add>, %7, %cst_6 [0] : vector<512x128xf32> to vector<128xf32>
    %9 = vector.shape_cast %8 : vector<128xf32> to vector<1x128xf32>
    %10 = tpu.concatenate %6, %9 in 0 : vector<1x128xf32>, vector<1x128xf32> -> vector<2x128xf32>
    %c0_7 = arith.constant 0 : index
    %c0_8 = arith.constant 0 : index
    %c0_9 = arith.constant 0 : index
    %11 = vector.load %arg4[%c0_7, %c0_8, %c0_9] : memref<1x2x128xf32, #tpu.memory_space<vmem>>, vector<1x2x128xf32>
    %12 = vector.shape_cast %11 : vector<1x2x128xf32> to vector<2x128xf32>
    %13 = vector.shape_cast %10 : vector<2x128xf32> to vector<1x2x128xf32>
    tpu.vector_store %arg4[%c0_7, %c0_8, %c0_9], %13 {strides = array<i32>} : memref<1x2x128xf32, #tpu.memory_space<vmem>>, vector<1x2x128xf32>,
    return
  }
  func.func @transform_0(%arg0: i32) -> (i32, i32) {
    %c0_i32 = arith.constant 0 : i32
    %c0_i32_0 = arith.constant 0 : i32
    return %arg0, %c0_i32 : i32, i32
  }
  func.func @transform_1(%arg0: i32) -> (i32, i32) {
    %c0_i32 = arith.constant 0 : i32
    %c0_i32_0 = arith.constant 0 : i32
    %c0_i32_1 = arith.constant 0 : i32
    return %c0_i32, %c0_i32_0 : i32, i32
  }
  func.func @transform_2(%arg0: i32) -> (i32, i32) {
    %c0_i32 = arith.constant 0 : i32
    %c0_i32_0 = arith.constant 0 : i32
    return %arg0, %c0_i32 : i32, i32
  }
  func.func @transform_3(%arg0: i32) -> (i32, i32, i32) {
    %c0_i32 = arith.constant 0 : i32
    %c0_i32_0 = arith.constant 0 : i32
    %c0_i32_1 = arith.constant 0 : i32
    return %arg0, %c0_i32, %c0_i32_0 : i32, i32, i32
  }
}

module attributes {stable_mosaic.version = 11 : i64} {
  func.func @conv2_kernel(%arg0: i32, %arg1: memref<4x9x9x128xbf16, #tpu.memory_space<vmem>>, %arg2: memref<9x128x128xbf16, #tpu.memory_space<vmem>>, %arg3: memref<1x128xf32, #tpu.memory_space<vmem>>, %arg4: memref<1x128xf32, #tpu.memory_space<vmem>>, %arg5: memref<1x64x128xbf16, #tpu.memory_space<vmem>>, %arg6: memref<1x2x128xf32, #tpu.memory_space<vmem>>, %arg7: memref<4x9x9x128xbf16, #tpu.memory_space<vmem>>) attributes {dimension_semantics = [#tpu.dimension_semantics<parallel>], iteration_bounds = array<i64: 2>, scalar_prefetch = 0 : i64, scratch_operands = 1 : i64, tpu.core_type = #tpu.core_type<tc>, window_params = [{transform_indices = @transform_0, window_bounds = array<i64: 4, 9, 9, 128>}, {pipeline_mode = #tpu.pipeline_mode<synchronous>, transform_indices = @transform_1, window_bounds = array<i64: 9, 128, 128>}, {pipeline_mode = #tpu.pipeline_mode<synchronous>, transform_indices = @transform_2, window_bounds = array<i64: 1, 128>}, {pipeline_mode = #tpu.pipeline_mode<synchronous>, transform_indices = @transform_3, window_bounds = array<i64: 1, 128>}, {transform_indices = @transform_4, window_bounds = array<i64: 1, 64, 128>}, {transform_indices = @transform_5, window_bounds = array<i64: 1, 2, 128>}]} {
    %c0 = arith.constant 0 : index
    %c0_0 = arith.constant 0 : index
    %0 = vector.load %arg3[%c0, %c0_0] : memref<1x128xf32, #tpu.memory_space<vmem>>, vector<1x128xf32>
    %1 = vector.shape_cast %0 : vector<1x128xf32> to vector<1x1x128xf32>
    %c0_1 = arith.constant 0 : index
    %c0_2 = arith.constant 0 : index
    %2 = vector.load %arg4[%c0_1, %c0_2] : memref<1x128xf32, #tpu.memory_space<vmem>>, vector<1x128xf32>
    %3 = vector.shape_cast %2 : vector<1x128xf32> to vector<1x1x128xf32>
    %cst = arith.constant 0.000000e+00 : bf16
    %4 = vector.broadcast %cst : bf16 to vector<4x9x9x128xbf16>
    %c0_3 = arith.constant 0 : index
    %c0_4 = arith.constant 0 : index
    %c0_5 = arith.constant 0 : index
    %c0_6 = arith.constant 0 : index
    %5 = vector.load %arg7[%c0_3, %c0_4, %c0_5, %c0_6] : memref<4x9x9x128xbf16, #tpu.memory_space<vmem>>, vector<4x9x9x128xbf16>
    tpu.vector_store %arg7[%c0_3, %c0_4, %c0_5, %c0_6], %4 {strides = array<i32>} : memref<4x9x9x128xbf16, #tpu.memory_space<vmem>>, vector<4x9x9x128xbf16>,
    %c0_7 = arith.constant 0 : index
    %c1 = arith.constant 1 : index
    %c1_8 = arith.constant 1 : index
    %c0_9 = arith.constant 0 : index
    %6 = vector.load %arg1[%c0_7, %c1, %c1_8, %c0_9] : memref<4x9x9x128xbf16, #tpu.memory_space<vmem>>, vector<1x8x8x128xbf16>
    %7 = vector.shape_cast %6 : vector<1x8x8x128xbf16> to vector<8x8x128xbf16>
    %8 = arith.extf %7 : vector<8x8x128xbf16> to vector<8x8x128xf32>
    %9 = vector.broadcast %1 : vector<1x1x128xf32> to vector<8x8x128xf32>
    %10 = arith.mulf %8, %9 : vector<8x8x128xf32>
    %11 = vector.broadcast %3 : vector<1x1x128xf32> to vector<8x8x128xf32>
    %12 = arith.addf %10, %11 : vector<8x8x128xf32>
    %cst_10 = arith.constant 0.000000e+00 : f32
    %13 = vector.broadcast %cst_10 : f32 to vector<8x8x128xf32>
    %14 = arith.maximumf %12, %13 : vector<8x8x128xf32>
    %15 = arith.truncf %14 : vector<8x8x128xf32> to vector<8x8x128xbf16>
    %c0_11 = arith.constant 0 : index
    %c1_12 = arith.constant 1 : index
    %c1_13 = arith.constant 1 : index
    %c0_14 = arith.constant 0 : index
    %16 = vector.load %arg7[%c0_11, %c1_12, %c1_13, %c0_14] : memref<4x9x9x128xbf16, #tpu.memory_space<vmem>>, vector<1x8x8x128xbf16>
    %17 = vector.shape_cast %16 : vector<1x8x8x128xbf16> to vector<8x8x128xbf16>
    %18 = vector.shape_cast %15 : vector<8x8x128xbf16> to vector<1x8x8x128xbf16>
    tpu.vector_store %arg7[%c0_11, %c1_12, %c1_13, %c0_14], %18 {strides = array<i32>} : memref<4x9x9x128xbf16, #tpu.memory_space<vmem>>, vector<1x8x8x128xbf16>,
    %c1_15 = arith.constant 1 : index
    %c1_16 = arith.constant 1 : index
    %c0_17 = arith.constant 0 : index
    %c0_18 = arith.constant 0 : index
    %19 = vector.load %arg1[%c1_15, %c1_16, %c0_17, %c0_18] : memref<4x9x9x128xbf16, #tpu.memory_space<vmem>>, vector<1x8x8x128xbf16>
    %20 = vector.shape_cast %19 : vector<1x8x8x128xbf16> to vector<8x8x128xbf16>
    %21 = arith.extf %20 : vector<8x8x128xbf16> to vector<8x8x128xf32>
    %22 = vector.broadcast %1 : vector<1x1x128xf32> to vector<8x8x128xf32>
    %23 = arith.mulf %21, %22 : vector<8x8x128xf32>
    %24 = vector.broadcast %3 : vector<1x1x128xf32> to vector<8x8x128xf32>
    %25 = arith.addf %23, %24 : vector<8x8x128xf32>
    %cst_19 = arith.constant 0.000000e+00 : f32
    %26 = vector.broadcast %cst_19 : f32 to vector<8x8x128xf32>
    %27 = arith.maximumf %25, %26 : vector<8x8x128xf32>
    %28 = arith.truncf %27 : vector<8x8x128xf32> to vector<8x8x128xbf16>
    %c1_20 = arith.constant 1 : index
    %c1_21 = arith.constant 1 : index
    %c0_22 = arith.constant 0 : index
    %c0_23 = arith.constant 0 : index
    %29 = vector.load %arg7[%c1_20, %c1_21, %c0_22, %c0_23] : memref<4x9x9x128xbf16, #tpu.memory_space<vmem>>, vector<1x8x8x128xbf16>
    %30 = vector.shape_cast %29 : vector<1x8x8x128xbf16> to vector<8x8x128xbf16>
    %31 = vector.shape_cast %28 : vector<8x8x128xbf16> to vector<1x8x8x128xbf16>
    tpu.vector_store %arg7[%c1_20, %c1_21, %c0_22, %c0_23], %31 {strides = array<i32>} : memref<4x9x9x128xbf16, #tpu.memory_space<vmem>>, vector<1x8x8x128xbf16>,
    %c2 = arith.constant 2 : index
    %c0_24 = arith.constant 0 : index
    %c1_25 = arith.constant 1 : index
    %c0_26 = arith.constant 0 : index
    %32 = vector.load %arg1[%c2, %c0_24, %c1_25, %c0_26] : memref<4x9x9x128xbf16, #tpu.memory_space<vmem>>, vector<1x8x8x128xbf16>
    %33 = vector.shape_cast %32 : vector<1x8x8x128xbf16> to vector<8x8x128xbf16>
    %34 = arith.extf %33 : vector<8x8x128xbf16> to vector<8x8x128xf32>
    %35 = vector.broadcast %1 : vector<1x1x128xf32> to vector<8x8x128xf32>
    %36 = arith.mulf %34, %35 : vector<8x8x128xf32>
    %37 = vector.broadcast %3 : vector<1x1x128xf32> to vector<8x8x128xf32>
    %38 = arith.addf %36, %37 : vector<8x8x128xf32>
    %cst_27 = arith.constant 0.000000e+00 : f32
    %39 = vector.broadcast %cst_27 : f32 to vector<8x8x128xf32>
    %40 = arith.maximumf %38, %39 : vector<8x8x128xf32>
    %41 = arith.truncf %40 : vector<8x8x128xf32> to vector<8x8x128xbf16>
    %c2_28 = arith.constant 2 : index
    %c0_29 = arith.constant 0 : index
    %c1_30 = arith.constant 1 : index
    %c0_31 = arith.constant 0 : index
    %42 = vector.load %arg7[%c2_28, %c0_29, %c1_30, %c0_31] : memref<4x9x9x128xbf16, #tpu.memory_space<vmem>>, vector<1x8x8x128xbf16>
    %43 = vector.shape_cast %42 : vector<1x8x8x128xbf16> to vector<8x8x128xbf16>
    %44 = vector.shape_cast %41 : vector<8x8x128xbf16> to vector<1x8x8x128xbf16>
    tpu.vector_store %arg7[%c2_28, %c0_29, %c1_30, %c0_31], %44 {strides = array<i32>} : memref<4x9x9x128xbf16, #tpu.memory_space<vmem>>, vector<1x8x8x128xbf16>,
    %c3 = arith.constant 3 : index
    %c0_32 = arith.constant 0 : index
    %c0_33 = arith.constant 0 : index
    %c0_34 = arith.constant 0 : index
    %45 = vector.load %arg1[%c3, %c0_32, %c0_33, %c0_34] : memref<4x9x9x128xbf16, #tpu.memory_space<vmem>>, vector<1x8x8x128xbf16>
    %46 = vector.shape_cast %45 : vector<1x8x8x128xbf16> to vector<8x8x128xbf16>
    %47 = arith.extf %46 : vector<8x8x128xbf16> to vector<8x8x128xf32>
    %48 = vector.broadcast %1 : vector<1x1x128xf32> to vector<8x8x128xf32>
    %49 = arith.mulf %47, %48 : vector<8x8x128xf32>
    %50 = vector.broadcast %3 : vector<1x1x128xf32> to vector<8x8x128xf32>
    %51 = arith.addf %49, %50 : vector<8x8x128xf32>
    %cst_35 = arith.constant 0.000000e+00 : f32
    %52 = vector.broadcast %cst_35 : f32 to vector<8x8x128xf32>
    %53 = arith.maximumf %51, %52 : vector<8x8x128xf32>
    %54 = arith.truncf %53 : vector<8x8x128xf32> to vector<8x8x128xbf16>
    %c3_36 = arith.constant 3 : index
    %c0_37 = arith.constant 0 : index
    %c0_38 = arith.constant 0 : index
    %c0_39 = arith.constant 0 : index
    %55 = vector.load %arg7[%c3_36, %c0_37, %c0_38, %c0_39] : memref<4x9x9x128xbf16, #tpu.memory_space<vmem>>, vector<1x8x8x128xbf16>
    %56 = vector.shape_cast %55 : vector<1x8x8x128xbf16> to vector<8x8x128xbf16>
    %57 = vector.shape_cast %54 : vector<8x8x128xbf16> to vector<1x8x8x128xbf16>
    tpu.vector_store %arg7[%c3_36, %c0_37, %c0_38, %c0_39], %57 {strides = array<i32>} : memref<4x9x9x128xbf16, #tpu.memory_space<vmem>>, vector<1x8x8x128xbf16>,
    %cst_40 = arith.constant 0.000000e+00 : f32
    %58 = vector.broadcast %cst_40 : f32 to vector<1x128xf32>
    %cst_41 = arith.constant 0.000000e+00 : f32
    %59 = vector.broadcast %cst_41 : f32 to vector<1x128xf32>
    %cst_42 = arith.constant 0.000000e+00 : f32
    %60 = vector.broadcast %cst_42 : f32 to vector<64x128xf32>
    %c0_43 = arith.constant 0 : index
    %c0_44 = arith.constant 0 : index
    %c0_45 = arith.constant 0 : index
    %c0_46 = arith.constant 0 : index
    %61 = vector.load %arg7[%c0_43, %c0_44, %c0_45, %c0_46] : memref<4x9x9x128xbf16, #tpu.memory_space<vmem>>, vector<1x8x8x128xbf16>
    %62 = vector.shape_cast %61 : vector<1x8x8x128xbf16> to vector<8x8x128xbf16>
    %63 = vector.shape_cast %62 : vector<8x8x128xbf16> to vector<64x128xbf16>
    %c0_47 = arith.constant 0 : index
    %c0_48 = arith.constant 0 : index
    %c0_49 = arith.constant 0 : index
    %64 = vector.load %arg2[%c0_47, %c0_48, %c0_49] : memref<9x128x128xbf16, #tpu.memory_space<vmem>>, vector<1x128x128xbf16>
    %65 = vector.shape_cast %64 : vector<1x128x128xbf16> to vector<128x128xbf16>
    %cst_50 = arith.constant dense<0.000000e+00> : vector<64x128xf32>
    %66 = tpu.matmul %63, %65, %cst_50 {dimension_numbers = #tpu.dot_dimension_numbers<[1], [0], [0], [1], [0, 0, 1, 1], [], []>} : vector<64x128xbf16>, vector<128x128xbf16>, vector<64x128xf32> -> vector<64x128xf32>
    %67 = arith.addf %60, %66 : vector<64x128xf32>
    %c1_51 = arith.constant 1 : index
    %c0_52 = arith.constant 0 : index
    %c0_53 = arith.constant 0 : index
    %c0_54 = arith.constant 0 : index
    %68 = vector.load %arg7[%c1_51, %c0_52, %c0_53, %c0_54] : memref<4x9x9x128xbf16, #tpu.memory_space<vmem>>, vector<1x8x8x128xbf16>
    %69 = vector.shape_cast %68 : vector<1x8x8x128xbf16> to vector<8x8x128xbf16>
    %70 = vector.shape_cast %69 : vector<8x8x128xbf16> to vector<64x128xbf16>
    %c1_55 = arith.constant 1 : index
    %c0_56 = arith.constant 0 : index
    %c0_57 = arith.constant 0 : index
    %71 = vector.load %arg2[%c1_55, %c0_56, %c0_57] : memref<9x128x128xbf16, #tpu.memory_space<vmem>>, vector<1x128x128xbf16>
    %72 = vector.shape_cast %71 : vector<1x128x128xbf16> to vector<128x128xbf16>
    %cst_58 = arith.constant dense<0.000000e+00> : vector<64x128xf32>
    %73 = tpu.matmul %70, %72, %cst_58 {dimension_numbers = #tpu.dot_dimension_numbers<[1], [0], [0], [1], [0, 0, 1, 1], [], []>} : vector<64x128xbf16>, vector<128x128xbf16>, vector<64x128xf32> -> vector<64x128xf32>
    %74 = arith.addf %67, %73 : vector<64x128xf32>
    %c0_59 = arith.constant 0 : index
    %c0_60 = arith.constant 0 : index
    %c1_61 = arith.constant 1 : index
    %c0_62 = arith.constant 0 : index
    %75 = vector.load %arg7[%c0_59, %c0_60, %c1_61, %c0_62] : memref<4x9x9x128xbf16, #tpu.memory_space<vmem>>, vector<1x8x8x128xbf16>
    %76 = vector.shape_cast %75 : vector<1x8x8x128xbf16> to vector<8x8x128xbf16>
    %77 = vector.shape_cast %76 : vector<8x8x128xbf16> to vector<64x128xbf16>
    %c2_63 = arith.constant 2 : index
    %c0_64 = arith.constant 0 : index
    %c0_65 = arith.constant 0 : index
    %78 = vector.load %arg2[%c2_63, %c0_64, %c0_65] : memref<9x128x128xbf16, #tpu.memory_space<vmem>>, vector<1x128x128xbf16>
    %79 = vector.shape_cast %78 : vector<1x128x128xbf16> to vector<128x128xbf16>
    %cst_66 = arith.constant dense<0.000000e+00> : vector<64x128xf32>
    %80 = tpu.matmul %77, %79, %cst_66 {dimension_numbers = #tpu.dot_dimension_numbers<[1], [0], [0], [1], [0, 0, 1, 1], [], []>} : vector<64x128xbf16>, vector<128x128xbf16>, vector<64x128xf32> -> vector<64x128xf32>
    %81 = arith.addf %74, %80 : vector<64x128xf32>
    %c2_67 = arith.constant 2 : index
    %c0_68 = arith.constant 0 : index
    %c0_69 = arith.constant 0 : index
    %c0_70 = arith.constant 0 : index
    %82 = vector.load %arg7[%c2_67, %c0_68, %c0_69, %c0_70] : memref<4x9x9x128xbf16, #tpu.memory_space<vmem>>, vector<1x8x8x128xbf16>
    %83 = vector.shape_cast %82 : vector<1x8x8x128xbf16> to vector<8x8x128xbf16>
    %84 = vector.shape_cast %83 : vector<8x8x128xbf16> to vector<64x128xbf16>
    %c3_71 = arith.constant 3 : index
    %c0_72 = arith.constant 0 : index
    %c0_73 = arith.constant 0 : index
    %85 = vector.load %arg2[%c3_71, %c0_72, %c0_73] : memref<9x128x128xbf16, #tpu.memory_space<vmem>>, vector<1x128x128xbf16>
    %86 = vector.shape_cast %85 : vector<1x128x128xbf16> to vector<128x128xbf16>
    %cst_74 = arith.constant dense<0.000000e+00> : vector<64x128xf32>
    %87 = tpu.matmul %84, %86, %cst_74 {dimension_numbers = #tpu.dot_dimension_numbers<[1], [0], [0], [1], [0, 0, 1, 1], [], []>} : vector<64x128xbf16>, vector<128x128xbf16>, vector<64x128xf32> -> vector<64x128xf32>
    %88 = arith.addf %81, %87 : vector<64x128xf32>
    %c3_75 = arith.constant 3 : index
    %c0_76 = arith.constant 0 : index
    %c0_77 = arith.constant 0 : index
    %c0_78 = arith.constant 0 : index
    %89 = vector.load %arg7[%c3_75, %c0_76, %c0_77, %c0_78] : memref<4x9x9x128xbf16, #tpu.memory_space<vmem>>, vector<1x8x8x128xbf16>
    %90 = vector.shape_cast %89 : vector<1x8x8x128xbf16> to vector<8x8x128xbf16>
    %91 = vector.shape_cast %90 : vector<8x8x128xbf16> to vector<64x128xbf16>
    %c4 = arith.constant 4 : index
    %c0_79 = arith.constant 0 : index
    %c0_80 = arith.constant 0 : index
    %92 = vector.load %arg2[%c4, %c0_79, %c0_80] : memref<9x128x128xbf16, #tpu.memory_space<vmem>>, vector<1x128x128xbf16>
    %93 = vector.shape_cast %92 : vector<1x128x128xbf16> to vector<128x128xbf16>
    %cst_81 = arith.constant dense<0.000000e+00> : vector<64x128xf32>
    %94 = tpu.matmul %91, %93, %cst_81 {dimension_numbers = #tpu.dot_dimension_numbers<[1], [0], [0], [1], [0, 0, 1, 1], [], []>} : vector<64x128xbf16>, vector<128x128xbf16>, vector<64x128xf32> -> vector<64x128xf32>
    %95 = arith.addf %88, %94 : vector<64x128xf32>
    %c2_82 = arith.constant 2 : index
    %c0_83 = arith.constant 0 : index
    %c1_84 = arith.constant 1 : index
    %c0_85 = arith.constant 0 : index
    %96 = vector.load %arg7[%c2_82, %c0_83, %c1_84, %c0_85] : memref<4x9x9x128xbf16, #tpu.memory_space<vmem>>, vector<1x8x8x128xbf16>
    %97 = vector.shape_cast %96 : vector<1x8x8x128xbf16> to vector<8x8x128xbf16>
    %98 = vector.shape_cast %97 : vector<8x8x128xbf16> to vector<64x128xbf16>
    %c5 = arith.constant 5 : index
    %c0_86 = arith.constant 0 : index
    %c0_87 = arith.constant 0 : index
    %99 = vector.load %arg2[%c5, %c0_86, %c0_87] : memref<9x128x128xbf16, #tpu.memory_space<vmem>>, vector<1x128x128xbf16>
    %100 = vector.shape_cast %99 : vector<1x128x128xbf16> to vector<128x128xbf16>
    %cst_88 = arith.constant dense<0.000000e+00> : vector<64x128xf32>
    %101 = tpu.matmul %98, %100, %cst_88 {dimension_numbers = #tpu.dot_dimension_numbers<[1], [0], [0], [1], [0, 0, 1, 1], [], []>} : vector<64x128xbf16>, vector<128x128xbf16>, vector<64x128xf32> -> vector<64x128xf32>
    %102 = arith.addf %95, %101 : vector<64x128xf32>
    %c0_89 = arith.constant 0 : index
    %c1_90 = arith.constant 1 : index
    %c0_91 = arith.constant 0 : index
    %c0_92 = arith.constant 0 : index
    %103 = vector.load %arg7[%c0_89, %c1_90, %c0_91, %c0_92] : memref<4x9x9x128xbf16, #tpu.memory_space<vmem>>, vector<1x8x8x128xbf16>
    %104 = vector.shape_cast %103 : vector<1x8x8x128xbf16> to vector<8x8x128xbf16>
    %105 = vector.shape_cast %104 : vector<8x8x128xbf16> to vector<64x128xbf16>
    %c6 = arith.constant 6 : index
    %c0_93 = arith.constant 0 : index
    %c0_94 = arith.constant 0 : index
    %106 = vector.load %arg2[%c6, %c0_93, %c0_94] : memref<9x128x128xbf16, #tpu.memory_space<vmem>>, vector<1x128x128xbf16>
    %107 = vector.shape_cast %106 : vector<1x128x128xbf16> to vector<128x128xbf16>
    %cst_95 = arith.constant dense<0.000000e+00> : vector<64x128xf32>
    %108 = tpu.matmul %105, %107, %cst_95 {dimension_numbers = #tpu.dot_dimension_numbers<[1], [0], [0], [1], [0, 0, 1, 1], [], []>} : vector<64x128xbf16>, vector<128x128xbf16>, vector<64x128xf32> -> vector<64x128xf32>
    %109 = arith.addf %102, %108 : vector<64x128xf32>
    %c1_96 = arith.constant 1 : index
    %c1_97 = arith.constant 1 : index
    %c0_98 = arith.constant 0 : index
    %c0_99 = arith.constant 0 : index
    %110 = vector.load %arg7[%c1_96, %c1_97, %c0_98, %c0_99] : memref<4x9x9x128xbf16, #tpu.memory_space<vmem>>, vector<1x8x8x128xbf16>
    %111 = vector.shape_cast %110 : vector<1x8x8x128xbf16> to vector<8x8x128xbf16>
    %112 = vector.shape_cast %111 : vector<8x8x128xbf16> to vector<64x128xbf16>
    %c7 = arith.constant 7 : index
    %c0_100 = arith.constant 0 : index
    %c0_101 = arith.constant 0 : index
    %113 = vector.load %arg2[%c7, %c0_100, %c0_101] : memref<9x128x128xbf16, #tpu.memory_space<vmem>>, vector<1x128x128xbf16>
    %114 = vector.shape_cast %113 : vector<1x128x128xbf16> to vector<128x128xbf16>
    %cst_102 = arith.constant dense<0.000000e+00> : vector<64x128xf32>
    %115 = tpu.matmul %112, %114, %cst_102 {dimension_numbers = #tpu.dot_dimension_numbers<[1], [0], [0], [1], [0, 0, 1, 1], [], []>} : vector<64x128xbf16>, vector<128x128xbf16>, vector<64x128xf32> -> vector<64x128xf32>
    %116 = arith.addf %109, %115 : vector<64x128xf32>
    %c0_103 = arith.constant 0 : index
    %c1_104 = arith.constant 1 : index
    %c1_105 = arith.constant 1 : index
    %c0_106 = arith.constant 0 : index
    %117 = vector.load %arg7[%c0_103, %c1_104, %c1_105, %c0_106] : memref<4x9x9x128xbf16, #tpu.memory_space<vmem>>, vector<1x8x8x128xbf16>
    %118 = vector.shape_cast %117 : vector<1x8x8x128xbf16> to vector<8x8x128xbf16>
    %119 = vector.shape_cast %118 : vector<8x8x128xbf16> to vector<64x128xbf16>
    %c8 = arith.constant 8 : index
    %c0_107 = arith.constant 0 : index
    %c0_108 = arith.constant 0 : index
    %120 = vector.load %arg2[%c8, %c0_107, %c0_108] : memref<9x128x128xbf16, #tpu.memory_space<vmem>>, vector<1x128x128xbf16>
    %121 = vector.shape_cast %120 : vector<1x128x128xbf16> to vector<128x128xbf16>
    %cst_109 = arith.constant dense<0.000000e+00> : vector<64x128xf32>
    %122 = tpu.matmul %119, %121, %cst_109 {dimension_numbers = #tpu.dot_dimension_numbers<[1], [0], [0], [1], [0, 0, 1, 1], [], []>} : vector<64x128xbf16>, vector<128x128xbf16>, vector<64x128xf32> -> vector<64x128xf32>
    %123 = arith.addf %116, %122 : vector<64x128xf32>
    %124 = arith.truncf %123 : vector<64x128xf32> to vector<64x128xbf16>
    %c0_110 = arith.constant 0 : index
    %c0_111 = arith.constant 0 : index
    %c0_112 = arith.constant 0 : index
    %125 = vector.load %arg5[%c0_110, %c0_111, %c0_112] : memref<1x64x128xbf16, #tpu.memory_space<vmem>>, vector<1x64x128xbf16>
    %126 = vector.shape_cast %125 : vector<1x64x128xbf16> to vector<64x128xbf16>
    %127 = vector.shape_cast %124 : vector<64x128xbf16> to vector<1x64x128xbf16>
    tpu.vector_store %arg5[%c0_110, %c0_111, %c0_112], %127 {strides = array<i32>} : memref<1x64x128xbf16, #tpu.memory_space<vmem>>, vector<1x64x128xbf16>,
    %cst_113 = arith.constant dense<0.000000e+00> : vector<128xf32>
    %128 = vector.multi_reduction <add>, %123, %cst_113 [0] : vector<64x128xf32> to vector<128xf32>
    %129 = vector.shape_cast %128 : vector<128xf32> to vector<1x128xf32>
    %130 = arith.addf %58, %129 : vector<1x128xf32>
    %131 = arith.mulf %123, %123 : vector<64x128xf32>
    %cst_114 = arith.constant dense<0.000000e+00> : vector<128xf32>
    %132 = vector.multi_reduction <add>, %131, %cst_114 [0] : vector<64x128xf32> to vector<128xf32>
    %133 = vector.shape_cast %132 : vector<128xf32> to vector<1x128xf32>
    %134 = arith.addf %59, %133 : vector<1x128xf32>
    %135 = tpu.concatenate %130, %134 in 0 : vector<1x128xf32>, vector<1x128xf32> -> vector<2x128xf32>
    %c0_115 = arith.constant 0 : index
    %c0_116 = arith.constant 0 : index
    %c0_117 = arith.constant 0 : index
    %136 = vector.load %arg6[%c0_115, %c0_116, %c0_117] : memref<1x2x128xf32, #tpu.memory_space<vmem>>, vector<1x2x128xf32>
    %137 = vector.shape_cast %136 : vector<1x2x128xf32> to vector<2x128xf32>
    %138 = vector.shape_cast %135 : vector<2x128xf32> to vector<1x2x128xf32>
    tpu.vector_store %arg6[%c0_115, %c0_116, %c0_117], %138 {strides = array<i32>} : memref<1x2x128xf32, #tpu.memory_space<vmem>>, vector<1x2x128xf32>,
    return
  }
  func.func @transform_0(%arg0: i32) -> (i32, i32, i32, i32) {
    %c0_i32 = arith.constant 0 : i32
    %c0_i32_0 = arith.constant 0 : i32
    %c0_i32_1 = arith.constant 0 : i32
    %c0_i32_2 = arith.constant 0 : i32
    return %arg0, %c0_i32, %c0_i32_0, %c0_i32_1 : i32, i32, i32, i32
  }
  func.func @transform_1(%arg0: i32) -> (i32, i32, i32) {
    %c0_i32 = arith.constant 0 : i32
    %c0_i32_0 = arith.constant 0 : i32
    %c0_i32_1 = arith.constant 0 : i32
    %c0_i32_2 = arith.constant 0 : i32
    return %c0_i32, %c0_i32_0, %c0_i32_1 : i32, i32, i32
  }
  func.func @transform_2(%arg0: i32) -> (i32, i32) {
    %c0_i32 = arith.constant 0 : i32
    %c0_i32_0 = arith.constant 0 : i32
    %c0_i32_1 = arith.constant 0 : i32
    return %c0_i32, %c0_i32_0 : i32, i32
  }
  func.func @transform_3(%arg0: i32) -> (i32, i32) {
    %c0_i32 = arith.constant 0 : i32
    %c0_i32_0 = arith.constant 0 : i32
    %c0_i32_1 = arith.constant 0 : i32
    return %c0_i32, %c0_i32_0 : i32, i32
  }
  func.func @transform_4(%arg0: i32) -> (i32, i32, i32) {
    %c0_i32 = arith.constant 0 : i32
    %c0_i32_0 = arith.constant 0 : i32
    %c0_i32_1 = arith.constant 0 : i32
    return %arg0, %c0_i32, %c0_i32_0 : i32, i32, i32
  }
  func.func @transform_5(%arg0: i32) -> (i32, i32, i32) {
    %c0_i32 = arith.constant 0 : i32
    %c0_i32_0 = arith.constant 0 : i32
    %c0_i32_1 = arith.constant 0 : i32
    return %arg0, %c0_i32, %c0_i32_0 : i32, i32, i32
  }
}

module attributes {stable_mosaic.version = 11 : i64} {
  func.func @bn_mm_ds_kernel(%arg0: i32, %arg1: memref<512x128xbf16, #tpu.memory_space<vmem>>, %arg2: memref<1x128xf32, #tpu.memory_space<vmem>>, %arg3: memref<1x128xf32, #tpu.memory_space<vmem>>, %arg4: memref<128x128xbf16, #tpu.memory_space<vmem>>, %arg5: memref<512x128xbf16, #tpu.memory_space<vmem>>, %arg6: memref<128x128xbf16, #tpu.memory_space<vmem>>, %arg7: memref<512x128xbf16, #tpu.memory_space<vmem>>, %arg8: memref<512x128xbf16, #tpu.memory_space<vmem>>, %arg9: memref<1x2x128xf32, #tpu.memory_space<vmem>>, %arg10: memref<1x2x128xf32, #tpu.memory_space<vmem>>) attributes {dimension_semantics = [#tpu.dimension_semantics<parallel>], iteration_bounds = array<i64: 1>, scalar_prefetch = 0 : i64, scratch_operands = 0 : i64, tpu.core_type = #tpu.core_type<tc>, window_params = [{transform_indices = @transform_0, window_bounds = array<i64: 512, 128>}, {pipeline_mode = #tpu.pipeline_mode<synchronous>, transform_indices = @transform_1, window_bounds = array<i64: 1, 128>}, {pipeline_mode = #tpu.pipeline_mode<synchronous>, transform_indices = @transform_2, window_bounds = array<i64: 1, 128>}, {pipeline_mode = #tpu.pipeline_mode<synchronous>, transform_indices = @transform_3, window_bounds = array<i64: 128, 128>}, {transform_indices = @transform_4, window_bounds = array<i64: 512, 128>}, {pipeline_mode = #tpu.pipeline_mode<synchronous>, transform_indices = @transform_5, window_bounds = array<i64: 128, 128>}, {transform_indices = @transform_6, window_bounds = array<i64: 512, 128>}, {transform_indices = @transform_7, window_bounds = array<i64: 512, 128>}, {transform_indices = @transform_8, window_bounds = array<i64: 1, 2, 128>}, {transform_indices = @transform_9, window_bounds = array<i64: 1, 2, 128>}]} {
    %c512_i32 = arith.constant 512 : i32
    %0 = arith.muli %arg0, %c512_i32 : i32
    %1 = tpu.iota {dimensions = array<i32: 0>} : vector<512x1xi32>
    %2 = vector.broadcast %0 : i32 to vector<512x1xi32>
    %3 = arith.addi %2, %1 : vector<512x1xi32>
    %c0 = arith.constant 0 : index
    %c0_0 = arith.constant 0 : index
    %4 = vector.load %arg1[%c0, %c0_0] : memref<512x128xbf16, #tpu.memory_space<vmem>>, vector<512x128xbf16>
    %5 = arith.extf %4 : vector<512x128xbf16> to vector<512x128xf32>
    %c0_1 = arith.constant 0 : index
    %c0_2 = arith.constant 0 : index
    %6 = vector.load %arg2[%c0_1, %c0_2] : memref<1x128xf32, #tpu.memory_space<vmem>>, vector<1x128xf32>
    %7 = vector.broadcast %6 : vector<1x128xf32> to vector<512x128xf32>
    %8 = arith.mulf %5, %7 : vector<512x128xf32>
    %c0_3 = arith.constant 0 : index
    %c0_4 = arith.constant 0 : index
    %9 = vector.load %arg3[%c0_3, %c0_4] : memref<1x128xf32, #tpu.memory_space<vmem>>, vector<1x128xf32>
    %10 = vector.broadcast %9 : vector<1x128xf32> to vector<512x128xf32>
    %11 = arith.addf %8, %10 : vector<512x128xf32>
    %cst = arith.constant 0.000000e+00 : f32
    %12 = vector.broadcast %cst : f32 to vector<512x128xf32>
    %13 = arith.maximumf %11, %12 : vector<512x128xf32>
    %c128_i32 = arith.constant 128 : i32
    %14 = vector.broadcast %c128_i32 : i32 to vector<512x1xi32>
    %15 = arith.cmpi slt, %3, %14 : vector<512x1xi32>
    %cst_5 = arith.constant 0.000000e+00 : f32
    %16 = vector.shape_cast %15 : vector<512x1xi1> to vector<512x1xi1>
    %17 = vector.broadcast %16 : vector<512x1xi1> to vector<512x128xi1>
    %18 = vector.broadcast %cst_5 : f32 to vector<512x128xf32>
    %19 = arith.select %17, %13, %18 : vector<512x128xi1>, vector<512x128xf32>
    %20 = arith.truncf %19 : vector<512x128xf32> to vector<512x128xbf16>
    %c0_6 = arith.constant 0 : index
    %c0_7 = arith.constant 0 : index
    %21 = vector.load %arg4[%c0_6, %c0_7] : memref<128x128xbf16, #tpu.memory_space<vmem>>, vector<128x128xbf16>
    %cst_8 = arith.constant dense<0.000000e+00> : vector<512x128xf32>
    %22 = tpu.matmul %20, %21, %cst_8 {dimension_numbers = #tpu.dot_dimension_numbers<[1], [0], [0], [1], [0, 0, 1, 1], [], []>} : vector<512x128xbf16>, vector<128x128xbf16>, vector<512x128xf32> -> vector<512x128xf32>
    %23 = arith.truncf %22 : vector<512x128xf32> to vector<512x128xbf16>
    %c0_9 = arith.constant 0 : index
    %c0_10 = arith.constant 0 : index
    %24 = vector.load %arg7[%c0_9, %c0_10] : memref<512x128xbf16, #tpu.memory_space<vmem>>, vector<512x128xbf16>
    tpu.vector_store %arg7[%c0_9, %c0_10], %23 {strides = array<i32>} : memref<512x128xbf16, #tpu.memory_space<vmem>>, vector<512x128xbf16>,
    %cst_11 = arith.constant dense<0.000000e+00> : vector<128xf32>
    %25 = vector.multi_reduction <add>, %22, %cst_11 [0] : vector<512x128xf32> to vector<128xf32>
    %26 = vector.shape_cast %25 : vector<128xf32> to vector<1x128xf32>
    %27 = arith.mulf %22, %22 : vector<512x128xf32>
    %cst_12 = arith.constant dense<0.000000e+00> : vector<128xf32>
    %28 = vector.multi_reduction <add>, %27, %cst_12 [0] : vector<512x128xf32> to vector<128xf32>
    %29 = vector.shape_cast %28 : vector<128xf32> to vector<1x128xf32>
    %30 = tpu.concatenate %26, %29 in 0 : vector<1x128xf32>, vector<1x128xf32> -> vector<2x128xf32>
    %c0_13 = arith.constant 0 : index
    %c0_14 = arith.constant 0 : index
    %c0_15 = arith.constant 0 : index
    %31 = vector.load %arg9[%c0_13, %c0_14, %c0_15] : memref<1x2x128xf32, #tpu.memory_space<vmem>>, vector<1x2x128xf32>
    %32 = vector.shape_cast %31 : vector<1x2x128xf32> to vector<2x128xf32>
    %33 = vector.shape_cast %30 : vector<2x128xf32> to vector<1x2x128xf32>
    tpu.vector_store %arg9[%c0_13, %c0_14, %c0_15], %33 {strides = array<i32>} : memref<1x2x128xf32, #tpu.memory_space<vmem>>, vector<1x2x128xf32>,
    %c0_16 = arith.constant 0 : index
    %c0_17 = arith.constant 0 : index
    %34 = vector.load %arg5[%c0_16, %c0_17] : memref<512x128xbf16, #tpu.memory_space<vmem>>, vector<512x128xbf16>
    %c0_18 = arith.constant 0 : index
    %c0_19 = arith.constant 0 : index
    %35 = vector.load %arg6[%c0_18, %c0_19] : memref<128x128xbf16, #tpu.memory_space<vmem>>, vector<128x128xbf16>
    %cst_20 = arith.constant dense<0.000000e+00> : vector<512x128xf32>
    %36 = tpu.matmul %34, %35, %cst_20 {dimension_numbers = #tpu.dot_dimension_numbers<[1], [0], [0], [1], [0, 0, 1, 1], [], []>} : vector<512x128xbf16>, vector<128x128xbf16>, vector<512x128xf32> -> vector<512x128xf32>
    %37 = arith.truncf %36 : vector<512x128xf32> to vector<512x128xbf16>
    %c0_21 = arith.constant 0 : index
    %c0_22 = arith.constant 0 : index
    %38 = vector.load %arg8[%c0_21, %c0_22] : memref<512x128xbf16, #tpu.memory_space<vmem>>, vector<512x128xbf16>
    tpu.vector_store %arg8[%c0_21, %c0_22], %37 {strides = array<i32>} : memref<512x128xbf16, #tpu.memory_space<vmem>>, vector<512x128xbf16>,
    %cst_23 = arith.constant dense<0.000000e+00> : vector<128xf32>
    %39 = vector.multi_reduction <add>, %36, %cst_23 [0] : vector<512x128xf32> to vector<128xf32>
    %40 = vector.shape_cast %39 : vector<128xf32> to vector<1x128xf32>
    %41 = arith.mulf %36, %36 : vector<512x128xf32>
    %cst_24 = arith.constant dense<0.000000e+00> : vector<128xf32>
    %42 = vector.multi_reduction <add>, %41, %cst_24 [0] : vector<512x128xf32> to vector<128xf32>
    %43 = vector.shape_cast %42 : vector<128xf32> to vector<1x128xf32>
    %44 = tpu.concatenate %40, %43 in 0 : vector<1x128xf32>, vector<1x128xf32> -> vector<2x128xf32>
    %c0_25 = arith.constant 0 : index
    %c0_26 = arith.constant 0 : index
    %c0_27 = arith.constant 0 : index
    %45 = vector.load %arg10[%c0_25, %c0_26, %c0_27] : memref<1x2x128xf32, #tpu.memory_space<vmem>>, vector<1x2x128xf32>
    %46 = vector.shape_cast %45 : vector<1x2x128xf32> to vector<2x128xf32>
    %47 = vector.shape_cast %44 : vector<2x128xf32> to vector<1x2x128xf32>
    tpu.vector_store %arg10[%c0_25, %c0_26, %c0_27], %47 {strides = array<i32>} : memref<1x2x128xf32, #tpu.memory_space<vmem>>, vector<1x2x128xf32>,
    return
  }
  func.func @transform_0(%arg0: i32) -> (i32, i32) {
    %c0_i32 = arith.constant 0 : i32
    %c0_i32_0 = arith.constant 0 : i32
    return %arg0, %c0_i32 : i32, i32
  }
  func.func @transform_1(%arg0: i32) -> (i32, i32) {
    %c0_i32 = arith.constant 0 : i32
    %c0_i32_0 = arith.constant 0 : i32
    %c0_i32_1 = arith.constant 0 : i32
    return %c0_i32, %c0_i32_0 : i32, i32
  }
  func.func @transform_2(%arg0: i32) -> (i32, i32) {
    %c0_i32 = arith.constant 0 : i32
    %c0_i32_0 = arith.constant 0 : i32
    %c0_i32_1 = arith.constant 0 : i32
    return %c0_i32, %c0_i32_0 : i32, i32
  }
  func.func @transform_3(%arg0: i32) -> (i32, i32) {
    %c0_i32 = arith.constant 0 : i32
    %c0_i32_0 = arith.constant 0 : i32
    %c0_i32_1 = arith.constant 0 : i32
    return %c0_i32, %c0_i32_0 : i32, i32
  }
  func.func @transform_4(%arg0: i32) -> (i32, i32) {
    %c0_i32 = arith.constant 0 : i32
    %c0_i32_0 = arith.constant 0 : i32
    return %arg0, %c0_i32 : i32, i32
  }
  func.func @transform_5(%arg0: i32) -> (i32, i32) {
    %c0_i32 = arith.constant 0 : i32
    %c0_i32_0 = arith.constant 0 : i32
    %c0_i32_1 = arith.constant 0 : i32
    return %c0_i32, %c0_i32_0 : i32, i32
  }
  func.func @transform_6(%arg0: i32) -> (i32, i32) {
    %c0_i32 = arith.constant 0 : i32
    %c0_i32_0 = arith.constant 0 : i32
    return %arg0, %c0_i32 : i32, i32
  }
  func.func @transform_7(%arg0: i32) -> (i32, i32) {
    %c0_i32 = arith.constant 0 : i32
    %c0_i32_0 = arith.constant 0 : i32
    return %arg0, %c0_i32 : i32, i32
  }
  func.func @transform_8(%arg0: i32) -> (i32, i32, i32) {
    %c0_i32 = arith.constant 0 : i32
    %c0_i32_0 = arith.constant 0 : i32
    %c0_i32_1 = arith.constant 0 : i32
    return %arg0, %c0_i32, %c0_i32_0 : i32, i32, i32
  }
  func.func @transform_9(%arg0: i32) -> (i32, i32, i32) {
    %c0_i32 = arith.constant 0 : i32
    %c0_i32_0 = arith.constant 0 : i32
    %c0_i32_1 = arith.constant 0 : i32
    return %arg0, %c0_i32, %c0_i32_0 : i32, i32, i32
  }
}

module attributes {stable_mosaic.version = 11 : i64} {
  func.func @final_apply_kernel(%arg0: i32, %arg1: memref<512x128xbf16, #tpu.memory_space<vmem>>, %arg2: memref<512x128xbf16, #tpu.memory_space<vmem>>, %arg3: memref<1x128xf32, #tpu.memory_space<vmem>>, %arg4: memref<1x128xf32, #tpu.memory_space<vmem>>, %arg5: memref<1x128xf32, #tpu.memory_space<vmem>>, %arg6: memref<512x128xf32, #tpu.memory_space<vmem>>) attributes {dimension_semantics = [#tpu.dimension_semantics<parallel>], iteration_bounds = array<i64: 1>, scalar_prefetch = 0 : i64, scratch_operands = 0 : i64, tpu.core_type = #tpu.core_type<tc>, window_params = [{transform_indices = @transform_0, window_bounds = array<i64: 512, 128>}, {transform_indices = @transform_1, window_bounds = array<i64: 512, 128>}, {pipeline_mode = #tpu.pipeline_mode<synchronous>, transform_indices = @transform_2, window_bounds = array<i64: 1, 128>}, {pipeline_mode = #tpu.pipeline_mode<synchronous>, transform_indices = @transform_3, window_bounds = array<i64: 1, 128>}, {pipeline_mode = #tpu.pipeline_mode<synchronous>, transform_indices = @transform_4, window_bounds = array<i64: 1, 128>}, {transform_indices = @transform_5, window_bounds = array<i64: 512, 128>}]} {
    %c0 = arith.constant 0 : index
    %c0_0 = arith.constant 0 : index
    %0 = vector.load %arg1[%c0, %c0_0] : memref<512x128xbf16, #tpu.memory_space<vmem>>, vector<512x128xbf16>
    %1 = arith.extf %0 : vector<512x128xbf16> to vector<512x128xf32>
    %c0_1 = arith.constant 0 : index
    %c0_2 = arith.constant 0 : index
    %2 = vector.load %arg3[%c0_1, %c0_2] : memref<1x128xf32, #tpu.memory_space<vmem>>, vector<1x128xf32>
    %3 = vector.broadcast %2 : vector<1x128xf32> to vector<512x128xf32>
    %4 = arith.mulf %1, %3 : vector<512x128xf32>
    %c0_3 = arith.constant 0 : index
    %c0_4 = arith.constant 0 : index
    %5 = vector.load %arg2[%c0_3, %c0_4] : memref<512x128xbf16, #tpu.memory_space<vmem>>, vector<512x128xbf16>
    %6 = arith.extf %5 : vector<512x128xbf16> to vector<512x128xf32>
    %c0_5 = arith.constant 0 : index
    %c0_6 = arith.constant 0 : index
    %7 = vector.load %arg4[%c0_5, %c0_6] : memref<1x128xf32, #tpu.memory_space<vmem>>, vector<1x128xf32>
    %8 = vector.broadcast %7 : vector<1x128xf32> to vector<512x128xf32>
    %9 = arith.mulf %6, %8 : vector<512x128xf32>
    %10 = arith.addf %4, %9 : vector<512x128xf32>
    %c0_7 = arith.constant 0 : index
    %c0_8 = arith.constant 0 : index
    %11 = vector.load %arg5[%c0_7, %c0_8] : memref<1x128xf32, #tpu.memory_space<vmem>>, vector<1x128xf32>
    %12 = vector.broadcast %11 : vector<1x128xf32> to vector<512x128xf32>
    %13 = arith.addf %10, %12 : vector<512x128xf32>
    %cst = arith.constant 0.000000e+00 : f32
    %14 = vector.broadcast %cst : f32 to vector<512x128xf32>
    %15 = arith.maximumf %13, %14 : vector<512x128xf32>
    %c0_9 = arith.constant 0 : index
    %c0_10 = arith.constant 0 : index
    %16 = vector.load %arg6[%c0_9, %c0_10] : memref<512x128xf32, #tpu.memory_space<vmem>>, vector<512x128xf32>
    tpu.vector_store %arg6[%c0_9, %c0_10], %15 {strides = array<i32>} : memref<512x128xf32, #tpu.memory_space<vmem>>, vector<512x128xf32>,
    return
  }
  func.func @transform_0(%arg0: i32) -> (i32, i32) {
    %c0_i32 = arith.constant 0 : i32
    %c0_i32_0 = arith.constant 0 : i32
    return %arg0, %c0_i32 : i32, i32
  }
  func.func @transform_1(%arg0: i32) -> (i32, i32) {
    %c0_i32 = arith.constant 0 : i32
    %c0_i32_0 = arith.constant 0 : i32
    return %arg0, %c0_i32 : i32, i32
  }
  func.func @transform_2(%arg0: i32) -> (i32, i32) {
    %c0_i32 = arith.constant 0 : i32
    %c0_i32_0 = arith.constant 0 : i32
    %c0_i32_1 = arith.constant 0 : i32
    return %c0_i32, %c0_i32_0 : i32, i32
  }
  func.func @transform_3(%arg0: i32) -> (i32, i32) {
    %c0_i32 = arith.constant 0 : i32
    %c0_i32_0 = arith.constant 0 : i32
    %c0_i32_1 = arith.constant 0 : i32
    return %c0_i32, %c0_i32_0 : i32, i32
  }
  func.func @transform_4(%arg0: i32) -> (i32, i32) {
    %c0_i32 = arith.constant 0 : i32
    %c0_i32_0 = arith.constant 0 : i32
    %c0_i32_1 = arith.constant 0 : i32
    return %c0_i32, %c0_i32_0 : i32, i32
  }
  func.func @transform_5(%arg0: i32) -> (i32, i32) {
    %c0_i32 = arith.constant 0 : i32
    %c0_i32_0 = arith.constant 0 : i32
    return %arg0, %c0_i32 : i32, i32
  }
}

</mosaic_0001>

<llo_original>
// kernel: encoder_bottleneck_forward.4
$region0: #{encoder_bottleneck_forward.4}
  #allocation0 [shape = 'u32[]', space=smem, size = 0x4, offset = 0x4, fixed_abs, tag = 'smem constant byte address 0x4 - core index']
  #allocation1 [shape = 'u32[144,128]{1,0:T(1,128)}', space=vmem, size = 0x12000, scoped, tag = 'internal scratch']
  %s0 = inlined_call_operand.vmem [shape: bf16[512,128], index: 0, kind: input, shape index: {}]
  %s1 = inlined_call_operand.vmem [shape: bf16[128,128], index: 1, kind: input, shape index: {}]
  %s2 = inlined_call_operand.vmem [shape: bf16[512,128], index: 2, kind: output, shape index: {0}]
  %s3 = inlined_call_operand.vmem [shape: f32[1,2,128], index: 3, kind: output, shape index: {1}]
  %4 = xla_tuple %s2, %s3
  %s5 = sld [smem:[#allocation0]]
  $region26: #{encoder_bottleneck_forward.4} parent=0
    _
  %s7 = ssub.s32 1, %s5
  %s8 = scalar_select 0, %s7, %s5
  // Predicated region
  $region2: #{encoder_bottleneck_forward.4} parent=0 // pred_check
    _
  $region3: #{encoder_bottleneck_forward.4} parent=0 // pred_check_branch
    %10 = sbr.rel (0) target = $region5
  $region4: #{encoder_bottleneck_forward.4} parent=0 // pred_region
    _
  $region5: #{encoder_bottleneck_forward.4} parent=0 // pred_fallthru
    _
  // Predicated region
  $region6: #{encoder_bottleneck_forward.4} parent=0 // pred_check
    _
  $region7: #{encoder_bottleneck_forward.4} parent=0 // pred_check_branch
    %12 = sbr.rel (0) target = $region9
  $region8: #{encoder_bottleneck_forward.4} parent=0 // pred_region
    _
  $region9: #{encoder_bottleneck_forward.4} parent=0 // pred_fallthru
    _
  %v14 = vld [vmem:[%s0] sm:$0xf]
  %v15 = vld [vmem:[%s0 + $0x4] sm:$0xf]
  %v16 = vld [vmem:[%s0 + $0x8] sm:$0xf]
  %v17 = vld [vmem:[%s0 + $0xc] sm:$0xf]
  %v18 = vld [vmem:[%s0 + $0x10] sm:$0xf]
  %v19 = vld [vmem:[%s0 + $0x14] sm:$0xf]
  %v20 = vld [vmem:[%s0 + $0x18] sm:$0xf]
  %v21 = vld [vmem:[%s0 + $0x1c] sm:$0xf]
  %v22 = vld [vmem:[%s0 + $0x20] sm:$0xf]
  %v23 = vld [vmem:[%s0 + $0x24] sm:$0xf]
  %v24 = vld [vmem:[%s0 + $0x28] sm:$0xf]
  %v25 = vld [vmem:[%s0 + $0x2c] sm:$0xf]
  %v26 = vld [vmem:[%s0 + $0x30] sm:$0xf]
  %v27 = vld [vmem:[%s0 + $0x34] sm:$0xf]
  %v28 = vld [vmem:[%s0 + $0x38] sm:$0xf]
  %v29 = vld [vmem:[%s0 + $0x3c] sm:$0xf]
  %v30 = vld [vmem:[%s0 + $0x40] sm:$0xf]
  %v31 = vld [vmem:[%s0 + $0x44] sm:$0xf]
  %v32 = vld [vmem:[%s0 + $0x48] sm:$0xf]
  %v33 = vld [vmem:[%s0 + $0x4c] sm:$0xf]
  %v34 = vld [vmem:[%s0 + $0x50] sm:$0xf]
  %v35 = vld [vmem:[%s0 + $0x54] sm:$0xf]
  %v36 = vld [vmem:[%s0 + $0x58] sm:$0xf]
  %v37 = vld [vmem:[%s0 + $0x5c] sm:$0xf]
  %v38 = vld [vmem:[%s0 + $0x60] sm:$0xf]
  %v39 = vld [vmem:[%s0 + $0x64] sm:$0xf]
  %v40 = vld [vmem:[%s0 + $0x68] sm:$0xf]
  %v41 = vld [vmem:[%s0 + $0x6c] sm:$0xf]
  %v42 = vld [vmem:[%s0 + $0x70] sm:$0xf]
  %v43 = vld [vmem:[%s0 + $0x74] sm:$0xf]
  %v44 = vld [vmem:[%s0 + $0x78] sm:$0xf]
  %v45 = vld [vmem:[%s0 + $0x7c] sm:$0xf]
  %v46 = vld [vmem:[%s0 + $0x80] sm:$0xf]
  %v47 = vld [vmem:[%s0 + $0x84] sm:$0xf]
  %v48 = vld [vmem:[%s0 + $0x88] sm:$0xf]
  %v49 = vld [vmem:[%s0 + $0x8c] sm:$0xf]
  %v50 = vld [vmem:[%s0 + $0x90] sm:$0xf]
  %v51 = vld [vmem:[%s0 + $0x94] sm:$0xf]
  %v52 = vld [vmem:[%s0 + $0x98] sm:$0xf]
  %v53 = vld [vmem:[%s0 + $0x9c] sm:$0xf]
  %v54 = vld [vmem:[%s0 + $0xa0] sm:$0xf]
  %v55 = vld [vmem:[%s0 + $0xa4] sm:$0xf]
  %v56 = vld [vmem:[%s0 + $0xa8] sm:$0xf]
  %v57 = vld [vmem:[%s0 + $0xac] sm:$0xf]
  %v58 = vld [vmem:[%s0 + $0xb0] sm:$0xf]
  %v59 = vld [vmem:[%s0 + $0xb4] sm:$0xf]
  %v60 = vld [vmem:[%s0 + $0xb8] sm:$0xf]
  %v61 = vld [vmem:[%s0 + $0xbc] sm:$0xf]
  %v62 = vld [vmem:[%s0 + $0xc0] sm:$0xf]
  %v63 = vld [vmem:[%s0 + $0xc4] sm:$0xf]
  %v64 = vld [vmem:[%s0 + $0xc8] sm:$0xf]
  %v65 = vld [vmem:[%s0 + $0xcc] sm:$0xf]
  %v66 = vld [vmem:[%s0 + $0xd0] sm:$0xf]
  %v67 = vld [vmem:[%s0 + $0xd4] sm:$0xf]
  %v68 = vld [vmem:[%s0 + $0xd8] sm:$0xf]
  %v69 = vld [vmem:[%s0 + $0xdc] sm:$0xf]
  %v70 = vld [vmem:[%s0 + $0xe0] sm:$0xf]
  %v71 = vld [vmem:[%s0 + $0xe4] sm:$0xf]
  %v72 = vld [vmem:[%s0 + $0xe8] sm:$0xf]
  %v73 = vld [vmem:[%s0 + $0xec] sm:$0xf]
  %v74 = vld [vmem:[%s0 + $0xf0] sm:$0xf]
  %v75 = vld [vmem:[%s0 + $0xf4] sm:$0xf]
  %v76 = vld [vmem:[%s0 + $0xf8] sm:$0xf]
  %v77 = vld [vmem:[%s0 + $0xfc] sm:$0xf]
  %v78 = vld [vmem:[%s1] sm:$0xf]
  %v79 = vld [vmem:[%s1 + $0x4] sm:$0xf]
  %v80 = vld [vmem:[%s1 + $0x8] sm:$0xf]
  %v81 = vld [vmem:[%s1 + $0xc] sm:$0xf]
  %v82 = vld [vmem:[%s1 + $0x10] sm:$0xf]
  %v83 = vld [vmem:[%s1 + $0x14] sm:$0xf]
  %v84 = vld [vmem:[%s1 + $0x18] sm:$0xf]
  %v85 = vld [vmem:[%s1 + $0x1c] sm:$0xf]
  %v86 = vld [vmem:[%s1 + $0x20] sm:$0xf]
  %v87 = vld [vmem:[%s1 + $0x24] sm:$0xf]
  %v88 = vld [vmem:[%s1 + $0x28] sm:$0xf]
  %v89 = vld [vmem:[%s1 + $0x2c] sm:$0xf]
  %v90 = vld [vmem:[%s1 + $0x30] sm:$0xf]
  %v91 = vld [vmem:[%s1 + $0x34] sm:$0xf]
  %v92 = vld [vmem:[%s1 + $0x38] sm:$0xf]
  %v93 = vld [vmem:[%s1 + $0x3c] sm:$0xf]
  %v158 = vunpack.c.l.b16 %v14
  %v159 = vunpack.c.l.b16 %v15
  %v160 = vunpack.c.l.b16 %v16
  %v161 = vunpack.c.l.b16 %v17
  %v162 = vunpack.c.l.b16 %v18
  %v163 = vunpack.c.l.b16 %v19
  %v164 = vunpack.c.l.b16 %v20
  %v165 = vunpack.c.l.b16 %v21
  %v166 = vunpack.c.l.b16 %v22
  %v167 = vunpack.c.l.b16 %v23
  %v168 = vunpack.c.l.b16 %v24
  %v169 = vunpack.c.l.b16 %v25
  %v170 = vunpack.c.l.b16 %v26
  %v171 = vunpack.c.l.b16 %v27
  %v172 = vunpack.c.l.b16 %v28
  %v173 = vunpack.c.l.b16 %v29
  %v174 = vunpack.c.l.b16 %v30
  %v175 = vunpack.c.l.b16 %v31
  %v176 = vunpack.c.l.b16 %v32
  %v177 = vunpack.c.l.b16 %v33
  %v178 = vunpack.c.l.b16 %v34
  %v179 = vunpack.c.l.b16 %v35
  %v180 = vunpack.c.l.b16 %v36
  %v181 = vunpack.c.l.b16 %v37
  %v182 = vunpack.c.l.b16 %v38
  %v183 = vunpack.c.l.b16 %v39
  %v184 = vunpack.c.l.b16 %v40
  %v185 = vunpack.c.l.b16 %v41
  %v186 = vunpack.c.l.b16 %v42
  %v187 = vunpack.c.l.b16 %v43
  %v188 = vunpack.c.l.b16 %v44
  %v189 = vunpack.c.l.b16 %v45
  %v190 = vunpack.c.l.b16 %v46
  %v191 = vunpack.c.l.b16 %v47
  %v192 = vunpack.c.l.b16 %v48
  %v193 = vunpack.c.l.b16 %v49
  %v194 = vunpack.c.l.b16 %v50
  %v195 = vunpack.c.l.b16 %v51
  %v196 = vunpack.c.l.b16 %v52
  %v197 = vunpack.c.l.b16 %v53
  %v198 = vunpack.c.l.b16 %v54
  %v199 = vunpack.c.l.b16 %v55
  %v200 = vunpack.c.l.b16 %v56
  %v201 = vunpack.c.l.b16 %v57
  %v202 = vunpack.c.l.b16 %v58
  %v203 = vunpack.c.l.b16 %v59
  %v204 = vunpack.c.l.b16 %v60
  %v205 = vunpack.c.l.b16 %v61
  %v206 = vunpack.c.l.b16 %v62
  %v207 = vunpack.c.l.b16 %v63
  %v208 = vunpack.c.l.b16 %v64
  %v209 = vunpack.c.l.b16 %v65
  %v210 = vunpack.c.l.b16 %v66
  %v211 = vunpack.c.l.b16 %v67
  %v212 = vunpack.c.l.b16 %v68
  %v213 = vunpack.c.l.b16 %v69
  %v214 = vunpack.c.l.b16 %v70
  %v215 = vunpack.c.l.b16 %v71
  %v216 = vunpack.c.l.b16 %v72
  %v217 = vunpack.c.l.b16 %v73
  %v218 = vunpack.c.l.b16 %v74
  %v219 = vunpack.c.l.b16 %v75
  %v220 = vunpack.c.l.b16 %v76
  %v221 = vunpack.c.l.b16 %v77
  %v222 = vpack.c.b16 %v159, %v158
  %v223 = vpack.c.b16 %v161, %v160
  %v224 = vpack.c.b16 %v163, %v162
  %v225 = vpack.c.b16 %v165, %v164
  %v226 = vpack.c.b16 %v167, %v166
  %v227 = vpack.c.b16 %v169, %v168
  %v228 = vpack.c.b16 %v171, %v170
  %v229 = vpack.c.b16 %v173, %v172
  %v230 = vpack.c.b16 %v175, %v174
  %v231 = vpack.c.b16 %v177, %v176
  %v232 = vpack.c.b16 %v179, %v178
  %v233 = vpack.c.b16 %v181, %v180
  %v234 = vpack.c.b16 %v183, %v182
  %v235 = vpack.c.b16 %v185, %v184
  %v236 = vpack.c.b16 %v187, %v186
  %v237 = vpack.c.b16 %v189, %v188
  %v238 = vpack.c.b16 %v191, %v190
  %v239 = vpack.c.b16 %v193, %v192
  %v240 = vpack.c.b16 %v195, %v194
  %v241 = vpack.c.b16 %v197, %v196
  %v242 = vpack.c.b16 %v199, %v198
  %v243 = vpack.c.b16 %v201, %v200
  %v244 = vpack.c.b16 %v203, %v202
  %v245 = vpack.c.b16 %v205, %v204
  %v246 = vpack.c.b16 %v207, %v206
  %v247 = vpack.c.b16 %v209, %v208
  %v248 = vpack.c.b16 %v211, %v210
  %v249 = vpack.c.b16 %v213, %v212
  %v250 = vpack.c.b16 %v215, %v214
  %v251 = vpack.c.b16 %v217, %v216
  %v252 = vpack.c.b16 %v219, %v218
  %v253 = vpack.c.b16 %v221, %v220
  %v302 = vunpack.c.l.b16 %v78
  %v303 = vunpack.c.l.b16 %v79
  %v304 = vunpack.c.l.b16 %v80
  %v305 = vunpack.c.l.b16 %v81
  %v306 = vunpack.c.l.b16 %v82
  %v307 = vunpack.c.l.b16 %v83
  %v308 = vunpack.c.l.b16 %v84
  %v309 = vunpack.c.l.b16 %v85
  %v310 = vunpack.c.l.b16 %v86
  %v311 = vunpack.c.l.b16 %v87
  %v312 = vunpack.c.l.b16 %v88
  %v313 = vunpack.c.l.b16 %v89
  %v314 = vunpack.c.l.b16 %v90
  %v315 = vunpack.c.l.b16 %v91
  %v316 = vunpack.c.l.b16 %v92
  %v317 = vunpack.c.l.b16 %v93
  %v318 = vpack.c.b16 %v303, %v302
  %v319 = vpack.c.b16 %v305, %v304
  %v320 = vpack.c.b16 %v307, %v306
  %v321 = vpack.c.b16 %v309, %v308
  %v322 = vpack.c.b16 %v311, %v310
  %v323 = vpack.c.b16 %v313, %v312
  %v324 = vpack.c.b16 %v315, %v314
  %v325 = vpack.c.b16 %v317, %v316
  %334 = vmatprep.subr.bf16.mxu0 0
  %335 = vmatpush1.bf16.msra.mxu0 %v318
  %336 = vmatprep.subr.bf16.mxu0 0
  %337 = vmatpush1.bf16.msra.mxu0 %v319
  %338 = vmatprep.subr.bf16.mxu0 0
  %339 = vmatpush1.bf16.msra.mxu0 %v320
  %340 = vmatprep.subr.bf16.mxu0 0
  %341 = vmatpush1.bf16.msra.mxu0 %v321
  %342 = vmatprep.subr.bf16.mxu0 0
  %343 = vmatpush1.bf16.msra.mxu0 %v322
  %344 = vmatprep.subr.bf16.mxu0 0
  %345 = vmatpush1.bf16.msra.mxu0 %v323
  %346 = vmatprep.subr.bf16.mxu0 0
  %347 = vmatpush1.bf16.msra.mxu0 %v324
  %348 = vmatprep.subr.bf16.mxu0 0
  %349 = vmatpush1.bf16.msra.mxu0 %v325
  %350 = vmatprep.subr.bf16.mxu0 0
  %351 = vmatpush1.bf16.msra.mxu0 0
  %352 = vmatprep.subr.bf16.mxu0 0
  %353 = vmatpush1.bf16.msra.mxu0 0
  %354 = vmatprep.subr.bf16.mxu0 0
  %355 = vmatpush1.bf16.msra.mxu0 0
  %356 = vmatprep.subr.bf16.mxu0 0
  %357 = vmatpush1.bf16.msra.mxu0 0
  %358 = vmatprep.subr.bf16.mxu0 0
  %359 = vmatpush1.bf16.msra.mxu0 0
  %360 = vmatprep.subr.bf16.mxu0 0
  %361 = vmatpush1.bf16.msra.mxu0 0
  %362 = vmatprep.subr.bf16.mxu0 0
  %363 = vmatpush1.bf16.msra.mxu0 0
  %364 = vmatprep.subr.bf16.mxu0 0
  %365 = vmatpush1.bf16.msra.mxu0 0
  %366 = vmatprep.mubr.bf16.mxu0 0
  %367 = vmatmul.mubr.bf16.gmra.mrb[0].mxu0 %v222
  %v368 = vpop.f32.mrb[0].mxu0
  %v369 = vadd.f32 0.0, %v368
  %v370 = vpop.f32.mrb[0].mxu0
  %v371 = vpop.f32.mrb[0].mxu0
  %v372 = vadd.f32 0.0, %v371
  %v373 = vpop.f32.mrb[0].mxu0
  %374 = vmatprep.mubr.bf16.mxu0 0
  %375 = vmatmul.mubr.bf16.gmra.mrb[0].mxu0 %v223
  %v376 = vpop.f32.mrb[0].mxu0
  %v377 = vadd.f32 0.0, %v376
  %v378 = vpop.f32.mrb[0].mxu0
  %v379 = vpop.f32.mrb[0].mxu0
  %v380 = vadd.f32 0.0, %v379
  %v381 = vpop.f32.mrb[0].mxu0
  %382 = vmatprep.mubr.bf16.mxu0 0
  %383 = vmatmul.mubr.bf16.gmra.mrb[0].mxu0 %v224
  %v384 = vpop.f32.mrb[0].mxu0
  %v385 = vadd.f32 0.0, %v384
  %v386 = vpop.f32.mrb[0].mxu0
  %v387 = vpop.f32.mrb[0].mxu0
  %v388 = vadd.f32 0.0, %v387
  %v389 = vpop.f32.mrb[0].mxu0
  %390 = vmatprep.mubr.bf16.mxu0 0
  %391 = vmatmul.mubr.bf16.gmra.mrb[0].mxu0 %v225
  %v392 = vpop.f32.mrb[0].mxu0
  %v393 = vadd.f32 0.0, %v392
  %v394 = vpop.f32.mrb[0].mxu0
  %v395 = vpop.f32.mrb[0].mxu0
  %v396 = vadd.f32 0.0, %v395
  %v397 = vpop.f32.mrb[0].mxu0
  %398 = vmatprep.mubr.bf16.mxu0 0
  %399 = vmatmul.mubr.bf16.gmra.mrb[0].mxu0 %v226
  %v400 = vpop.f32.mrb[0].mxu0
  %v401 = vadd.f32 0.0, %v400
  %v402 = vpop.f32.mrb[0].mxu0
  %v403 = vpop.f32.mrb[0].mxu0
  %v404 = vadd.f32 0.0, %v403
  %v405 = vpop.f32.mrb[0].mxu0
  %406 = vmatprep.mubr.bf16.mxu0 0
  %407 = vmatmul.mubr.bf16.gmra.mrb[0].mxu0 %v227
  %v408 = vpop.f32.mrb[0].mxu0
  %v409 = vadd.f32 0.0, %v408
  %v410 = vpop.f32.mrb[0].mxu0
  %v411 = vpop.f32.mrb[0].mxu0
  %v412 = vadd.f32 0.0, %v411
  %v413 = vpop.f32.mrb[0].mxu0
  %414 = vmatprep.mubr.bf16.mxu0 0
  %415 = vmatmul.mubr.bf16.gmra.mrb[0].mxu0 %v228
  %v416 = vpop.f32.mrb[0].mxu0
  %v417 = vadd.f32 0.0, %v416
  %v418 = vpop.f32.mrb[0].mxu0
  %v419 = vpop.f32.mrb[0].mxu0
  %v420 = vadd.f32 0.0, %v419
  %v421 = vpop.f32.mrb[0].mxu0
  %422 = vmatprep.mubr.bf16.mxu0 0
  %423 = vmatmul.mubr.bf16.gmra.mrb[0].mxu0 %v229
  %v424 = vpop.f32.mrb[0].mxu0
  %v425 = vadd.f32 0.0, %v424
  %v426 = vpop.f32.mrb[0].mxu0
  %v427 = vpop.f32.mrb[0].mxu0
  %v428 = vadd.f32 0.0, %v427
  %v429 = vpop.f32.mrb[0].mxu0
  %430 = vmatprep.mubr.bf16.mxu0 0
  %431 = vmatmul.mubr.bf16.gmra.mrb[0].mxu0 %v230
  %v432 = vpop.f32.mrb[0].mxu0
  %v433 = vadd.f32 0.0, %v432
  %v434 = vpop.f32.mrb[0].mxu0
  %v435 = vpop.f32.mrb[0].mxu0
  %v436 = vadd.f32 0.0, %v435
  %v437 = vpop.f32.mrb[0].mxu0
  %438 = vmatprep.mubr.bf16.mxu0 0
  %439 = vmatmul.mubr.bf16.gmra.mrb[0].mxu0 %v231
  %v440 = vpop.f32.mrb[0].mxu0
  %v441 = vadd.f32 0.0, %v440
  %v442 = vpop.f32.mrb[0].mxu0
  %v443 = vpop.f32.mrb[0].mxu0
  %v444 = vadd.f32 0.0, %v443
  %v445 = vpop.f32.mrb[0].mxu0
  %446 = vmatprep.mubr.bf16.mxu0 0
  %447 = vmatmul.mubr.bf16.gmra.mrb[0].mxu0 %v232
  %v448 = vpop.f32.mrb[0].mxu0
  %v449 = vadd.f32 0.0, %v448
  %v450 = vpop.f32.mrb[0].mxu0
  %v451 = vpop.f32.mrb[0].mxu0
  %v452 = vadd.f32 0.0, %v451
  %v453 = vpop.f32.mrb[0].mxu0
  %454 = vmatprep.mubr.bf16.mxu0 0
  %455 = vmatmul.mubr.bf16.gmra.mrb[0].mxu0 %v233
  %v456 = vpop.f32.mrb[0].mxu0
  %v457 = vadd.f32 0.0, %v456
  %v458 = vpop.f32.mrb[0].mxu0
  %v459 = vpop.f32.mrb[0].mxu0
  %v460 = vadd.f32 0.0, %v459
  %v461 = vpop.f32.mrb[0].mxu0
  %462 = vmatprep.mubr.bf16.mxu0 0
  %463 = vmatmul.mubr.bf16.gmra.mrb[0].mxu0 %v234
  %v464 = vpop.f32.mrb[0].mxu0
  %v465 = vadd.f32 0.0, %v464
  %v466 = vpop.f32.mrb[0].mxu0
  %v467 = vpop.f32.mrb[0].mxu0
  %v468 = vadd.f32 0.0, %v467
  %v469 = vpop.f32.mrb[0].mxu0
  %470 = vmatprep.mubr.bf16.mxu0 0
  %471 = vmatmul.mubr.bf16.gmra.mrb[0].mxu0 %v235
  %v472 = vpop.f32.mrb[0].mxu0
  %v473 = vadd.f32 0.0, %v472
  %v474 = vpop.f32.mrb[0].mxu0
  %v475 = vpop.f32.mrb[0].mxu0
  %v476 = vadd.f32 0.0, %v475
  %v477 = vpop.f32.mrb[0].mxu0
  %478 = vmatprep.mubr.bf16.mxu0 0
  %479 = vmatmul.mubr.bf16.gmra.mrb[0].mxu0 %v236
  %v480 = vpop.f32.mrb[0].mxu0
  %v481 = vadd.f32 0.0, %v480
  %v482 = vpop.f32.mrb[0].mxu0
  %v483 = vpop.f32.mrb[0].mxu0
  %v484 = vadd.f32 0.0, %v483
  %v485 = vpop.f32.mrb[0].mxu0
  %486 = vmatprep.mubr.bf16.mxu0 0
  %487 = vmatmul.mubr.bf16.gmra.mrb[0].mxu0 %v237
  %v488 = vpop.f32.mrb[0].mxu0
  %v489 = vadd.f32 0.0, %v488
  %v490 = vpop.f32.mrb[0].mxu0
  %v491 = vpop.f32.mrb[0].mxu0
  %v492 = vadd.f32 0.0, %v491
  %v493 = vpop.f32.mrb[0].mxu0
  %494 = vmatprep.mubr.bf16.mxu0 0
  %495 = vmatmul.mubr.bf16.gmra.mrb[0].mxu0 %v238
  %v496 = vpop.f32.mrb[0].mxu0
  %v497 = vadd.f32 0.0, %v496
  %v498 = vpop.f32.mrb[0].mxu0
  %v499 = vpop.f32.mrb[0].mxu0
  %v500 = vadd.f32 0.0, %v499
  %v501 = vpop.f32.mrb[0].mxu0
  %502 = vmatprep.mubr.bf16.mxu0 0
  %503 = vmatmul.mubr.bf16.gmra.mrb[0].mxu0 %v239
  %v504 = vpop.f32.mrb[0].mxu0
  %v505 = vadd.f32 0.0, %v504
  %v506 = vpop.f32.mrb[0].mxu0
  %v507 = vpop.f32.mrb[0].mxu0
  %v508 = vadd.f32 0.0, %v507
  %v509 = vpop.f32.mrb[0].mxu0
  %510 = vmatprep.mubr.bf16.mxu0 0
  %511 = vmatmul.mubr.bf16.gmra.mrb[0].mxu0 %v240
  %v512 = vpop.f32.mrb[0].mxu0
  %v513 = vadd.f32 0.0, %v512
  %v514 = vpop.f32.mrb[0].mxu0
  %v515 = vpop.f32.mrb[0].mxu0
  %v516 = vadd.f32 0.0, %v515
  %v517 = vpop.f32.mrb[0].mxu0
  %518 = vmatprep.mubr.bf16.mxu0 0
  %519 = vmatmul.mubr.bf16.gmra.mrb[0].mxu0 %v241
  %v520 = vpop.f32.mrb[0].mxu0
  %v521 = vadd.f32 0.0, %v520
  %v522 = vpop.f32.mrb[0].mxu0
  %v523 = vpop.f32.mrb[0].mxu0
  %v524 = vadd.f32 0.0, %v523
  %v525 = vpop.f32.mrb[0].mxu0
  %526 = vmatprep.mubr.bf16.mxu0 0
  %527 = vmatmul.mubr.bf16.gmra.mrb[0].mxu0 %v242
  %v528 = vpop.f32.mrb[0].mxu0
  %v529 = vadd.f32 0.0, %v528
  %v530 = vpop.f32.mrb[0].mxu0
  %v531 = vpop.f32.mrb[0].mxu0
  %v532 = vadd.f32 0.0, %v531
  %v533 = vpop.f32.mrb[0].mxu0
  %534 = vmatprep.mubr.bf16.mxu0 0
  %535 = vmatmul.mubr.bf16.gmra.mrb[0].mxu0 %v243
  %v536 = vpop.f32.mrb[0].mxu0
  %v537 = vadd.f32 0.0, %v536
  %v538 = vpop.f32.mrb[0].mxu0
  %v539 = vpop.f32.mrb[0].mxu0
  %v540 = vadd.f32 0.0, %v539
  %v541 = vpop.f32.mrb[0].mxu0
  %542 = vmatprep.mubr.bf16.mxu0 0
  %543 = vmatmul.mubr.bf16.gmra.mrb[0].mxu0 %v244
  %v544 = vpop.f32.mrb[0].mxu0
  %v545 = vadd.f32 0.0, %v544
  %v546 = vpop.f32.mrb[0].mxu0
  %v547 = vpop.f32.mrb[0].mxu0
  %v548 = vadd.f32 0.0, %v547
  %v549 = vpop.f32.mrb[0].mxu0
  %550 = vmatprep.mubr.bf16.mxu0 0
  %551 = vmatmul.mubr.bf16.gmra.mrb[0].mxu0 %v245
  %v552 = vpop.f32.mrb[0].mxu0
  %v553 = vadd.f32 0.0, %v552
  %v554 = vpop.f32.mrb[0].mxu0
  %v555 = vpop.f32.mrb[0].mxu0
  %v556 = vadd.f32 0.0, %v555
  %v557 = vpop.f32.mrb[0].mxu0
  %558 = vmatprep.mubr.bf16.mxu0 0
  %559 = vmatmul.mubr.bf16.gmra.mrb[0].mxu0 %v246
  %v560 = vpop.f32.mrb[0].mxu0
  %v561 = vadd.f32 0.0, %v560
  %v562 = vpop.f32.mrb[0].mxu0
  %v563 = vpop.f32.mrb[0].mxu0
  %v564 = vadd.f32 0.0, %v563
  %v565 = vpop.f32.mrb[0].mxu0
  %566 = vmatprep.mubr.bf16.mxu0 0
  %567 = vmatmul.mubr.bf16.gmra.mrb[0].mxu0 %v247
  %v568 = vpop.f32.mrb[0].mxu0
  %v569 = vadd.f32 0.0, %v568
  %v570 = vpop.f32.mrb[0].mxu0
  %v571 = vpop.f32.mrb[0].mxu0
  %v572 = vadd.f32 0.0, %v571
  %v573 = vpop.f32.mrb[0].mxu0
  %574 = vmatprep.mubr.bf16.mxu0 0
  %575 = vmatmul.mubr.bf16.gmra.mrb[0].mxu0 %v248
  %v576 = vpop.f32.mrb[0].mxu0
  %v577 = vadd.f32 0.0, %v576
  %v578 = vpop.f32.mrb[0].mxu0
  %v579 = vpop.f32.mrb[0].mxu0
  %v580 = vadd.f32 0.0, %v579
  %v581 = vpop.f32.mrb[0].mxu0
  %582 = vmatprep.mubr.bf16.mxu0 0
  %583 = vmatmul.mubr.bf16.gmra.mrb[0].mxu0 %v249
  %v584 = vpop.f32.mrb[0].mxu0
  %v585 = vadd.f32 0.0, %v584
  %v586 = vpop.f32.mrb[0].mxu0
  %v587 = vpop.f32.mrb[0].mxu0
  %v588 = vadd.f32 0.0, %v587
  %v589 = vpop.f32.mrb[0].mxu0
  %590 = vmatprep.mubr.bf16.mxu0 0
  %591 = vmatmul.mubr.bf16.gmra.mrb[0].mxu0 %v250
  %v592 = vpop.f32.mrb[0].mxu0
  %v593 = vadd.f32 0.0, %v592
  %v594 = vpop.f32.mrb[0].mxu0
  %v595 = vpop.f32.mrb[0].mxu0
  %v596 = vadd.f32 0.0, %v595
  %v597 = vpop.f32.mrb[0].mxu0
  %598 = vmatprep.mubr.bf16.mxu0 0
  %599 = vmatmul.mubr.bf16.gmra.mrb[0].mxu0 %v251
  %v600 = vpop.f32.mrb[0].mxu0
  %v601 = vadd.f32 0.0, %v600
  %v602 = vpop.f32.mrb[0].mxu0
  %v603 = vpop.f32.mrb[0].mxu0
  %v604 = vadd.f32 0.0, %v603
  %v605 = vpop.f32.mrb[0].mxu0
  %606 = vmatprep.mubr.bf16.mxu0 0
  %607 = vmatmul.mubr.bf16.gmra.mrb[0].mxu0 %v252
  %v608 = vpop.f32.mrb[0].mxu0
  %v609 = vadd.f32 0.0, %v608
  %v610 = vpop.f32.mrb[0].mxu0
  %v611 = vpop.f32.mrb[0].mxu0
  %v612 = vadd.f32 0.0, %v611
  %v613 = vpop.f32.mrb[0].mxu0
  %614 = vmatprep.mubr.bf16.mxu0 0
  %615 = vmatmul.mubr.bf16.gmra.mrb[0].mxu0 %v253
  %v616 = vpop.f32.mrb[0].mxu0
  %v617 = vadd.f32 0.0, %v616
  %v618 = vpop.f32.mrb[0].mxu0
  %v619 = vpop.f32.mrb[0].mxu0
  %v620 = vadd.f32 0.0, %v619
  %v621 = vpop.f32.mrb[0].mxu0
  %622 = vdwg.mxu0
  %v623 = vpack.c.bf16 %v372, %v369
  %v624 = vpack.c.bf16 %v380, %v377
  %v625 = vpack.c.bf16 %v388, %v385
  %v626 = vpack.c.bf16 %v396, %v393
  %v627 = vpack.c.bf16 %v404, %v401
  %v628 = vpack.c.bf16 %v412, %v409
  %v629 = vpack.c.bf16 %v420, %v417
  %v630 = vpack.c.bf16 %v428, %v425
  %v631 = vpack.c.bf16 %v436, %v433
  %v632 = vpack.c.bf16 %v444, %v441
  %v633 = vpack.c.bf16 %v452, %v449
  %v634 = vpack.c.bf16 %v460, %v457
  %v635 = vpack.c.bf16 %v468, %v465
  %v636 = vpack.c.bf16 %v476, %v473
  %v637 = vpack.c.bf16 %v484, %v481
  %v638 = vpack.c.bf16 %v492, %v489
  %v639 = vpack.c.bf16 %v500, %v497
  %v640 = vpack.c.bf16 %v508, %v505
  %v641 = vpack.c.bf16 %v516, %v513
  %v642 = vpack.c.bf16 %v524, %v521
  %v643 = vpack.c.bf16 %v532, %v529
  %v644 = vpack.c.bf16 %v540, %v537
  %v645 = vpack.c.bf16 %v548, %v545
  %v646 = vpack.c.bf16 %v556, %v553
  %v647 = vpack.c.bf16 %v564, %v561
  %v648 = vpack.c.bf16 %v572, %v569
  %v649 = vpack.c.bf16 %v580, %v577
  %v650 = vpack.c.bf16 %v588, %v585
  %v651 = vpack.c.bf16 %v596, %v593
  %v652 = vpack.c.bf16 %v604, %v601
  %v653 = vpack.c.bf16 %v612, %v609
  %v654 = vpack.c.bf16 %v620, %v617
  %v687 = vunpack.c.l.b16 %v623
  %v688 = vunpack.c.h.b16 %v623
  %v689 = vunpack.c.l.b16 %v624
  %v690 = vunpack.c.h.b16 %v624
  %v691 = vunpack.c.l.b16 %v625
  %v692 = vunpack.c.h.b16 %v625
  %v693 = vunpack.c.l.b16 %v626
  %v694 = vunpack.c.h.b16 %v626
  %v695 = vunpack.c.l.b16 %v627
  %v696 = vunpack.c.h.b16 %v627
  %v697 = vunpack.c.l.b16 %v628
  %v698 = vunpack.c.h.b16 %v628
  %v699 = vunpack.c.l.b16 %v629
  %v700 = vunpack.c.h.b16 %v629
  %v701 = vunpack.c.l.b16 %v630
  %v702 = vunpack.c.h.b16 %v630
  %v703 = vunpack.c.l.b16 %v631
  %v704 = vunpack.c.h.b16 %v631
  %v705 = vunpack.c.l.b16 %v632
  %v706 = vunpack.c.h.b16 %v632
  %v707 = vunpack.c.l.b16 %v633
  %v708 = vunpack.c.h.b16 %v633
  %v709 = vunpack.c.l.b16 %v634
  %v710 = vunpack.c.h.b16 %v634
  %v711 = vunpack.c.l.b16 %v635
  %v712 = vunpack.c.h.b16 %v635
  %v713 = vunpack.c.l.b16 %v636
  %v714 = vunpack.c.h.b16 %v636
  %v715 = vunpack.c.l.b16 %v637
  %v716 = vunpack.c.h.b16 %v637
  %v717 = vunpack.c.l.b16 %v638
  %v718 = vunpack.c.h.b16 %v638
  %v719 = vunpack.c.l.b16 %v639
  %v720 = vunpack.c.h.b16 %v639
  %v721 = vunpack.c.l.b16 %v640
  %v722 = vunpack.c.h.b16 %v640
  %v723 = vunpack.c.l.b16 %v641
  %v724 = vunpack.c.h.b16 %v641
  %v725 = vunpack.c.l.b16 %v642
  %v726 = vunpack.c.h.b16 %v642
  %v727 = vunpack.c.l.b16 %v643
  %v728 = vunpack.c.h.b16 %v643
  %v729 = vunpack.c.l.b16 %v644
  %v730 = vunpack.c.h.b16 %v644
  %v731 = vunpack.c.l.b16 %v645
  %v732 = vunpack.c.h.b16 %v645
  %v733 = vunpack.c.l.b16 %v646
  %v734 = vunpack.c.h.b16 %v646
  %v735 = vunpack.c.l.b16 %v647
  %v736 = vunpack.c.h.b16 %v647
  %v737 = vunpack.c.l.b16 %v648
  %v738 = vunpack.c.h.b16 %v648
  %v739 = vunpack.c.l.b16 %v649
  %v740 = vunpack.c.h.b16 %v649
  %v741 = vunpack.c.l.b16 %v650
  %v742 = vunpack.c.h.b16 %v650
  %v743 = vunpack.c.l.b16 %v651
  %v744 = vunpack.c.h.b16 %v651
  %v745 = vunpack.c.l.b16 %v652
  %v746 = vunpack.c.h.b16 %v652
  %v747 = vunpack.c.l.b16 %v653
  %v748 = vunpack.c.h.b16 %v653
  %v749 = vunpack.c.l.b16 %v654
  %v750 = vunpack.c.h.b16 %v654
  %v751 = vpack.c.b16 %v687, %v687
  %v752 = vpack.c.b16 %v688, %v688
  %v753 = vpack.c.b16 %v689, %v689
  %v754 = vpack.c.b16 %v690, %v690
  %v755 = vpack.c.b16 %v691, %v691
  %v756 = vpack.c.b16 %v692, %v692
  %v757 = vpack.c.b16 %v693, %v693
  %v758 = vpack.c.b16 %v694, %v694
  %v759 = vpack.c.b16 %v695, %v695
  %v760 = vpack.c.b16 %v696, %v696
  %v761 = vpack.c.b16 %v697, %v697
  %v762 = vpack.c.b16 %v698, %v698
  %v763 = vpack.c.b16 %v699, %v699
  %v764 = vpack.c.b16 %v700, %v700
  %v765 = vpack.c.b16 %v701, %v701
  %v766 = vpack.c.b16 %v702, %v702
  %v767 = vpack.c.b16 %v703, %v703
  %v768 = vpack.c.b16 %v704, %v704
  %v769 = vpack.c.b16 %v705, %v705
  %v770 = vpack.c.b16 %v706, %v706
  %v771 = vpack.c.b16 %v707, %v707
  %v772 = vpack.c.b16 %v708, %v708
  %v773 = vpack.c.b16 %v709, %v709
  %v774 = vpack.c.b16 %v710, %v710
  %v775 = vpack.c.b16 %v711, %v711
  %v776 = vpack.c.b16 %v712, %v712
  %v777 = vpack.c.b16 %v713, %v713
  %v778 = vpack.c.b16 %v714, %v714
  %v779 = vpack.c.b16 %v715, %v715
  %v780 = vpack.c.b16 %v716, %v716
  %v781 = vpack.c.b16 %v717, %v717
  %v782 = vpack.c.b16 %v718, %v718
  %v783 = vpack.c.b16 %v719, %v719
  %v784 = vpack.c.b16 %v720, %v720
  %v785 = vpack.c.b16 %v721, %v721
  %v786 = vpack.c.b16 %v722, %v722
  %v787 = vpack.c.b16 %v723, %v723
  %v788 = vpack.c.b16 %v724, %v724
  %v789 = vpack.c.b16 %v725, %v725
  %v790 = vpack.c.b16 %v726, %v726
  %v791 = vpack.c.b16 %v727, %v727
  %v792 = vpack.c.b16 %v728, %v728
  %v793 = vpack.c.b16 %v729, %v729
  %v794 = vpack.c.b16 %v730, %v730
  %v795 = vpack.c.b16 %v731, %v731
  %v796 = vpack.c.b16 %v732, %v732
  %v797 = vpack.c.b16 %v733, %v733
  %v798 = vpack.c.b16 %v734, %v734
  %v799 = vpack.c.b16 %v735, %v735
  %v800 = vpack.c.b16 %v736, %v736
  %v801 = vpack.c.b16 %v737, %v737
  %v802 = vpack.c.b16 %v738, %v738
  %v803 = vpack.c.b16 %v739, %v739
  %v804 = vpack.c.b16 %v740, %v740
  %v805 = vpack.c.b16 %v741, %v741
  %v806 = vpack.c.b16 %v742, %v742
  %v807 = vpack.c.b16 %v743, %v743
  %v808 = vpack.c.b16 %v744, %v744
  %v809 = vpack.c.b16 %v745, %v745
  %v810 = vpack.c.b16 %v746, %v746
  %v811 = vpack.c.b16 %v747, %v747
  %v812 = vpack.c.b16 %v748, %v748
  %v813 = vpack.c.b16 %v749, %v749
  %v814 = vpack.c.b16 %v750, %v750
  %879 = vst [vmem:[%s2] sm:$0xf] %v751
  %880 = vst [vmem:[%s2 + $0x4] sm:$0xf] %v752
  %881 = vst [vmem:[%s2 + $0x8] sm:$0xf] %v753
  %882 = vst [vmem:[%s2 + $0xc] sm:$0xf] %v754
  %883 = vst [vmem:[%s2 + $0x10] sm:$0xf] %v755
  %884 = vst [vmem:[%s2 + $0x14] sm:$0xf] %v756
  %885 = vst [vmem:[%s2 + $0x18] sm:$0xf] %v757
  %886 = vst [vmem:[%s2 + $0x1c] sm:$0xf] %v758
  %887 = vst [vmem:[%s2 + $0x20] sm:$0xf] %v759
  %888 = vst [vmem:[%s2 + $0x24] sm:$0xf] %v760
  %889 = vst [vmem:[%s2 + $0x28] sm:$0xf] %v761
  %890 = vst [vmem:[%s2 + $0x2c] sm:$0xf] %v762
  %891 = vst [vmem:[%s2 + $0x30] sm:$0xf] %v763
  %892 = vst [vmem:[%s2 + $0x34] sm:$0xf] %v764
  %893 = vst [vmem:[%s2 + $0x38] sm:$0xf] %v765
  %894 = vst [vmem:[%s2 + $0x3c] sm:$0xf] %v766
  %895 = vst [vmem:[%s2 + $0x40] sm:$0xf] %v767
  %896 = vst [vmem:[%s2 + $0x44] sm:$0xf] %v768
  %897 = vst [vmem:[%s2 + $0x48] sm:$0xf] %v769
  %898 = vst [vmem:[%s2 + $0x4c] sm:$0xf] %v770
  %899 = vst [vmem:[%s2 + $0x50] sm:$0xf] %v771
  %900 = vst [vmem:[%s2 + $0x54] sm:$0xf] %v772
  %901 = vst [vmem:[%s2 + $0x58] sm:$0xf] %v773
  %902 = vst [vmem:[%s2 + $0x5c] sm:$0xf] %v774
  %903 = vst [vmem:[%s2 + $0x60] sm:$0xf] %v775
  %904 = vst [vmem:[%s2 + $0x64] sm:$0xf] %v776
  %905 = vst [vmem:[%s2 + $0x68] sm:$0xf] %v777
  %906 = vst [vmem:[%s2 + $0x6c] sm:$0xf] %v778
  %907 = vst [vmem:[%s2 + $0x70] sm:$0xf] %v779
  %908 = vst [vmem:[%s2 + $0x74] sm:$0xf] %v780
  %909 = vst [vmem:[%s2 + $0x78] sm:$0xf] %v781
  %910 = vst [vmem:[%s2 + $0x7c] sm:$0xf] %v782
  %911 = vst [vmem:[%s2 + $0x80] sm:$0xf] %v783
  %912 = vst [vmem:[%s2 + $0x84] sm:$0xf] %v784
  %913 = vst [vmem:[%s2 + $0x88] sm:$0xf] %v785
  %914 = vst [vmem:[%s2 + $0x8c] sm:$0xf] %v786
  %915 = vst [vmem:[%s2 + $0x90] sm:$0xf] %v787
  %916 = vst [vmem:[%s2 + $0x94] sm:$0xf] %v788
  %917 = vst [vmem:[%s2 + $0x98] sm:$0xf] %v789
  %918 = vst [vmem:[%s2 + $0x9c] sm:$0xf] %v790
  %919 = vst [vmem:[%s2 + $0xa0] sm:$0xf] %v791
  %920 = vst [vmem:[%s2 + $0xa4] sm:$0xf] %v792
  %921 = vst [vmem:[%s2 + $0xa8] sm:$0xf] %v793
  %922 = vst [vmem:[%s2 + $0xac] sm:$0xf] %v794
  %923 = vst [vmem:[%s2 + $0xb0] sm:$0xf] %v795
  %924 = vst [vmem:[%s2 + $0xb4] sm:$0xf] %v796
  %925 = vst [vmem:[%s2 + $0xb8] sm:$0xf] %v797
  %926 = vst [vmem:[%s2 + $0xbc] sm:$0xf] %v798
  %927 = vst [vmem:[%s2 + $0xc0] sm:$0xf] %v799
  %928 = vst [vmem:[%s2 + $0xc4] sm:$0xf] %v800
  %929 = vst [vmem:[%s2 + $0xc8] sm:$0xf] %v801
  %930 = vst [vmem:[%s2 + $0xcc] sm:$0xf] %v802
  %931 = vst [vmem:[%s2 + $0xd0] sm:$0xf] %v803
  %932 = vst [vmem:[%s2 + $0xd4] sm:$0xf] %v804
  %933 = vst [vmem:[%s2 + $0xd8] sm:$0xf] %v805
  %934 = vst [vmem:[%s2 + $0xdc] sm:$0xf] %v806
  %935 = vst [vmem:[%s2 + $0xe0] sm:$0xf] %v807
  %936 = vst [vmem:[%s2 + $0xe4] sm:$0xf] %v808
  %937 = vst [vmem:[%s2 + $0xe8] sm:$0xf] %v809
  %938 = vst [vmem:[%s2 + $0xec] sm:$0xf] %v810
  %939 = vst [vmem:[%s2 + $0xf0] sm:$0xf] %v811
  %940 = vst [vmem:[%s2 + $0xf4] sm:$0xf] %v812
  %941 = vst [vmem:[%s2 + $0xf8] sm:$0xf] %v813
  %942 = vst [vmem:[%s2 + $0xfc] sm:$0xf] %v814
  %v943 = vadd.f32 %v369, %v372
  %v944 = vadd.f32 %v943, %v377
  %v945 = vadd.f32 %v944, %v380
  %v946 = vadd.f32 %v945, %v385
  %v947 = vadd.f32 %v946, %v388
  %v948 = vadd.f32 %v947, %v393
  %v949 = vadd.f32 %v948, %v396
  %v950 = vadd.f32 %v949, %v401
  %v951 = vadd.f32 %v950, %v404
  %v952 = vadd.f32 %v951, %v409
  %v953 = vadd.f32 %v952, %v412
  %v954 = vadd.f32 %v953, %v417
  %v955 = vadd.f32 %v954, %v420
  %v956 = vadd.f32 %v955, %v425
  %v957 = vadd.f32 %v956, %v428
  %v958 = vadd.f32 %v957, %v433
  %v959 = vadd.f32 %v958, %v436
  %v960 = vadd.f32 %v959, %v441
  %v961 = vadd.f32 %v960, %v444
  %v962 = vadd.f32 %v961, %v449
  %v963 = vadd.f32 %v962, %v452
  %v964 = vadd.f32 %v963, %v457
  %v965 = vadd.f32 %v964, %v460
  %v966 = vadd.f32 %v965, %v465
  %v967 = vadd.f32 %v966, %v468
  %v968 = vadd.f32 %v967, %v473
  %v969 = vadd.f32 %v968, %v476
  %v970 = vadd.f32 %v969, %v481
  %v971 = vadd.f32 %v970, %v484
  %v972 = vadd.f32 %v971, %v489
  %v973 = vadd.f32 %v972, %v492
  %v974 = vadd.f32 %v973, %v497
  %v975 = vadd.f32 %v974, %v500
  %v976 = vadd.f32 %v975, %v505
  %v977 = vadd.f32 %v976, %v508
  %v978 = vadd.f32 %v977, %v513
  %v979 = vadd.f32 %v978, %v516
  %v980 = vadd.f32 %v979, %v521
  %v981 = vadd.f32 %v980, %v524
  %v982 = vadd.f32 %v981, %v529
  %v983 = vadd.f32 %v982, %v532
  %v984 = vadd.f32 %v983, %v537
  %v985 = vadd.f32 %v984, %v540
  %v986 = vadd.f32 %v985, %v545
  %v987 = vadd.f32 %v986, %v548
  %v988 = vadd.f32 %v987, %v553
  %v989 = vadd.f32 %v988, %v556
  %v990 = vadd.f32 %v989, %v561
  %v991 = vadd.f32 %v990, %v564
  %v992 = vadd.f32 %v991, %v569
  %v993 = vadd.f32 %v992, %v572
  %v994 = vadd.f32 %v993, %v577
  %v995 = vadd.f32 %v994, %v580
  %v996 = vadd.f32 %v995, %v585
  %v997 = vadd.f32 %v996, %v588
  %v998 = vadd.f32 %v997, %v593
  %v999 = vadd.f32 %v998, %v596
  %v1000 = vadd.f32 %v999, %v601
  %v1001 = vadd.f32 %v1000, %v604
  %v1002 = vadd.f32 %v1001, %v609
  %v1003 = vadd.f32 %v1002, %v612
  %v1004 = vadd.f32 %v1003, %v617
  %v1005 = vadd.f32 %v1004, %v620
  %v1006 = vrot.slane %v1005, 4
  %v1007 = vadd.f32 %v1005, %v1006
  %v1008 = vrot.slane %v1007, 2
  %v1009 = vadd.f32 %v1007, %v1008
  %v1010 = vrot.slane %v1009, 1
  %v1011 = vadd.f32 %v1009, %v1010
  %v1012 = vmul.f32 %v369, %v369
  %v1013 = vmul.f32 %v372, %v372
  %v1014 = vmul.f32 %v377, %v377
  %v1015 = vmul.f32 %v380, %v380
  %v1016 = vmul.f32 %v385, %v385
  %v1017 = vmul.f32 %v388, %v388
  %v1018 = vmul.f32 %v393, %v393
  %v1019 = vmul.f32 %v396, %v396
  %v1020 = vmul.f32 %v401, %v401
  %v1021 = vmul.f32 %v404, %v404
  %v1022 = vmul.f32 %v409, %v409
  %v1023 = vmul.f32 %v412, %v412
  %v1024 = vmul.f32 %v417, %v417
  %v1025 = vmul.f32 %v420, %v420
  %v1026 = vmul.f32 %v425, %v425
  %v1027 = vmul.f32 %v428, %v428
  %v1028 = vmul.f32 %v433, %v433
  %v1029 = vmul.f32 %v436, %v436
  %v1030 = vmul.f32 %v441, %v441
  %v1031 = vmul.f32 %v444, %v444
  %v1032 = vmul.f32 %v449, %v449
  %v1033 = vmul.f32 %v452, %v452
  %v1034 = vmul.f32 %v457, %v457
  %v1035 = vmul.f32 %v460, %v460
  %v1036 = vmul.f32 %v465, %v465
  %v1037 = vmul.f32 %v468, %v468
  %v1038 = vmul.f32 %v473, %v473
  %v1039 = vmul.f32 %v476, %v476
  %v1040 = vmul.f32 %v481, %v481
  %v1041 = vmul.f32 %v484, %v484
  %v1042 = vmul.f32 %v489, %v489
  %v1043 = vmul.f32 %v492, %v492
  %v1044 = vmul.f32 %v497, %v497
  %v1045 = vmul.f32 %v500, %v500
  %v1046 = vmul.f32 %v505, %v505
  %v1047 = vmul.f32 %v508, %v508
  %v1048 = vmul.f32 %v513, %v513
  %v1049 = vmul.f32 %v516, %v516
  %v1050 = vmul.f32 %v521, %v521
  %v1051 = vmul.f32 %v524, %v524
  %v1052 = vmul.f32 %v529, %v529
  %v1053 = vmul.f32 %v532, %v532
  %v1054 = vmul.f32 %v537, %v537
  %v1055 = vmul.f32 %v540, %v540
  %v1056 = vmul.f32 %v545, %v545
  %v1057 = vmul.f32 %v548, %v548
  %v1058 = vmul.f32 %v553, %v553
  %v1059 = vmul.f32 %v556, %v556
  %v1060 = vmul.f32 %v561, %v561
  %v1061 = vmul.f32 %v564, %v564
  %v1062 = vmul.f32 %v569, %v569
  %v1063 = vmul.f32 %v572, %v572
  %v1064 = vmul.f32 %v577, %v577
  %v1065 = vmul.f32 %v580, %v580
  %v1066 = vmul.f32 %v585, %v585
  %v1067 = vmul.f32 %v588, %v588
  %v1068 = vmul.f32 %v593, %v593
  %v1069 = vmul.f32 %v596, %v596
  %v1070 = vmul.f32 %v601, %v601
  %v1071 = vmul.f32 %v604, %v604
  %v1072 = vmul.f32 %v609, %v609
  %v1073 = vmul.f32 %v612, %v612
  %v1074 = vmul.f32 %v617, %v617
  %v1075 = vmul.f32 %v620, %v620
  %v1076 = vadd.f32 %v1012, %v1013
  %v1077 = vadd.f32 %v1076, %v1014
  %v1078 = vadd.f32 %v1077, %v1015
  %v1079 = vadd.f32 %v1078, %v1016
  %v1080 = vadd.f32 %v1079, %v1017
  %v1081 = vadd.f32 %v1080, %v1018
  %v1082 = vadd.f32 %v1081, %v1019
  %v1083 = vadd.f32 %v1082, %v1020
  %v1084 = vadd.f32 %v1083, %v1021
  %v1085 = vadd.f32 %v1084, %v1022
  %v1086 = vadd.f32 %v1085, %v1023
  %v1087 = vadd.f32 %v1086, %v1024
  %v1088 = vadd.f32 %v1087, %v1025
  %v1089 = vadd.f32 %v1088, %v1026
  %v1090 = vadd.f32 %v1089, %v1027
  %v1091 = vadd.f32 %v1090, %v1028
  %v1092 = vadd.f32 %v1091, %v1029
  %v1093 = vadd.f32 %v1092, %v1030
  %v1094 = vadd.f32 %v1093, %v1031
  %v1095 = vadd.f32 %v1094, %v1032
  %v1096 = vadd.f32 %v1095, %v1033
  %v1097 = vadd.f32 %v1096, %v1034
  %v1098 = vadd.f32 %v1097, %v1035
  %v1099 = vadd.f32 %v1098, %v1036
  %v1100 = vadd.f32 %v1099, %v1037
  %v1101 = vadd.f32 %v1100, %v1038
  %v1102 = vadd.f32 %v1101, %v1039
  %v1103 = vadd.f32 %v1102, %v1040
  %v1104 = vadd.f32 %v1103, %v1041
  %v1105 = vadd.f32 %v1104, %v1042
  %v1106 = vadd.f32 %v1105, %v1043
  %v1107 = vadd.f32 %v1106, %v1044
  %v1108 = vadd.f32 %v1107, %v1045
  %v1109 = vadd.f32 %v1108, %v1046
  %v1110 = vadd.f32 %v1109, %v1047
  %v1111 = vadd.f32 %v1110, %v1048
  %v1112 = vadd.f32 %v1111, %v1049
  %v1113 = vadd.f32 %v1112, %v1050
  %v1114 = vadd.f32 %v1113, %v1051
  %v1115 = vadd.f32 %v1114, %v1052
  %v1116 = vadd.f32 %v1115, %v1053
  %v1117 = vadd.f32 %v1116, %v1054
  %v1118 = vadd.f32 %v1117, %v1055
  %v1119 = vadd.f32 %v1118, %v1056
  %v1120 = vadd.f32 %v1119, %v1057
  %v1121 = vadd.f32 %v1120, %v1058
  %v1122 = vadd.f32 %v1121, %v1059
  %v1123 = vadd.f32 %v1122, %v1060
  %v1124 = vadd.f32 %v1123, %v1061
  %v1125 = vadd.f32 %v1124, %v1062
  %v1126 = vadd.f32 %v1125, %v1063
  %v1127 = vadd.f32 %v1126, %v1064
  %v1128 = vadd.f32 %v1127, %v1065
  %v1129 = vadd.f32 %v1128, %v1066
  %v1130 = vadd.f32 %v1129, %v1067
  %v1131 = vadd.f32 %v1130, %v1068
  %v1132 = vadd.f32 %v1131, %v1069
  %v1133 = vadd.f32 %v1132, %v1070
  %v1134 = vadd.f32 %v1133, %v1071
  %v1135 = vadd.f32 %v1134, %v1072
  %v1136 = vadd.f32 %v1135, %v1073
  %v1137 = vadd.f32 %v1136, %v1074
  %v1138 = vadd.f32 %v1137, %v1075
  %v1139 = vrot.slane %v1138, 4
  %v1140 = vadd.f32 %v1138, %v1139
  %v1141 = vrot.slane %v1140, 2
  %v1142 = vadd.f32 %v1140, %v1141
  %v1143 = vrot.slane %v1142, 1
  %v1144 = vadd.f32 %v1142, %v1143
  %vm1145 = vcmask 1040384
  %v1146 = vsel %vm1145, %v1011, %v1144
  %1147 = vst [vmem:[%s3] sm:$0x3] %v1146
  // Predicated region
  $region10: #{encoder_bottleneck_forward.4} parent=0 // pred_check
    _
  $region11: #{encoder_bottleneck_forward.4} parent=0 // pred_check_branch
    %1149 = sbr.rel (0) target = $region13
  $region12: #{encoder_bottleneck_forward.4} parent=0 // pred_region
    _
  $region13: #{encoder_bottleneck_forward.4} parent=0 // pred_fallthru
    _
  // Predicated region
  $region14: #{encoder_bottleneck_forward.4} parent=0 // pred_check
    _
  $region15: #{encoder_bottleneck_forward.4} parent=0 // pred_check_branch
    %1151 = sbr.rel (0) target = $region17
  $region16: #{encoder_bottleneck_forward.4} parent=0 // pred_region
    _
  $region17: #{encoder_bottleneck_forward.4} parent=0 // pred_fallthru
    _
  // Predicated region
  $region18: #{encoder_bottleneck_forward.4} parent=0 // pred_check
    _
  $region19: #{encoder_bottleneck_forward.4} parent=0 // pred_check_branch
    %1153 = sbr.rel (0) target = $region21
  $region20: #{encoder_bottleneck_forward.4} parent=0 // pred_region
    _
  $region21: #{encoder_bottleneck_forward.4} parent=0 // pred_fallthru
    _
  // Predicated region
  $region22: #{encoder_bottleneck_forward.4} parent=0 // pred_check
    _
  $region23: #{encoder_bottleneck_forward.4} parent=0 // pred_check_branch
    %1155 = sbr.rel (0) target = $region25
  $region24: #{encoder_bottleneck_forward.4} parent=0 // pred_region
    _
  $region25: #{encoder_bottleneck_forward.4} parent=0 // pred_fallthru
    _

// kernel: encoder_bottleneck_forward.7
$region0: #{encoder_bottleneck_forward.7}
  #allocation0 [shape = 'u32[]', space=smem, size = 0x4, offset = 0x4, fixed_abs, tag = 'smem constant byte address 0x4 - core index']
  #allocation1 [shape = 'u32[144,128]{1,0:T(1,128)}', space=vmem, size = 0x12000, scoped, tag = 'internal scratch']
  %s0 = inlined_call_operand.vmem [shape: bf16[512,128], index: 0, kind: input, shape index: {}]
  %s1 = inlined_call_operand.vmem [shape: bf16[512,128], index: 1, kind: input, shape index: {}]
  %s2 = inlined_call_operand.vmem [shape: f32[1,128], index: 2, kind: input, shape index: {}]
  %s3 = inlined_call_operand.vmem [shape: f32[1,128], index: 3, kind: input, shape index: {}]
  %s4 = inlined_call_operand.vmem [shape: f32[1,128], index: 4, kind: input, shape index: {}]
  %s5 = inlined_call_operand.vmem [shape: f32[512,128], index: 5, kind: output, shape index: {}]
  %s6 = sld [smem:[#allocation0]]
  $region30: #{encoder_bottleneck_forward.7} parent=0
    _
  %s8 = ssub.s32 1, %s6
  %s9 = scalar_select 0, %s8, %s6
  // Predicated region
  $region2: #{encoder_bottleneck_forward.7} parent=0 // pred_check
    _
  $region3: #{encoder_bottleneck_forward.7} parent=0 // pred_check_branch
    %11 = sbr.rel (0) target = $region5
  $region4: #{encoder_bottleneck_forward.7} parent=0 // pred_region
    _
  $region5: #{encoder_bottleneck_forward.7} parent=0 // pred_fallthru
    _
  // Predicated region
  $region6: #{encoder_bottleneck_forward.7} parent=0 // pred_check
    _
  $region7: #{encoder_bottleneck_forward.7} parent=0 // pred_check_branch
    %13 = sbr.rel (0) target = $region9
  $region8: #{encoder_bottleneck_forward.7} parent=0 // pred_region
    _
  $region9: #{encoder_bottleneck_forward.7} parent=0 // pred_fallthru
    _
  // Predicated region
  $region10: #{encoder_bottleneck_forward.7} parent=0 // pred_check
    _
  $region11: #{encoder_bottleneck_forward.7} parent=0 // pred_check_branch
    %15 = sbr.rel (0) target = $region13
  $region12: #{encoder_bottleneck_forward.7} parent=0 // pred_region
    _
  $region13: #{encoder_bottleneck_forward.7} parent=0 // pred_fallthru
    _
  // Predicated region
  $region14: #{encoder_bottleneck_forward.7} parent=0 // pred_check
    _
  $region15: #{encoder_bottleneck_forward.7} parent=0 // pred_check_branch
    %17 = sbr.rel (0) target = $region17
  $region16: #{encoder_bottleneck_forward.7} parent=0 // pred_region
    _
  $region17: #{encoder_bottleneck_forward.7} parent=0 // pred_fallthru
    _
  // Predicated region
  $region18: #{encoder_bottleneck_forward.7} parent=0 // pred_check
    _
  $region19: #{encoder_bottleneck_forward.7} parent=0 // pred_check_branch
    %19 = sbr.rel (0) target = $region21
  $region20: #{encoder_bottleneck_forward.7} parent=0 // pred_region
    _
  $region21: #{encoder_bottleneck_forward.7} parent=0 // pred_fallthru
    _
  %v20 = vld [vmem:[%s0] sm:$0xf]
  %v21 = vld [vmem:[%s0 + $0x4] sm:$0xf]
  %v22 = vld [vmem:[%s0 + $0x8] sm:$0xf]
  %v23 = vld [vmem:[%s0 + $0xc] sm:$0xf]
  %v24 = vld [vmem:[%s0 + $0x10] sm:$0xf]
  %v25 = vld [vmem:[%s0 + $0x14] sm:$0xf]
  %v26 = vld [vmem:[%s0 + $0x18] sm:$0xf]
  %v27 = vld [vmem:[%s0 + $0x1c] sm:$0xf]
  %v28 = vld [vmem:[%s0 + $0x20] sm:$0xf]
  %v29 = vld [vmem:[%s0 + $0x24] sm:$0xf]
  %v30 = vld [vmem:[%s0 + $0x28] sm:$0xf]
  %v31 = vld [vmem:[%s0 + $0x2c] sm:$0xf]
  %v32 = vld [vmem:[%s0 + $0x30] sm:$0xf]
  %v33 = vld [vmem:[%s0 + $0x34] sm:$0xf]
  %v34 = vld [vmem:[%s0 + $0x38] sm:$0xf]
  %v35 = vld [vmem:[%s0 + $0x3c] sm:$0xf]
  %v36 = vld [vmem:[%s0 + $0x40] sm:$0xf]
  %v37 = vld [vmem:[%s0 + $0x44] sm:$0xf]
  %v38 = vld [vmem:[%s0 + $0x48] sm:$0xf]
  %v39 = vld [vmem:[%s0 + $0x4c] sm:$0xf]
  %v40 = vld [vmem:[%s0 + $0x50] sm:$0xf]
  %v41 = vld [vmem:[%s0 + $0x54] sm:$0xf]
  %v42 = vld [vmem:[%s0 + $0x58] sm:$0xf]
  %v43 = vld [vmem:[%s0 + $0x5c] sm:$0xf]
  %v44 = vld [vmem:[%s0 + $0x60] sm:$0xf]
  %v45 = vld [vmem:[%s0 + $0x64] sm:$0xf]
  %v46 = vld [vmem:[%s0 + $0x68] sm:$0xf]
  %v47 = vld [vmem:[%s0 + $0x6c] sm:$0xf]
  %v48 = vld [vmem:[%s0 + $0x70] sm:$0xf]
  %v49 = vld [vmem:[%s0 + $0x74] sm:$0xf]
  %v50 = vld [vmem:[%s0 + $0x78] sm:$0xf]
  %v51 = vld [vmem:[%s0 + $0x7c] sm:$0xf]
  %v52 = vld [vmem:[%s0 + $0x80] sm:$0xf]
  %v53 = vld [vmem:[%s0 + $0x84] sm:$0xf]
  %v54 = vld [vmem:[%s0 + $0x88] sm:$0xf]
  %v55 = vld [vmem:[%s0 + $0x8c] sm:$0xf]
  %v56 = vld [vmem:[%s0 + $0x90] sm:$0xf]
  %v57 = vld [vmem:[%s0 + $0x94] sm:$0xf]
  %v58 = vld [vmem:[%s0 + $0x98] sm:$0xf]
  %v59 = vld [vmem:[%s0 + $0x9c] sm:$0xf]
  %v60 = vld [vmem:[%s0 + $0xa0] sm:$0xf]
  %v61 = vld [vmem:[%s0 + $0xa4] sm:$0xf]
  %v62 = vld [vmem:[%s0 + $0xa8] sm:$0xf]
  %v63 = vld [vmem:[%s0 + $0xac] sm:$0xf]
  %v64 = vld [vmem:[%s0 + $0xb0] sm:$0xf]
  %v65 = vld [vmem:[%s0 + $0xb4] sm:$0xf]
  %v66 = vld [vmem:[%s0 + $0xb8] sm:$0xf]
  %v67 = vld [vmem:[%s0 + $0xbc] sm:$0xf]
  %v68 = vld [vmem:[%s0 + $0xc0] sm:$0xf]
  %v69 = vld [vmem:[%s0 + $0xc4] sm:$0xf]
  %v70 = vld [vmem:[%s0 + $0xc8] sm:$0xf]
  %v71 = vld [vmem:[%s0 + $0xcc] sm:$0xf]
  %v72 = vld [vmem:[%s0 + $0xd0] sm:$0xf]
  %v73 = vld [vmem:[%s0 + $0xd4] sm:$0xf]
  %v74 = vld [vmem:[%s0 + $0xd8] sm:$0xf]
  %v75 = vld [vmem:[%s0 + $0xdc] sm:$0xf]
  %v76 = vld [vmem:[%s0 + $0xe0] sm:$0xf]
  %v77 = vld [vmem:[%s0 + $0xe4] sm:$0xf]
  %v78 = vld [vmem:[%s0 + $0xe8] sm:$0xf]
  %v79 = vld [vmem:[%s0 + $0xec] sm:$0xf]
  %v80 = vld [vmem:[%s0 + $0xf0] sm:$0xf]
  %v81 = vld [vmem:[%s0 + $0xf4] sm:$0xf]
  %v82 = vld [vmem:[%s0 + $0xf8] sm:$0xf]
  %v83 = vld [vmem:[%s0 + $0xfc] sm:$0xf]
  %v84 = vunpack.c.l.bf16 %v20
  %v85 = vunpack.c.l.bf16 %v21
  %v86 = vunpack.c.l.bf16 %v22
  %v87 = vunpack.c.l.bf16 %v23
  %v88 = vunpack.c.l.bf16 %v24
  %v89 = vunpack.c.l.bf16 %v25
  %v90 = vunpack.c.l.bf16 %v26
  %v91 = vunpack.c.l.bf16 %v27
  %v92 = vunpack.c.l.bf16 %v28
  %v93 = vunpack.c.l.bf16 %v29
  %v94 = vunpack.c.l.bf16 %v30
  %v95 = vunpack.c.l.bf16 %v31
  %v96 = vunpack.c.l.bf16 %v32
  %v97 = vunpack.c.l.bf16 %v33
  %v98 = vunpack.c.l.bf16 %v34
  %v99 = vunpack.c.l.bf16 %v35
  %v100 = vunpack.c.l.bf16 %v36
  %v101 = vunpack.c.l.bf16 %v37
  %v102 = vunpack.c.l.bf16 %v38
  %v103 = vunpack.c.l.bf16 %v39
  %v104 = vunpack.c.l.bf16 %v40
  %v105 = vunpack.c.l.bf16 %v41
  %v106 = vunpack.c.l.bf16 %v42
  %v107 = vunpack.c.l.bf16 %v43
  %v108 = vunpack.c.l.bf16 %v44
  %v109 = vunpack.c.l.bf16 %v45
  %v110 = vunpack.c.l.bf16 %v46
  %v111 = vunpack.c.l.bf16 %v47
  %v112 = vunpack.c.l.bf16 %v48
  %v113 = vunpack.c.l.bf16 %v49
  %v114 = vunpack.c.l.bf16 %v50
  %v115 = vunpack.c.l.bf16 %v51
  %v116 = vunpack.c.l.bf16 %v52
  %v117 = vunpack.c.l.bf16 %v53
  %v118 = vunpack.c.l.bf16 %v54
  %v119 = vunpack.c.l.bf16 %v55
  %v120 = vunpack.c.l.bf16 %v56
  %v121 = vunpack.c.l.bf16 %v57
  %v122 = vunpack.c.l.bf16 %v58
  %v123 = vunpack.c.l.bf16 %v59
  %v124 = vunpack.c.l.bf16 %v60
  %v125 = vunpack.c.l.bf16 %v61
  %v126 = vunpack.c.l.bf16 %v62
  %v127 = vunpack.c.l.bf16 %v63
  %v128 = vunpack.c.l.bf16 %v64
  %v129 = vunpack.c.l.bf16 %v65
  %v130 = vunpack.c.l.bf16 %v66
  %v131 = vunpack.c.l.bf16 %v67
  %v132 = vunpack.c.l.bf16 %v68
  %v133 = vunpack.c.l.bf16 %v69
  %v134 = vunpack.c.l.bf16 %v70
  %v135 = vunpack.c.l.bf16 %v71
  %v136 = vunpack.c.l.bf16 %v72
  %v137 = vunpack.c.l.bf16 %v73
  %v138 = vunpack.c.l.bf16 %v74
  %v139 = vunpack.c.l.bf16 %v75
  %v140 = vunpack.c.l.bf16 %v76
  %v141 = vunpack.c.l.bf16 %v77
  %v142 = vunpack.c.l.bf16 %v78
  %v143 = vunpack.c.l.bf16 %v79
  %v144 = vunpack.c.l.bf16 %v80
  %v145 = vunpack.c.l.bf16 %v81
  %v146 = vunpack.c.l.bf16 %v82
  %v147 = vunpack.c.l.bf16 %v83
  %v148 = vld [vmem:[%s2] sm:$0x1]
  %v150 = vlaneseq
  %v151 = vshrl.u32 %v150, 7
  %v152 = vsub.s32 0, %v151
  %v153 = vrot.slane %v148, %v152
  %v155 = vmul.f32 %v84, %v153
  %v156 = vmul.f32 %v85, %v153
  %v157 = vmul.f32 %v86, %v153
  %v158 = vmul.f32 %v87, %v153
  %v159 = vmul.f32 %v88, %v153
  %v160 = vmul.f32 %v89, %v153
  %v161 = vmul.f32 %v90, %v153
  %v162 = vmul.f32 %v91, %v153
  %v163 = vmul.f32 %v92, %v153
  %v164 = vmul.f32 %v93, %v153
  %v165 = vmul.f32 %v94, %v153
  %v166 = vmul.f32 %v95, %v153
  %v167 = vmul.f32 %v96, %v153
  %v168 = vmul.f32 %v97, %v153
  %v169 = vmul.f32 %v98, %v153
  %v170 = vmul.f32 %v99, %v153
  %v171 = vmul.f32 %v100, %v153
  %v172 = vmul.f32 %v101, %v153
  %v173 = vmul.f32 %v102, %v153
  %v174 = vmul.f32 %v103, %v153
  %v175 = vmul.f32 %v104, %v153
  %v176 = vmul.f32 %v105, %v153
  %v177 = vmul.f32 %v106, %v153
  %v178 = vmul.f32 %v107, %v153
  %v179 = vmul.f32 %v108, %v153
  %v180 = vmul.f32 %v109, %v153
  %v181 = vmul.f32 %v110, %v153
  %v182 = vmul.f32 %v111, %v153
  %v183 = vmul.f32 %v112, %v153
  %v184 = vmul.f32 %v113, %v153
  %v185 = vmul.f32 %v114, %v153
  %v186 = vmul.f32 %v115, %v153
  %v187 = vmul.f32 %v116, %v153
  %v188 = vmul.f32 %v117, %v153
  %v189 = vmul.f32 %v118, %v153
  %v190 = vmul.f32 %v119, %v153
  %v191 = vmul.f32 %v120, %v153
  %v192 = vmul.f32 %v121, %v153
  %v193 = vmul.f32 %v122, %v153
  %v194 = vmul.f32 %v123, %v153
  %v195 = vmul.f32 %v124, %v153
  %v196 = vmul.f32 %v125, %v153
  %v197 = vmul.f32 %v126, %v153
  %v198 = vmul.f32 %v127, %v153
  %v199 = vmul.f32 %v128, %v153
  %v200 = vmul.f32 %v129, %v153
  %v201 = vmul.f32 %v130, %v153
  %v202 = vmul.f32 %v131, %v153
  %v203 = vmul.f32 %v132, %v153
  %v204 = vmul.f32 %v133, %v153
  %v205 = vmul.f32 %v134, %v153
  %v206 = vmul.f32 %v135, %v153
  %v207 = vmul.f32 %v136, %v153
  %v208 = vmul.f32 %v137, %v153
  %v209 = vmul.f32 %v138, %v153
  %v210 = vmul.f32 %v139, %v153
  %v211 = vmul.f32 %v140, %v153
  %v212 = vmul.f32 %v141, %v153
  %v213 = vmul.f32 %v142, %v153
  %v214 = vmul.f32 %v143, %v153
  %v215 = vmul.f32 %v144, %v153
  %v216 = vmul.f32 %v145, %v153
  %v217 = vmul.f32 %v146, %v153
  %v218 = vmul.f32 %v147, %v153
  %v219 = vld [vmem:[%s1] sm:$0xf]
  %v220 = vld [vmem:[%s1 + $0x4] sm:$0xf]
  %v221 = vld [vmem:[%s1 + $0x8] sm:$0xf]
  %v222 = vld [vmem:[%s1 + $0xc] sm:$0xf]
  %v223 = vld [vmem:[%s1 + $0x10] sm:$0xf]
  %v224 = vld [vmem:[%s1 + $0x14] sm:$0xf]
  %v225 = vld [vmem:[%s1 + $0x18] sm:$0xf]
  %v226 = vld [vmem:[%s1 + $0x1c] sm:$0xf]
  %v227 = vld [vmem:[%s1 + $0x20] sm:$0xf]
  %v228 = vld [vmem:[%s1 + $0x24] sm:$0xf]
  %v229 = vld [vmem:[%s1 + $0x28] sm:$0xf]
  %v230 = vld [vmem:[%s1 + $0x2c] sm:$0xf]
  %v231 = vld [vmem:[%s1 + $0x30] sm:$0xf]
  %v232 = vld [vmem:[%s1 + $0x34] sm:$0xf]
  %v233 = vld [vmem:[%s1 + $0x38] sm:$0xf]
  %v234 = vld [vmem:[%s1 + $0x3c] sm:$0xf]
  %v235 = vld [vmem:[%s1 + $0x40] sm:$0xf]
  %v236 = vld [vmem:[%s1 + $0x44] sm:$0xf]
  %v237 = vld [vmem:[%s1 + $0x48] sm:$0xf]
  %v238 = vld [vmem:[%s1 + $0x4c] sm:$0xf]
  %v239 = vld [vmem:[%s1 + $0x50] sm:$0xf]
  %v240 = vld [vmem:[%s1 + $0x54] sm:$0xf]
  %v241 = vld [vmem:[%s1 + $0x58] sm:$0xf]
  %v242 = vld [vmem:[%s1 + $0x5c] sm:$0xf]
  %v243 = vld [vmem:[%s1 + $0x60] sm:$0xf]
  %v244 = vld [vmem:[%s1 + $0x64] sm:$0xf]
  %v245 = vld [vmem:[%s1 + $0x68] sm:$0xf]
  %v246 = vld [vmem:[%s1 + $0x6c] sm:$0xf]
  %v247 = vld [vmem:[%s1 + $0x70] sm:$0xf]
  %v248 = vld [vmem:[%s1 + $0x74] sm:$0xf]
  %v249 = vld [vmem:[%s1 + $0x78] sm:$0xf]
  %v250 = vld [vmem:[%s1 + $0x7c] sm:$0xf]
  %v251 = vld [vmem:[%s1 + $0x80] sm:$0xf]
  %v252 = vld [vmem:[%s1 + $0x84] sm:$0xf]
  %v253 = vld [vmem:[%s1 + $0x88] sm:$0xf]
  %v254 = vld [vmem:[%s1 + $0x8c] sm:$0xf]
  %v255 = vld [vmem:[%s1 + $0x90] sm:$0xf]
  %v256 = vld [vmem:[%s1 + $0x94] sm:$0xf]
  %v257 = vld [vmem:[%s1 + $0x98] sm:$0xf]
  %v258 = vld [vmem:[%s1 + $0x9c] sm:$0xf]
  %v259 = vld [vmem:[%s1 + $0xa0] sm:$0xf]
  %v260 = vld [vmem:[%s1 + $0xa4] sm:$0xf]
  %v261 = vld [vmem:[%s1 + $0xa8] sm:$0xf]
  %v262 = vld [vmem:[%s1 + $0xac] sm:$0xf]
  %v263 = vld [vmem:[%s1 + $0xb0] sm:$0xf]
  %v264 = vld [vmem:[%s1 + $0xb4] sm:$0xf]
  %v265 = vld [vmem:[%s1 + $0xb8] sm:$0xf]
  %v266 = vld [vmem:[%s1 + $0xbc] sm:$0xf]
  %v267 = vld [vmem:[%s1 + $0xc0] sm:$0xf]
  %v268 = vld [vmem:[%s1 + $0xc4] sm:$0xf]
  %v269 = vld [vmem:[%s1 + $0xc8] sm:$0xf]
  %v270 = vld [vmem:[%s1 + $0xcc] sm:$0xf]
  %v271 = vld [vmem:[%s1 + $0xd0] sm:$0xf]
  %v272 = vld [vmem:[%s1 + $0xd4] sm:$0xf]
  %v273 = vld [vmem:[%s1 + $0xd8] sm:$0xf]
  %v274 = vld [vmem:[%s1 + $0xdc] sm:$0xf]
  %v275 = vld [vmem:[%s1 + $0xe0] sm:$0xf]
  %v276 = vld [vmem:[%s1 + $0xe4] sm:$0xf]
  %v277 = vld [vmem:[%s1 + $0xe8] sm:$0xf]
  %v278 = vld [vmem:[%s1 + $0xec] sm:$0xf]
  %v279 = vld [vmem:[%s1 + $0xf0] sm:$0xf]
  %v280 = vld [vmem:[%s1 + $0xf4] sm:$0xf]
  %v281 = vld [vmem:[%s1 + $0xf8] sm:$0xf]
  %v282 = vld [vmem:[%s1 + $0xfc] sm:$0xf]
  %v283 = vunpack.c.l.bf16 %v219
  %v284 = vunpack.c.l.bf16 %v220
  %v285 = vunpack.c.l.bf16 %v221
  %v286 = vunpack.c.l.bf16 %v222
  %v287 = vunpack.c.l.bf16 %v223
  %v288 = vunpack.c.l.bf16 %v224
  %v289 = vunpack.c.l.bf16 %v225
  %v290 = vunpack.c.l.bf16 %v226
  %v291 = vunpack.c.l.bf16 %v227
  %v292 = vunpack.c.l.bf16 %v228
  %v293 = vunpack.c.l.bf16 %v229
  %v294 = vunpack.c.l.bf16 %v230
  %v295 = vunpack.c.l.bf16 %v231
  %v296 = vunpack.c.l.bf16 %v232
  %v297 = vunpack.c.l.bf16 %v233
  %v298 = vunpack.c.l.bf16 %v234
  %v299 = vunpack.c.l.bf16 %v235
  %v300 = vunpack.c.l.bf16 %v236
  %v301 = vunpack.c.l.bf16 %v237
  %v302 = vunpack.c.l.bf16 %v238
  %v303 = vunpack.c.l.bf16 %v239
  %v304 = vunpack.c.l.bf16 %v240
  %v305 = vunpack.c.l.bf16 %v241
  %v306 = vunpack.c.l.bf16 %v242
  %v307 = vunpack.c.l.bf16 %v243
  %v308 = vunpack.c.l.bf16 %v244
  %v309 = vunpack.c.l.bf16 %v245
  %v310 = vunpack.c.l.bf16 %v246
  %v311 = vunpack.c.l.bf16 %v247
  %v312 = vunpack.c.l.bf16 %v248
  %v313 = vunpack.c.l.bf16 %v249
  %v314 = vunpack.c.l.bf16 %v250
  %v315 = vunpack.c.l.bf16 %v251
  %v316 = vunpack.c.l.bf16 %v252
  %v317 = vunpack.c.l.bf16 %v253
  %v318 = vunpack.c.l.bf16 %v254
  %v319 = vunpack.c.l.bf16 %v255
  %v320 = vunpack.c.l.bf16 %v256
  %v321 = vunpack.c.l.bf16 %v257
  %v322 = vunpack.c.l.bf16 %v258
  %v323 = vunpack.c.l.bf16 %v259
  %v324 = vunpack.c.l.bf16 %v260
  %v325 = vunpack.c.l.bf16 %v261
  %v326 = vunpack.c.l.bf16 %v262
  %v327 = vunpack.c.l.bf16 %v263
  %v328 = vunpack.c.l.bf16 %v264
  %v329 = vunpack.c.l.bf16 %v265
  %v330 = vunpack.c.l.bf16 %v266
  %v331 = vunpack.c.l.bf16 %v267
  %v332 = vunpack.c.l.bf16 %v268
  %v333 = vunpack.c.l.bf16 %v269
  %v334 = vunpack.c.l.bf16 %v270
  %v335 = vunpack.c.l.bf16 %v271
  %v336 = vunpack.c.l.bf16 %v272
  %v337 = vunpack.c.l.bf16 %v273
  %v338 = vunpack.c.l.bf16 %v274
  %v339 = vunpack.c.l.bf16 %v275
  %v340 = vunpack.c.l.bf16 %v276
  %v341 = vunpack.c.l.bf16 %v277
  %v342 = vunpack.c.l.bf16 %v278
  %v343 = vunpack.c.l.bf16 %v279
  %v344 = vunpack.c.l.bf16 %v280
  %v345 = vunpack.c.l.bf16 %v281
  %v346 = vunpack.c.l.bf16 %v282
  %v347 = vld [vmem:[%s3] sm:$0x1]
  %v349 = vlaneseq
  %v350 = vshrl.u32 %v349, 7
  %v351 = vsub.s32 0, %v350
  %v352 = vrot.slane %v347, %v351
  %v354 = vmul.f32 %v283, %v352
  %v355 = vmul.f32 %v284, %v352
  %v356 = vmul.f32 %v285, %v352
  %v357 = vmul.f32 %v286, %v352
  %v358 = vmul.f32 %v287, %v352
  %v359 = vmul.f32 %v288, %v352
  %v360 = vmul.f32 %v289, %v352
  %v361 = vmul.f32 %v290, %v352
  %v362 = vmul.f32 %v291, %v352
  %v363 = vmul.f32 %v292, %v352
  %v364 = vmul.f32 %v293, %v352
  %v365 = vmul.f32 %v294, %v352
  %v366 = vmul.f32 %v295, %v352
  %v367 = vmul.f32 %v296, %v352
  %v368 = vmul.f32 %v297, %v352
  %v369 = vmul.f32 %v298, %v352
  %v370 = vmul.f32 %v299, %v352
  %v371 = vmul.f32 %v300, %v352
  %v372 = vmul.f32 %v301, %v352
  %v373 = vmul.f32 %v302, %v352
  %v374 = vmul.f32 %v303, %v352
  %v375 = vmul.f32 %v304, %v352
  %v376 = vmul.f32 %v305, %v352
  %v377 = vmul.f32 %v306, %v352
  %v378 = vmul.f32 %v307, %v352
  %v379 = vmul.f32 %v308, %v352
  %v380 = vmul.f32 %v309, %v352
  %v381 = vmul.f32 %v310, %v352
  %v382 = vmul.f32 %v311, %v352
  %v383 = vmul.f32 %v312, %v352
  %v384 = vmul.f32 %v313, %v352
  %v385 = vmul.f32 %v314, %v352
  %v386 = vmul.f32 %v315, %v352
  %v387 = vmul.f32 %v316, %v352
  %v388 = vmul.f32 %v317, %v352
  %v389 = vmul.f32 %v318, %v352
  %v390 = vmul.f32 %v319, %v352
  %v391 = vmul.f32 %v320, %v352
  %v392 = vmul.f32 %v321, %v352
  %v393 = vmul.f32 %v322, %v352
  %v394 = vmul.f32 %v323, %v352
  %v395 = vmul.f32 %v324, %v352
  %v396 = vmul.f32 %v325, %v352
  %v397 = vmul.f32 %v326, %v352
  %v398 = vmul.f32 %v327, %v352
  %v399 = vmul.f32 %v328, %v352
  %v400 = vmul.f32 %v329, %v352
  %v401 = vmul.f32 %v330, %v352
  %v402 = vmul.f32 %v331, %v352
  %v403 = vmul.f32 %v332, %v352
  %v404 = vmul.f32 %v333, %v352
  %v405 = vmul.f32 %v334, %v352
  %v406 = vmul.f32 %v335, %v352
  %v407 = vmul.f32 %v336, %v352
  %v408 = vmul.f32 %v337, %v352
  %v409 = vmul.f32 %v338, %v352
  %v410 = vmul.f32 %v339, %v352
  %v411 = vmul.f32 %v340, %v352
  %v412 = vmul.f32 %v341, %v352
  %v413 = vmul.f32 %v342, %v352
  %v414 = vmul.f32 %v343, %v352
  %v415 = vmul.f32 %v344, %v352
  %v416 = vmul.f32 %v345, %v352
  %v417 = vmul.f32 %v346, %v352
  %v418 = vadd.f32 %v155, %v354
  %v419 = vadd.f32 %v156, %v355
  %v420 = vadd.f32 %v157, %v356
  %v421 = vadd.f32 %v158, %v357
  %v422 = vadd.f32 %v159, %v358
  %v423 = vadd.f32 %v160, %v359
  %v424 = vadd.f32 %v161, %v360
  %v425 = vadd.f32 %v162, %v361
  %v426 = vadd.f32 %v163, %v362
  %v427 = vadd.f32 %v164, %v363
  %v428 = vadd.f32 %v165, %v364
  %v429 = vadd.f32 %v166, %v365
  %v430 = vadd.f32 %v167, %v366
  %v431 = vadd.f32 %v168, %v367
  %v432 = vadd.f32 %v169, %v368
  %v433 = vadd.f32 %v170, %v369
  %v434 = vadd.f32 %v171, %v370
  %v435 = vadd.f32 %v172, %v371
  %v436 = vadd.f32 %v173, %v372
  %v437 = vadd.f32 %v174, %v373
  %v438 = vadd.f32 %v175, %v374
  %v439 = vadd.f32 %v176, %v375
  %v440 = vadd.f32 %v177, %v376
  %v441 = vadd.f32 %v178, %v377
  %v442 = vadd.f32 %v179, %v378
  %v443 = vadd.f32 %v180, %v379
  %v444 = vadd.f32 %v181, %v380
  %v445 = vadd.f32 %v182, %v381
  %v446 = vadd.f32 %v183, %v382
  %v447 = vadd.f32 %v184, %v383
  %v448 = vadd.f32 %v185, %v384
  %v449 = vadd.f32 %v186, %v385
  %v450 = vadd.f32 %v187, %v386
  %v451 = vadd.f32 %v188, %v387
  %v452 = vadd.f32 %v189, %v388
  %v453 = vadd.f32 %v190, %v389
  %v454 = vadd.f32 %v191, %v390
  %v455 = vadd.f32 %v192, %v391
  %v456 = vadd.f32 %v193, %v392
  %v457 = vadd.f32 %v194, %v393
  %v458 = vadd.f32 %v195, %v394
  %v459 = vadd.f32 %v196, %v395
  %v460 = vadd.f32 %v197, %v396
  %v461 = vadd.f32 %v198, %v397
  %v462 = vadd.f32 %v199, %v398
  %v463 = vadd.f32 %v200, %v399
  %v464 = vadd.f32 %v201, %v400
  %v465 = vadd.f32 %v202, %v401
  %v466 = vadd.f32 %v203, %v402
  %v467 = vadd.f32 %v204, %v403
  %v468 = vadd.f32 %v205, %v404
  %v469 = vadd.f32 %v206, %v405
  %v470 = vadd.f32 %v207, %v406
  %v471 = vadd.f32 %v208, %v407
  %v472 = vadd.f32 %v209, %v408
  %v473 = vadd.f32 %v210, %v409
  %v474 = vadd.f32 %v211, %v410
  %v475 = vadd.f32 %v212, %v411
  %v476 = vadd.f32 %v213, %v412
  %v477 = vadd.f32 %v214, %v413
  %v478 = vadd.f32 %v215, %v414
  %v479 = vadd.f32 %v216, %v415
  %v480 = vadd.f32 %v217, %v416
  %v481 = vadd.f32 %v218, %v417
  %v482 = vld [vmem:[%s4] sm:$0x1]
  %v484 = vlaneseq
  %v485 = vshrl.u32 %v484, 7
  %v486 = vsub.s32 0, %v485
  %v487 = vrot.slane %v482, %v486
  %v489 = vadd.f32 %v418, %v487
  %v490 = vadd.f32 %v419, %v487
  %v491 = vadd.f32 %v420, %v487
  %v492 = vadd.f32 %v421, %v487
  %v493 = vadd.f32 %v422, %v487
  %v494 = vadd.f32 %v423, %v487
  %v495 = vadd.f32 %v424, %v487
  %v496 = vadd.f32 %v425, %v487
  %v497 = vadd.f32 %v426, %v487
  %v498 = vadd.f32 %v427, %v487
  %v499 = vadd.f32 %v428, %v487
  %v500 = vadd.f32 %v429, %v487
  %v501 = vadd.f32 %v430, %v487
  %v502 = vadd.f32 %v431, %v487
  %v503 = vadd.f32 %v432, %v487
  %v504 = vadd.f32 %v433, %v487
  %v505 = vadd.f32 %v434, %v487
  %v506 = vadd.f32 %v435, %v487
  %v507 = vadd.f32 %v436, %v487
  %v508 = vadd.f32 %v437, %v487
  %v509 = vadd.f32 %v438, %v487
  %v510 = vadd.f32 %v439, %v487
  %v511 = vadd.f32 %v440, %v487
  %v512 = vadd.f32 %v441, %v487
  %v513 = vadd.f32 %v442, %v487
  %v514 = vadd.f32 %v443, %v487
  %v515 = vadd.f32 %v444, %v487
  %v516 = vadd.f32 %v445, %v487
  %v517 = vadd.f32 %v446, %v487
  %v518 = vadd.f32 %v447, %v487
  %v519 = vadd.f32 %v448, %v487
  %v520 = vadd.f32 %v449, %v487
  %v521 = vadd.f32 %v450, %v487
  %v522 = vadd.f32 %v451, %v487
  %v523 = vadd.f32 %v452, %v487
  %v524 = vadd.f32 %v453, %v487
  %v525 = vadd.f32 %v454, %v487
  %v526 = vadd.f32 %v455, %v487
  %v527 = vadd.f32 %v456, %v487
  %v528 = vadd.f32 %v457, %v487
  %v529 = vadd.f32 %v458, %v487
  %v530 = vadd.f32 %v459, %v487
  %v531 = vadd.f32 %v460, %v487
  %v532 = vadd.f32 %v461, %v487
  %v533 = vadd.f32 %v462, %v487
  %v534 = vadd.f32 %v463, %v487
  %v535 = vadd.f32 %v464, %v487
  %v536 = vadd.f32 %v465, %v487
  %v537 = vadd.f32 %v466, %v487
  %v538 = vadd.f32 %v467, %v487
  %v539 = vadd.f32 %v468, %v487
  %v540 = vadd.f32 %v469, %v487
  %v541 = vadd.f32 %v470, %v487
  %v542 = vadd.f32 %v471, %v487
  %v543 = vadd.f32 %v472, %v487
  %v544 = vadd.f32 %v473, %v487
  %v545 = vadd.f32 %v474, %v487
  %v546 = vadd.f32 %v475, %v487
  %v547 = vadd.f32 %v476, %v487
  %v548 = vadd.f32 %v477, %v487
  %v549 = vadd.f32 %v478, %v487
  %v550 = vadd.f32 %v479, %v487
  %v551 = vadd.f32 %v480, %v487
  %v552 = vadd.f32 %v481, %v487
  %v553 = vmax.f32 %v489, 0.0
  %v554 = vmax.f32 %v490, 0.0
  %v555 = vmax.f32 %v491, 0.0
  %v556 = vmax.f32 %v492, 0.0
  %v557 = vmax.f32 %v493, 0.0
  %v558 = vmax.f32 %v494, 0.0
  %v559 = vmax.f32 %v495, 0.0
  %v560 = vmax.f32 %v496, 0.0
  %v561 = vmax.f32 %v497, 0.0
  %v562 = vmax.f32 %v498, 0.0
  %v563 = vmax.f32 %v499, 0.0
  %v564 = vmax.f32 %v500, 0.0
  %v565 = vmax.f32 %v501, 0.0
  %v566 = vmax.f32 %v502, 0.0
  %v567 = vmax.f32 %v503, 0.0
  %v568 = vmax.f32 %v504, 0.0
  %v569 = vmax.f32 %v505, 0.0
  %v570 = vmax.f32 %v506, 0.0
  %v571 = vmax.f32 %v507, 0.0
  %v572 = vmax.f32 %v508, 0.0
  %v573 = vmax.f32 %v509, 0.0
  %v574 = vmax.f32 %v510, 0.0
  %v575 = vmax.f32 %v511, 0.0
  %v576 = vmax.f32 %v512, 0.0
  %v577 = vmax.f32 %v513, 0.0
  %v578 = vmax.f32 %v514, 0.0
  %v579 = vmax.f32 %v515, 0.0
  %v580 = vmax.f32 %v516, 0.0
  %v581 = vmax.f32 %v517, 0.0
  %v582 = vmax.f32 %v518, 0.0
  %v583 = vmax.f32 %v519, 0.0
  %v584 = vmax.f32 %v520, 0.0
  %v585 = vmax.f32 %v521, 0.0
  %v586 = vmax.f32 %v522, 0.0
  %v587 = vmax.f32 %v523, 0.0
  %v588 = vmax.f32 %v524, 0.0
  %v589 = vmax.f32 %v525, 0.0
  %v590 = vmax.f32 %v526, 0.0
  %v591 = vmax.f32 %v527, 0.0
  %v592 = vmax.f32 %v528, 0.0
  %v593 = vmax.f32 %v529, 0.0
  %v594 = vmax.f32 %v530, 0.0
  %v595 = vmax.f32 %v531, 0.0
  %v596 = vmax.f32 %v532, 0.0
  %v597 = vmax.f32 %v533, 0.0
  %v598 = vmax.f32 %v534, 0.0
  %v599 = vmax.f32 %v535, 0.0
  %v600 = vmax.f32 %v536, 0.0
  %v601 = vmax.f32 %v537, 0.0
  %v602 = vmax.f32 %v538, 0.0
  %v603 = vmax.f32 %v539, 0.0
  %v604 = vmax.f32 %v540, 0.0
  %v605 = vmax.f32 %v541, 0.0
  %v606 = vmax.f32 %v542, 0.0
  %v607 = vmax.f32 %v543, 0.0
  %v608 = vmax.f32 %v544, 0.0
  %v609 = vmax.f32 %v545, 0.0
  %v610 = vmax.f32 %v546, 0.0
  %v611 = vmax.f32 %v547, 0.0
  %v612 = vmax.f32 %v548, 0.0
  %v613 = vmax.f32 %v549, 0.0
  %v614 = vmax.f32 %v550, 0.0
  %v615 = vmax.f32 %v551, 0.0
  %v616 = vmax.f32 %v552, 0.0
  %617 = vst [vmem:[%s5] sm:$0xff] %v553
  %618 = vst [vmem:[%s5 + $0x8] sm:$0xff] %v554
  %619 = vst [vmem:[%s5 + $0x10] sm:$0xff] %v555
  %620 = vst [vmem:[%s5 + $0x18] sm:$0xff] %v556
  %621 = vst [vmem:[%s5 + $0x20] sm:$0xff] %v557
  %622 = vst [vmem:[%s5 + $0x28] sm:$0xff] %v558
  %623 = vst [vmem:[%s5 + $0x30] sm:$0xff] %v559
  %624 = vst [vmem:[%s5 + $0x38] sm:$0xff] %v560
  %625 = vst [vmem:[%s5 + $0x40] sm:$0xff] %v561
  %626 = vst [vmem:[%s5 + $0x48] sm:$0xff] %v562
  %627 = vst [vmem:[%s5 + $0x50] sm:$0xff] %v563
  %628 = vst [vmem:[%s5 + $0x58] sm:$0xff] %v564
  %629 = vst [vmem:[%s5 + $0x60] sm:$0xff] %v565
  %630 = vst [vmem:[%s5 + $0x68] sm:$0xff] %v566
  %631 = vst [vmem:[%s5 + $0x70] sm:$0xff] %v567
  %632 = vst [vmem:[%s5 + $0x78] sm:$0xff] %v568
  %633 = vst [vmem:[%s5 + $0x80] sm:$0xff] %v569
  %634 = vst [vmem:[%s5 + $0x88] sm:$0xff] %v570
  %635 = vst [vmem:[%s5 + $0x90] sm:$0xff] %v571
  %636 = vst [vmem:[%s5 + $0x98] sm:$0xff] %v572
  %637 = vst [vmem:[%s5 + $0xa0] sm:$0xff] %v573
  %638 = vst [vmem:[%s5 + $0xa8] sm:$0xff] %v574
  %639 = vst [vmem:[%s5 + $0xb0] sm:$0xff] %v575
  %640 = vst [vmem:[%s5 + $0xb8] sm:$0xff] %v576
  %641 = vst [vmem:[%s5 + $0xc0] sm:$0xff] %v577
  %642 = vst [vmem:[%s5 + $0xc8] sm:$0xff] %v578
  %643 = vst [vmem:[%s5 + $0xd0] sm:$0xff] %v579
  %644 = vst [vmem:[%s5 + $0xd8] sm:$0xff] %v580
  %645 = vst [vmem:[%s5 + $0xe0] sm:$0xff] %v581
  %646 = vst [vmem:[%s5 + $0xe8] sm:$0xff] %v582
  %647 = vst [vmem:[%s5 + $0xf0] sm:$0xff] %v583
  %648 = vst [vmem:[%s5 + $0xf8] sm:$0xff] %v584
  %649 = vst [vmem:[%s5 + $0x100] sm:$0xff] %v585
  %650 = vst [vmem:[%s5 + $0x108] sm:$0xff] %v586
  %651 = vst [vmem:[%s5 + $0x110] sm:$0xff] %v587
  %652 = vst [vmem:[%s5 + $0x118] sm:$0xff] %v588
  %653 = vst [vmem:[%s5 + $0x120] sm:$0xff] %v589
  %654 = vst [vmem:[%s5 + $0x128] sm:$0xff] %v590
  %655 = vst [vmem:[%s5 + $0x130] sm:$0xff] %v591
  %656 = vst [vmem:[%s5 + $0x138] sm:$0xff] %v592
  %657 = vst [vmem:[%s5 + $0x140] sm:$0xff] %v593
  %658 = vst [vmem:[%s5 + $0x148] sm:$0xff] %v594
  %659 = vst [vmem:[%s5 + $0x150] sm:$0xff] %v595
  %660 = vst [vmem:[%s5 + $0x158] sm:$0xff] %v596
  %661 = vst [vmem:[%s5 + $0x160] sm:$0xff] %v597
  %662 = vst [vmem:[%s5 + $0x168] sm:$0xff] %v598
  %663 = vst [vmem:[%s5 + $0x170] sm:$0xff] %v599
  %664 = vst [vmem:[%s5 + $0x178] sm:$0xff] %v600
  %665 = vst [vmem:[%s5 + $0x180] sm:$0xff] %v601
  %666 = vst [vmem:[%s5 + $0x188] sm:$0xff] %v602
  %667 = vst [vmem:[%s5 + $0x190] sm:$0xff] %v603
  %668 = vst [vmem:[%s5 + $0x198] sm:$0xff] %v604
  %669 = vst [vmem:[%s5 + $0x1a0] sm:$0xff] %v605
  %670 = vst [vmem:[%s5 + $0x1a8] sm:$0xff] %v606
  %671 = vst [vmem:[%s5 + $0x1b0] sm:$0xff] %v607
  %672 = vst [vmem:[%s5 + $0x1b8] sm:$0xff] %v608
  %673 = vst [vmem:[%s5 + $0x1c0] sm:$0xff] %v609
  %674 = vst [vmem:[%s5 + $0x1c8] sm:$0xff] %v610
  %675 = vst [vmem:[%s5 + $0x1d0] sm:$0xff] %v611
  %676 = vst [vmem:[%s5 + $0x1d8] sm:$0xff] %v612
  %677 = vst [vmem:[%s5 + $0x1e0] sm:$0xff] %v613
  %678 = vst [vmem:[%s5 + $0x1e8] sm:$0xff] %v614
  %679 = vst [vmem:[%s5 + $0x1f0] sm:$0xff] %v615
  %680 = vst [vmem:[%s5 + $0x1f8] sm:$0xff] %v616
  // Predicated region
  $region22: #{encoder_bottleneck_forward.7} parent=0 // pred_check
    _
  $region23: #{encoder_bottleneck_forward.7} parent=0 // pred_check_branch
    %682 = sbr.rel (0) target = $region25
  $region24: #{encoder_bottleneck_forward.7} parent=0 // pred_region
    _
  $region25: #{encoder_bottleneck_forward.7} parent=0 // pred_fallthru
    _
  // Predicated region
  $region26: #{encoder_bottleneck_forward.7} parent=0 // pred_check
    _
  $region27: #{encoder_bottleneck_forward.7} parent=0 // pred_check_branch
    %684 = sbr.rel (0) target = $region29
  $region28: #{encoder_bottleneck_forward.7} parent=0 // pred_region
    _
  $region29: #{encoder_bottleneck_forward.7} parent=0 // pred_fallthru
    _

// kernel: encoder_bottleneck_forward.5
$region0: #{encoder_bottleneck_forward.5}
  #allocation0 [shape = 'u32[]', space=smem, size = 0x4, offset = 0x4, fixed_abs, tag = 'smem constant byte address 0x4 - core index']
  #allocation1 [shape = 'u32[144,128]{1,0:T(1,128)}', space=vmem, size = 0x12000, scoped, tag = 'internal scratch']
  #allocation2 [shape = 'bf16[4,9,9,128]{3,2,1,0:T(8,128)(2,1)}', space=vmem, size = 0x24000, scoped, tag = 'scratch operand']
  %s0 = inlined_call_operand.vmem [shape: bf16[8,9,9,128], index: 0, kind: input, shape index: {}]
  %s1 = inlined_call_operand.vmem [shape: bf16[9,128,128], index: 1, kind: input, shape index: {}]
  %s2 = inlined_call_operand.vmem [shape: f32[1,128], index: 2, kind: input, shape index: {}]
  %s3 = inlined_call_operand.vmem [shape: f32[1,128], index: 3, kind: input, shape index: {}]
  %s4 = inlined_call_operand.vmem [shape: bf16[2,64,128], index: 4, kind: output, shape index: {0}]
  %s5 = inlined_call_operand.vmem [shape: f32[2,2,128], index: 5, kind: output, shape index: {1}]
  %6 = xla_tuple %s4, %s5
  %s7 = sld [smem:[#allocation0]]
  $region57: #{encoder_bottleneck_forward.5} parent=0
    _
  %s9 = ssub.s32 1, %s7
  %s10 = scalar_select 0, %s9, %s7
  loop: start=0, step=1, limit=4
  $region2: #{encoder_bottleneck_forward.5} parent=0 // loop_pre_header
    _
  $region3: #{encoder_bottleneck_forward.5} parent=0 // loop_header
    %s12 = sphi 0, %s16
    %p13 = scmp.ge.s32.totalorder %s12, 4
    %s22 = sphi 0, %s24
    %s25 = sphi 0, %s22
    %s26 = sphi 0, %s25
    %s42 = sphi 0, %s26
    %s46 = sphi 0, %s46
    %s48 = sphi 0, %s46
    %s49 = sphi 0, %s48
    %s63 = sphi 0, %s49
    %s67 = sphi 0, %s67
    %s69 = sphi 0, %s67
    %s70 = sphi 0, %s69
    %s84 = sphi 0, %s70
    %s88 = sphi 0, %s88
    %s90 = sphi 0, %s88
    %s91 = sphi 0, %s90
    %s105 = sphi 0, %s91
    %s111 = sphi 0, %s113
    %s114 = sphi 0, %s111
    %s115 = sphi 0, %s114
    %s131 = sphi 0, %s115
    %s137 = sphi 0, %s139
    %s140 = sphi 0, %s137
    %s141 = sphi 0, %s140
    %s157 = sphi 0, %s141
  $region4: #{encoder_bottleneck_forward.5} parent=0 // loop_header_branch
    %15 = sbr.rel (%p13) target = $region8
  $region5: #{encoder_bottleneck_forward.5} parent=0 // loop_body
    %s17 = ssub.s32 %s12, 1
    %s18 = ssub.s32 %s12, 2
    %s19 = sadd.s32 %s12, 1
    %s20 = ssub.s32 %s12, %s19
    %p21 = scmp.eq.s32.totalorder %s20, 0
    %s23 = sadd.s32 %s22, 1
    %s24 = scalar_select %p21, %s22, %s23
    %p27 = pneg %p21
    %p28 = scmp.eq.s32.totalorder %s12, 1
    %p29 = por %p27, %p28
    %p30 = scmp.ne.s32.totalorder %s22, %s25
    %p31 = scmp.eq.s32.totalorder %s12, 0
    %p32 = por %p30, %p31
    %p33 = scmp.ne.s32.totalorder %s22, %s25
    %p34 = scmp.eq.s32.totalorder %s17, 1
    %p35 = por %p33, %p34
    %p36 = scmp.ne.s32.totalorder %s25, %s26
    %p37 = scmp.eq.s32.totalorder %s17, 0
    %p38 = por %p36, %p37
    %p39 = scmp.ne.s32.totalorder %s25, %s26
    %p40 = scmp.eq.s32.totalorder %s18, 1
    %p41 = por %p39, %p40
    %p43 = scmp.ne.s32.totalorder %s26, %s42
    %p44 = scmp.eq.s32.totalorder %s18, 0
    %p45 = por %p43, %p44
    %s47 = sadd.s32 %s46, 1
    %p50 = scmp.eq.s32.totalorder %s12, 1
    %p51 = scmp.ne.s32.totalorder %s46, %s48
    %p52 = scmp.eq.s32.totalorder %s12, 0
    %p53 = por %p51, %p52
    %p54 = scmp.ne.s32.totalorder %s46, %s48
    %p55 = scmp.eq.s32.totalorder %s17, 1
    %p56 = por %p54, %p55
    %p57 = scmp.ne.s32.totalorder %s48, %s49
    %p58 = scmp.eq.s32.totalorder %s17, 0
    %p59 = por %p57, %p58
    %p60 = scmp.ne.s32.totalorder %s48, %s49
    %p61 = scmp.eq.s32.totalorder %s18, 1
    %p62 = por %p60, %p61
    %p64 = scmp.ne.s32.totalorder %s49, %s63
    %p65 = scmp.eq.s32.totalorder %s18, 0
    %p66 = por %p64, %p65
    %s68 = sadd.s32 %s67, 1
    %p71 = scmp.eq.s32.totalorder %s12, 1
    %p72 = scmp.ne.s32.totalorder %s67, %s69
    %p73 = scmp.eq.s32.totalorder %s12, 0
    %p74 = por %p72, %p73
    %p75 = scmp.ne.s32.totalorder %s67, %s69
    %p76 = scmp.eq.s32.totalorder %s17, 1
    %p77 = por %p75, %p76
    %p78 = scmp.ne.s32.totalorder %s69, %s70
    %p79 = scmp.eq.s32.totalorder %s17, 0
    %p80 = por %p78, %p79
    %p81 = scmp.ne.s32.totalorder %s69, %s70
    %p82 = scmp.eq.s32.totalorder %s18, 1
    %p83 = por %p81, %p82
    %p85 = scmp.ne.s32.totalorder %s70, %s84
    %p86 = scmp.eq.s32.totalorder %s18, 0
    %p87 = por %p85, %p86
    %s89 = sadd.s32 %s88, 1
    %p92 = scmp.eq.s32.totalorder %s12, 1
    %p93 = scmp.ne.s32.totalorder %s88, %s90
    %p94 = scmp.eq.s32.totalorder %s12, 0
    %p95 = por %p93, %p94
    %p96 = scmp.ne.s32.totalorder %s88, %s90
    %p97 = scmp.eq.s32.totalorder %s17, 1
    %p98 = por %p96, %p97
    %p99 = scmp.ne.s32.totalorder %s90, %s91
    %p100 = scmp.eq.s32.totalorder %s17, 0
    %p101 = por %p99, %p100
    %p102 = scmp.ne.s32.totalorder %s90, %s91
    %p103 = scmp.eq.s32.totalorder %s18, 1
    %p104 = por %p102, %p103
    %p106 = scmp.ne.s32.totalorder %s91, %s105
    %p107 = scmp.eq.s32.totalorder %s18, 0
    %p108 = por %p106, %p107
    %s109 = ssub.s32 %s12, %s19
    %p110 = scmp.eq.s32.totalorder %s109, 0
    %s112 = sadd.s32 %s111, 1
    %s113 = scalar_select %p110, %s111, %s112
    %p116 = pneg %p110
    %p117 = scmp.eq.s32.totalorder %s12, 1
    %p118 = por %p116, %p117
    %p119 = scmp.ne.s32.totalorder %s111, %s114
    %p120 = scmp.eq.s32.totalorder %s12, 0
    %p121 = por %p119, %p120
    %p122 = scmp.ne.s32.totalorder %s111, %s114
    %p123 = scmp.eq.s32.totalorder %s17, 1
    %p124 = por %p122, %p123
    %p125 = scmp.ne.s32.totalorder %s114, %s115
    %p126 = scmp.eq.s32.totalorder %s17, 0
    %p127 = por %p125, %p126
    %p128 = scmp.ne.s32.totalorder %s114, %s115
    %p129 = scmp.eq.s32.totalorder %s18, 1
    %p130 = por %p128, %p129
    %p132 = scmp.ne.s32.totalorder %s115, %s131
    %p133 = scmp.eq.s32.totalorder %s18, 0
    %p134 = por %p132, %p133
    %s135 = ssub.s32 %s12, %s19
    %p136 = scmp.eq.s32.totalorder %s135, 0
    %s138 = sadd.s32 %s137, 1
    %s139 = scalar_select %p136, %s137, %s138
    %p142 = pneg %p136
    %p143 = scmp.eq.s32.totalorder %s12, 1
    %p144 = por %p142, %p143
    %p145 = scmp.ne.s32.totalorder %s137, %s140
    %p146 = scmp.eq.s32.totalorder %s12, 0
    %p147 = por %p145, %p146
    %p148 = scmp.ne.s32.totalorder %s137, %s140
    %p149 = scmp.eq.s32.totalorder %s17, 1
    %p150 = por %p148, %p149
    %p151 = scmp.ne.s32.totalorder %s140, %s141
    %p152 = scmp.eq.s32.totalorder %s17, 0
    %p153 = por %p151, %p152
    %p154 = scmp.ne.s32.totalorder %s140, %s141
    %p155 = scmp.eq.s32.totalorder %s18, 1
    %p156 = por %p154, %p155
    %p158 = scmp.ne.s32.totalorder %s141, %s157
    %p159 = scmp.eq.s32.totalorder %s18, 0
    %p160 = por %p158, %p159
    %p161 = scmp.le.s32.totalorder 1, %s12
    %p162 = scmp.lt.s32.totalorder %s12, 3
    %p163 = pnand %p161, %p162
    %p164 = pneg %p163
    // Predicated region
    $region9: #{encoder_bottleneck_forward.5} parent=5 // pred_check
      _
    $region10: #{encoder_bottleneck_forward.5} parent=5 // pred_check_branch
      %166 = sbr.rel (%p163) target = $region12
    $region11: #{encoder_bottleneck_forward.5} parent=5 // pred_region
      %s167 = ssub.s32 %s12, 1
      // Predicated region
      $region13: #{encoder_bottleneck_forward.5} parent=11 // pred_check
        %p168 = pneg %p59
      $region14: #{encoder_bottleneck_forward.5} parent=11 // pred_check_branch
        %170 = sbr.rel (%p168) target = $region16
      $region15: #{encoder_bottleneck_forward.5} parent=11 // pred_region
        _
      $region16: #{encoder_bottleneck_forward.5} parent=11 // pred_fallthru
        _
      // Predicated region
      $region17: #{encoder_bottleneck_forward.5} parent=11 // pred_check
        %p171 = pneg %p80
      $region18: #{encoder_bottleneck_forward.5} parent=11 // pred_check_branch
        %173 = sbr.rel (%p171) target = $region20
      $region19: #{encoder_bottleneck_forward.5} parent=11 // pred_region
        _
      $region20: #{encoder_bottleneck_forward.5} parent=11 // pred_fallthru
        _
      // Predicated region
      $region21: #{encoder_bottleneck_forward.5} parent=11 // pred_check
        %p174 = pneg %p101
      $region22: #{encoder_bottleneck_forward.5} parent=11 // pred_check_branch
        %176 = sbr.rel (%p174) target = $region24
      $region23: #{encoder_bottleneck_forward.5} parent=11 // pred_region
        _
      $region24: #{encoder_bottleneck_forward.5} parent=11 // pred_fallthru
        _
    $region12: #{encoder_bottleneck_forward.5} parent=5 // pred_fallthru
      _
    %p177 = scmp.lt.s32.totalorder %s12, 2
    // Predicated region
    $region25: #{encoder_bottleneck_forward.5} parent=5 // pred_check
      %p178 = pneg %p177
    $region26: #{encoder_bottleneck_forward.5} parent=5 // pred_check_branch
      %180 = sbr.rel (%p178) target = $region28
    $region27: #{encoder_bottleneck_forward.5} parent=5 // pred_region
      // Predicated region
      $region29: #{encoder_bottleneck_forward.5} parent=27 // pred_check
        %p181 = pneg %p32
      $region30: #{encoder_bottleneck_forward.5} parent=27 // pred_check_branch
        %183 = sbr.rel (%p181) target = $region32
      $region31: #{encoder_bottleneck_forward.5} parent=27 // pred_region
        %s184 = smul.u32 4, %s12
        %p185 = scmp.lt.s32.totalorder %s184, 7
        %s186 = scalar_select %p185, %s184, 7
        %s187 = smul.addr %s186, 18
        %s188 = smul.addr %s187, 4
        %s189 = scalar_lea.vmem %s0, %s188
        %s190 = smul.u32 4, %s12
      $region32: #{encoder_bottleneck_forward.5} parent=27 // pred_fallthru
        _
    $region28: #{encoder_bottleneck_forward.5} parent=5 // pred_fallthru
      _
    %p191 = scmp.le.s32.totalorder 1, %s12
    %p192 = scmp.lt.s32.totalorder %s12, 3
    %p193 = pnand %p191, %p192
    %p194 = pneg %p193
    // Predicated region
    $region33: #{encoder_bottleneck_forward.5} parent=5 // pred_check
      _
    $region34: #{encoder_bottleneck_forward.5} parent=5 // pred_check_branch
      %196 = sbr.rel (%p193) target = $region36
    $region35: #{encoder_bottleneck_forward.5} parent=5 // pred_region
      %s197 = ssub.s32 %s12, 1
      %s198 = smul.u32 4, %s17
      %p199 = scmp.lt.s32.totalorder %s198, 7
      %s200 = scalar_select %p199, %s198, 7
      %s201 = smul.addr %s200, 18
      %s202 = smul.addr %s201, 4
      %s203 = scalar_lea.vmem %s0, %s202
      %p204 = pneg %p38
      %p205 = pneg %p35
      %p206 = pneg %p59
      %p207 = pneg %p56
      %p208 = pneg %p80
      %p209 = pneg %p77
      %p210 = pneg %p101
      %p211 = pneg %p98
      %p212 = pneg %p127
      %p213 = pneg %p124
      %p214 = scmp.lt.s32.totalorder %s17, 1
      %s215 = scalar_select %p214, %s17, 1
      %s216 = smul.addr %s215, 8
      %s217 = smul.addr %s216, 4
      %s218 = scalar_lea.vmem %s4, %s217
      %p219 = pneg %p153
      %p220 = pneg %p150
      %p221 = scmp.lt.s32.totalorder %s17, 1
      %s222 = scalar_select %p221, %s17, 1
      %s223 = smul.addr %s222, 2
      %s224 = scalar_lea.vmem %s5, %s223
      %s225 = smul.u32 4, %s17
      %p226 = scmp.lt.s32.totalorder %s225, 7
      %s227 = scalar_select %p226, %s225, 7
      %s228 = smul.addr %s227, 18
      %s229 = smul.addr %s228, 4
      %s230 = scalar_lea.vmem %s0, %s229
      %s231 = smul.u32 4, %s17
      %p232 = scmp.lt.s32.totalorder %s17, 1
      %s233 = scalar_select %p232, %s17, 1
      %s234 = smul.addr %s233, 8
      %s235 = smul.addr %s234, 4
      %s236 = scalar_lea.vmem %s4, %s235
      %p237 = scmp.lt.s32.totalorder %s17, 1
      %s238 = scalar_select %p237, %s17, 1
      %s239 = smul.addr %s238, 2
      %s240 = scalar_lea.vmem %s5, %s239
      %v242 = vld [vmem:[%s2] sm:$0x1]
      %v243 = vld [vmem:[%s3] sm:$0x1]
      %244 = vst [vmem:[#allocation2] sm:$0xf] 0
      %vm245 = vcmask 1040384
      %vm246 = vsmask.f32 256
      %vm247 = vmand %vm245, %vm246
      %v248 = vld [vmem:[#allocation2 + $0x4] sm:$0x1]
      %v249 = vsel %vm247, 0, %v248
      %250 = vst [vmem:[#allocation2 + $0x4] sm:$0x1] %v249
      %251 = vst [vmem:[#allocation2 + $0x8] sm:$0xf] 0
      %v252 = vld [vmem:[#allocation2 + $0xc] sm:$0x1]
      %v253 = vsel %vm247, 0, %v252
      %254 = vst [vmem:[#allocation2 + $0xc] sm:$0x1] %v253
      %255 = vst [vmem:[#allocation2 + $0x10] sm:$0xf] 0
      %v256 = vld [vmem:[#allocation2 + $0x14] sm:$0x1]
      %v257 = vsel %vm247, 0, %v256
      %258 = vst [vmem:[#allocation2 + $0x14] sm:$0x1] %v257
      %259 = vst [vmem:[#allocation2 + $0x18] sm:$0xf] 0
      %v260 = vld [vmem:[#allocation2 + $0x1c] sm:$0x1]
      %v261 = vsel %vm247, 0, %v260
      %262 = vst [vmem:[#allocation2 + $0x1c] sm:$0x1] %v261
      %263 = vst [vmem:[#allocation2 + $0x20] sm:$0xf] 0
      %v264 = vld [vmem:[#allocation2 + $0x24] sm:$0x1]
      %v265 = vsel %vm247, 0, %v264
      %266 = vst [vmem:[#allocation2 + $0x24] sm:$0x1] %v265
      %267 = vst [vmem:[#allocation2 + $0x28] sm:$0xf] 0
      %v268 = vld [vmem:[#allocation2 + $0x2c] sm:$0x1]
      %v269 = vsel %vm247, 0, %v268
      %270 = vst [vmem:[#allocation2 + $0x2c] sm:$0x1] %v269
      %271 = vst [vmem:[#allocation2 + $0x30] sm:$0xf] 0
      %v272 = vld [vmem:[#allocation2 + $0x34] sm:$0x1]
      %v273 = vsel %vm247, 0, %v272
      %274 = vst [vmem:[#allocation2 + $0x34] sm:$0x1] %v273
      %275 = vst [vmem:[#allocation2 + $0x38] sm:$0xf] 0
      %v276 = vld [vmem:[#allocation2 + $0x3c] sm:$0x1]
      %v277 = vsel %vm247, 0, %v276
      %278 = vst [vmem:[#allocation2 + $0x3c] sm:$0x1] %v277
      %279 = vst [vmem:[#allocation2 + $0x40] sm:$0xf] 0
      %v280 = vld [vmem:[#allocation2 + $0x44] sm:$0x1]
      %v281 = vsel %vm247, 0, %v280
      %282 = vst [vmem:[#allocation2 + $0x44] sm:$0x1] %v281
      %283 = vst [vmem:[#allocation2 + $0x48] sm:$0xf] 0
      %v284 = vld [vmem:[#allocation2 + $0x4c] sm:$0x1]
      %v285 = vsel %vm247, 0, %v284
      %286 = vst [vmem:[#allocation2 + $0x4c] sm:$0x1] %v285
      %287 = vst [vmem:[#allocation2 + $0x50] sm:$0xf] 0
      %v288 = vld [vmem:[#allocation2 + $0x54] sm:$0x1]
      %v289 = vsel %vm247, 0, %v288
      %290 = vst [vmem:[#allocation2 + $0x54] sm:$0x1] %v289
      %291 = vst [vmem:[#allocation2 + $0x58] sm:$0xf] 0
      %v292 = vld [vmem:[#allocation2 + $0x5c] sm:$0x1]
      %v293 = vsel %vm247, 0, %v292
      %294 = vst [vmem:[#allocation2 + $0x5c] sm:$0x1] %v293
      %295 = vst [vmem:[#allocation2 + $0x60] sm:$0xf] 0
      %v296 = vld [vmem:[#allocation2 + $0x64] sm:$0x1]
      %v297 = vsel %vm247, 0, %v296
      %298 = vst [vmem:[#allocation2 + $0x64] sm:$0x1] %v297
      %299 = vst [vmem:[#allocation2 + $0x68] sm:$0xf] 0
      %v300 = vld [vmem:[#allocation2 + $0x6c] sm:$0x1]
      %v301 = vsel %vm247, 0, %v300
      %302 = vst [vmem:[#allocation2 + $0x6c] sm:$0x1] %v301
      %303 = vst [vmem:[#allocation2 + $0x70] sm:$0xf] 0
      %v304 = vld [vmem:[#allocation2 + $0x74] sm:$0x1]
      %v305 = vsel %vm247, 0, %v304
      %306 = vst [vmem:[#allocation2 + $0x74] sm:$0x1] %v305
      %307 = vst [vmem:[#allocation2 + $0x78] sm:$0xf] 0
      %v308 = vld [vmem:[#allocation2 + $0x7c] sm:$0x1]
      %v309 = vsel %vm247, 0, %v308
      %310 = vst [vmem:[#allocation2 + $0x7c] sm:$0x1] %v309
      %311 = vst [vmem:[#allocation2 + $0x80] sm:$0xf] 0
      %v312 = vld [vmem:[#allocation2 + $0x84] sm:$0x1]
      %v313 = vsel %vm247, 0, %v312
      %314 = vst [vmem:[#allocation2 + $0x84] sm:$0x1] %v313
      %315 = vst [vmem:[#allocation2 + $0x88] sm:$0xf] 0
      %v316 = vld [vmem:[#allocation2 + $0x8c] sm:$0x1]
      %v317 = vsel %vm247, 0, %v316
      %318 = vst [vmem:[#allocation2 + $0x8c] sm:$0x1] %v317
      %319 = vst [vmem:[#allocation2 + $0x90] sm:$0xf] 0
      %v320 = vld [vmem:[#allocation2 + $0x94] sm:$0x1]
      %v321 = vsel %vm247, 0, %v320
      %322 = vst [vmem:[#allocation2 + $0x94] sm:$0x1] %v321
      %323 = vst [vmem:[#allocation2 + $0x98] sm:$0xf] 0
      %v324 = vld [vmem:[#allocation2 + $0x9c] sm:$0x1]
      %v325 = vsel %vm247, 0, %v324
      %326 = vst [vmem:[#allocation2 + $0x9c] sm:$0x1] %v325
      %327 = vst [vmem:[#allocation2 + $0xa0] sm:$0xf] 0
      %v328 = vld [vmem:[#allocation2 + $0xa4] sm:$0x1]
      %v329 = vsel %vm247, 0, %v328
      %330 = vst [vmem:[#allocation2 + $0xa4] sm:$0x1] %v329
      %331 = vst [vmem:[#allocation2 + $0xa8] sm:$0xf] 0
      %v332 = vld [vmem:[#allocation2 + $0xac] sm:$0x1]
      %v333 = vsel %vm247, 0, %v332
      %334 = vst [vmem:[#allocation2 + $0xac] sm:$0x1] %v333
      %335 = vst [vmem:[#allocation2 + $0xb0] sm:$0xf] 0
      %v336 = vld [vmem:[#allocation2 + $0xb4] sm:$0x1]
      %v337 = vsel %vm247, 0, %v336
      %338 = vst [vmem:[#allocation2 + $0xb4] sm:$0x1] %v337
      %339 = vst [vmem:[#allocation2 + $0xb8] sm:$0xf] 0
      %v340 = vld [vmem:[#allocation2 + $0xbc] sm:$0x1]
      %v341 = vsel %vm247, 0, %v340
      %342 = vst [vmem:[#allocation2 + $0xbc] sm:$0x1] %v341
      %343 = vst [vmem:[#allocation2 + $0xc0] sm:$0xf] 0
      %v344 = vld [vmem:[#allocation2 + $0xc4] sm:$0x1]
      %v345 = vsel %vm247, 0, %v344
      %346 = vst [vmem:[#allocation2 + $0xc4] sm:$0x1] %v345
      %347 = vst [vmem:[#allocation2 + $0xc8] sm:$0xf] 0
      %v348 = vld [vmem:[#allocation2 + $0xcc] sm:$0x1]
      %v349 = vsel %vm247, 0, %v348
      %350 = vst [vmem:[#allocation2 + $0xcc] sm:$0x1] %v349
      %351 = vst [vmem:[#allocation2 + $0xd0] sm:$0xf] 0
      %v352 = vld [vmem:[#allocation2 + $0xd4] sm:$0x1]
      %v353 = vsel %vm247, 0, %v352
      %354 = vst [vmem:[#allocation2 + $0xd4] sm:$0x1] %v353
      %355 = vst [vmem:[#allocation2 + $0xd8] sm:$0xf] 0
      %v356 = vld [vmem:[#allocation2 + $0xdc] sm:$0x1]
      %v357 = vsel %vm247, 0, %v356
      %358 = vst [vmem:[#allocation2 + $0xdc] sm:$0x1] %v357
      %359 = vst [vmem:[#allocation2 + $0xe0] sm:$0xf] 0
      %v360 = vld [vmem:[#allocation2 + $0xe4] sm:$0x1]
      %v361 = vsel %vm247, 0, %v360
      %362 = vst [vmem:[#allocation2 + $0xe4] sm:$0x1] %v361
      %363 = vst [vmem:[#allocation2 + $0xe8] sm:$0xf] 0
      %v364 = vld [vmem:[#allocation2 + $0xec] sm:$0x1]
      %v365 = vsel %vm247, 0, %v364
      %366 = vst [vmem:[#allocation2 + $0xec] sm:$0x1] %v365
      %367 = vst [vmem:[#allocation2 + $0xf0] sm:$0xf] 0
      %v368 = vld [vmem:[#allocation2 + $0xf4] sm:$0x1]
      %v369 = vsel %vm247, 0, %v368
      %370 = vst [vmem:[#allocation2 + $0xf4] sm:$0x1] %v369
      %371 = vst [vmem:[#allocation2 + $0xf8] sm:$0xf] 0
      %v372 = vld [vmem:[#allocation2 + $0xfc] sm:$0x1]
      %v373 = vsel %vm247, 0, %v372
      %374 = vst [vmem:[#allocation2 + $0xfc] sm:$0x1] %v373
      %375 = vst [vmem:[#allocation2 + $0x100] sm:$0xf] 0
      %v376 = vld [vmem:[#allocation2 + $0x104] sm:$0x1]
      %v377 = vsel %vm247, 0, %v376
      %378 = vst [vmem:[#allocation2 + $0x104] sm:$0x1] %v377
      %379 = vst [vmem:[#allocation2 + $0x108] sm:$0xf] 0
      %v380 = vld [vmem:[#allocation2 + $0x10c] sm:$0x1]
      %v381 = vsel %vm247, 0, %v380
      %382 = vst [vmem:[#allocation2 + $0x10c] sm:$0x1] %v381
      %383 = vst [vmem:[#allocation2 + $0x110] sm:$0xf] 0
      %v384 = vld [vmem:[#allocation2 + $0x114] sm:$0x1]
      %v385 = vsel %vm247, 0, %v384
      %386 = vst [vmem:[#allocation2 + $0x114] sm:$0x1] %v385
      %387 = vst [vmem:[#allocation2 + $0x118] sm:$0xf] 0
      %v388 = vld [vmem:[#allocation2 + $0x11c] sm:$0x1]
      %v389 = vsel %vm247, 0, %v388
      %390 = vst [vmem:[#allocation2 + $0x11c] sm:$0x1] %v389
      %s391 = scalar_lea.vmem %s230, 8
      %v392 = vld [vmem:[%s391] sm:$0xf]
      %v393 = vld [vmem:[%s391 + $0x4] sm:$0x1]
      %v394 = vld [vmem:[%s391 + $0x8] sm:$0xf]
      %v395 = vld [vmem:[%s391 + $0xc] sm:$0x1]
      %v396 = vld [vmem:[%s391 + $0x10] sm:$0xf]
      %v397 = vld [vmem:[%s391 + $0x14] sm:$0x1]
      %v398 = vld [vmem:[%s391 + $0x18] sm:$0xf]
      %v399 = vld [vmem:[%s391 + $0x1c] sm:$0x1]
      %v400 = vld [vmem:[%s391 + $0x20] sm:$0xf]
      %v401 = vld [vmem:[%s391 + $0x24] sm:$0x1]
      %v402 = vld [vmem:[%s391 + $0x28] sm:$0xf]
      %v403 = vld [vmem:[%s391 + $0x2c] sm:$0x1]
      %v404 = vld [vmem:[%s391 + $0x30] sm:$0xf]
      %v405 = vld [vmem:[%s391 + $0x34] sm:$0x1]
      %v406 = vld [vmem:[%s391 + $0x38] sm:$0xf]
      %v407 = vld [vmem:[%s391 + $0x3c] sm:$0x1]
      %v408 = vunpack.c.l.bf16 %v392
      %v409 = vunpack.c.l.bf16 %v393
      %v410 = vunpack.c.l.bf16 %v394
      %v411 = vunpack.c.l.bf16 %v395
      %v412 = vunpack.c.l.bf16 %v396
      %v413 = vunpack.c.l.bf16 %v397
      %v414 = vunpack.c.l.bf16 %v398
      %v415 = vunpack.c.l.bf16 %v399
      %v416 = vunpack.c.l.bf16 %v400
      %v417 = vunpack.c.l.bf16 %v401
      %v418 = vunpack.c.l.bf16 %v402
      %v419 = vunpack.c.l.bf16 %v403
      %v420 = vunpack.c.l.bf16 %v404
      %v421 = vunpack.c.l.bf16 %v405
      %v422 = vunpack.c.l.bf16 %v406
      %v423 = vunpack.c.l.bf16 %v407
      %v425 = vlaneseq
      %v426 = vshrl.u32 %v425, 7
      %v427 = vsub.s32 0, %v426
      %v428 = vrot.slane %v242, %v427
      %v430 = vmul.f32 %v408, %v428
      %v431 = vmul.f32 %v409, %v428
      %v432 = vmul.f32 %v410, %v428
      %v433 = vmul.f32 %v411, %v428
      %v434 = vmul.f32 %v412, %v428
      %v435 = vmul.f32 %v413, %v428
      %v436 = vmul.f32 %v414, %v428
      %v437 = vmul.f32 %v415, %v428
      %v438 = vmul.f32 %v416, %v428
      %v439 = vmul.f32 %v417, %v428
      %v440 = vmul.f32 %v418, %v428
      %v441 = vmul.f32 %v419, %v428
      %v442 = vmul.f32 %v420, %v428
      %v443 = vmul.f32 %v421, %v428
      %v444 = vmul.f32 %v422, %v428
      %v445 = vmul.f32 %v423, %v428
      %v447 = vlaneseq
      %v448 = vshrl.u32 %v447, 7
      %v449 = vsub.s32 0, %v448
      %v450 = vrot.slane %v243, %v449
      %v452 = vadd.f32 %v430, %v450
      %v453 = vadd.f32 %v431, %v450
      %v454 = vadd.f32 %v432, %v450
      %v455 = vadd.f32 %v433, %v450
      %v456 = vadd.f32 %v434, %v450
      %v457 = vadd.f32 %v435, %v450
      %v458 = vadd.f32 %v436, %v450
      %v459 = vadd.f32 %v437, %v450
      %v460 = vadd.f32 %v438, %v450
      %v461 = vadd.f32 %v439, %v450
      %v462 = vadd.f32 %v440, %v450
      %v463 = vadd.f32 %v441, %v450
      %v464 = vadd.f32 %v442, %v450
      %v465 = vadd.f32 %v443, %v450
      %v466 = vadd.f32 %v444, %v450
      %v467 = vadd.f32 %v445, %v450
      %v468 = vmax.f32 %v452, 0.0
      %v469 = vmax.f32 %v453, 0.0
      %v470 = vmax.f32 %v454, 0.0
      %v471 = vmax.f32 %v455, 0.0
      %v472 = vmax.f32 %v456, 0.0
      %v473 = vmax.f32 %v457, 0.0
      %v474 = vmax.f32 %v458, 0.0
      %v475 = vmax.f32 %v459, 0.0
      %v476 = vmax.f32 %v460, 0.0
      %v477 = vmax.f32 %v461, 0.0
      %v478 = vmax.f32 %v462, 0.0
      %v479 = vmax.f32 %v463, 0.0
      %v480 = vmax.f32 %v464, 0.0
      %v481 = vmax.f32 %v465, 0.0
      %v482 = vmax.f32 %v466, 0.0
      %v483 = vmax.f32 %v467, 0.0
      %v484 = vpack.c.bf16 %v469, %v468
      %v485 = vpack.c.bf16 %v471, %v470
      %v486 = vpack.c.bf16 %v473, %v472
      %v487 = vpack.c.bf16 %v475, %v474
      %v488 = vpack.c.bf16 %v477, %v476
      %v489 = vpack.c.bf16 %v479, %v478
      %v490 = vpack.c.bf16 %v481, %v480
      %v491 = vpack.c.bf16 %v483, %v482
      %v500 = vunpack.c.l.b16 %v484
      %v501 = vunpack.c.h.b16 %v484
      %v502 = vunpack.c.l.b16 %v485
      %v503 = vunpack.c.h.b16 %v485
      %v504 = vunpack.c.l.b16 %v486
      %v505 = vunpack.c.h.b16 %v486
      %v506 = vunpack.c.l.b16 %v487
      %v507 = vunpack.c.h.b16 %v487
      %v508 = vunpack.c.l.b16 %v488
      %v509 = vunpack.c.h.b16 %v488
      %v510 = vunpack.c.l.b16 %v489
      %v511 = vunpack.c.h.b16 %v489
      %v512 = vunpack.c.l.b16 %v490
      %v513 = vunpack.c.h.b16 %v490
      %v514 = vunpack.c.l.b16 %v491
      %v515 = vunpack.c.h.b16 %v491
      %v516 = vpack.c.b16 %v500, %v500
      %v517 = vpack.c.b16 %v501, %v501
      %v518 = vpack.c.b16 %v502, %v502
      %v519 = vpack.c.b16 %v503, %v503
      %v520 = vpack.c.b16 %v504, %v504
      %v521 = vpack.c.b16 %v505, %v505
      %v522 = vpack.c.b16 %v506, %v506
      %v523 = vpack.c.b16 %v507, %v507
      %v524 = vpack.c.b16 %v508, %v508
      %v525 = vpack.c.b16 %v509, %v509
      %v526 = vpack.c.b16 %v510, %v510
      %v527 = vpack.c.b16 %v511, %v511
      %v528 = vpack.c.b16 %v512, %v512
      %v529 = vpack.c.b16 %v513, %v513
      %v530 = vpack.c.b16 %v514, %v514
      %v531 = vpack.c.b16 %v515, %v515
      %s548 = scalar_lea.vmem [#allocation2], 8
      %vm549 = vcmask 1043456
      %vm550 = vsmask.f32 7938
      %vm551 = vmand %vm549, %vm550
      %v552 = vld [vmem:[%s548] sm:$0xf]
      %v553 = vsel %vm551, %v516, %v552
      %554 = vst [vmem:[%s548] sm:$0xf] %v553
      %v555 = vld [vmem:[%s548 + $0x4] sm:$0x1]
      %v556 = vsel %vm247, %v517, %v555
      %557 = vst [vmem:[%s548 + $0x4] sm:$0x1] %v556
      %v558 = vld [vmem:[%s548 + $0x8] sm:$0xf]
      %v559 = vsel %vm551, %v518, %v558
      %560 = vst [vmem:[%s548 + $0x8] sm:$0xf] %v559
      %v561 = vld [vmem:[%s548 + $0xc] sm:$0x1]
      %v562 = vsel %vm247, %v519, %v561
      %563 = vst [vmem:[%s548 + $0xc] sm:$0x1] %v562
      %v564 = vld [vmem:[%s548 + $0x10] sm:$0xf]
      %v565 = vsel %vm551, %v520, %v564
      %566 = vst [vmem:[%s548 + $0x10] sm:$0xf] %v565
      %v567 = vld [vmem:[%s548 + $0x14] sm:$0x1]
      %v568 = vsel %vm247, %v521, %v567
      %569 = vst [vmem:[%s548 + $0x14] sm:$0x1] %v568
      %v570 = vld [vmem:[%s548 + $0x18] sm:$0xf]
      %v571 = vsel %vm551, %v522, %v570
      %572 = vst [vmem:[%s548 + $0x18] sm:$0xf] %v571
      %v573 = vld [vmem:[%s548 + $0x1c] sm:$0x1]
      %v574 = vsel %vm247, %v523, %v573
      %575 = vst [vmem:[%s548 + $0x1c] sm:$0x1] %v574
      %v576 = vld [vmem:[%s548 + $0x20] sm:$0xf]
      %v577 = vsel %vm551, %v524, %v576
      %578 = vst [vmem:[%s548 + $0x20] sm:$0xf] %v577
      %v579 = vld [vmem:[%s548 + $0x24] sm:$0x1]
      %v580 = vsel %vm247, %v525, %v579
      %581 = vst [vmem:[%s548 + $0x24] sm:$0x1] %v580
      %v582 = vld [vmem:[%s548 + $0x28] sm:$0xf]
      %v583 = vsel %vm551, %v526, %v582
      %584 = vst [vmem:[%s548 + $0x28] sm:$0xf] %v583
      %v585 = vld [vmem:[%s548 + $0x2c] sm:$0x1]
      %v586 = vsel %vm247, %v527, %v585
      %587 = vst [vmem:[%s548 + $0x2c] sm:$0x1] %v586
      %v588 = vld [vmem:[%s548 + $0x30] sm:$0xf]
      %v589 = vsel %vm551, %v528, %v588
      %590 = vst [vmem:[%s548 + $0x30] sm:$0xf] %v589
      %v591 = vld [vmem:[%s548 + $0x34] sm:$0x1]
      %v592 = vsel %vm247, %v529, %v591
      %593 = vst [vmem:[%s548 + $0x34] sm:$0x1] %v592
      %v594 = vld [vmem:[%s548 + $0x38] sm:$0xf]
      %v595 = vsel %vm551, %v530, %v594
      %596 = vst [vmem:[%s548 + $0x38] sm:$0xf] %v595
      %v597 = vld [vmem:[%s548 + $0x3c] sm:$0x1]
      %v598 = vsel %vm247, %v531, %v597
      %599 = vst [vmem:[%s548 + $0x3c] sm:$0x1] %v598
      %s600 = scalar_lea.vmem %s230, 80
      %v601 = vld [vmem:[%s600] sm:$0xf]
      %v602 = vld [vmem:[%s600 + $0x8] sm:$0xf]
      %v603 = vld [vmem:[%s600 + $0x10] sm:$0xf]
      %v604 = vld [vmem:[%s600 + $0x18] sm:$0xf]
      %v605 = vld [vmem:[%s600 + $0x20] sm:$0xf]
      %v606 = vld [vmem:[%s600 + $0x28] sm:$0xf]
      %v607 = vld [vmem:[%s600 + $0x30] sm:$0xf]
      %v608 = vld [vmem:[%s600 + $0x38] sm:$0xf]
      %v609 = vunpack.c.l.bf16 %v601
      %v610 = vunpack.c.l.bf16 %v602
      %v611 = vunpack.c.l.bf16 %v603
      %v612 = vunpack.c.l.bf16 %v604
      %v613 = vunpack.c.l.bf16 %v605
      %v614 = vunpack.c.l.bf16 %v606
      %v615 = vunpack.c.l.bf16 %v607
      %v616 = vunpack.c.l.bf16 %v608
      %v617 = vmul.f32 %v609, %v428
      %v618 = vmul.f32 %v610, %v428
      %v619 = vmul.f32 %v611, %v428
      %v620 = vmul.f32 %v612, %v428
      %v621 = vmul.f32 %v613, %v428
      %v622 = vmul.f32 %v614, %v428
      %v623 = vmul.f32 %v615, %v428
      %v624 = vmul.f32 %v616, %v428
      %v625 = vadd.f32 %v617, %v450
      %v626 = vadd.f32 %v618, %v450
      %v627 = vadd.f32 %v619, %v450
      %v628 = vadd.f32 %v620, %v450
      %v629 = vadd.f32 %v621, %v450
      %v630 = vadd.f32 %v622, %v450
      %v631 = vadd.f32 %v623, %v450
      %v632 = vadd.f32 %v624, %v450
      %v633 = vmax.f32 %v625, 0.0
      %v634 = vmax.f32 %v626, 0.0
      %v635 = vmax.f32 %v627, 0.0
      %v636 = vmax.f32 %v628, 0.0
      %v637 = vmax.f32 %v629, 0.0
      %v638 = vmax.f32 %v630, 0.0
      %v639 = vmax.f32 %v631, 0.0
      %v640 = vmax.f32 %v632, 0.0
      %v641 = vpack.c.bf16 %v633, %v633
      %v642 = vpack.c.bf16 %v634, %v634
      %v643 = vpack.c.bf16 %v635, %v635
      %v644 = vpack.c.bf16 %v636, %v636
      %v645 = vpack.c.bf16 %v637, %v637
      %v646 = vpack.c.bf16 %v638, %v638
      %v647 = vpack.c.bf16 %v639, %v639
      %v648 = vpack.c.bf16 %v640, %v640
      %s649 = scalar_lea.vmem [#allocation2], 80
      %650 = vst [vmem:[%s649] sm:$0xf] %v641
      %651 = vst [vmem:[%s649 + $0x8] sm:$0xf] %v642
      %652 = vst [vmem:[%s649 + $0x10] sm:$0xf] %v643
      %653 = vst [vmem:[%s649 + $0x18] sm:$0xf] %v644
      %654 = vst [vmem:[%s649 + $0x20] sm:$0xf] %v645
      %655 = vst [vmem:[%s649 + $0x28] sm:$0xf] %v646
      %656 = vst [vmem:[%s649 + $0x30] sm:$0xf] %v647
      %657 = vst [vmem:[%s649 + $0x38] sm:$0xf] %v648
      %s658 = scalar_lea.vmem %s230, 144
      %v659 = vld [vmem:[%s658] sm:$0xf]
      %v660 = vld [vmem:[%s658 + $0x4] sm:$0x1]
      %v661 = vld [vmem:[%s658 + $0x8] sm:$0xf]
      %v662 = vld [vmem:[%s658 + $0xc] sm:$0x1]
      %v663 = vld [vmem:[%s658 + $0x10] sm:$0xf]
      %v664 = vld [vmem:[%s658 + $0x14] sm:$0x1]
      %v665 = vld [vmem:[%s658 + $0x18] sm:$0xf]
      %v666 = vld [vmem:[%s658 + $0x1c] sm:$0x1]
      %v667 = vld [vmem:[%s658 + $0x20] sm:$0xf]
      %v668 = vld [vmem:[%s658 + $0x24] sm:$0x1]
      %v669 = vld [vmem:[%s658 + $0x28] sm:$0xf]
      %v670 = vld [vmem:[%s658 + $0x2c] sm:$0x1]
      %v671 = vld [vmem:[%s658 + $0x30] sm:$0xf]
      %v672 = vld [vmem:[%s658 + $0x34] sm:$0x1]
      %v673 = vld [vmem:[%s658 + $0x38] sm:$0xf]
      %v674 = vld [vmem:[%s658 + $0x3c] sm:$0x1]
      %v675 = vunpack.c.l.bf16 %v659
      %v676 = vunpack.c.l.bf16 %v660
      %v677 = vunpack.c.l.bf16 %v661
      %v678 = vunpack.c.l.bf16 %v662
      %v679 = vunpack.c.l.bf16 %v663
      %v680 = vunpack.c.l.bf16 %v664
      %v681 = vunpack.c.l.bf16 %v665
      %v682 = vunpack.c.l.bf16 %v666
      %v683 = vunpack.c.l.bf16 %v667
      %v684 = vunpack.c.l.bf16 %v668
      %v685 = vunpack.c.l.bf16 %v669
      %v686 = vunpack.c.l.bf16 %v670
      %v687 = vunpack.c.l.bf16 %v671
      %v688 = vunpack.c.l.bf16 %v672
      %v689 = vunpack.c.l.bf16 %v673
      %v690 = vunpack.c.l.bf16 %v674
      %v691 = vmul.f32 %v675, %v428
      %v692 = vmul.f32 %v676, %v428
      %v693 = vmul.f32 %v677, %v428
      %v694 = vmul.f32 %v678, %v428
      %v695 = vmul.f32 %v679, %v428
      %v696 = vmul.f32 %v680, %v428
      %v697 = vmul.f32 %v681, %v428
      %v698 = vmul.f32 %v682, %v428
      %v699 = vmul.f32 %v683, %v428
      %v700 = vmul.f32 %v684, %v428
      %v701 = vmul.f32 %v685, %v428
      %v702 = vmul.f32 %v686, %v428
      %v703 = vmul.f32 %v687, %v428
      %v704 = vmul.f32 %v688, %v428
      %v705 = vmul.f32 %v689, %v428
      %v706 = vmul.f32 %v690, %v428
      %v707 = vadd.f32 %v691, %v450
      %v708 = vadd.f32 %v692, %v450
      %v709 = vadd.f32 %v693, %v450
      %v710 = vadd.f32 %v694, %v450
      %v711 = vadd.f32 %v695, %v450
      %v712 = vadd.f32 %v696, %v450
      %v713 = vadd.f32 %v697, %v450
      %v714 = vadd.f32 %v698, %v450
      %v715 = vadd.f32 %v699, %v450
      %v716 = vadd.f32 %v700, %v450
      %v717 = vadd.f32 %v701, %v450
      %v718 = vadd.f32 %v702, %v450
      %v719 = vadd.f32 %v703, %v450
      %v720 = vadd.f32 %v704, %v450
      %v721 = vadd.f32 %v705, %v450
      %v722 = vadd.f32 %v706, %v450
      %v723 = vmax.f32 %v707, 0.0
      %v724 = vmax.f32 %v708, 0.0
      %v725 = vmax.f32 %v709, 0.0
      %v726 = vmax.f32 %v710, 0.0
      %v727 = vmax.f32 %v711, 0.0
      %v728 = vmax.f32 %v712, 0.0
      %v729 = vmax.f32 %v713, 0.0
      %v730 = vmax.f32 %v714, 0.0
      %v731 = vmax.f32 %v715, 0.0
      %v732 = vmax.f32 %v716, 0.0
      %v733 = vmax.f32 %v717, 0.0
      %v734 = vmax.f32 %v718, 0.0
      %v735 = vmax.f32 %v719, 0.0
      %v736 = vmax.f32 %v720, 0.0
      %v737 = vmax.f32 %v721, 0.0
      %v738 = vmax.f32 %v722, 0.0
      %v739 = vpack.c.bf16 %v724, %v723
      %v740 = vpack.c.bf16 %v726, %v725
      %v741 = vpack.c.bf16 %v728, %v727
      %v742 = vpack.c.bf16 %v730, %v729
      %v743 = vpack.c.bf16 %v732, %v731
      %v744 = vpack.c.bf16 %v734, %v733
      %v745 = vpack.c.bf16 %v736, %v735
      %v746 = vpack.c.bf16 %v738, %v737
      %v755 = vunpack.c.l.b16 %v739
      %v756 = vunpack.c.h.b16 %v739
      %v757 = vunpack.c.l.b16 %v740
      %v758 = vunpack.c.h.b16 %v740
      %v759 = vunpack.c.l.b16 %v741
      %v760 = vunpack.c.h.b16 %v741
      %v761 = vunpack.c.l.b16 %v742
      %v762 = vunpack.c.h.b16 %v742
      %v763 = vunpack.c.l.b16 %v743
      %v764 = vunpack.c.h.b16 %v743
      %v765 = vunpack.c.l.b16 %v744
      %v766 = vunpack.c.h.b16 %v744
      %v767 = vunpack.c.l.b16 %v745
      %v768 = vunpack.c.h.b16 %v745
      %v769 = vunpack.c.l.b16 %v746
      %v770 = vunpack.c.h.b16 %v746
      %v771 = vpack.c.b16 %v755, %v755
      %v772 = vpack.c.b16 %v756, %v756
      %v773 = vpack.c.b16 %v757, %v757
      %v774 = vpack.c.b16 %v758, %v758
      %v775 = vpack.c.b16 %v759, %v759
      %v776 = vpack.c.b16 %v760, %v760
      %v777 = vpack.c.b16 %v761, %v761
      %v778 = vpack.c.b16 %v762, %v762
      %v779 = vpack.c.b16 %v763, %v763
      %v780 = vpack.c.b16 %v764, %v764
      %v781 = vpack.c.b16 %v765, %v765
      %v782 = vpack.c.b16 %v766, %v766
      %v783 = vpack.c.b16 %v767, %v767
      %v784 = vpack.c.b16 %v768, %v768
      %v785 = vpack.c.b16 %v769, %v769
      %v786 = vpack.c.b16 %v770, %v770
      %s803 = scalar_lea.vmem [#allocation2], 144
      %v804 = vld [vmem:[%s803] sm:$0xf]
      %v805 = vsel %vm551, %v771, %v804
      %806 = vst [vmem:[%s803] sm:$0xf] %v805
      %v807 = vld [vmem:[%s803 + $0x4] sm:$0x1]
      %v808 = vsel %vm247, %v772, %v807
      %809 = vst [vmem:[%s803 + $0x4] sm:$0x1] %v808
      %v810 = vld [vmem:[%s803 + $0x8] sm:$0xf]
      %v811 = vsel %vm551, %v773, %v810
      %812 = vst [vmem:[%s803 + $0x8] sm:$0xf] %v811
      %v813 = vld [vmem:[%s803 + $0xc] sm:$0x1]
      %v814 = vsel %vm247, %v774, %v813
      %815 = vst [vmem:[%s803 + $0xc] sm:$0x1] %v814
      %v816 = vld [vmem:[%s803 + $0x10] sm:$0xf]
      %v817 = vsel %vm551, %v775, %v816
      %818 = vst [vmem:[%s803 + $0x10] sm:$0xf] %v817
      %v819 = vld [vmem:[%s803 + $0x14] sm:$0x1]
      %v820 = vsel %vm247, %v776, %v819
      %821 = vst [vmem:[%s803 + $0x14] sm:$0x1] %v820
      %v822 = vld [vmem:[%s803 + $0x18] sm:$0xf]
      %v823 = vsel %vm551, %v777, %v822
      %824 = vst [vmem:[%s803 + $0x18] sm:$0xf] %v823
      %v825 = vld [vmem:[%s803 + $0x1c] sm:$0x1]
      %v826 = vsel %vm247, %v778, %v825
      %827 = vst [vmem:[%s803 + $0x1c] sm:$0x1] %v826
      %v828 = vld [vmem:[%s803 + $0x20] sm:$0xf]
      %v829 = vsel %vm551, %v779, %v828
      %830 = vst [vmem:[%s803 + $0x20] sm:$0xf] %v829
      %v831 = vld [vmem:[%s803 + $0x24] sm:$0x1]
      %v832 = vsel %vm247, %v780, %v831
      %833 = vst [vmem:[%s803 + $0x24] sm:$0x1] %v832
      %v834 = vld [vmem:[%s803 + $0x28] sm:$0xf]
      %v835 = vsel %vm551, %v781, %v834
      %836 = vst [vmem:[%s803 + $0x28] sm:$0xf] %v835
      %v837 = vld [vmem:[%s803 + $0x2c] sm:$0x1]
      %v838 = vsel %vm247, %v782, %v837
      %839 = vst [vmem:[%s803 + $0x2c] sm:$0x1] %v838
      %v840 = vld [vmem:[%s803 + $0x30] sm:$0xf]
      %v841 = vsel %vm551, %v783, %v840
      %842 = vst [vmem:[%s803 + $0x30] sm:$0xf] %v841
      %v843 = vld [vmem:[%s803 + $0x34] sm:$0x1]
      %v844 = vsel %vm247, %v784, %v843
      %845 = vst [vmem:[%s803 + $0x34] sm:$0x1] %v844
      %v846 = vld [vmem:[%s803 + $0x38] sm:$0xf]
      %v847 = vsel %vm551, %v785, %v846
      %848 = vst [vmem:[%s803 + $0x38] sm:$0xf] %v847
      %v849 = vld [vmem:[%s803 + $0x3c] sm:$0x1]
      %v850 = vsel %vm247, %v786, %v849
      %851 = vst [vmem:[%s803 + $0x3c] sm:$0x1] %v850
      %s852 = scalar_lea.vmem %s230, 216
      %v853 = vld [vmem:[%s852] sm:$0xf]
      %v854 = vld [vmem:[%s852 + $0x8] sm:$0xf]
      %v855 = vld [vmem:[%s852 + $0x10] sm:$0xf]
      %v856 = vld [vmem:[%s852 + $0x18] sm:$0xf]
      %v857 = vld [vmem:[%s852 + $0x20] sm:$0xf]
      %v858 = vld [vmem:[%s852 + $0x28] sm:$0xf]
      %v859 = vld [vmem:[%s852 + $0x30] sm:$0xf]
      %v860 = vld [vmem:[%s852 + $0x38] sm:$0xf]
      %v861 = vunpack.c.l.bf16 %v853
      %v862 = vunpack.c.l.bf16 %v854
      %v863 = vunpack.c.l.bf16 %v855
      %v864 = vunpack.c.l.bf16 %v856
      %v865 = vunpack.c.l.bf16 %v857
      %v866 = vunpack.c.l.bf16 %v858
      %v867 = vunpack.c.l.bf16 %v859
      %v868 = vunpack.c.l.bf16 %v860
      %v869 = vmul.f32 %v861, %v428
      %v870 = vmul.f32 %v862, %v428
      %v871 = vmul.f32 %v863, %v428
      %v872 = vmul.f32 %v864, %v428
      %v873 = vmul.f32 %v865, %v428
      %v874 = vmul.f32 %v866, %v428
      %v875 = vmul.f32 %v867, %v428
      %v876 = vmul.f32 %v868, %v428
      %v877 = vadd.f32 %v869, %v450
      %v878 = vadd.f32 %v870, %v450
      %v879 = vadd.f32 %v871, %v450
      %v880 = vadd.f32 %v872, %v450
      %v881 = vadd.f32 %v873, %v450
      %v882 = vadd.f32 %v874, %v450
      %v883 = vadd.f32 %v875, %v450
      %v884 = vadd.f32 %v876, %v450
      %v885 = vmax.f32 %v877, 0.0
      %v886 = vmax.f32 %v878, 0.0
      %v887 = vmax.f32 %v879, 0.0
      %v888 = vmax.f32 %v880, 0.0
      %v889 = vmax.f32 %v881, 0.0
      %v890 = vmax.f32 %v882, 0.0
      %v891 = vmax.f32 %v883, 0.0
      %v892 = vmax.f32 %v884, 0.0
      %v893 = vpack.c.bf16 %v885, %v885
      %v894 = vpack.c.bf16 %v886, %v886
      %v895 = vpack.c.bf16 %v887, %v887
      %v896 = vpack.c.bf16 %v888, %v888
      %v897 = vpack.c.bf16 %v889, %v889
      %v898 = vpack.c.bf16 %v890, %v890
      %v899 = vpack.c.bf16 %v891, %v891
      %v900 = vpack.c.bf16 %v892, %v892
      %s901 = scalar_lea.vmem [#allocation2], 216
      %902 = vst [vmem:[%s901] sm:$0xf] %v893
      %903 = vst [vmem:[%s901 + $0x8] sm:$0xf] %v894
      %904 = vst [vmem:[%s901 + $0x10] sm:$0xf] %v895
      %905 = vst [vmem:[%s901 + $0x18] sm:$0xf] %v896
      %906 = vst [vmem:[%s901 + $0x20] sm:$0xf] %v897
      %907 = vst [vmem:[%s901 + $0x28] sm:$0xf] %v898
      %908 = vst [vmem:[%s901 + $0x30] sm:$0xf] %v899
      %909 = vst [vmem:[%s901 + $0x38] sm:$0xf] %v900
      %v910 = vld [vmem:[#allocation2] sm:$0xf]
      %v911 = vld [vmem:[#allocation2 + $0x8] sm:$0xf]
      %v912 = vld [vmem:[#allocation2 + $0x10] sm:$0xf]
      %v913 = vld [vmem:[#allocation2 + $0x18] sm:$0xf]
      %v914 = vld [vmem:[#allocation2 + $0x20] sm:$0xf]
      %v915 = vld [vmem:[#allocation2 + $0x28] sm:$0xf]
      %v916 = vld [vmem:[#allocation2 + $0x30] sm:$0xf]
      %v917 = vld [vmem:[#allocation2 + $0x38] sm:$0xf]
      %v918 = vld [vmem:[%s1] sm:$0xf]
      %v919 = vld [vmem:[%s1 + $0x4] sm:$0xf]
      %v920 = vld [vmem:[%s1 + $0x8] sm:$0xf]
      %v921 = vld [vmem:[%s1 + $0xc] sm:$0xf]
      %v922 = vld [vmem:[%s1 + $0x10] sm:$0xf]
      %v923 = vld [vmem:[%s1 + $0x14] sm:$0xf]
      %v924 = vld [vmem:[%s1 + $0x18] sm:$0xf]
      %v925 = vld [vmem:[%s1 + $0x1c] sm:$0xf]
      %v926 = vld [vmem:[%s1 + $0x20] sm:$0xf]
      %v927 = vld [vmem:[%s1 + $0x24] sm:$0xf]
      %v928 = vld [vmem:[%s1 + $0x28] sm:$0xf]
      %v929 = vld [vmem:[%s1 + $0x2c] sm:$0xf]
      %v930 = vld [vmem:[%s1 + $0x30] sm:$0xf]
      %v931 = vld [vmem:[%s1 + $0x34] sm:$0xf]
      %v932 = vld [vmem:[%s1 + $0x38] sm:$0xf]
      %v933 = vld [vmem:[%s1 + $0x3c] sm:$0xf]
      %s934 = scalar_lea.vmem [#allocation2], 72
      %v935 = vld [vmem:[%s934] sm:$0xf]
      %v936 = vld [vmem:[%s934 + $0x8] sm:$0xf]
      %v937 = vld [vmem:[%s934 + $0x10] sm:$0xf]
      %v938 = vld [vmem:[%s934 + $0x18] sm:$0xf]
      %v939 = vld [vmem:[%s934 + $0x20] sm:$0xf]
      %v940 = vld [vmem:[%s934 + $0x28] sm:$0xf]
      %v941 = vld [vmem:[%s934 + $0x30] sm:$0xf]
      %v942 = vld [vmem:[%s934 + $0x38] sm:$0xf]
      %s943 = scalar_lea.vmem %s1, 64
      %v944 = vld [vmem:[%s943] sm:$0xf]
      %v945 = vld [vmem:[%s943 + $0x4] sm:$0xf]
      %v946 = vld [vmem:[%s943 + $0x8] sm:$0xf]
      %v947 = vld [vmem:[%s943 + $0xc] sm:$0xf]
      %v948 = vld [vmem:[%s943 + $0x10] sm:$0xf]
      %v949 = vld [vmem:[%s943 + $0x14] sm:$0xf]
      %v950 = vld [vmem:[%s943 + $0x18] sm:$0xf]
      %v951 = vld [vmem:[%s943 + $0x1c] sm:$0xf]
      %v952 = vld [vmem:[%s943 + $0x20] sm:$0xf]
      %v953 = vld [vmem:[%s943 + $0x24] sm:$0xf]
      %v954 = vld [vmem:[%s943 + $0x28] sm:$0xf]
      %v955 = vld [vmem:[%s943 + $0x2c] sm:$0xf]
      %v956 = vld [vmem:[%s943 + $0x30] sm:$0xf]
      %v957 = vld [vmem:[%s943 + $0x34] sm:$0xf]
      %v958 = vld [vmem:[%s943 + $0x38] sm:$0xf]
      %v959 = vld [vmem:[%s943 + $0x3c] sm:$0xf]
      %v968 = vunpack.c.l.b16 %v935
      %v969 = vunpack.c.l.b16 %v936
      %v970 = vunpack.c.l.b16 %v937
      %v971 = vunpack.c.l.b16 %v938
      %v972 = vunpack.c.l.b16 %v939
      %v973 = vunpack.c.l.b16 %v940
      %v974 = vunpack.c.l.b16 %v941
      %v975 = vunpack.c.l.b16 %v942
      %v976 = vpack.c.b16 %v969, %v968
      %v977 = vpack.c.b16 %v971, %v970
      %v978 = vpack.c.b16 %v973, %v972
      %v979 = vpack.c.b16 %v975, %v974
      %v1000 = vunpack.c.l.b16 %v944
      %v1001 = vunpack.c.l.b16 %v945
      %v1002 = vunpack.c.l.b16 %v946
      %v1003 = vunpack.c.l.b16 %v947
      %v1004 = vunpack.c.l.b16 %v948
      %v1005 = vunpack.c.l.b16 %v949
      %v1006 = vunpack.c.l.b16 %v950
      %v1007 = vunpack.c.l.b16 %v951
      %v1008 = vunpack.c.l.b16 %v952
      %v1009 = vunpack.c.l.b16 %v953
      %v1010 = vunpack.c.l.b16 %v954
      %v1011 = vunpack.c.l.b16 %v955
      %v1012 = vunpack.c.l.b16 %v956
      %v1013 = vunpack.c.l.b16 %v957
      %v1014 = vunpack.c.l.b16 %v958
      %v1015 = vunpack.c.l.b16 %v959
      %v1016 = vpack.c.b16 %v1001, %v1000
      %v1017 = vpack.c.b16 %v1003, %v1002
      %v1018 = vpack.c.b16 %v1005, %v1004
      %v1019 = vpack.c.b16 %v1007, %v1006
      %v1020 = vpack.c.b16 %v1009, %v1008
      %v1021 = vpack.c.b16 %v1011, %v1010
      %v1022 = vpack.c.b16 %v1013, %v1012
      %v1023 = vpack.c.b16 %v1015, %v1014
      %1032 = vmatprep.subr.bf16.mxu0 0
      %1033 = vmatpush1.bf16.msra.mxu0 %v1016
      %1034 = vmatprep.subr.bf16.mxu0 0
      %1035 = vmatpush1.bf16.msra.mxu0 %v1017
      %1036 = vmatprep.subr.bf16.mxu0 0
      %1037 = vmatpush1.bf16.msra.mxu0 %v1018
      %1038 = vmatprep.subr.bf16.mxu0 0
      %1039 = vmatpush1.bf16.msra.mxu0 %v1019
      %1040 = vmatprep.subr.bf16.mxu0 0
      %1041 = vmatpush1.bf16.msra.mxu0 %v1020
      %1042 = vmatprep.subr.bf16.mxu0 0
      %1043 = vmatpush1.bf16.msra.mxu0 %v1021
      %1044 = vmatprep.subr.bf16.mxu0 0
      %1045 = vmatpush1.bf16.msra.mxu0 %v1022
      %1046 = vmatprep.subr.bf16.mxu0 0
      %1047 = vmatpush1.bf16.msra.mxu0 %v1023
      %1048 = vmatprep.subr.bf16.mxu0 0
      %1049 = vmatpush1.bf16.msra.mxu0 0
      %1050 = vmatprep.subr.bf16.mxu0 0
      %1051 = vmatpush1.bf16.msra.mxu0 0
      %1052 = vmatprep.subr.bf16.mxu0 0
      %1053 = vmatpush1.bf16.msra.mxu0 0
      %1054 = vmatprep.subr.bf16.mxu0 0
      %1055 = vmatpush1.bf16.msra.mxu0 0
      %1056 = vmatprep.subr.bf16.mxu0 0
      %1057 = vmatpush1.bf16.msra.mxu0 0
      %1058 = vmatprep.subr.bf16.mxu0 0
      %1059 = vmatpush1.bf16.msra.mxu0 0
      %1060 = vmatprep.subr.bf16.mxu0 0
      %1061 = vmatpush1.bf16.msra.mxu0 0
      %1062 = vmatprep.subr.bf16.mxu0 0
      %1063 = vmatpush1.bf16.msra.mxu0 0
      %1064 = vmatprep.mubr.bf16.mxu0 0
      %1065 = vmatmul.mubr.bf16.gmra.mrb[0].mxu0 %v976
      %v1066 = vpop.f32.mrb[0].mxu0
      %v1067 = vadd.f32 0.0, %v1066
      %v1068 = vpop.f32.mrb[0].mxu0
      %v1069 = vpop.f32.mrb[0].mxu0
      %v1070 = vadd.f32 0.0, %v1069
      %v1071 = vpop.f32.mrb[0].mxu0
      %1072 = vmatprep.mubr.bf16.mxu0 0
      %1073 = vmatmul.mubr.bf16.gmra.mrb[0].mxu0 %v977
      %v1074 = vpop.f32.mrb[0].mxu0
      %v1075 = vadd.f32 0.0, %v1074
      %v1076 = vpop.f32.mrb[0].mxu0
      %v1077 = vpop.f32.mrb[0].mxu0
      %v1078 = vadd.f32 0.0, %v1077
      %v1079 = vpop.f32.mrb[0].mxu0
      %1080 = vmatprep.mubr.bf16.mxu0 0
      %1081 = vmatmul.mubr.bf16.gmra.mrb[0].mxu0 %v978
      %v1082 = vpop.f32.mrb[0].mxu0
      %v1083 = vadd.f32 0.0, %v1082
      %v1084 = vpop.f32.mrb[0].mxu0
      %v1085 = vpop.f32.mrb[0].mxu0
      %v1086 = vadd.f32 0.0, %v1085
      %v1087 = vpop.f32.mrb[0].mxu0
      %1088 = vmatprep.mubr.bf16.mxu0 0
      %1089 = vmatmul.mubr.bf16.gmra.mrb[0].mxu0 %v979
      %v1090 = vpop.f32.mrb[0].mxu0
      %v1091 = vadd.f32 0.0, %v1090
      %v1092 = vpop.f32.mrb[0].mxu0
      %v1093 = vpop.f32.mrb[0].mxu0
      %v1094 = vadd.f32 0.0, %v1093
      %v1095 = vpop.f32.mrb[0].mxu0
      %1096 = vdwg.mxu0
      %v1105 = vunpack.c.l.b16 %v910
      %v1106 = vunpack.c.l.b16 %v911
      %v1107 = vunpack.c.l.b16 %v912
      %v1108 = vunpack.c.l.b16 %v913
      %v1109 = vunpack.c.l.b16 %v914
      %v1110 = vunpack.c.l.b16 %v915
      %v1111 = vunpack.c.l.b16 %v916
      %v1112 = vunpack.c.l.b16 %v917
      %v1113 = vpack.c.b16 %v1106, %v1105
      %v1114 = vpack.c.b16 %v1108, %v1107
      %v1115 = vpack.c.b16 %v1110, %v1109
      %v1116 = vpack.c.b16 %v1112, %v1111
      %v1137 = vunpack.c.l.b16 %v918
      %v1138 = vunpack.c.l.b16 %v919
      %v1139 = vunpack.c.l.b16 %v920
      %v1140 = vunpack.c.l.b16 %v921
      %v1141 = vunpack.c.l.b16 %v922
      %v1142 = vunpack.c.l.b16 %v923
      %v1143 = vunpack.c.l.b16 %v924
      %v1144 = vunpack.c.l.b16 %v925
      %v1145 = vunpack.c.l.b16 %v926
      %v1146 = vunpack.c.l.b16 %v927
      %v1147 = vunpack.c.l.b16 %v928
      %v1148 = vunpack.c.l.b16 %v929
      %v1149 = vunpack.c.l.b16 %v930
      %v1150 = vunpack.c.l.b16 %v931
      %v1151 = vunpack.c.l.b16 %v932
      %v1152 = vunpack.c.l.b16 %v933
      %v1153 = vpack.c.b16 %v1138, %v1137
      %v1154 = vpack.c.b16 %v1140, %v1139
      %v1155 = vpack.c.b16 %v1142, %v1141
      %v1156 = vpack.c.b16 %v1144, %v1143
      %v1157 = vpack.c.b16 %v1146, %v1145
      %v1158 = vpack.c.b16 %v1148, %v1147
      %v1159 = vpack.c.b16 %v1150, %v1149
      %v1160 = vpack.c.b16 %v1152, %v1151
      %1169 = vmatprep.subr.bf16.mxu0 0
      %1170 = vmatpush1.bf16.msra.mxu0 %v1153
      %1171 = vmatprep.subr.bf16.mxu0 0
      %1172 = vmatpush1.bf16.msra.mxu0 %v1154
      %1173 = vmatprep.subr.bf16.mxu0 0
      %1174 = vmatpush1.bf16.msra.mxu0 %v1155
      %1175 = vmatprep.subr.bf16.mxu0 0
      %1176 = vmatpush1.bf16.msra.mxu0 %v1156
      %1177 = vmatprep.subr.bf16.mxu0 0
      %1178 = vmatpush1.bf16.msra.mxu0 %v1157
      %1179 = vmatprep.subr.bf16.mxu0 0
      %1180 = vmatpush1.bf16.msra.mxu0 %v1158
      %1181 = vmatprep.subr.bf16.mxu0 0
      %1182 = vmatpush1.bf16.msra.mxu0 %v1159
      %1183 = vmatprep.subr.bf16.mxu0 0
      %1184 = vmatpush1.bf16.msra.mxu0 %v1160
      %1185 = vmatprep.subr.bf16.mxu0 0
      %1186 = vmatpush1.bf16.msra.mxu0 0
      %1187 = vmatprep.subr.bf16.mxu0 0
      %1188 = vmatpush1.bf16.msra.mxu0 0
      %1189 = vmatprep.subr.bf16.mxu0 0
      %1190 = vmatpush1.bf16.msra.mxu0 0
      %1191 = vmatprep.subr.bf16.mxu0 0
      %1192 = vmatpush1.bf16.msra.mxu0 0
      %1193 = vmatprep.subr.bf16.mxu0 0
      %1194 = vmatpush1.bf16.msra.mxu0 0
      %1195 = vmatprep.subr.bf16.mxu0 0
      %1196 = vmatpush1.bf16.msra.mxu0 0
      %1197 = vmatprep.subr.bf16.mxu0 0
      %1198 = vmatpush1.bf16.msra.mxu0 0
      %1199 = vmatprep.subr.bf16.mxu0 0
      %1200 = vmatpush1.bf16.msra.mxu0 0
      %1201 = vmatprep.mubr.bf16.mxu0 0
      %1202 = vmatmul.mubr.bf16.gmra.mrb[0].mxu0 %v1113
      %v1203 = vpop.f32.mrb[0].mxu0
      %v1204 = vadd.f32 %v1067, %v1203
      %v1205 = vpop.f32.mrb[0].mxu0
      %v1206 = vpop.f32.mrb[0].mxu0
      %v1207 = vadd.f32 %v1070, %v1206
      %v1208 = vpop.f32.mrb[0].mxu0
      %1209 = vmatprep.mubr.bf16.mxu0 0
      %1210 = vmatmul.mubr.bf16.gmra.mrb[0].mxu0 %v1114
      %v1211 = vpop.f32.mrb[0].mxu0
      %v1212 = vadd.f32 %v1075, %v1211
      %v1213 = vpop.f32.mrb[0].mxu0
      %v1214 = vpop.f32.mrb[0].mxu0
      %v1215 = vadd.f32 %v1078, %v1214
      %v1216 = vpop.f32.mrb[0].mxu0
      %1217 = vmatprep.mubr.bf16.mxu0 0
      %1218 = vmatmul.mubr.bf16.gmra.mrb[0].mxu0 %v1115
      %v1219 = vpop.f32.mrb[0].mxu0
      %v1220 = vadd.f32 %v1083, %v1219
      %v1221 = vpop.f32.mrb[0].mxu0
      %v1222 = vpop.f32.mrb[0].mxu0
      %v1223 = vadd.f32 %v1086, %v1222
      %v1224 = vpop.f32.mrb[0].mxu0
      %1225 = vmatprep.mubr.bf16.mxu0 0
      %1226 = vmatmul.mubr.bf16.gmra.mrb[0].mxu0 %v1116
      %v1227 = vpop.f32.mrb[0].mxu0
      %v1228 = vadd.f32 %v1091, %v1227
      %v1229 = vpop.f32.mrb[0].mxu0
      %v1230 = vpop.f32.mrb[0].mxu0
      %v1231 = vadd.f32 %v1094, %v1230
      %v1232 = vpop.f32.mrb[0].mxu0
      %1233 = vdwg.mxu0
      %v1234 = vld [vmem:[#allocation2] sm:$0xf]
      %v1235 = vld [vmem:[#allocation2 + $0x4] sm:$0x1]
      %v1236 = vld [vmem:[#allocation2 + $0x8] sm:$0xf]
      %v1237 = vld [vmem:[#allocation2 + $0xc] sm:$0x1]
      %v1238 = vld [vmem:[#allocation2 + $0x10] sm:$0xf]
      %v1239 = vld [vmem:[#allocation2 + $0x14] sm:$0x1]
      %v1240 = vld [vmem:[#allocation2 + $0x18] sm:$0xf]
      %v1241 = vld [vmem:[#allocation2 + $0x1c] sm:$0x1]
      %v1242 = vld [vmem:[#allocation2 + $0x20] sm:$0xf]
      %v1243 = vld [vmem:[#allocation2 + $0x24] sm:$0x1]
      %v1244 = vld [vmem:[#allocation2 + $0x28] sm:$0xf]
      %v1245 = vld [vmem:[#allocation2 + $0x2c] sm:$0x1]
      %v1246 = vld [vmem:[#allocation2 + $0x30] sm:$0xf]
      %v1247 = vld [vmem:[#allocation2 + $0x34] sm:$0x1]
      %v1248 = vld [vmem:[#allocation2 + $0x38] sm:$0xf]
      %v1249 = vld [vmem:[#allocation2 + $0x3c] sm:$0x1]
      %vm1250 = vsmask.f32 3328
      %vm1251 = vsmask.f32 7440
      %vm1252 = vmor %vm1250, %vm1251
      %v1254 = vshrl.u32 %v1234, 16
      %v1256 = vrot.slane %v1254, 4
      %v1257 = vshll.u32 %v1234, 16
      %v1259 = vrot.slane %v1257, 5
      %v1260 = vor.u32 %v1256, %v1259
      %v1261 = vrot.slane %v1260, 4
      %v1263 = vshll.u32 %v1235, 16
      %v1265 = vrot.slane %v1263, 5
      %v1266 = vsel %vm1252, %v1261, %v1265
      %v1268 = vshrl.u32 %v1236, 16
      %v1270 = vrot.slane %v1268, 4
      %v1271 = vshll.u32 %v1236, 16
      %v1273 = vrot.slane %v1271, 5
      %v1274 = vor.u32 %v1270, %v1273
      %v1275 = vrot.slane %v1274, 4
      %v1277 = vshll.u32 %v1237, 16
      %v1279 = vrot.slane %v1277, 5
      %v1280 = vsel %vm1252, %v1275, %v1279
      %v1282 = vshrl.u32 %v1238, 16
      %v1284 = vrot.slane %v1282, 4
      %v1285 = vshll.u32 %v1238, 16
      %v1287 = vrot.slane %v1285, 5
      %v1288 = vor.u32 %v1284, %v1287
      %v1289 = vrot.slane %v1288, 4
      %v1291 = vshll.u32 %v1239, 16
      %v1293 = vrot.slane %v1291, 5
      %v1294 = vsel %vm1252, %v1289, %v1293
      %v1296 = vshrl.u32 %v1240, 16
      %v1298 = vrot.slane %v1296, 4
      %v1299 = vshll.u32 %v1240, 16
      %v1301 = vrot.slane %v1299, 5
      %v1302 = vor.u32 %v1298, %v1301
      %v1303 = vrot.slane %v1302, 4
      %v1305 = vshll.u32 %v1241, 16
      %v1307 = vrot.slane %v1305, 5
      %v1308 = vsel %vm1252, %v1303, %v1307
      %v1310 = vshrl.u32 %v1242, 16
      %v1312 = vrot.slane %v1310, 4
      %v1313 = vshll.u32 %v1242, 16
      %v1315 = vrot.slane %v1313, 5
      %v1316 = vor.u32 %v1312, %v1315
      %v1317 = vrot.slane %v1316, 4
      %v1319 = vshll.u32 %v1243, 16
      %v1321 = vrot.slane %v1319, 5
      %v1322 = vsel %vm1252, %v1317, %v1321
      %v1324 = vshrl.u32 %v1244, 16
      %v1326 = vrot.slane %v1324, 4
      %v1327 = vshll.u32 %v1244, 16
      %v1329 = vrot.slane %v1327, 5
      %v1330 = vor.u32 %v1326, %v1329
      %v1331 = vrot.slane %v1330, 4
      %v1333 = vshll.u32 %v1245, 16
      %v1335 = vrot.slane %v1333, 5
      %v1336 = vsel %vm1252, %v1331, %v1335
      %v1338 = vshrl.u32 %v1246, 16
      %v1340 = vrot.slane %v1338, 4
      %v1341 = vshll.u32 %v1246, 16
      %v1343 = vrot.slane %v1341, 5
      %v1344 = vor.u32 %v1340, %v1343
      %v1345 = vrot.slane %v1344, 4
      %v1347 = vshll.u32 %v1247, 16
      %v1349 = vrot.slane %v1347, 5
      %v1350 = vsel %vm1252, %v1345, %v1349
      %v1352 = vshrl.u32 %v1248, 16
      %v1354 = vrot.slane %v1352, 4
      %v1355 = vshll.u32 %v1248, 16
      %v1357 = vrot.slane %v1355, 5
      %v1358 = vor.u32 %v1354, %v1357
      %v1359 = vrot.slane %v1358, 4
      %v1361 = vshll.u32 %v1249, 16
      %v1363 = vrot.slane %v1361, 5
      %v1364 = vsel %vm1252, %v1359, %v1363
      %s1365 = scalar_lea.vmem %s1, 128
      %v1366 = vld [vmem:[%s1365] sm:$0xf]
      %v1367 = vld [vmem:[%s1365 + $0x4] sm:$0xf]
      %v1368 = vld [vmem:[%s1365 + $0x8] sm:$0xf]
      %v1369 = vld [vmem:[%s1365 + $0xc] sm:$0xf]
      %v1370 = vld [vmem:[%s1365 + $0x10] sm:$0xf]
      %v1371 = vld [vmem:[%s1365 + $0x14] sm:$0xf]
      %v1372 = vld [vmem:[%s1365 + $0x18] sm:$0xf]
      %v1373 = vld [vmem:[%s1365 + $0x1c] sm:$0xf]
      %v1374 = vld [vmem:[%s1365 + $0x20] sm:$0xf]
      %v1375 = vld [vmem:[%s1365 + $0x24] sm:$0xf]
      %v1376 = vld [vmem:[%s1365 + $0x28] sm:$0xf]
      %v1377 = vld [vmem:[%s1365 + $0x2c] sm:$0xf]
      %v1378 = vld [vmem:[%s1365 + $0x30] sm:$0xf]
      %v1379 = vld [vmem:[%s1365 + $0x34] sm:$0xf]
      %v1380 = vld [vmem:[%s1365 + $0x38] sm:$0xf]
      %v1381 = vld [vmem:[%s1365 + $0x3c] sm:$0xf]
      %v1382 = vunpack.c.l.b16 %v1266
      %v1383 = vunpack.c.l.b16 %v1280
      %v1384 = vunpack.c.l.b16 %v1294
      %v1385 = vunpack.c.l.b16 %v1308
      %v1386 = vunpack.c.l.b16 %v1322
      %v1387 = vunpack.c.l.b16 %v1336
      %v1388 = vunpack.c.l.b16 %v1350
      %v1389 = vunpack.c.l.b16 %v1364
      %v1390 = vpack.c.b16 %v1383, %v1382
      %v1391 = vpack.c.b16 %v1385, %v1384
      %v1392 = vpack.c.b16 %v1387, %v1386
      %v1393 = vpack.c.b16 %v1389, %v1388
      %v1414 = vunpack.c.l.b16 %v1366
      %v1415 = vunpack.c.l.b16 %v1367
      %v1416 = vunpack.c.l.b16 %v1368
      %v1417 = vunpack.c.l.b16 %v1369
      %v1418 = vunpack.c.l.b16 %v1370
      %v1419 = vunpack.c.l.b16 %v1371
      %v1420 = vunpack.c.l.b16 %v1372
      %v1421 = vunpack.c.l.b16 %v1373
      %v1422 = vunpack.c.l.b16 %v1374
      %v1423 = vunpack.c.l.b16 %v1375
      %v1424 = vunpack.c.l.b16 %v1376
      %v1425 = vunpack.c.l.b16 %v1377
      %v1426 = vunpack.c.l.b16 %v1378
      %v1427 = vunpack.c.l.b16 %v1379
      %v1428 = vunpack.c.l.b16 %v1380
      %v1429 = vunpack.c.l.b16 %v1381
      %v1430 = vpack.c.b16 %v1415, %v1414
      %v1431 = vpack.c.b16 %v1417, %v1416
      %v1432 = vpack.c.b16 %v1419, %v1418
      %v1433 = vpack.c.b16 %v1421, %v1420
      %v1434 = vpack.c.b16 %v1423, %v1422
      %v1435 = vpack.c.b16 %v1425, %v1424
      %v1436 = vpack.c.b16 %v1427, %v1426
      %v1437 = vpack.c.b16 %v1429, %v1428
      %1446 = vmatprep.subr.bf16.mxu0 0
      %1447 = vmatpush1.bf16.msra.mxu0 %v1430
      %1448 = vmatprep.subr.bf16.mxu0 0
      %1449 = vmatpush1.bf16.msra.mxu0 %v1431
      %1450 = vmatprep.subr.bf16.mxu0 0
      %1451 = vmatpush1.bf16.msra.mxu0 %v1432
      %1452 = vmatprep.subr.bf16.mxu0 0
      %1453 = vmatpush1.bf16.msra.mxu0 %v1433
      %1454 = vmatprep.subr.bf16.mxu0 0
      %1455 = vmatpush1.bf16.msra.mxu0 %v1434
      %1456 = vmatprep.subr.bf16.mxu0 0
      %1457 = vmatpush1.bf16.msra.mxu0 %v1435
      %1458 = vmatprep.subr.bf16.mxu0 0
      %1459 = vmatpush1.bf16.msra.mxu0 %v1436
      %1460 = vmatprep.subr.bf16.mxu0 0
      %1461 = vmatpush1.bf16.msra.mxu0 %v1437
      %1462 = vmatprep.subr.bf16.mxu0 0
      %1463 = vmatpush1.bf16.msra.mxu0 0
      %1464 = vmatprep.subr.bf16.mxu0 0
      %1465 = vmatpush1.bf16.msra.mxu0 0
      %1466 = vmatprep.subr.bf16.mxu0 0
      %1467 = vmatpush1.bf16.msra.mxu0 0
      %1468 = vmatprep.subr.bf16.mxu0 0
      %1469 = vmatpush1.bf16.msra.mxu0 0
      %1470 = vmatprep.subr.bf16.mxu0 0
      %1471 = vmatpush1.bf16.msra.mxu0 0
      %1472 = vmatprep.subr.bf16.mxu0 0
      %1473 = vmatpush1.bf16.msra.mxu0 0
      %1474 = vmatprep.subr.bf16.mxu0 0
      %1475 = vmatpush1.bf16.msra.mxu0 0
      %1476 = vmatprep.subr.bf16.mxu0 0
      %1477 = vmatpush1.bf16.msra.mxu0 0
      %1478 = vmatprep.mubr.bf16.mxu0 0
      %1479 = vmatmul.mubr.bf16.gmra.mrb[0].mxu0 %v1390
      %v1480 = vpop.f32.mrb[0].mxu0
      %v1481 = vadd.f32 0.0, %v1480
      %v1482 = vpop.f32.mrb[0].mxu0
      %v1483 = vpop.f32.mrb[0].mxu0
      %v1484 = vadd.f32 0.0, %v1483
      %v1485 = vpop.f32.mrb[0].mxu0
      %1486 = vmatprep.mubr.bf16.mxu0 0
      %1487 = vmatmul.mubr.bf16.gmra.mrb[0].mxu0 %v1391
      %v1488 = vpop.f32.mrb[0].mxu0
      %v1489 = vadd.f32 0.0, %v1488
      %v1490 = vpop.f32.mrb[0].mxu0
      %v1491 = vpop.f32.mrb[0].mxu0
      %v1492 = vadd.f32 0.0, %v1491
      %v1493 = vpop.f32.mrb[0].mxu0
      %1494 = vmatprep.mubr.bf16.mxu0 0
      %1495 = vmatmul.mubr.bf16.gmra.mrb[0].mxu0 %v1392
      %v1496 = vpop.f32.mrb[0].mxu0
      %v1497 = vadd.f32 0.0, %v1496
      %v1498 = vpop.f32.mrb[0].mxu0
      %v1499 = vpop.f32.mrb[0].mxu0
      %v1500 = vadd.f32 0.0, %v1499
      %v1501 = vpop.f32.mrb[0].mxu0
      %1502 = vmatprep.mubr.bf16.mxu0 0
      %1503 = vmatmul.mubr.bf16.gmra.mrb[0].mxu0 %v1393
      %v1504 = vpop.f32.mrb[0].mxu0
      %v1505 = vadd.f32 0.0, %v1504
      %v1506 = vpop.f32.mrb[0].mxu0
      %v1507 = vpop.f32.mrb[0].mxu0
      %v1508 = vadd.f32 0.0, %v1507
      %v1509 = vpop.f32.mrb[0].mxu0
      %1510 = vdwg.mxu0
      %v1511 = vadd.f32 %v1204, %v1481
      %v1512 = vadd.f32 %v1207, %v1484
      %v1513 = vadd.f32 %v1212, %v1489
      %v1514 = vadd.f32 %v1215, %v1492
      %v1515 = vadd.f32 %v1220, %v1497
      %v1516 = vadd.f32 %v1223, %v1500
      %v1517 = vadd.f32 %v1228, %v1505
      %v1518 = vadd.f32 %v1231, %v1508
      %v1519 = vld [vmem:[%s803] sm:$0xf]
      %v1520 = vld [vmem:[%s803 + $0x8] sm:$0xf]
      %v1521 = vld [vmem:[%s803 + $0x10] sm:$0xf]
      %v1522 = vld [vmem:[%s803 + $0x18] sm:$0xf]
      %v1523 = vld [vmem:[%s803 + $0x20] sm:$0xf]
      %v1524 = vld [vmem:[%s803 + $0x28] sm:$0xf]
      %v1525 = vld [vmem:[%s803 + $0x30] sm:$0xf]
      %v1526 = vld [vmem:[%s803 + $0x38] sm:$0xf]
      %s1527 = scalar_lea.vmem %s1, 192
      %v1528 = vld [vmem:[%s1527] sm:$0xf]
      %v1529 = vld [vmem:[%s1527 + $0x4] sm:$0xf]
      %v1530 = vld [vmem:[%s1527 + $0x8] sm:$0xf]
      %v1531 = vld [vmem:[%s1527 + $0xc] sm:$0xf]
      %v1532 = vld [vmem:[%s1527 + $0x10] sm:$0xf]
      %v1533 = vld [vmem:[%s1527 + $0x14] sm:$0xf]
      %v1534 = vld [vmem:[%s1527 + $0x18] sm:$0xf]
      %v1535 = vld [vmem:[%s1527 + $0x1c] sm:$0xf]
      %v1536 = vld [vmem:[%s1527 + $0x20] sm:$0xf]
      %v1537 = vld [vmem:[%s1527 + $0x24] sm:$0xf]
      %v1538 = vld [vmem:[%s1527 + $0x28] sm:$0xf]
      %v1539 = vld [vmem:[%s1527 + $0x2c] sm:$0xf]
      %v1540 = vld [vmem:[%s1527 + $0x30] sm:$0xf]
      %v1541 = vld [vmem:[%s1527 + $0x34] sm:$0xf]
      %v1542 = vld [vmem:[%s1527 + $0x38] sm:$0xf]
      %v1543 = vld [vmem:[%s1527 + $0x3c] sm:$0xf]
      %v1552 = vunpack.c.l.b16 %v1519
      %v1553 = vunpack.c.l.b16 %v1520
      %v1554 = vunpack.c.l.b16 %v1521
      %v1555 = vunpack.c.l.b16 %v1522
      %v1556 = vunpack.c.l.b16 %v1523
      %v1557 = vunpack.c.l.b16 %v1524
      %v1558 = vunpack.c.l.b16 %v1525
      %v1559 = vunpack.c.l.b16 %v1526
      %v1560 = vpack.c.b16 %v1553, %v1552
      %v1561 = vpack.c.b16 %v1555, %v1554
      %v1562 = vpack.c.b16 %v1557, %v1556
      %v1563 = vpack.c.b16 %v1559, %v1558
      %v1584 = vunpack.c.l.b16 %v1528
      %v1585 = vunpack.c.l.b16 %v1529
      %v1586 = vunpack.c.l.b16 %v1530
      %v1587 = vunpack.c.l.b16 %v1531
      %v1588 = vunpack.c.l.b16 %v1532
      %v1589 = vunpack.c.l.b16 %v1533
      %v1590 = vunpack.c.l.b16 %v1534
      %v1591 = vunpack.c.l.b16 %v1535
      %v1592 = vunpack.c.l.b16 %v1536
      %v1593 = vunpack.c.l.b16 %v1537
      %v1594 = vunpack.c.l.b16 %v1538
      %v1595 = vunpack.c.l.b16 %v1539
      %v1596 = vunpack.c.l.b16 %v1540
      %v1597 = vunpack.c.l.b16 %v1541
      %v1598 = vunpack.c.l.b16 %v1542
      %v1599 = vunpack.c.l.b16 %v1543
      %v1600 = vpack.c.b16 %v1585, %v1584
      %v1601 = vpack.c.b16 %v1587, %v1586
      %v1602 = vpack.c.b16 %v1589, %v1588
      %v1603 = vpack.c.b16 %v1591, %v1590
      %v1604 = vpack.c.b16 %v1593, %v1592
      %v1605 = vpack.c.b16 %v1595, %v1594
      %v1606 = vpack.c.b16 %v1597, %v1596
      %v1607 = vpack.c.b16 %v1599, %v1598
      %1616 = vmatprep.subr.bf16.mxu0 0
      %1617 = vmatpush1.bf16.msra.mxu0 %v1600
      %1618 = vmatprep.subr.bf16.mxu0 0
      %1619 = vmatpush1.bf16.msra.mxu0 %v1601
      %1620 = vmatprep.subr.bf16.mxu0 0
      %1621 = vmatpush1.bf16.msra.mxu0 %v1602
      %1622 = vmatprep.subr.bf16.mxu0 0
      %1623 = vmatpush1.bf16.msra.mxu0 %v1603
      %1624 = vmatprep.subr.bf16.mxu0 0
      %1625 = vmatpush1.bf16.msra.mxu0 %v1604
      %1626 = vmatprep.subr.bf16.mxu0 0
      %1627 = vmatpush1.bf16.msra.mxu0 %v1605
      %1628 = vmatprep.subr.bf16.mxu0 0
      %1629 = vmatpush1.bf16.msra.mxu0 %v1606
      %1630 = vmatprep.subr.bf16.mxu0 0
      %1631 = vmatpush1.bf16.msra.mxu0 %v1607
      %1632 = vmatprep.subr.bf16.mxu0 0
      %1633 = vmatpush1.bf16.msra.mxu0 0
      %1634 = vmatprep.subr.bf16.mxu0 0
      %1635 = vmatpush1.bf16.msra.mxu0 0
      %1636 = vmatprep.subr.bf16.mxu0 0
      %1637 = vmatpush1.bf16.msra.mxu0 0
      %1638 = vmatprep.subr.bf16.mxu0 0
      %1639 = vmatpush1.bf16.msra.mxu0 0
      %1640 = vmatprep.subr.bf16.mxu0 0
      %1641 = vmatpush1.bf16.msra.mxu0 0
      %1642 = vmatprep.subr.bf16.mxu0 0
      %1643 = vmatpush1.bf16.msra.mxu0 0
      %1644 = vmatprep.subr.bf16.mxu0 0
      %1645 = vmatpush1.bf16.msra.mxu0 0
      %1646 = vmatprep.subr.bf16.mxu0 0
      %1647 = vmatpush1.bf16.msra.mxu0 0
      %1648 = vmatprep.mubr.bf16.mxu0 0
      %1649 = vmatmul.mubr.bf16.gmra.mrb[0].mxu0 %v1560
      %v1650 = vpop.f32.mrb[0].mxu0
      %v1651 = vadd.f32 0.0, %v1650
      %v1652 = vpop.f32.mrb[0].mxu0
      %v1653 = vpop.f32.mrb[0].mxu0
      %v1654 = vadd.f32 0.0, %v1653
      %v1655 = vpop.f32.mrb[0].mxu0
      %1656 = vmatprep.mubr.bf16.mxu0 0
      %1657 = vmatmul.mubr.bf16.gmra.mrb[0].mxu0 %v1561
      %v1658 = vpop.f32.mrb[0].mxu0
      %v1659 = vadd.f32 0.0, %v1658
      %v1660 = vpop.f32.mrb[0].mxu0
      %v1661 = vpop.f32.mrb[0].mxu0
      %v1662 = vadd.f32 0.0, %v1661
      %v1663 = vpop.f32.mrb[0].mxu0
      %1664 = vmatprep.mubr.bf16.mxu0 0
      %1665 = vmatmul.mubr.bf16.gmra.mrb[0].mxu0 %v1562
      %v1666 = vpop.f32.mrb[0].mxu0
      %v1667 = vadd.f32 0.0, %v1666
      %v1668 = vpop.f32.mrb[0].mxu0
      %v1669 = vpop.f32.mrb[0].mxu0
      %v1670 = vadd.f32 0.0, %v1669
      %v1671 = vpop.f32.mrb[0].mxu0
      %1672 = vmatprep.mubr.bf16.mxu0 0
      %1673 = vmatmul.mubr.bf16.gmra.mrb[0].mxu0 %v1563
      %v1674 = vpop.f32.mrb[0].mxu0
      %v1675 = vadd.f32 0.0, %v1674
      %v1676 = vpop.f32.mrb[0].mxu0
      %v1677 = vpop.f32.mrb[0].mxu0
      %v1678 = vadd.f32 0.0, %v1677
      %v1679 = vpop.f32.mrb[0].mxu0
      %1680 = vdwg.mxu0
      %v1681 = vadd.f32 %v1511, %v1651
      %v1682 = vadd.f32 %v1512, %v1654
      %v1683 = vadd.f32 %v1513, %v1659
      %v1684 = vadd.f32 %v1514, %v1662
      %v1685 = vadd.f32 %v1515, %v1667
      %v1686 = vadd.f32 %v1516, %v1670
      %v1687 = vadd.f32 %v1517, %v1675
      %v1688 = vadd.f32 %v1518, %v1678
      %v1689 = vld [vmem:[%s901] sm:$0xf]
      %v1690 = vld [vmem:[%s901 + $0x8] sm:$0xf]
      %v1691 = vld [vmem:[%s901 + $0x10] sm:$0xf]
      %v1692 = vld [vmem:[%s901 + $0x18] sm:$0xf]
      %v1693 = vld [vmem:[%s901 + $0x20] sm:$0xf]
      %v1694 = vld [vmem:[%s901 + $0x28] sm:$0xf]
      %v1695 = vld [vmem:[%s901 + $0x30] sm:$0xf]
      %v1696 = vld [vmem:[%s901 + $0x38] sm:$0xf]
      %s1697 = scalar_lea.vmem %s1, 256
      %v1698 = vld [vmem:[%s1697] sm:$0xf]
      %v1699 = vld [vmem:[%s1697 + $0x4] sm:$0xf]
      %v1700 = vld [vmem:[%s1697 + $0x8] sm:$0xf]
      %v1701 = vld [vmem:[%s1697 + $0xc] sm:$0xf]
      %v1702 = vld [vmem:[%s1697 + $0x10] sm:$0xf]
      %v1703 = vld [vmem:[%s1697 + $0x14] sm:$0xf]
      %v1704 = vld [vmem:[%s1697 + $0x18] sm:$0xf]
      %v1705 = vld [vmem:[%s1697 + $0x1c] sm:$0xf]
      %v1706 = vld [vmem:[%s1697 + $0x20] sm:$0xf]
      %v1707 = vld [vmem:[%s1697 + $0x24] sm:$0xf]
      %v1708 = vld [vmem:[%s1697 + $0x28] sm:$0xf]
      %v1709 = vld [vmem:[%s1697 + $0x2c] sm:$0xf]
      %v1710 = vld [vmem:[%s1697 + $0x30] sm:$0xf]
      %v1711 = vld [vmem:[%s1697 + $0x34] sm:$0xf]
      %v1712 = vld [vmem:[%s1697 + $0x38] sm:$0xf]
      %v1713 = vld [vmem:[%s1697 + $0x3c] sm:$0xf]
      %v1722 = vunpack.c.l.b16 %v1689
      %v1723 = vunpack.c.l.b16 %v1690
      %v1724 = vunpack.c.l.b16 %v1691
      %v1725 = vunpack.c.l.b16 %v1692
      %v1726 = vunpack.c.l.b16 %v1693
      %v1727 = vunpack.c.l.b16 %v1694
      %v1728 = vunpack.c.l.b16 %v1695
      %v1729 = vunpack.c.l.b16 %v1696
      %v1730 = vpack.c.b16 %v1723, %v1722
      %v1731 = vpack.c.b16 %v1725, %v1724
      %v1732 = vpack.c.b16 %v1727, %v1726
      %v1733 = vpack.c.b16 %v1729, %v1728
      %v1754 = vunpack.c.l.b16 %v1698
      %v1755 = vunpack.c.l.b16 %v1699
      %v1756 = vunpack.c.l.b16 %v1700
      %v1757 = vunpack.c.l.b16 %v1701
      %v1758 = vunpack.c.l.b16 %v1702
      %v1759 = vunpack.c.l.b16 %v1703
      %v1760 = vunpack.c.l.b16 %v1704
      %v1761 = vunpack.c.l.b16 %v1705
      %v1762 = vunpack.c.l.b16 %v1706
      %v1763 = vunpack.c.l.b16 %v1707
      %v1764 = vunpack.c.l.b16 %v1708
      %v1765 = vunpack.c.l.b16 %v1709
      %v1766 = vunpack.c.l.b16 %v1710
      %v1767 = vunpack.c.l.b16 %v1711
      %v1768 = vunpack.c.l.b16 %v1712
      %v1769 = vunpack.c.l.b16 %v1713
      %v1770 = vpack.c.b16 %v1755, %v1754
      %v1771 = vpack.c.b16 %v1757, %v1756
      %v1772 = vpack.c.b16 %v1759, %v1758
      %v1773 = vpack.c.b16 %v1761, %v1760
      %v1774 = vpack.c.b16 %v1763, %v1762
      %v1775 = vpack.c.b16 %v1765, %v1764
      %v1776 = vpack.c.b16 %v1767, %v1766
      %v1777 = vpack.c.b16 %v1769, %v1768
      %1786 = vmatprep.subr.bf16.mxu0 0
      %1787 = vmatpush1.bf16.msra.mxu0 %v1770
      %1788 = vmatprep.subr.bf16.mxu0 0
      %1789 = vmatpush1.bf16.msra.mxu0 %v1771
      %1790 = vmatprep.subr.bf16.mxu0 0
      %1791 = vmatpush1.bf16.msra.mxu0 %v1772
      %1792 = vmatprep.subr.bf16.mxu0 0
      %1793 = vmatpush1.bf16.msra.mxu0 %v1773
      %1794 = vmatprep.subr.bf16.mxu0 0
      %1795 = vmatpush1.bf16.msra.mxu0 %v1774
      %1796 = vmatprep.subr.bf16.mxu0 0
      %1797 = vmatpush1.bf16.msra.mxu0 %v1775
      %1798 = vmatprep.subr.bf16.mxu0 0
      %1799 = vmatpush1.bf16.msra.mxu0 %v1776
      %1800 = vmatprep.subr.bf16.mxu0 0
      %1801 = vmatpush1.bf16.msra.mxu0 %v1777
      %1802 = vmatprep.subr.bf16.mxu0 0
      %1803 = vmatpush1.bf16.msra.mxu0 0
      %1804 = vmatprep.subr.bf16.mxu0 0
      %1805 = vmatpush1.bf16.msra.mxu0 0
      %1806 = vmatprep.subr.bf16.mxu0 0
      %1807 = vmatpush1.bf16.msra.mxu0 0
      %1808 = vmatprep.subr.bf16.mxu0 0
      %1809 = vmatpush1.bf16.msra.mxu0 0
      %1810 = vmatprep.subr.bf16.mxu0 0
      %1811 = vmatpush1.bf16.msra.mxu0 0
      %1812 = vmatprep.subr.bf16.mxu0 0
      %1813 = vmatpush1.bf16.msra.mxu0 0
      %1814 = vmatprep.subr.bf16.mxu0 0
      %1815 = vmatpush1.bf16.msra.mxu0 0
      %1816 = vmatprep.subr.bf16.mxu0 0
      %1817 = vmatpush1.bf16.msra.mxu0 0
      %1818 = vmatprep.mubr.bf16.mxu0 0
      %1819 = vmatmul.mubr.bf16.gmra.mrb[0].mxu0 %v1730
      %v1820 = vpop.f32.mrb[0].mxu0
      %v1821 = vadd.f32 0.0, %v1820
      %v1822 = vpop.f32.mrb[0].mxu0
      %v1823 = vpop.f32.mrb[0].mxu0
      %v1824 = vadd.f32 0.0, %v1823
      %v1825 = vpop.f32.mrb[0].mxu0
      %1826 = vmatprep.mubr.bf16.mxu0 0
      %1827 = vmatmul.mubr.bf16.gmra.mrb[0].mxu0 %v1731
      %v1828 = vpop.f32.mrb[0].mxu0
      %v1829 = vadd.f32 0.0, %v1828
      %v1830 = vpop.f32.mrb[0].mxu0
      %v1831 = vpop.f32.mrb[0].mxu0
      %v1832 = vadd.f32 0.0, %v1831
      %v1833 = vpop.f32.mrb[0].mxu0
      %1834 = vmatprep.mubr.bf16.mxu0 0
      %1835 = vmatmul.mubr.bf16.gmra.mrb[0].mxu0 %v1732
      %v1836 = vpop.f32.mrb[0].mxu0
      %v1837 = vadd.f32 0.0, %v1836
      %v1838 = vpop.f32.mrb[0].mxu0
      %v1839 = vpop.f32.mrb[0].mxu0
      %v1840 = vadd.f32 0.0, %v1839
      %v1841 = vpop.f32.mrb[0].mxu0
      %1842 = vmatprep.mubr.bf16.mxu0 0
      %1843 = vmatmul.mubr.bf16.gmra.mrb[0].mxu0 %v1733
      %v1844 = vpop.f32.mrb[0].mxu0
      %v1845 = vadd.f32 0.0, %v1844
      %v1846 = vpop.f32.mrb[0].mxu0
      %v1847 = vpop.f32.mrb[0].mxu0
      %v1848 = vadd.f32 0.0, %v1847
      %v1849 = vpop.f32.mrb[0].mxu0
      %1850 = vdwg.mxu0
      %v1851 = vadd.f32 %v1681, %v1821
      %v1852 = vadd.f32 %v1682, %v1824
      %v1853 = vadd.f32 %v1683, %v1829
      %v1854 = vadd.f32 %v1684, %v1832
      %v1855 = vadd.f32 %v1685, %v1837
      %v1856 = vadd.f32 %v1686, %v1840
      %v1857 = vadd.f32 %v1687, %v1845
      %v1858 = vadd.f32 %v1688, %v1848
      %v1859 = vld [vmem:[%s803] sm:$0xf]
      %v1860 = vld [vmem:[%s803 + $0x4] sm:$0x1]
      %v1861 = vld [vmem:[%s803 + $0x8] sm:$0xf]
      %v1862 = vld [vmem:[%s803 + $0xc] sm:$0x1]
      %v1863 = vld [vmem:[%s803 + $0x10] sm:$0xf]
      %v1864 = vld [vmem:[%s803 + $0x14] sm:$0x1]
      %v1865 = vld [vmem:[%s803 + $0x18] sm:$0xf]
      %v1866 = vld [vmem:[%s803 + $0x1c] sm:$0x1]
      %v1867 = vld [vmem:[%s803 + $0x20] sm:$0xf]
      %v1868 = vld [vmem:[%s803 + $0x24] sm:$0x1]
      %v1869 = vld [vmem:[%s803 + $0x28] sm:$0xf]
      %v1870 = vld [vmem:[%s803 + $0x2c] sm:$0x1]
      %v1871 = vld [vmem:[%s803 + $0x30] sm:$0xf]
      %v1872 = vld [vmem:[%s803 + $0x34] sm:$0x1]
      %v1873 = vld [vmem:[%s803 + $0x38] sm:$0xf]
      %v1874 = vld [vmem:[%s803 + $0x3c] sm:$0x1]
      %v1876 = vshrl.u32 %v1859, 16
      %v1878 = vrot.slane %v1876, 4
      %v1879 = vshll.u32 %v1859, 16
      %v1881 = vrot.slane %v1879, 5
      %v1882 = vor.u32 %v1878, %v1881
      %v1883 = vrot.slane %v1882, 4
      %v1885 = vshll.u32 %v1860, 16
      %v1887 = vrot.slane %v1885, 5
      %v1888 = vsel %vm1252, %v1883, %v1887
      %v1890 = vshrl.u32 %v1861, 16
      %v1892 = vrot.slane %v1890, 4
      %v1893 = vshll.u32 %v1861, 16
      %v1895 = vrot.slane %v1893, 5
      %v1896 = vor.u32 %v1892, %v1895
      %v1897 = vrot.slane %v1896, 4
      %v1899 = vshll.u32 %v1862, 16
      %v1901 = vrot.slane %v1899, 5
      %v1902 = vsel %vm1252, %v1897, %v1901
      %v1904 = vshrl.u32 %v1863, 16
      %v1906 = vrot.slane %v1904, 4
      %v1907 = vshll.u32 %v1863, 16
      %v1909 = vrot.slane %v1907, 5
      %v1910 = vor.u32 %v1906, %v1909
      %v1911 = vrot.slane %v1910, 4
      %v1913 = vshll.u32 %v1864, 16
      %v1915 = vrot.slane %v1913, 5
      %v1916 = vsel %vm1252, %v1911, %v1915
      %v1918 = vshrl.u32 %v1865, 16
      %v1920 = vrot.slane %v1918, 4
      %v1921 = vshll.u32 %v1865, 16
      %v1923 = vrot.slane %v1921, 5
      %v1924 = vor.u32 %v1920, %v1923
      %v1925 = vrot.slane %v1924, 4
      %v1927 = vshll.u32 %v1866, 16
      %v1929 = vrot.slane %v1927, 5
      %v1930 = vsel %vm1252, %v1925, %v1929
      %v1932 = vshrl.u32 %v1867, 16
      %v1934 = vrot.slane %v1932, 4
      %v1935 = vshll.u32 %v1867, 16
      %v1937 = vrot.slane %v1935, 5
      %v1938 = vor.u32 %v1934, %v1937
      %v1939 = vrot.slane %v1938, 4
      %v1941 = vshll.u32 %v1868, 16
      %v1943 = vrot.slane %v1941, 5
      %v1944 = vsel %vm1252, %v1939, %v1943
      %v1946 = vshrl.u32 %v1869, 16
      %v1948 = vrot.slane %v1946, 4
      %v1949 = vshll.u32 %v1869, 16
      %v1951 = vrot.slane %v1949, 5
      %v1952 = vor.u32 %v1948, %v1951
      %v1953 = vrot.slane %v1952, 4
      %v1955 = vshll.u32 %v1870, 16
      %v1957 = vrot.slane %v1955, 5
      %v1958 = vsel %vm1252, %v1953, %v1957
      %v1960 = vshrl.u32 %v1871, 16
      %v1962 = vrot.slane %v1960, 4
      %v1963 = vshll.u32 %v1871, 16
      %v1965 = vrot.slane %v1963, 5
      %v1966 = vor.u32 %v1962, %v1965
      %v1967 = vrot.slane %v1966, 4
      %v1969 = vshll.u32 %v1872, 16
      %v1971 = vrot.slane %v1969, 5
      %v1972 = vsel %vm1252, %v1967, %v1971
      %v1974 = vshrl.u32 %v1873, 16
      %v1976 = vrot.slane %v1974, 4
      %v1977 = vshll.u32 %v1873, 16
      %v1979 = vrot.slane %v1977, 5
      %v1980 = vor.u32 %v1976, %v1979
      %v1981 = vrot.slane %v1980, 4
      %v1983 = vshll.u32 %v1874, 16
      %v1985 = vrot.slane %v1983, 5
      %v1986 = vsel %vm1252, %v1981, %v1985
      %s1987 = scalar_lea.vmem %s1, 320
      %v1988 = vld [vmem:[%s1987] sm:$0xf]
      %v1989 = vld [vmem:[%s1987 + $0x4] sm:$0xf]
      %v1990 = vld [vmem:[%s1987 + $0x8] sm:$0xf]
      %v1991 = vld [vmem:[%s1987 + $0xc] sm:$0xf]
      %v1992 = vld [vmem:[%s1987 + $0x10] sm:$0xf]
      %v1993 = vld [vmem:[%s1987 + $0x14] sm:$0xf]
      %v1994 = vld [vmem:[%s1987 + $0x18] sm:$0xf]
      %v1995 = vld [vmem:[%s1987 + $0x1c] sm:$0xf]
      %v1996 = vld [vmem:[%s1987 + $0x20] sm:$0xf]
      %v1997 = vld [vmem:[%s1987 + $0x24] sm:$0xf]
      %v1998 = vld [vmem:[%s1987 + $0x28] sm:$0xf]
      %v1999 = vld [vmem:[%s1987 + $0x2c] sm:$0xf]
      %v2000 = vld [vmem:[%s1987 + $0x30] sm:$0xf]
      %v2001 = vld [vmem:[%s1987 + $0x34] sm:$0xf]
      %v2002 = vld [vmem:[%s1987 + $0x38] sm:$0xf]
      %v2003 = vld [vmem:[%s1987 + $0x3c] sm:$0xf]
      %v2004 = vunpack.c.l.b16 %v1888
      %v2005 = vunpack.c.l.b16 %v1902
      %v2006 = vunpack.c.l.b16 %v1916
      %v2007 = vunpack.c.l.b16 %v1930
      %v2008 = vunpack.c.l.b16 %v1944
      %v2009 = vunpack.c.l.b16 %v1958
      %v2010 = vunpack.c.l.b16 %v1972
      %v2011 = vunpack.c.l.b16 %v1986
      %v2012 = vpack.c.b16 %v2005, %v2004
      %v2013 = vpack.c.b16 %v2007, %v2006
      %v2014 = vpack.c.b16 %v2009, %v2008
      %v2015 = vpack.c.b16 %v2011, %v2010
      %v2036 = vunpack.c.l.b16 %v1988
      %v2037 = vunpack.c.l.b16 %v1989
      %v2038 = vunpack.c.l.b16 %v1990
      %v2039 = vunpack.c.l.b16 %v1991
      %v2040 = vunpack.c.l.b16 %v1992
      %v2041 = vunpack.c.l.b16 %v1993
      %v2042 = vunpack.c.l.b16 %v1994
      %v2043 = vunpack.c.l.b16 %v1995
      %v2044 = vunpack.c.l.b16 %v1996
      %v2045 = vunpack.c.l.b16 %v1997
      %v2046 = vunpack.c.l.b16 %v1998
      %v2047 = vunpack.c.l.b16 %v1999
      %v2048 = vunpack.c.l.b16 %v2000
      %v2049 = vunpack.c.l.b16 %v2001
      %v2050 = vunpack.c.l.b16 %v2002
      %v2051 = vunpack.c.l.b16 %v2003
      %v2052 = vpack.c.b16 %v2037, %v2036
      %v2053 = vpack.c.b16 %v2039, %v2038
      %v2054 = vpack.c.b16 %v2041, %v2040
      %v2055 = vpack.c.b16 %v2043, %v2042
      %v2056 = vpack.c.b16 %v2045, %v2044
      %v2057 = vpack.c.b16 %v2047, %v2046
      %v2058 = vpack.c.b16 %v2049, %v2048
      %v2059 = vpack.c.b16 %v2051, %v2050
      %2068 = vmatprep.subr.bf16.mxu0 0
      %2069 = vmatpush1.bf16.msra.mxu0 %v2052
      %2070 = vmatprep.subr.bf16.mxu0 0
      %2071 = vmatpush1.bf16.msra.mxu0 %v2053
      %2072 = vmatprep.subr.bf16.mxu0 0
      %2073 = vmatpush1.bf16.msra.mxu0 %v2054
      %2074 = vmatprep.subr.bf16.mxu0 0
      %2075 = vmatpush1.bf16.msra.mxu0 %v2055
      %2076 = vmatprep.subr.bf16.mxu0 0
      %2077 = vmatpush1.bf16.msra.mxu0 %v2056
      %2078 = vmatprep.subr.bf16.mxu0 0
      %2079 = vmatpush1.bf16.msra.mxu0 %v2057
      %2080 = vmatprep.subr.bf16.mxu0 0
      %2081 = vmatpush1.bf16.msra.mxu0 %v2058
      %2082 = vmatprep.subr.bf16.mxu0 0
      %2083 = vmatpush1.bf16.msra.mxu0 %v2059
      %2084 = vmatprep.subr.bf16.mxu0 0
      %2085 = vmatpush1.bf16.msra.mxu0 0
      %2086 = vmatprep.subr.bf16.mxu0 0
      %2087 = vmatpush1.bf16.msra.mxu0 0
      %2088 = vmatprep.subr.bf16.mxu0 0
      %2089 = vmatpush1.bf16.msra.mxu0 0
      %2090 = vmatprep.subr.bf16.mxu0 0
      %2091 = vmatpush1.bf16.msra.mxu0 0
      %2092 = vmatprep.subr.bf16.mxu0 0
      %2093 = vmatpush1.bf16.msra.mxu0 0
      %2094 = vmatprep.subr.bf16.mxu0 0
      %2095 = vmatpush1.bf16.msra.mxu0 0
      %2096 = vmatprep.subr.bf16.mxu0 0
      %2097 = vmatpush1.bf16.msra.mxu0 0
      %2098 = vmatprep.subr.bf16.mxu0 0
      %2099 = vmatpush1.bf16.msra.mxu0 0
      %2100 = vmatprep.mubr.bf16.mxu0 0
      %2101 = vmatmul.mubr.bf16.gmra.mrb[0].mxu0 %v2012
      %v2102 = vpop.f32.mrb[0].mxu0
      %v2103 = vadd.f32 0.0, %v2102
      %v2104 = vpop.f32.mrb[0].mxu0
      %v2105 = vpop.f32.mrb[0].mxu0
      %v2106 = vadd.f32 0.0, %v2105
      %v2107 = vpop.f32.mrb[0].mxu0
      %2108 = vmatprep.mubr.bf16.mxu0 0
      %2109 = vmatmul.mubr.bf16.gmra.mrb[0].mxu0 %v2013
      %v2110 = vpop.f32.mrb[0].mxu0
      %v2111 = vadd.f32 0.0, %v2110
      %v2112 = vpop.f32.mrb[0].mxu0
      %v2113 = vpop.f32.mrb[0].mxu0
      %v2114 = vadd.f32 0.0, %v2113
      %v2115 = vpop.f32.mrb[0].mxu0
      %2116 = vmatprep.mubr.bf16.mxu0 0
      %2117 = vmatmul.mubr.bf16.gmra.mrb[0].mxu0 %v2014
      %v2118 = vpop.f32.mrb[0].mxu0
      %v2119 = vadd.f32 0.0, %v2118
      %v2120 = vpop.f32.mrb[0].mxu0
      %v2121 = vpop.f32.mrb[0].mxu0
      %v2122 = vadd.f32 0.0, %v2121
      %v2123 = vpop.f32.mrb[0].mxu0
      %2124 = vmatprep.mubr.bf16.mxu0 0
      %2125 = vmatmul.mubr.bf16.gmra.mrb[0].mxu0 %v2015
      %v2126 = vpop.f32.mrb[0].mxu0
      %v2127 = vadd.f32 0.0, %v2126
      %v2128 = vpop.f32.mrb[0].mxu0
      %v2129 = vpop.f32.mrb[0].mxu0
      %v2130 = vadd.f32 0.0, %v2129
      %v2131 = vpop.f32.mrb[0].mxu0
      %2132 = vdwg.mxu0
      %v2133 = vadd.f32 %v1851, %v2103
      %v2134 = vadd.f32 %v1852, %v2106
      %v2135 = vadd.f32 %v1853, %v2111
      %v2136 = vadd.f32 %v1854, %v2114
      %v2137 = vadd.f32 %v1855, %v2119
      %v2138 = vadd.f32 %v1856, %v2122
      %v2139 = vadd.f32 %v1857, %v2127
      %v2140 = vadd.f32 %v1858, %v2130
      %v2141 = vld [vmem:[%s548] sm:$0xf]
      %v2142 = vld [vmem:[%s548 + $0x8] sm:$0xf]
      %v2143 = vld [vmem:[%s548 + $0x10] sm:$0xf]
      %v2144 = vld [vmem:[%s548 + $0x18] sm:$0xf]
      %v2145 = vld [vmem:[%s548 + $0x20] sm:$0xf]
      %v2146 = vld [vmem:[%s548 + $0x28] sm:$0xf]
      %v2147 = vld [vmem:[%s548 + $0x30] sm:$0xf]
      %v2148 = vld [vmem:[%s548 + $0x38] sm:$0xf]
      %s2149 = scalar_lea.vmem %s1, 384
      %v2150 = vld [vmem:[%s2149] sm:$0xf]
      %v2151 = vld [vmem:[%s2149 + $0x4] sm:$0xf]
      %v2152 = vld [vmem:[%s2149 + $0x8] sm:$0xf]
      %v2153 = vld [vmem:[%s2149 + $0xc] sm:$0xf]
      %v2154 = vld [vmem:[%s2149 + $0x10] sm:$0xf]
      %v2155 = vld [vmem:[%s2149 + $0x14] sm:$0xf]
      %v2156 = vld [vmem:[%s2149 + $0x18] sm:$0xf]
      %v2157 = vld [vmem:[%s2149 + $0x1c] sm:$0xf]
      %v2158 = vld [vmem:[%s2149 + $0x20] sm:$0xf]
      %v2159 = vld [vmem:[%s2149 + $0x24] sm:$0xf]
      %v2160 = vld [vmem:[%s2149 + $0x28] sm:$0xf]
      %v2161 = vld [vmem:[%s2149 + $0x2c] sm:$0xf]
      %v2162 = vld [vmem:[%s2149 + $0x30] sm:$0xf]
      %v2163 = vld [vmem:[%s2149 + $0x34] sm:$0xf]
      %v2164 = vld [vmem:[%s2149 + $0x38] sm:$0xf]
      %v2165 = vld [vmem:[%s2149 + $0x3c] sm:$0xf]
      %v2174 = vunpack.c.l.b16 %v2141
      %v2175 = vunpack.c.l.b16 %v2142
      %v2176 = vunpack.c.l.b16 %v2143
      %v2177 = vunpack.c.l.b16 %v2144
      %v2178 = vunpack.c.l.b16 %v2145
      %v2179 = vunpack.c.l.b16 %v2146
      %v2180 = vunpack.c.l.b16 %v2147
      %v2181 = vunpack.c.l.b16 %v2148
      %v2182 = vpack.c.b16 %v2175, %v2174
      %v2183 = vpack.c.b16 %v2177, %v2176
      %v2184 = vpack.c.b16 %v2179, %v2178
      %v2185 = vpack.c.b16 %v2181, %v2180
      %v2206 = vunpack.c.l.b16 %v2150
      %v2207 = vunpack.c.l.b16 %v2151
      %v2208 = vunpack.c.l.b16 %v2152
      %v2209 = vunpack.c.l.b16 %v2153
      %v2210 = vunpack.c.l.b16 %v2154
      %v2211 = vunpack.c.l.b16 %v2155
      %v2212 = vunpack.c.l.b16 %v2156
      %v2213 = vunpack.c.l.b16 %v2157
      %v2214 = vunpack.c.l.b16 %v2158
      %v2215 = vunpack.c.l.b16 %v2159
      %v2216 = vunpack.c.l.b16 %v2160
      %v2217 = vunpack.c.l.b16 %v2161
      %v2218 = vunpack.c.l.b16 %v2162
      %v2219 = vunpack.c.l.b16 %v2163
      %v2220 = vunpack.c.l.b16 %v2164
      %v2221 = vunpack.c.l.b16 %v2165
      %v2222 = vpack.c.b16 %v2207, %v2206
      %v2223 = vpack.c.b16 %v2209, %v2208
      %v2224 = vpack.c.b16 %v2211, %v2210
      %v2225 = vpack.c.b16 %v2213, %v2212
      %v2226 = vpack.c.b16 %v2215, %v2214
      %v2227 = vpack.c.b16 %v2217, %v2216
      %v2228 = vpack.c.b16 %v2219, %v2218
      %v2229 = vpack.c.b16 %v2221, %v2220
      %2238 = vmatprep.subr.bf16.mxu0 0
      %2239 = vmatpush1.bf16.msra.mxu0 %v2222
      %2240 = vmatprep.subr.bf16.mxu0 0
      %2241 = vmatpush1.bf16.msra.mxu0 %v2223
      %2242 = vmatprep.subr.bf16.mxu0 0
      %2243 = vmatpush1.bf16.msra.mxu0 %v2224
      %2244 = vmatprep.subr.bf16.mxu0 0
      %2245 = vmatpush1.bf16.msra.mxu0 %v2225
      %2246 = vmatprep.subr.bf16.mxu0 0
      %2247 = vmatpush1.bf16.msra.mxu0 %v2226
      %2248 = vmatprep.subr.bf16.mxu0 0
      %2249 = vmatpush1.bf16.msra.mxu0 %v2227
      %2250 = vmatprep.subr.bf16.mxu0 0
      %2251 = vmatpush1.bf16.msra.mxu0 %v2228
      %2252 = vmatprep.subr.bf16.mxu0 0
      %2253 = vmatpush1.bf16.msra.mxu0 %v2229
      %2254 = vmatprep.subr.bf16.mxu0 0
      %2255 = vmatpush1.bf16.msra.mxu0 0
      %2256 = vmatprep.subr.bf16.mxu0 0
      %2257 = vmatpush1.bf16.msra.mxu0 0
      %2258 = vmatprep.subr.bf16.mxu0 0
      %2259 = vmatpush1.bf16.msra.mxu0 0
      %2260 = vmatprep.subr.bf16.mxu0 0
      %2261 = vmatpush1.bf16.msra.mxu0 0
      %2262 = vmatprep.subr.bf16.mxu0 0
      %2263 = vmatpush1.bf16.msra.mxu0 0
      %2264 = vmatprep.subr.bf16.mxu0 0
      %2265 = vmatpush1.bf16.msra.mxu0 0
      %2266 = vmatprep.subr.bf16.mxu0 0
      %2267 = vmatpush1.bf16.msra.mxu0 0
      %2268 = vmatprep.subr.bf16.mxu0 0
      %2269 = vmatpush1.bf16.msra.mxu0 0
      %2270 = vmatprep.mubr.bf16.mxu0 0
      %2271 = vmatmul.mubr.bf16.gmra.mrb[0].mxu0 %v2182
      %v2272 = vpop.f32.mrb[0].mxu0
      %v2273 = vadd.f32 0.0, %v2272
      %v2274 = vpop.f32.mrb[0].mxu0
      %v2275 = vpop.f32.mrb[0].mxu0
      %v2276 = vadd.f32 0.0, %v2275
      %v2277 = vpop.f32.mrb[0].mxu0
      %2278 = vmatprep.mubr.bf16.mxu0 0
      %2279 = vmatmul.mubr.bf16.gmra.mrb[0].mxu0 %v2183
      %v2280 = vpop.f32.mrb[0].mxu0
      %v2281 = vadd.f32 0.0, %v2280
      %v2282 = vpop.f32.mrb[0].mxu0
      %v2283 = vpop.f32.mrb[0].mxu0
      %v2284 = vadd.f32 0.0, %v2283
      %v2285 = vpop.f32.mrb[0].mxu0
      %2286 = vmatprep.mubr.bf16.mxu0 0
      %2287 = vmatmul.mubr.bf16.gmra.mrb[0].mxu0 %v2184
      %v2288 = vpop.f32.mrb[0].mxu0
      %v2289 = vadd.f32 0.0, %v2288
      %v2290 = vpop.f32.mrb[0].mxu0
      %v2291 = vpop.f32.mrb[0].mxu0
      %v2292 = vadd.f32 0.0, %v2291
      %v2293 = vpop.f32.mrb[0].mxu0
      %2294 = vmatprep.mubr.bf16.mxu0 0
      %2295 = vmatmul.mubr.bf16.gmra.mrb[0].mxu0 %v2185
      %v2296 = vpop.f32.mrb[0].mxu0
      %v2297 = vadd.f32 0.0, %v2296
      %v2298 = vpop.f32.mrb[0].mxu0
      %v2299 = vpop.f32.mrb[0].mxu0
      %v2300 = vadd.f32 0.0, %v2299
      %v2301 = vpop.f32.mrb[0].mxu0
      %2302 = vdwg.mxu0
      %v2303 = vadd.f32 %v2133, %v2273
      %v2304 = vadd.f32 %v2134, %v2276
      %v2305 = vadd.f32 %v2135, %v2281
      %v2306 = vadd.f32 %v2136, %v2284
      %v2307 = vadd.f32 %v2137, %v2289
      %v2308 = vadd.f32 %v2138, %v2292
      %v2309 = vadd.f32 %v2139, %v2297
      %v2310 = vadd.f32 %v2140, %v2300
      %v2311 = vld [vmem:[%s649] sm:$0xf]
      %v2312 = vld [vmem:[%s649 + $0x8] sm:$0xf]
      %v2313 = vld [vmem:[%s649 + $0x10] sm:$0xf]
      %v2314 = vld [vmem:[%s649 + $0x18] sm:$0xf]
      %v2315 = vld [vmem:[%s649 + $0x20] sm:$0xf]
      %v2316 = vld [vmem:[%s649 + $0x28] sm:$0xf]
      %v2317 = vld [vmem:[%s649 + $0x30] sm:$0xf]
      %v2318 = vld [vmem:[%s649 + $0x38] sm:$0xf]
      %s2319 = scalar_lea.vmem %s1, 448
      %v2320 = vld [vmem:[%s2319] sm:$0xf]
      %v2321 = vld [vmem:[%s2319 + $0x4] sm:$0xf]
      %v2322 = vld [vmem:[%s2319 + $0x8] sm:$0xf]
      %v2323 = vld [vmem:[%s2319 + $0xc] sm:$0xf]
      %v2324 = vld [vmem:[%s2319 + $0x10] sm:$0xf]
      %v2325 = vld [vmem:[%s2319 + $0x14] sm:$0xf]
      %v2326 = vld [vmem:[%s2319 + $0x18] sm:$0xf]
      %v2327 = vld [vmem:[%s2319 + $0x1c] sm:$0xf]
      %v2328 = vld [vmem:[%s2319 + $0x20] sm:$0xf]
      %v2329 = vld [vmem:[%s2319 + $0x24] sm:$0xf]
      %v2330 = vld [vmem:[%s2319 + $0x28] sm:$0xf]
      %v2331 = vld [vmem:[%s2319 + $0x2c] sm:$0xf]
      %v2332 = vld [vmem:[%s2319 + $0x30] sm:$0xf]
      %v2333 = vld [vmem:[%s2319 + $0x34] sm:$0xf]
      %v2334 = vld [vmem:[%s2319 + $0x38] sm:$0xf]
      %v2335 = vld [vmem:[%s2319 + $0x3c] sm:$0xf]
      %v2344 = vunpack.c.l.b16 %v2311
      %v2345 = vunpack.c.l.b16 %v2312
      %v2346 = vunpack.c.l.b16 %v2313
      %v2347 = vunpack.c.l.b16 %v2314
      %v2348 = vunpack.c.l.b16 %v2315
      %v2349 = vunpack.c.l.b16 %v2316
      %v2350 = vunpack.c.l.b16 %v2317
      %v2351 = vunpack.c.l.b16 %v2318
      %v2352 = vpack.c.b16 %v2345, %v2344
      %v2353 = vpack.c.b16 %v2347, %v2346
      %v2354 = vpack.c.b16 %v2349, %v2348
      %v2355 = vpack.c.b16 %v2351, %v2350
      %v2376 = vunpack.c.l.b16 %v2320
      %v2377 = vunpack.c.l.b16 %v2321
      %v2378 = vunpack.c.l.b16 %v2322
      %v2379 = vunpack.c.l.b16 %v2323
      %v2380 = vunpack.c.l.b16 %v2324
      %v2381 = vunpack.c.l.b16 %v2325
      %v2382 = vunpack.c.l.b16 %v2326
      %v2383 = vunpack.c.l.b16 %v2327
      %v2384 = vunpack.c.l.b16 %v2328
      %v2385 = vunpack.c.l.b16 %v2329
      %v2386 = vunpack.c.l.b16 %v2330
      %v2387 = vunpack.c.l.b16 %v2331
      %v2388 = vunpack.c.l.b16 %v2332
      %v2389 = vunpack.c.l.b16 %v2333
      %v2390 = vunpack.c.l.b16 %v2334
      %v2391 = vunpack.c.l.b16 %v2335
      %v2392 = vpack.c.b16 %v2377, %v2376
      %v2393 = vpack.c.b16 %v2379, %v2378
      %v2394 = vpack.c.b16 %v2381, %v2380
      %v2395 = vpack.c.b16 %v2383, %v2382
      %v2396 = vpack.c.b16 %v2385, %v2384
      %v2397 = vpack.c.b16 %v2387, %v2386
      %v2398 = vpack.c.b16 %v2389, %v2388
      %v2399 = vpack.c.b16 %v2391, %v2390
      %2408 = vmatprep.subr.bf16.mxu0 0
      %2409 = vmatpush1.bf16.msra.mxu0 %v2392
      %2410 = vmatprep.subr.bf16.mxu0 0
      %2411 = vmatpush1.bf16.msra.mxu0 %v2393
      %2412 = vmatprep.subr.bf16.mxu0 0
      %2413 = vmatpush1.bf16.msra.mxu0 %v2394
      %2414 = vmatprep.subr.bf16.mxu0 0
      %2415 = vmatpush1.bf16.msra.mxu0 %v2395
      %2416 = vmatprep.subr.bf16.mxu0 0
      %2417 = vmatpush1.bf16.msra.mxu0 %v2396
      %2418 = vmatprep.subr.bf16.mxu0 0
      %2419 = vmatpush1.bf16.msra.mxu0 %v2397
      %2420 = vmatprep.subr.bf16.mxu0 0
      %2421 = vmatpush1.bf16.msra.mxu0 %v2398
      %2422 = vmatprep.subr.bf16.mxu0 0
      %2423 = vmatpush1.bf16.msra.mxu0 %v2399
      %2424 = vmatprep.subr.bf16.mxu0 0
      %2425 = vmatpush1.bf16.msra.mxu0 0
      %2426 = vmatprep.subr.bf16.mxu0 0
      %2427 = vmatpush1.bf16.msra.mxu0 0
      %2428 = vmatprep.subr.bf16.mxu0 0
      %2429 = vmatpush1.bf16.msra.mxu0 0
      %2430 = vmatprep.subr.bf16.mxu0 0
      %2431 = vmatpush1.bf16.msra.mxu0 0
      %2432 = vmatprep.subr.bf16.mxu0 0
      %2433 = vmatpush1.bf16.msra.mxu0 0
      %2434 = vmatprep.subr.bf16.mxu0 0
      %2435 = vmatpush1.bf16.msra.mxu0 0
      %2436 = vmatprep.subr.bf16.mxu0 0
      %2437 = vmatpush1.bf16.msra.mxu0 0
      %2438 = vmatprep.subr.bf16.mxu0 0
      %2439 = vmatpush1.bf16.msra.mxu0 0
      %2440 = vmatprep.mubr.bf16.mxu0 0
      %2441 = vmatmul.mubr.bf16.gmra.mrb[0].mxu0 %v2352
      %v2442 = vpop.f32.mrb[0].mxu0
      %v2443 = vadd.f32 0.0, %v2442
      %v2444 = vpop.f32.mrb[0].mxu0
      %v2445 = vpop.f32.mrb[0].mxu0
      %v2446 = vadd.f32 0.0, %v2445
      %v2447 = vpop.f32.mrb[0].mxu0
      %2448 = vmatprep.mubr.bf16.mxu0 0
      %2449 = vmatmul.mubr.bf16.gmra.mrb[0].mxu0 %v2353
      %v2450 = vpop.f32.mrb[0].mxu0
      %v2451 = vadd.f32 0.0, %v2450
      %v2452 = vpop.f32.mrb[0].mxu0
      %v2453 = vpop.f32.mrb[0].mxu0
      %v2454 = vadd.f32 0.0, %v2453
      %v2455 = vpop.f32.mrb[0].mxu0
      %2456 = vmatprep.mubr.bf16.mxu0 0
      %2457 = vmatmul.mubr.bf16.gmra.mrb[0].mxu0 %v2354
      %v2458 = vpop.f32.mrb[0].mxu0
      %v2459 = vadd.f32 0.0, %v2458
      %v2460 = vpop.f32.mrb[0].mxu0
      %v2461 = vpop.f32.mrb[0].mxu0
      %v2462 = vadd.f32 0.0, %v2461
      %v2463 = vpop.f32.mrb[0].mxu0
      %2464 = vmatprep.mubr.bf16.mxu0 0
      %2465 = vmatmul.mubr.bf16.gmra.mrb[0].mxu0 %v2355
      %v2466 = vpop.f32.mrb[0].mxu0
      %v2467 = vadd.f32 0.0, %v2466
      %v2468 = vpop.f32.mrb[0].mxu0
      %v2469 = vpop.f32.mrb[0].mxu0
      %v2470 = vadd.f32 0.0, %v2469
      %v2471 = vpop.f32.mrb[0].mxu0
      %2472 = vdwg.mxu0
      %v2473 = vadd.f32 %v2303, %v2443
      %v2474 = vadd.f32 %v2304, %v2446
      %v2475 = vadd.f32 %v2305, %v2451
      %v2476 = vadd.f32 %v2306, %v2454
      %v2477 = vadd.f32 %v2307, %v2459
      %v2478 = vadd.f32 %v2308, %v2462
      %v2479 = vadd.f32 %v2309, %v2467
      %v2480 = vadd.f32 %v2310, %v2470
      %v2481 = vld [vmem:[%s548] sm:$0xf]
      %v2482 = vld [vmem:[%s548 + $0x4] sm:$0x1]
      %v2483 = vld [vmem:[%s548 + $0x8] sm:$0xf]
      %v2484 = vld [vmem:[%s548 + $0xc] sm:$0x1]
      %v2485 = vld [vmem:[%s548 + $0x10] sm:$0xf]
      %v2486 = vld [vmem:[%s548 + $0x14] sm:$0x1]
      %v2487 = vld [vmem:[%s548 + $0x18] sm:$0xf]
      %v2488 = vld [vmem:[%s548 + $0x1c] sm:$0x1]
      %v2489 = vld [vmem:[%s548 + $0x20] sm:$0xf]
      %v2490 = vld [vmem:[%s548 + $0x24] sm:$0x1]
      %v2491 = vld [vmem:[%s548 + $0x28] sm:$0xf]
      %v2492 = vld [vmem:[%s548 + $0x2c] sm:$0x1]
      %v2493 = vld [vmem:[%s548 + $0x30] sm:$0xf]
      %v2494 = vld [vmem:[%s548 + $0x34] sm:$0x1]
      %v2495 = vld [vmem:[%s548 + $0x38] sm:$0xf]
      %v2496 = vld [vmem:[%s548 + $0x3c] sm:$0x1]
      %v2498 = vshrl.u32 %v2481, 16
      %v2500 = vrot.slane %v2498, 4
      %v2501 = vshll.u32 %v2481, 16
      %v2503 = vrot.slane %v2501, 5
      %v2504 = vor.u32 %v2500, %v2503
      %v2505 = vrot.slane %v2504, 4
      %v2507 = vshll.u32 %v2482, 16
      %v2509 = vrot.slane %v2507, 5
      %v2510 = vsel %vm1252, %v2505, %v2509
      %v2512 = vshrl.u32 %v2483, 16
      %v2514 = vrot.slane %v2512, 4
      %v2515 = vshll.u32 %v2483, 16
      %v2517 = vrot.slane %v2515, 5
      %v2518 = vor.u32 %v2514, %v2517
      %v2519 = vrot.slane %v2518, 4
      %v2521 = vshll.u32 %v2484, 16
      %v2523 = vrot.slane %v2521, 5
      %v2524 = vsel %vm1252, %v2519, %v2523
      %v2526 = vshrl.u32 %v2485, 16
      %v2528 = vrot.slane %v2526, 4
      %v2529 = vshll.u32 %v2485, 16
      %v2531 = vrot.slane %v2529, 5
      %v2532 = vor.u32 %v2528, %v2531
      %v2533 = vrot.slane %v2532, 4
      %v2535 = vshll.u32 %v2486, 16
      %v2537 = vrot.slane %v2535, 5
      %v2538 = vsel %vm1252, %v2533, %v2537
      %v2540 = vshrl.u32 %v2487, 16
      %v2542 = vrot.slane %v2540, 4
      %v2543 = vshll.u32 %v2487, 16
      %v2545 = vrot.slane %v2543, 5
      %v2546 = vor.u32 %v2542, %v2545
      %v2547 = vrot.slane %v2546, 4
      %v2549 = vshll.u32 %v2488, 16
      %v2551 = vrot.slane %v2549, 5
      %v2552 = vsel %vm1252, %v2547, %v2551
      %v2554 = vshrl.u32 %v2489, 16
      %v2556 = vrot.slane %v2554, 4
      %v2557 = vshll.u32 %v2489, 16
      %v2559 = vrot.slane %v2557, 5
      %v2560 = vor.u32 %v2556, %v2559
      %v2561 = vrot.slane %v2560, 4
      %v2563 = vshll.u32 %v2490, 16
      %v2565 = vrot.slane %v2563, 5
      %v2566 = vsel %vm1252, %v2561, %v2565
      %v2568 = vshrl.u32 %v2491, 16
      %v2570 = vrot.slane %v2568, 4
      %v2571 = vshll.u32 %v2491, 16
      %v2573 = vrot.slane %v2571, 5
      %v2574 = vor.u32 %v2570, %v2573
      %v2575 = vrot.slane %v2574, 4
      %v2577 = vshll.u32 %v2492, 16
      %v2579 = vrot.slane %v2577, 5
      %v2580 = vsel %vm1252, %v2575, %v2579
      %v2582 = vshrl.u32 %v2493, 16
      %v2584 = vrot.slane %v2582, 4
      %v2585 = vshll.u32 %v2493, 16
      %v2587 = vrot.slane %v2585, 5
      %v2588 = vor.u32 %v2584, %v2587
      %v2589 = vrot.slane %v2588, 4
      %v2591 = vshll.u32 %v2494, 16
      %v2593 = vrot.slane %v2591, 5
      %v2594 = vsel %vm1252, %v2589, %v2593
      %v2596 = vshrl.u32 %v2495, 16
      %v2598 = vrot.slane %v2596, 4
      %v2599 = vshll.u32 %v2495, 16
      %v2601 = vrot.slane %v2599, 5
      %v2602 = vor.u32 %v2598, %v2601
      %v2603 = vrot.slane %v2602, 4
      %v2605 = vshll.u32 %v2496, 16
      %v2607 = vrot.slane %v2605, 5
      %v2608 = vsel %vm1252, %v2603, %v2607
      %s2609 = scalar_lea.vmem %s1, 512
      %v2610 = vld [vmem:[%s2609] sm:$0xf]
      %v2611 = vld [vmem:[%s2609 + $0x4] sm:$0xf]
      %v2612 = vld [vmem:[%s2609 + $0x8] sm:$0xf]
      %v2613 = vld [vmem:[%s2609 + $0xc] sm:$0xf]
      %v2614 = vld [vmem:[%s2609 + $0x10] sm:$0xf]
      %v2615 = vld [vmem:[%s2609 + $0x14] sm:$0xf]
      %v2616 = vld [vmem:[%s2609 + $0x18] sm:$0xf]
      %v2617 = vld [vmem:[%s2609 + $0x1c] sm:$0xf]
      %v2618 = vld [vmem:[%s2609 + $0x20] sm:$0xf]
      %v2619 = vld [vmem:[%s2609 + $0x24] sm:$0xf]
      %v2620 = vld [vmem:[%s2609 + $0x28] sm:$0xf]
      %v2621 = vld [vmem:[%s2609 + $0x2c] sm:$0xf]
      %v2622 = vld [vmem:[%s2609 + $0x30] sm:$0xf]
      %v2623 = vld [vmem:[%s2609 + $0x34] sm:$0xf]
      %v2624 = vld [vmem:[%s2609 + $0x38] sm:$0xf]
      %v2625 = vld [vmem:[%s2609 + $0x3c] sm:$0xf]
      %v2626 = vunpack.c.l.b16 %v2510
      %v2627 = vunpack.c.l.b16 %v2524
      %v2628 = vunpack.c.l.b16 %v2538
      %v2629 = vunpack.c.l.b16 %v2552
      %v2630 = vunpack.c.l.b16 %v2566
      %v2631 = vunpack.c.l.b16 %v2580
      %v2632 = vunpack.c.l.b16 %v2594
      %v2633 = vunpack.c.l.b16 %v2608
      %v2634 = vpack.c.b16 %v2627, %v2626
      %v2635 = vpack.c.b16 %v2629, %v2628
      %v2636 = vpack.c.b16 %v2631, %v2630
      %v2637 = vpack.c.b16 %v2633, %v2632
      %v2658 = vunpack.c.l.b16 %v2610
      %v2659 = vunpack.c.l.b16 %v2611
      %v2660 = vunpack.c.l.b16 %v2612
      %v2661 = vunpack.c.l.b16 %v2613
      %v2662 = vunpack.c.l.b16 %v2614
      %v2663 = vunpack.c.l.b16 %v2615
      %v2664 = vunpack.c.l.b16 %v2616
      %v2665 = vunpack.c.l.b16 %v2617
      %v2666 = vunpack.c.l.b16 %v2618
      %v2667 = vunpack.c.l.b16 %v2619
      %v2668 = vunpack.c.l.b16 %v2620
      %v2669 = vunpack.c.l.b16 %v2621
      %v2670 = vunpack.c.l.b16 %v2622
      %v2671 = vunpack.c.l.b16 %v2623
      %v2672 = vunpack.c.l.b16 %v2624
      %v2673 = vunpack.c.l.b16 %v2625
      %v2674 = vpack.c.b16 %v2659, %v2658
      %v2675 = vpack.c.b16 %v2661, %v2660
      %v2676 = vpack.c.b16 %v2663, %v2662
      %v2677 = vpack.c.b16 %v2665, %v2664
      %v2678 = vpack.c.b16 %v2667, %v2666
      %v2679 = vpack.c.b16 %v2669, %v2668
      %v2680 = vpack.c.b16 %v2671, %v2670
      %v2681 = vpack.c.b16 %v2673, %v2672
      %2690 = vmatprep.subr.bf16.mxu0 0
      %2691 = vmatpush1.bf16.msra.mxu0 %v2674
      %2692 = vmatprep.subr.bf16.mxu0 0
      %2693 = vmatpush1.bf16.msra.mxu0 %v2675
      %2694 = vmatprep.subr.bf16.mxu0 0
      %2695 = vmatpush1.bf16.msra.mxu0 %v2676
      %2696 = vmatprep.subr.bf16.mxu0 0
      %2697 = vmatpush1.bf16.msra.mxu0 %v2677
      %2698 = vmatprep.subr.bf16.mxu0 0
      %2699 = vmatpush1.bf16.msra.mxu0 %v2678
      %2700 = vmatprep.subr.bf16.mxu0 0
      %2701 = vmatpush1.bf16.msra.mxu0 %v2679
      %2702 = vmatprep.subr.bf16.mxu0 0
      %2703 = vmatpush1.bf16.msra.mxu0 %v2680
      %2704 = vmatprep.subr.bf16.mxu0 0
      %2705 = vmatpush1.bf16.msra.mxu0 %v2681
      %2706 = vmatprep.subr.bf16.mxu0 0
      %2707 = vmatpush1.bf16.msra.mxu0 0
      %2708 = vmatprep.subr.bf16.mxu0 0
      %2709 = vmatpush1.bf16.msra.mxu0 0
      %2710 = vmatprep.subr.bf16.mxu0 0
      %2711 = vmatpush1.bf16.msra.mxu0 0
      %2712 = vmatprep.subr.bf16.mxu0 0
      %2713 = vmatpush1.bf16.msra.mxu0 0
      %2714 = vmatprep.subr.bf16.mxu0 0
      %2715 = vmatpush1.bf16.msra.mxu0 0
      %2716 = vmatprep.subr.bf16.mxu0 0
      %2717 = vmatpush1.bf16.msra.mxu0 0
      %2718 = vmatprep.subr.bf16.mxu0 0
      %2719 = vmatpush1.bf16.msra.mxu0 0
      %2720 = vmatprep.subr.bf16.mxu0 0
      %2721 = vmatpush1.bf16.msra.mxu0 0
      %2722 = vmatprep.mubr.bf16.mxu0 0
      %2723 = vmatmul.mubr.bf16.gmra.mrb[0].mxu0 %v2634
      %v2724 = vpop.f32.mrb[0].mxu0
      %v2725 = vadd.f32 0.0, %v2724
      %v2726 = vpop.f32.mrb[0].mxu0
      %v2727 = vpop.f32.mrb[0].mxu0
      %v2728 = vadd.f32 0.0, %v2727
      %v2729 = vpop.f32.mrb[0].mxu0
      %2730 = vmatprep.mubr.bf16.mxu0 0
      %2731 = vmatmul.mubr.bf16.gmra.mrb[0].mxu0 %v2635
      %v2732 = vpop.f32.mrb[0].mxu0
      %v2733 = vadd.f32 0.0, %v2732
      %v2734 = vpop.f32.mrb[0].mxu0
      %v2735 = vpop.f32.mrb[0].mxu0
      %v2736 = vadd.f32 0.0, %v2735
      %v2737 = vpop.f32.mrb[0].mxu0
      %2738 = vmatprep.mubr.bf16.mxu0 0
      %2739 = vmatmul.mubr.bf16.gmra.mrb[0].mxu0 %v2636
      %v2740 = vpop.f32.mrb[0].mxu0
      %v2741 = vadd.f32 0.0, %v2740
      %v2742 = vpop.f32.mrb[0].mxu0
      %v2743 = vpop.f32.mrb[0].mxu0
      %v2744 = vadd.f32 0.0, %v2743
      %v2745 = vpop.f32.mrb[0].mxu0
      %2746 = vmatprep.mubr.bf16.mxu0 0
      %2747 = vmatmul.mubr.bf16.gmra.mrb[0].mxu0 %v2637
      %v2748 = vpop.f32.mrb[0].mxu0
      %v2749 = vadd.f32 0.0, %v2748
      %v2750 = vpop.f32.mrb[0].mxu0
      %v2751 = vpop.f32.mrb[0].mxu0
      %v2752 = vadd.f32 0.0, %v2751
      %v2753 = vpop.f32.mrb[0].mxu0
      %2754 = vdwg.mxu0
      %v2755 = vadd.f32 %v2473, %v2725
      %v2756 = vadd.f32 %v2474, %v2728
      %v2757 = vadd.f32 %v2475, %v2733
      %v2758 = vadd.f32 %v2476, %v2736
      %v2759 = vadd.f32 %v2477, %v2741
      %v2760 = vadd.f32 %v2478, %v2744
      %v2761 = vadd.f32 %v2479, %v2749
      %v2762 = vadd.f32 %v2480, %v2752
      %v2763 = vpack.c.bf16 %v2756, %v2755
      %v2764 = vpack.c.bf16 %v2758, %v2757
      %v2765 = vpack.c.bf16 %v2760, %v2759
      %v2766 = vpack.c.bf16 %v2762, %v2761
      %v2771 = vunpack.c.l.b16 %v2763
      %v2772 = vunpack.c.h.b16 %v2763
      %v2773 = vunpack.c.l.b16 %v2764
      %v2774 = vunpack.c.h.b16 %v2764
      %v2775 = vunpack.c.l.b16 %v2765
      %v2776 = vunpack.c.h.b16 %v2765
      %v2777 = vunpack.c.l.b16 %v2766
      %v2778 = vunpack.c.h.b16 %v2766
      %v2779 = vpack.c.b16 %v2771, %v2771
      %v2780 = vpack.c.b16 %v2772, %v2772
      %v2781 = vpack.c.b16 %v2773, %v2773
      %v2782 = vpack.c.b16 %v2774, %v2774
      %v2783 = vpack.c.b16 %v2775, %v2775
      %v2784 = vpack.c.b16 %v2776, %v2776
      %v2785 = vpack.c.b16 %v2777, %v2777
      %v2786 = vpack.c.b16 %v2778, %v2778
      %2795 = vst [vmem:[%s236] sm:$0xf] %v2779
      %2796 = vst [vmem:[%s236 + $0x4] sm:$0xf] %v2780
      %2797 = vst [vmem:[%s236 + $0x8] sm:$0xf] %v2781
      %2798 = vst [vmem:[%s236 + $0xc] sm:$0xf] %v2782
      %2799 = vst [vmem:[%s236 + $0x10] sm:$0xf] %v2783
      %2800 = vst [vmem:[%s236 + $0x14] sm:$0xf] %v2784
      %2801 = vst [vmem:[%s236 + $0x18] sm:$0xf] %v2785
      %2802 = vst [vmem:[%s236 + $0x1c] sm:$0xf] %v2786
      %v2803 = vadd.f32 %v2755, %v2756
      %v2804 = vadd.f32 %v2803, %v2757
      %v2805 = vadd.f32 %v2804, %v2758
      %v2806 = vadd.f32 %v2805, %v2759
      %v2807 = vadd.f32 %v2806, %v2760
      %v2808 = vadd.f32 %v2807, %v2761
      %v2809 = vadd.f32 %v2808, %v2762
      %v2810 = vrot.slane %v2809, 4
      %v2811 = vadd.f32 %v2809, %v2810
      %v2812 = vrot.slane %v2811, 2
      %v2813 = vadd.f32 %v2811, %v2812
      %v2814 = vrot.slane %v2813, 1
      %v2815 = vadd.f32 %v2813, %v2814
      %v2816 = vadd.f32 %v2815, 0.0
      %v2817 = vmul.f32 %v2755, %v2755
      %v2818 = vmul.f32 %v2756, %v2756
      %v2819 = vmul.f32 %v2757, %v2757
      %v2820 = vmul.f32 %v2758, %v2758
      %v2821 = vmul.f32 %v2759, %v2759
      %v2822 = vmul.f32 %v2760, %v2760
      %v2823 = vmul.f32 %v2761, %v2761
      %v2824 = vmul.f32 %v2762, %v2762
      %v2825 = vadd.f32 %v2817, %v2818
      %v2826 = vadd.f32 %v2825, %v2819
      %v2827 = vadd.f32 %v2826, %v2820
      %v2828 = vadd.f32 %v2827, %v2821
      %v2829 = vadd.f32 %v2828, %v2822
      %v2830 = vadd.f32 %v2829, %v2823
      %v2831 = vadd.f32 %v2830, %v2824
      %v2832 = vrot.slane %v2831, 4
      %v2833 = vadd.f32 %v2831, %v2832
      %v2834 = vrot.slane %v2833, 2
      %v2835 = vadd.f32 %v2833, %v2834
      %v2836 = vrot.slane %v2835, 1
      %v2837 = vadd.f32 %v2835, %v2836
      %v2838 = vadd.f32 %v2837, 0.0
      %vm2839 = vcmask 1040384
      %v2840 = vsel %vm2839, %v2816, %v2838
      %2841 = vst [vmem:[%s240] sm:$0x3] %v2840
      %p2842 = scmp.lt.s32.totalorder %s17, 1
      %s2843 = scalar_select %p2842, %s17, 1
      %s2844 = smul.addr %s2843, 8
      %s2845 = smul.addr %s2844, 4
      %s2846 = scalar_lea.vmem %s4, %s2845
      %p2847 = scmp.lt.s32.totalorder %s17, 1
      %s2848 = scalar_select %p2847, %s17, 1
      %s2849 = smul.addr %s2848, 2
      %s2850 = scalar_lea.vmem %s5, %s2849
      // Predicated region
      $region37: #{encoder_bottleneck_forward.5} parent=35 // pred_check
        %p2851 = pneg %p124
      $region38: #{encoder_bottleneck_forward.5} parent=35 // pred_check_branch
        %2853 = sbr.rel (%p2851) target = $region40
      $region39: #{encoder_bottleneck_forward.5} parent=35 // pred_region
        _
      $region40: #{encoder_bottleneck_forward.5} parent=35 // pred_fallthru
        _
      // Predicated region
      $region41: #{encoder_bottleneck_forward.5} parent=35 // pred_check
        %p2854 = pneg %p150
      $region42: #{encoder_bottleneck_forward.5} parent=35 // pred_check_branch
        %2856 = sbr.rel (%p2854) target = $region44
      $region43: #{encoder_bottleneck_forward.5} parent=35 // pred_region
        _
      $region44: #{encoder_bottleneck_forward.5} parent=35 // pred_fallthru
        _
    $region36: #{encoder_bottleneck_forward.5} parent=5 // pred_fallthru
      _
    %p2857 = scmp.le.s32.totalorder 2, %s12
    // Predicated region
    $region45: #{encoder_bottleneck_forward.5} parent=5 // pred_check
      %p2858 = pneg %p2857
    $region46: #{encoder_bottleneck_forward.5} parent=5 // pred_check_branch
      %2860 = sbr.rel (%p2858) target = $region48
    $region47: #{encoder_bottleneck_forward.5} parent=5 // pred_region
      %s2861 = ssub.s32 %s12, 2
      // Predicated region
      $region49: #{encoder_bottleneck_forward.5} parent=47 // pred_check
        %p2862 = pneg %p130
      $region50: #{encoder_bottleneck_forward.5} parent=47 // pred_check_branch
        %2864 = sbr.rel (%p2862) target = $region52
      $region51: #{encoder_bottleneck_forward.5} parent=47 // pred_region
        %p2865 = scmp.lt.s32.totalorder %s18, 1
        %s2866 = scalar_select %p2865, %s18, 1
        %s2867 = smul.addr %s2866, 8
        %s2868 = smul.addr %s2867, 4
        %s2869 = scalar_lea.vmem %s4, %s2868
      $region52: #{encoder_bottleneck_forward.5} parent=47 // pred_fallthru
        _
      // Predicated region
      $region53: #{encoder_bottleneck_forward.5} parent=47 // pred_check
        %p2870 = pneg %p156
      $region54: #{encoder_bottleneck_forward.5} parent=47 // pred_check_branch
        %2872 = sbr.rel (%p2870) target = $region56
      $region55: #{encoder_bottleneck_forward.5} parent=47 // pred_region
        %p2873 = scmp.lt.s32.totalorder %s18, 1
        %s2874 = scalar_select %p2873, %s18, 1
        %s2875 = smul.addr %s2874, 2
        %s2876 = scalar_lea.vmem %s5, %s2875
      $region56: #{encoder_bottleneck_forward.5} parent=47 // pred_fallthru
        _
    $region48: #{encoder_bottleneck_forward.5} parent=5 // pred_fallthru
      _
  $region6: #{encoder_bottleneck_forward.5} parent=0 // loop_footer
    %s16 = sadd.s32 1, %s12
  $region7: #{encoder_bottleneck_forward.5} parent=0 // loop_footer_branch
    %11 = sbr.rel target = $region3
  $region8: #{encoder_bottleneck_forward.5} parent=0 // loop_exit
    _

// kernel: encoder_bottleneck_forward.6
$region0: #{encoder_bottleneck_forward.6}
  #allocation0 [shape = 'u32[]', space=smem, size = 0x4, offset = 0x4, fixed_abs, tag = 'smem constant byte address 0x4 - core index']
  #allocation1 [shape = 'u32[144,128]{1,0:T(1,128)}', space=vmem, size = 0x12000, scoped, tag = 'internal scratch']
  %s0 = inlined_call_operand.vmem [shape: bf16[512,128], index: 0, kind: input, shape index: {}]
  %s1 = inlined_call_operand.vmem [shape: f32[1,128], index: 1, kind: input, shape index: {}]
  %s2 = inlined_call_operand.vmem [shape: f32[1,128], index: 2, kind: input, shape index: {}]
  %s3 = inlined_call_operand.vmem [shape: bf16[128,128], index: 3, kind: input, shape index: {}]
  %s4 = inlined_call_operand.vmem [shape: bf16[512,128], index: 4, kind: input, shape index: {}]
  %s5 = inlined_call_operand.vmem [shape: bf16[128,128], index: 5, kind: input, shape index: {}]
  %s6 = inlined_call_operand.vmem [shape: bf16[512,128], index: 6, kind: output, shape index: {0}]
  %s7 = inlined_call_operand.vmem [shape: bf16[512,128], index: 7, kind: output, shape index: {1}]
  %s8 = inlined_call_operand.vmem [shape: f32[1,2,128], index: 8, kind: output, shape index: {2}]
  %s9 = inlined_call_operand.vmem [shape: f32[1,2,128], index: 9, kind: output, shape index: {3}]
  %10 = xla_tuple %s6, %s7, %s8, %s9
  %s11 = sld [smem:[#allocation0]]
  $region58: #{encoder_bottleneck_forward.6} parent=0
    _
  %s13 = ssub.s32 1, %s11
  %s14 = scalar_select 0, %s13, %s11
  // Predicated region
  $region2: #{encoder_bottleneck_forward.6} parent=0 // pred_check
    _
  $region3: #{encoder_bottleneck_forward.6} parent=0 // pred_check_branch
    %16 = sbr.rel (0) target = $region5
  $region4: #{encoder_bottleneck_forward.6} parent=0 // pred_region
    _
  $region5: #{encoder_bottleneck_forward.6} parent=0 // pred_fallthru
    _
  // Predicated region
  $region6: #{encoder_bottleneck_forward.6} parent=0 // pred_check
    _
  $region7: #{encoder_bottleneck_forward.6} parent=0 // pred_check_branch
    %18 = sbr.rel (0) target = $region9
  $region8: #{encoder_bottleneck_forward.6} parent=0 // pred_region
    _
  $region9: #{encoder_bottleneck_forward.6} parent=0 // pred_fallthru
    _
  // Predicated region
  $region10: #{encoder_bottleneck_forward.6} parent=0 // pred_check
    _
  $region11: #{encoder_bottleneck_forward.6} parent=0 // pred_check_branch
    %20 = sbr.rel (0) target = $region13
  $region12: #{encoder_bottleneck_forward.6} parent=0 // pred_region
    _
  $region13: #{encoder_bottleneck_forward.6} parent=0 // pred_fallthru
    _
  // Predicated region
  $region14: #{encoder_bottleneck_forward.6} parent=0 // pred_check
    _
  $region15: #{encoder_bottleneck_forward.6} parent=0 // pred_check_branch
    %22 = sbr.rel (0) target = $region17
  $region16: #{encoder_bottleneck_forward.6} parent=0 // pred_region
    _
  $region17: #{encoder_bottleneck_forward.6} parent=0 // pred_fallthru
    _
  // Predicated region
  $region18: #{encoder_bottleneck_forward.6} parent=0 // pred_check
    _
  $region19: #{encoder_bottleneck_forward.6} parent=0 // pred_check_branch
    %24 = sbr.rel (0) target = $region21
  $region20: #{encoder_bottleneck_forward.6} parent=0 // pred_region
    _
  $region21: #{encoder_bottleneck_forward.6} parent=0 // pred_fallthru
    _
  // Predicated region
  $region22: #{encoder_bottleneck_forward.6} parent=0 // pred_check
    _
  $region23: #{encoder_bottleneck_forward.6} parent=0 // pred_check_branch
    %26 = sbr.rel (0) target = $region25
  $region24: #{encoder_bottleneck_forward.6} parent=0 // pred_region
    _
  $region25: #{encoder_bottleneck_forward.6} parent=0 // pred_fallthru
    _
  %s28 = smul.u32 0, 512
  %v29 = vlaneseq
  %v30 = vshrl.u32 %v29, 7
  %v31 = vadd.s32 %v30, 8
  %v32 = vadd.s32 %v30, 16
  %v33 = vadd.s32 %v30, 24
  %v34 = vadd.s32 %v30, 32
  %v35 = vadd.s32 %v30, 40
  %v36 = vadd.s32 %v30, 48
  %v37 = vadd.s32 %v30, 56
  %v38 = vadd.s32 %v30, 64
  %v39 = vadd.s32 %v30, 72
  %v40 = vadd.s32 %v30, 80
  %v41 = vadd.s32 %v30, 88
  %v42 = vadd.s32 %v30, 96
  %v43 = vadd.s32 %v30, 104
  %v44 = vadd.s32 %v30, 112
  %v45 = vadd.s32 %v30, 120
  %v46 = vadd.s32 %v30, 128
  %v47 = vadd.s32 %v30, 136
  %v48 = vadd.s32 %v30, 144
  %v49 = vadd.s32 %v30, 152
  %v50 = vadd.s32 %v30, 160
  %v51 = vadd.s32 %v30, 168
  %v52 = vadd.s32 %v30, 176
  %v53 = vadd.s32 %v30, 184
  %v54 = vadd.s32 %v30, 192
  %v55 = vadd.s32 %v30, 200
  %v56 = vadd.s32 %v30, 208
  %v57 = vadd.s32 %v30, 216
  %v58 = vadd.s32 %v30, 224
  %v59 = vadd.s32 %v30, 232
  %v60 = vadd.s32 %v30, 240
  %v61 = vadd.s32 %v30, 248
  %v62 = vadd.s32 %v30, 256
  %v63 = vadd.s32 %v30, 264
  %v64 = vadd.s32 %v30, 272
  %v65 = vadd.s32 %v30, 280
  %v66 = vadd.s32 %v30, 288
  %v67 = vadd.s32 %v30, 296
  %v68 = vadd.s32 %v30, 304
  %v69 = vadd.s32 %v30, 312
  %v70 = vadd.s32 %v30, 320
  %v71 = vadd.s32 %v30, 328
  %v72 = vadd.s32 %v30, 336
  %v73 = vadd.s32 %v30, 344
  %v74 = vadd.s32 %v30, 352
  %v75 = vadd.s32 %v30, 360
  %v76 = vadd.s32 %v30, 368
  %v77 = vadd.s32 %v30, 376
  %v78 = vadd.s32 %v30, 384
  %v79 = vadd.s32 %v30, 392
  %v80 = vadd.s32 %v30, 400
  %v81 = vadd.s32 %v30, 408
  %v82 = vadd.s32 %v30, 416
  %v83 = vadd.s32 %v30, 424
  %v84 = vadd.s32 %v30, 432
  %v85 = vadd.s32 %v30, 440
  %v86 = vadd.s32 %v30, 448
  %v87 = vadd.s32 %v30, 456
  %v88 = vadd.s32 %v30, 464
  %v89 = vadd.s32 %v30, 472
  %v90 = vadd.s32 %v30, 480
  %v91 = vadd.s32 %v30, 488
  %v92 = vadd.s32 %v30, 496
  %v93 = vadd.s32 %v30, 504
  %v94 = vstv %s28
  %v95 = vadd.s32 %v94, %v30
  %v96 = vadd.s32 %v94, %v31
  %v97 = vadd.s32 %v94, %v32
  %v98 = vadd.s32 %v94, %v33
  %v99 = vadd.s32 %v94, %v34
  %v100 = vadd.s32 %v94, %v35
  %v101 = vadd.s32 %v94, %v36
  %v102 = vadd.s32 %v94, %v37
  %v103 = vadd.s32 %v94, %v38
  %v104 = vadd.s32 %v94, %v39
  %v105 = vadd.s32 %v94, %v40
  %v106 = vadd.s32 %v94, %v41
  %v107 = vadd.s32 %v94, %v42
  %v108 = vadd.s32 %v94, %v43
  %v109 = vadd.s32 %v94, %v44
  %v110 = vadd.s32 %v94, %v45
  %v111 = vadd.s32 %v94, %v46
  %v112 = vadd.s32 %v94, %v47
  %v113 = vadd.s32 %v94, %v48
  %v114 = vadd.s32 %v94, %v49
  %v115 = vadd.s32 %v94, %v50
  %v116 = vadd.s32 %v94, %v51
  %v117 = vadd.s32 %v94, %v52
  %v118 = vadd.s32 %v94, %v53
  %v119 = vadd.s32 %v94, %v54
  %v120 = vadd.s32 %v94, %v55
  %v121 = vadd.s32 %v94, %v56
  %v122 = vadd.s32 %v94, %v57
  %v123 = vadd.s32 %v94, %v58
  %v124 = vadd.s32 %v94, %v59
  %v125 = vadd.s32 %v94, %v60
  %v126 = vadd.s32 %v94, %v61
  %v127 = vadd.s32 %v94, %v62
  %v128 = vadd.s32 %v94, %v63
  %v129 = vadd.s32 %v94, %v64
  %v130 = vadd.s32 %v94, %v65
  %v131 = vadd.s32 %v94, %v66
  %v132 = vadd.s32 %v94, %v67
  %v133 = vadd.s32 %v94, %v68
  %v134 = vadd.s32 %v94, %v69
  %v135 = vadd.s32 %v94, %v70
  %v136 = vadd.s32 %v94, %v71
  %v137 = vadd.s32 %v94, %v72
  %v138 = vadd.s32 %v94, %v73
  %v139 = vadd.s32 %v94, %v74
  %v140 = vadd.s32 %v94, %v75
  %v141 = vadd.s32 %v94, %v76
  %v142 = vadd.s32 %v94, %v77
  %v143 = vadd.s32 %v94, %v78
  %v144 = vadd.s32 %v94, %v79
  %v145 = vadd.s32 %v94, %v80
  %v146 = vadd.s32 %v94, %v81
  %v147 = vadd.s32 %v94, %v82
  %v148 = vadd.s32 %v94, %v83
  %v149 = vadd.s32 %v94, %v84
  %v150 = vadd.s32 %v94, %v85
  %v151 = vadd.s32 %v94, %v86
  %v152 = vadd.s32 %v94, %v87
  %v153 = vadd.s32 %v94, %v88
  %v154 = vadd.s32 %v94, %v89
  %v155 = vadd.s32 %v94, %v90
  %v156 = vadd.s32 %v94, %v91
  %v157 = vadd.s32 %v94, %v92
  %v158 = vadd.s32 %v94, %v93
  %v159 = vld [vmem:[%s0] sm:$0xf]
  %v160 = vld [vmem:[%s0 + $0x4] sm:$0xf]
  %v161 = vld [vmem:[%s0 + $0x8] sm:$0xf]
  %v162 = vld [vmem:[%s0 + $0xc] sm:$0xf]
  %v163 = vld [vmem:[%s0 + $0x10] sm:$0xf]
  %v164 = vld [vmem:[%s0 + $0x14] sm:$0xf]
  %v165 = vld [vmem:[%s0 + $0x18] sm:$0xf]
  %v166 = vld [vmem:[%s0 + $0x1c] sm:$0xf]
  %v167 = vld [vmem:[%s0 + $0x20] sm:$0xf]
  %v168 = vld [vmem:[%s0 + $0x24] sm:$0xf]
  %v169 = vld [vmem:[%s0 + $0x28] sm:$0xf]
  %v170 = vld [vmem:[%s0 + $0x2c] sm:$0xf]
  %v171 = vld [vmem:[%s0 + $0x30] sm:$0xf]
  %v172 = vld [vmem:[%s0 + $0x34] sm:$0xf]
  %v173 = vld [vmem:[%s0 + $0x38] sm:$0xf]
  %v174 = vld [vmem:[%s0 + $0x3c] sm:$0xf]
  %v175 = vld [vmem:[%s0 + $0x40] sm:$0xf]
  %v176 = vld [vmem:[%s0 + $0x44] sm:$0xf]
  %v177 = vld [vmem:[%s0 + $0x48] sm:$0xf]
  %v178 = vld [vmem:[%s0 + $0x4c] sm:$0xf]
  %v179 = vld [vmem:[%s0 + $0x50] sm:$0xf]
  %v180 = vld [vmem:[%s0 + $0x54] sm:$0xf]
  %v181 = vld [vmem:[%s0 + $0x58] sm:$0xf]
  %v182 = vld [vmem:[%s0 + $0x5c] sm:$0xf]
  %v183 = vld [vmem:[%s0 + $0x60] sm:$0xf]
  %v184 = vld [vmem:[%s0 + $0x64] sm:$0xf]
  %v185 = vld [vmem:[%s0 + $0x68] sm:$0xf]
  %v186 = vld [vmem:[%s0 + $0x6c] sm:$0xf]
  %v187 = vld [vmem:[%s0 + $0x70] sm:$0xf]
  %v188 = vld [vmem:[%s0 + $0x74] sm:$0xf]
  %v189 = vld [vmem:[%s0 + $0x78] sm:$0xf]
  %v190 = vld [vmem:[%s0 + $0x7c] sm:$0xf]
  %v191 = vld [vmem:[%s0 + $0x80] sm:$0xf]
  %v192 = vld [vmem:[%s0 + $0x84] sm:$0xf]
  %v193 = vld [vmem:[%s0 + $0x88] sm:$0xf]
  %v194 = vld [vmem:[%s0 + $0x8c] sm:$0xf]
  %v195 = vld [vmem:[%s0 + $0x90] sm:$0xf]
  %v196 = vld [vmem:[%s0 + $0x94] sm:$0xf]
  %v197 = vld [vmem:[%s0 + $0x98] sm:$0xf]
  %v198 = vld [vmem:[%s0 + $0x9c] sm:$0xf]
  %v199 = vld [vmem:[%s0 + $0xa0] sm:$0xf]
  %v200 = vld [vmem:[%s0 + $0xa4] sm:$0xf]
  %v201 = vld [vmem:[%s0 + $0xa8] sm:$0xf]
  %v202 = vld [vmem:[%s0 + $0xac] sm:$0xf]
  %v203 = vld [vmem:[%s0 + $0xb0] sm:$0xf]
  %v204 = vld [vmem:[%s0 + $0xb4] sm:$0xf]
  %v205 = vld [vmem:[%s0 + $0xb8] sm:$0xf]
  %v206 = vld [vmem:[%s0 + $0xbc] sm:$0xf]
  %v207 = vld [vmem:[%s0 + $0xc0] sm:$0xf]
  %v208 = vld [vmem:[%s0 + $0xc4] sm:$0xf]
  %v209 = vld [vmem:[%s0 + $0xc8] sm:$0xf]
  %v210 = vld [vmem:[%s0 + $0xcc] sm:$0xf]
  %v211 = vld [vmem:[%s0 + $0xd0] sm:$0xf]
  %v212 = vld [vmem:[%s0 + $0xd4] sm:$0xf]
  %v213 = vld [vmem:[%s0 + $0xd8] sm:$0xf]
  %v214 = vld [vmem:[%s0 + $0xdc] sm:$0xf]
  %v215 = vld [vmem:[%s0 + $0xe0] sm:$0xf]
  %v216 = vld [vmem:[%s0 + $0xe4] sm:$0xf]
  %v217 = vld [vmem:[%s0 + $0xe8] sm:$0xf]
  %v218 = vld [vmem:[%s0 + $0xec] sm:$0xf]
  %v219 = vld [vmem:[%s0 + $0xf0] sm:$0xf]
  %v220 = vld [vmem:[%s0 + $0xf4] sm:$0xf]
  %v221 = vld [vmem:[%s0 + $0xf8] sm:$0xf]
  %v222 = vld [vmem:[%s0 + $0xfc] sm:$0xf]
  %v223 = vunpack.c.l.bf16 %v159
  %v224 = vunpack.c.l.bf16 %v160
  %v225 = vunpack.c.l.bf16 %v161
  %v226 = vunpack.c.l.bf16 %v162
  %v227 = vunpack.c.l.bf16 %v163
  %v228 = vunpack.c.l.bf16 %v164
  %v229 = vunpack.c.l.bf16 %v165
  %v230 = vunpack.c.l.bf16 %v166
  %v231 = vunpack.c.l.bf16 %v167
  %v232 = vunpack.c.l.bf16 %v168
  %v233 = vunpack.c.l.bf16 %v169
  %v234 = vunpack.c.l.bf16 %v170
  %v235 = vunpack.c.l.bf16 %v171
  %v236 = vunpack.c.l.bf16 %v172
  %v237 = vunpack.c.l.bf16 %v173
  %v238 = vunpack.c.l.bf16 %v174
  %v239 = vunpack.c.l.bf16 %v175
  %v240 = vunpack.c.l.bf16 %v176
  %v241 = vunpack.c.l.bf16 %v177
  %v242 = vunpack.c.l.bf16 %v178
  %v243 = vunpack.c.l.bf16 %v179
  %v244 = vunpack.c.l.bf16 %v180
  %v245 = vunpack.c.l.bf16 %v181
  %v246 = vunpack.c.l.bf16 %v182
  %v247 = vunpack.c.l.bf16 %v183
  %v248 = vunpack.c.l.bf16 %v184
  %v249 = vunpack.c.l.bf16 %v185
  %v250 = vunpack.c.l.bf16 %v186
  %v251 = vunpack.c.l.bf16 %v187
  %v252 = vunpack.c.l.bf16 %v188
  %v253 = vunpack.c.l.bf16 %v189
  %v254 = vunpack.c.l.bf16 %v190
  %v255 = vunpack.c.l.bf16 %v191
  %v256 = vunpack.c.l.bf16 %v192
  %v257 = vunpack.c.l.bf16 %v193
  %v258 = vunpack.c.l.bf16 %v194
  %v259 = vunpack.c.l.bf16 %v195
  %v260 = vunpack.c.l.bf16 %v196
  %v261 = vunpack.c.l.bf16 %v197
  %v262 = vunpack.c.l.bf16 %v198
  %v263 = vunpack.c.l.bf16 %v199
  %v264 = vunpack.c.l.bf16 %v200
  %v265 = vunpack.c.l.bf16 %v201
  %v266 = vunpack.c.l.bf16 %v202
  %v267 = vunpack.c.l.bf16 %v203
  %v268 = vunpack.c.l.bf16 %v204
  %v269 = vunpack.c.l.bf16 %v205
  %v270 = vunpack.c.l.bf16 %v206
  %v271 = vunpack.c.l.bf16 %v207
  %v272 = vunpack.c.l.bf16 %v208
  %v273 = vunpack.c.l.bf16 %v209
  %v274 = vunpack.c.l.bf16 %v210
  %v275 = vunpack.c.l.bf16 %v211
  %v276 = vunpack.c.l.bf16 %v212
  %v277 = vunpack.c.l.bf16 %v213
  %v278 = vunpack.c.l.bf16 %v214
  %v279 = vunpack.c.l.bf16 %v215
  %v280 = vunpack.c.l.bf16 %v216
  %v281 = vunpack.c.l.bf16 %v217
  %v282 = vunpack.c.l.bf16 %v218
  %v283 = vunpack.c.l.bf16 %v219
  %v284 = vunpack.c.l.bf16 %v220
  %v285 = vunpack.c.l.bf16 %v221
  %v286 = vunpack.c.l.bf16 %v222
  %v287 = vld [vmem:[%s1] sm:$0x1]
  %v289 = vlaneseq
  %v290 = vshrl.u32 %v289, 7
  %v291 = vsub.s32 0, %v290
  %v292 = vrot.slane %v287, %v291
  %v294 = vmul.f32 %v223, %v292
  %v295 = vmul.f32 %v224, %v292
  %v296 = vmul.f32 %v225, %v292
  %v297 = vmul.f32 %v226, %v292
  %v298 = vmul.f32 %v227, %v292
  %v299 = vmul.f32 %v228, %v292
  %v300 = vmul.f32 %v229, %v292
  %v301 = vmul.f32 %v230, %v292
  %v302 = vmul.f32 %v231, %v292
  %v303 = vmul.f32 %v232, %v292
  %v304 = vmul.f32 %v233, %v292
  %v305 = vmul.f32 %v234, %v292
  %v306 = vmul.f32 %v235, %v292
  %v307 = vmul.f32 %v236, %v292
  %v308 = vmul.f32 %v237, %v292
  %v309 = vmul.f32 %v238, %v292
  %v310 = vmul.f32 %v239, %v292
  %v311 = vmul.f32 %v240, %v292
  %v312 = vmul.f32 %v241, %v292
  %v313 = vmul.f32 %v242, %v292
  %v314 = vmul.f32 %v243, %v292
  %v315 = vmul.f32 %v244, %v292
  %v316 = vmul.f32 %v245, %v292
  %v317 = vmul.f32 %v246, %v292
  %v318 = vmul.f32 %v247, %v292
  %v319 = vmul.f32 %v248, %v292
  %v320 = vmul.f32 %v249, %v292
  %v321 = vmul.f32 %v250, %v292
  %v322 = vmul.f32 %v251, %v292
  %v323 = vmul.f32 %v252, %v292
  %v324 = vmul.f32 %v253, %v292
  %v325 = vmul.f32 %v254, %v292
  %v326 = vmul.f32 %v255, %v292
  %v327 = vmul.f32 %v256, %v292
  %v328 = vmul.f32 %v257, %v292
  %v329 = vmul.f32 %v258, %v292
  %v330 = vmul.f32 %v259, %v292
  %v331 = vmul.f32 %v260, %v292
  %v332 = vmul.f32 %v261, %v292
  %v333 = vmul.f32 %v262, %v292
  %v334 = vmul.f32 %v263, %v292
  %v335 = vmul.f32 %v264, %v292
  %v336 = vmul.f32 %v265, %v292
  %v337 = vmul.f32 %v266, %v292
  %v338 = vmul.f32 %v267, %v292
  %v339 = vmul.f32 %v268, %v292
  %v340 = vmul.f32 %v269, %v292
  %v341 = vmul.f32 %v270, %v292
  %v342 = vmul.f32 %v271, %v292
  %v343 = vmul.f32 %v272, %v292
  %v344 = vmul.f32 %v273, %v292
  %v345 = vmul.f32 %v274, %v292
  %v346 = vmul.f32 %v275, %v292
  %v347 = vmul.f32 %v276, %v292
  %v348 = vmul.f32 %v277, %v292
  %v349 = vmul.f32 %v278, %v292
  %v350 = vmul.f32 %v279, %v292
  %v351 = vmul.f32 %v280, %v292
  %v352 = vmul.f32 %v281, %v292
  %v353 = vmul.f32 %v282, %v292
  %v354 = vmul.f32 %v283, %v292
  %v355 = vmul.f32 %v284, %v292
  %v356 = vmul.f32 %v285, %v292
  %v357 = vmul.f32 %v286, %v292
  %v358 = vld [vmem:[%s2] sm:$0x1]
  %v360 = vlaneseq
  %v361 = vshrl.u32 %v360, 7
  %v362 = vsub.s32 0, %v361
  %v363 = vrot.slane %v358, %v362
  %v365 = vadd.f32 %v294, %v363
  %v366 = vadd.f32 %v295, %v363
  %v367 = vadd.f32 %v296, %v363
  %v368 = vadd.f32 %v297, %v363
  %v369 = vadd.f32 %v298, %v363
  %v370 = vadd.f32 %v299, %v363
  %v371 = vadd.f32 %v300, %v363
  %v372 = vadd.f32 %v301, %v363
  %v373 = vadd.f32 %v302, %v363
  %v374 = vadd.f32 %v303, %v363
  %v375 = vadd.f32 %v304, %v363
  %v376 = vadd.f32 %v305, %v363
  %v377 = vadd.f32 %v306, %v363
  %v378 = vadd.f32 %v307, %v363
  %v379 = vadd.f32 %v308, %v363
  %v380 = vadd.f32 %v309, %v363
  %v381 = vadd.f32 %v310, %v363
  %v382 = vadd.f32 %v311, %v363
  %v383 = vadd.f32 %v312, %v363
  %v384 = vadd.f32 %v313, %v363
  %v385 = vadd.f32 %v314, %v363
  %v386 = vadd.f32 %v315, %v363
  %v387 = vadd.f32 %v316, %v363
  %v388 = vadd.f32 %v317, %v363
  %v389 = vadd.f32 %v318, %v363
  %v390 = vadd.f32 %v319, %v363
  %v391 = vadd.f32 %v320, %v363
  %v392 = vadd.f32 %v321, %v363
  %v393 = vadd.f32 %v322, %v363
  %v394 = vadd.f32 %v323, %v363
  %v395 = vadd.f32 %v324, %v363
  %v396 = vadd.f32 %v325, %v363
  %v397 = vadd.f32 %v326, %v363
  %v398 = vadd.f32 %v327, %v363
  %v399 = vadd.f32 %v328, %v363
  %v400 = vadd.f32 %v329, %v363
  %v401 = vadd.f32 %v330, %v363
  %v402 = vadd.f32 %v331, %v363
  %v403 = vadd.f32 %v332, %v363
  %v404 = vadd.f32 %v333, %v363
  %v405 = vadd.f32 %v334, %v363
  %v406 = vadd.f32 %v335, %v363
  %v407 = vadd.f32 %v336, %v363
  %v408 = vadd.f32 %v337, %v363
  %v409 = vadd.f32 %v338, %v363
  %v410 = vadd.f32 %v339, %v363
  %v411 = vadd.f32 %v340, %v363
  %v412 = vadd.f32 %v341, %v363
  %v413 = vadd.f32 %v342, %v363
  %v414 = vadd.f32 %v343, %v363
  %v415 = vadd.f32 %v344, %v363
  %v416 = vadd.f32 %v345, %v363
  %v417 = vadd.f32 %v346, %v363
  %v418 = vadd.f32 %v347, %v363
  %v419 = vadd.f32 %v348, %v363
  %v420 = vadd.f32 %v349, %v363
  %v421 = vadd.f32 %v350, %v363
  %v422 = vadd.f32 %v351, %v363
  %v423 = vadd.f32 %v352, %v363
  %v424 = vadd.f32 %v353, %v363
  %v425 = vadd.f32 %v354, %v363
  %v426 = vadd.f32 %v355, %v363
  %v427 = vadd.f32 %v356, %v363
  %v428 = vadd.f32 %v357, %v363
  %v429 = vmax.f32 %v365, 0.0
  %v430 = vmax.f32 %v366, 0.0
  %v431 = vmax.f32 %v367, 0.0
  %v432 = vmax.f32 %v368, 0.0
  %v433 = vmax.f32 %v369, 0.0
  %v434 = vmax.f32 %v370, 0.0
  %v435 = vmax.f32 %v371, 0.0
  %v436 = vmax.f32 %v372, 0.0
  %v437 = vmax.f32 %v373, 0.0
  %v438 = vmax.f32 %v374, 0.0
  %v439 = vmax.f32 %v375, 0.0
  %v440 = vmax.f32 %v376, 0.0
  %v441 = vmax.f32 %v377, 0.0
  %v442 = vmax.f32 %v378, 0.0
  %v443 = vmax.f32 %v379, 0.0
  %v444 = vmax.f32 %v380, 0.0
  %v445 = vmax.f32 %v381, 0.0
  %v446 = vmax.f32 %v382, 0.0
  %v447 = vmax.f32 %v383, 0.0
  %v448 = vmax.f32 %v384, 0.0
  %v449 = vmax.f32 %v385, 0.0
  %v450 = vmax.f32 %v386, 0.0
  %v451 = vmax.f32 %v387, 0.0
  %v452 = vmax.f32 %v388, 0.0
  %v453 = vmax.f32 %v389, 0.0
  %v454 = vmax.f32 %v390, 0.0
  %v455 = vmax.f32 %v391, 0.0
  %v456 = vmax.f32 %v392, 0.0
  %v457 = vmax.f32 %v393, 0.0
  %v458 = vmax.f32 %v394, 0.0
  %v459 = vmax.f32 %v395, 0.0
  %v460 = vmax.f32 %v396, 0.0
  %v461 = vmax.f32 %v397, 0.0
  %v462 = vmax.f32 %v398, 0.0
  %v463 = vmax.f32 %v399, 0.0
  %v464 = vmax.f32 %v400, 0.0
  %v465 = vmax.f32 %v401, 0.0
  %v466 = vmax.f32 %v402, 0.0
  %v467 = vmax.f32 %v403, 0.0
  %v468 = vmax.f32 %v404, 0.0
  %v469 = vmax.f32 %v405, 0.0
  %v470 = vmax.f32 %v406, 0.0
  %v471 = vmax.f32 %v407, 0.0
  %v472 = vmax.f32 %v408, 0.0
  %v473 = vmax.f32 %v409, 0.0
  %v474 = vmax.f32 %v410, 0.0
  %v475 = vmax.f32 %v411, 0.0
  %v476 = vmax.f32 %v412, 0.0
  %v477 = vmax.f32 %v413, 0.0
  %v478 = vmax.f32 %v414, 0.0
  %v479 = vmax.f32 %v415, 0.0
  %v480 = vmax.f32 %v416, 0.0
  %v481 = vmax.f32 %v417, 0.0
  %v482 = vmax.f32 %v418, 0.0
  %v483 = vmax.f32 %v419, 0.0
  %v484 = vmax.f32 %v420, 0.0
  %v485 = vmax.f32 %v421, 0.0
  %v486 = vmax.f32 %v422, 0.0
  %v487 = vmax.f32 %v423, 0.0
  %v488 = vmax.f32 %v424, 0.0
  %v489 = vmax.f32 %v425, 0.0
  %v490 = vmax.f32 %v426, 0.0
  %v491 = vmax.f32 %v427, 0.0
  %v492 = vmax.f32 %v428, 0.0
  %vm493 = vcmp.lt.s32.totalorder %v95, 128
  %vm494 = vcmp.lt.s32.totalorder %v96, 128
  %vm495 = vcmp.lt.s32.totalorder %v97, 128
  %vm496 = vcmp.lt.s32.totalorder %v98, 128
  %vm497 = vcmp.lt.s32.totalorder %v99, 128
  %vm498 = vcmp.lt.s32.totalorder %v100, 128
  %vm499 = vcmp.lt.s32.totalorder %v101, 128
  %vm500 = vcmp.lt.s32.totalorder %v102, 128
  %vm501 = vcmp.lt.s32.totalorder %v103, 128
  %vm502 = vcmp.lt.s32.totalorder %v104, 128
  %vm503 = vcmp.lt.s32.totalorder %v105, 128
  %vm504 = vcmp.lt.s32.totalorder %v106, 128
  %vm505 = vcmp.lt.s32.totalorder %v107, 128
  %vm506 = vcmp.lt.s32.totalorder %v108, 128
  %vm507 = vcmp.lt.s32.totalorder %v109, 128
  %vm508 = vcmp.lt.s32.totalorder %v110, 128
  %vm509 = vcmp.lt.s32.totalorder %v111, 128
  %vm510 = vcmp.lt.s32.totalorder %v112, 128
  %vm511 = vcmp.lt.s32.totalorder %v113, 128
  %vm512 = vcmp.lt.s32.totalorder %v114, 128
  %vm513 = vcmp.lt.s32.totalorder %v115, 128
  %vm514 = vcmp.lt.s32.totalorder %v116, 128
  %vm515 = vcmp.lt.s32.totalorder %v117, 128
  %vm516 = vcmp.lt.s32.totalorder %v118, 128
  %vm517 = vcmp.lt.s32.totalorder %v119, 128
  %vm518 = vcmp.lt.s32.totalorder %v120, 128
  %vm519 = vcmp.lt.s32.totalorder %v121, 128
  %vm520 = vcmp.lt.s32.totalorder %v122, 128
  %vm521 = vcmp.lt.s32.totalorder %v123, 128
  %vm522 = vcmp.lt.s32.totalorder %v124, 128
  %vm523 = vcmp.lt.s32.totalorder %v125, 128
  %vm524 = vcmp.lt.s32.totalorder %v126, 128
  %vm525 = vcmp.lt.s32.totalorder %v127, 128
  %vm526 = vcmp.lt.s32.totalorder %v128, 128
  %vm527 = vcmp.lt.s32.totalorder %v129, 128
  %vm528 = vcmp.lt.s32.totalorder %v130, 128
  %vm529 = vcmp.lt.s32.totalorder %v131, 128
  %vm530 = vcmp.lt.s32.totalorder %v132, 128
  %vm531 = vcmp.lt.s32.totalorder %v133, 128
  %vm532 = vcmp.lt.s32.totalorder %v134, 128
  %vm533 = vcmp.lt.s32.totalorder %v135, 128
  %vm534 = vcmp.lt.s32.totalorder %v136, 128
  %vm535 = vcmp.lt.s32.totalorder %v137, 128
  %vm536 = vcmp.lt.s32.totalorder %v138, 128
  %vm537 = vcmp.lt.s32.totalorder %v139, 128
  %vm538 = vcmp.lt.s32.totalorder %v140, 128
  %vm539 = vcmp.lt.s32.totalorder %v141, 128
  %vm540 = vcmp.lt.s32.totalorder %v142, 128
  %vm541 = vcmp.lt.s32.totalorder %v143, 128
  %vm542 = vcmp.lt.s32.totalorder %v144, 128
  %vm543 = vcmp.lt.s32.totalorder %v145, 128
  %vm544 = vcmp.lt.s32.totalorder %v146, 128
  %vm545 = vcmp.lt.s32.totalorder %v147, 128
  %vm546 = vcmp.lt.s32.totalorder %v148, 128
  %vm547 = vcmp.lt.s32.totalorder %v149, 128
  %vm548 = vcmp.lt.s32.totalorder %v150, 128
  %vm549 = vcmp.lt.s32.totalorder %v151, 128
  %vm550 = vcmp.lt.s32.totalorder %v152, 128
  %vm551 = vcmp.lt.s32.totalorder %v153, 128
  %vm552 = vcmp.lt.s32.totalorder %v154, 128
  %vm553 = vcmp.lt.s32.totalorder %v155, 128
  %vm554 = vcmp.lt.s32.totalorder %v156, 128
  %vm555 = vcmp.lt.s32.totalorder %v157, 128
  %vm556 = vcmp.lt.s32.totalorder %v158, 128
  %v557 = vsel %vm493, 1, 0
  %v558 = vsel %vm494, 1, 0
  %v559 = vsel %vm495, 1, 0
  %v560 = vsel %vm496, 1, 0
  %v561 = vsel %vm497, 1, 0
  %v562 = vsel %vm498, 1, 0
  %v563 = vsel %vm499, 1, 0
  %v564 = vsel %vm500, 1, 0
  %v565 = vsel %vm501, 1, 0
  %v566 = vsel %vm502, 1, 0
  %v567 = vsel %vm503, 1, 0
  %v568 = vsel %vm504, 1, 0
  %v569 = vsel %vm505, 1, 0
  %v570 = vsel %vm506, 1, 0
  %v571 = vsel %vm507, 1, 0
  %v572 = vsel %vm508, 1, 0
  %v573 = vsel %vm509, 1, 0
  %v574 = vsel %vm510, 1, 0
  %v575 = vsel %vm511, 1, 0
  %v576 = vsel %vm512, 1, 0
  %v577 = vsel %vm513, 1, 0
  %v578 = vsel %vm514, 1, 0
  %v579 = vsel %vm515, 1, 0
  %v580 = vsel %vm516, 1, 0
  %v581 = vsel %vm517, 1, 0
  %v582 = vsel %vm518, 1, 0
  %v583 = vsel %vm519, 1, 0
  %v584 = vsel %vm520, 1, 0
  %v585 = vsel %vm521, 1, 0
  %v586 = vsel %vm522, 1, 0
  %v587 = vsel %vm523, 1, 0
  %v588 = vsel %vm524, 1, 0
  %v589 = vsel %vm525, 1, 0
  %v590 = vsel %vm526, 1, 0
  %v591 = vsel %vm527, 1, 0
  %v592 = vsel %vm528, 1, 0
  %v593 = vsel %vm529, 1, 0
  %v594 = vsel %vm530, 1, 0
  %v595 = vsel %vm531, 1, 0
  %v596 = vsel %vm532, 1, 0
  %v597 = vsel %vm533, 1, 0
  %v598 = vsel %vm534, 1, 0
  %v599 = vsel %vm535, 1, 0
  %v600 = vsel %vm536, 1, 0
  %v601 = vsel %vm537, 1, 0
  %v602 = vsel %vm538, 1, 0
  %v603 = vsel %vm539, 1, 0
  %v604 = vsel %vm540, 1, 0
  %v605 = vsel %vm541, 1, 0
  %v606 = vsel %vm542, 1, 0
  %v607 = vsel %vm543, 1, 0
  %v608 = vsel %vm544, 1, 0
  %v609 = vsel %vm545, 1, 0
  %v610 = vsel %vm546, 1, 0
  %v611 = vsel %vm547, 1, 0
  %v612 = vsel %vm548, 1, 0
  %v613 = vsel %vm549, 1, 0
  %v614 = vsel %vm550, 1, 0
  %v615 = vsel %vm551, 1, 0
  %v616 = vsel %vm552, 1, 0
  %v617 = vsel %vm553, 1, 0
  %v618 = vsel %vm554, 1, 0
  %v619 = vsel %vm555, 1, 0
  %v620 = vsel %vm556, 1, 0
  %vm621 = vcmp.eq.s32.totalorder %v557, 1
  %vm622 = vcmp.eq.s32.totalorder %v558, 1
  %vm623 = vcmp.eq.s32.totalorder %v559, 1
  %vm624 = vcmp.eq.s32.totalorder %v560, 1
  %vm625 = vcmp.eq.s32.totalorder %v561, 1
  %vm626 = vcmp.eq.s32.totalorder %v562, 1
  %vm627 = vcmp.eq.s32.totalorder %v563, 1
  %vm628 = vcmp.eq.s32.totalorder %v564, 1
  %vm629 = vcmp.eq.s32.totalorder %v565, 1
  %vm630 = vcmp.eq.s32.totalorder %v566, 1
  %vm631 = vcmp.eq.s32.totalorder %v567, 1
  %vm632 = vcmp.eq.s32.totalorder %v568, 1
  %vm633 = vcmp.eq.s32.totalorder %v569, 1
  %vm634 = vcmp.eq.s32.totalorder %v570, 1
  %vm635 = vcmp.eq.s32.totalorder %v571, 1
  %vm636 = vcmp.eq.s32.totalorder %v572, 1
  %vm637 = vcmp.eq.s32.totalorder %v573, 1
  %vm638 = vcmp.eq.s32.totalorder %v574, 1
  %vm639 = vcmp.eq.s32.totalorder %v575, 1
  %vm640 = vcmp.eq.s32.totalorder %v576, 1
  %vm641 = vcmp.eq.s32.totalorder %v577, 1
  %vm642 = vcmp.eq.s32.totalorder %v578, 1
  %vm643 = vcmp.eq.s32.totalorder %v579, 1
  %vm644 = vcmp.eq.s32.totalorder %v580, 1
  %vm645 = vcmp.eq.s32.totalorder %v581, 1
  %vm646 = vcmp.eq.s32.totalorder %v582, 1
  %vm647 = vcmp.eq.s32.totalorder %v583, 1
  %vm648 = vcmp.eq.s32.totalorder %v584, 1
  %vm649 = vcmp.eq.s32.totalorder %v585, 1
  %vm650 = vcmp.eq.s32.totalorder %v586, 1
  %vm651 = vcmp.eq.s32.totalorder %v587, 1
  %vm652 = vcmp.eq.s32.totalorder %v588, 1
  %vm653 = vcmp.eq.s32.totalorder %v589, 1
  %vm654 = vcmp.eq.s32.totalorder %v590, 1
  %vm655 = vcmp.eq.s32.totalorder %v591, 1
  %vm656 = vcmp.eq.s32.totalorder %v592, 1
  %vm657 = vcmp.eq.s32.totalorder %v593, 1
  %vm658 = vcmp.eq.s32.totalorder %v594, 1
  %vm659 = vcmp.eq.s32.totalorder %v595, 1
  %vm660 = vcmp.eq.s32.totalorder %v596, 1
  %vm661 = vcmp.eq.s32.totalorder %v597, 1
  %vm662 = vcmp.eq.s32.totalorder %v598, 1
  %vm663 = vcmp.eq.s32.totalorder %v599, 1
  %vm664 = vcmp.eq.s32.totalorder %v600, 1
  %vm665 = vcmp.eq.s32.totalorder %v601, 1
  %vm666 = vcmp.eq.s32.totalorder %v602, 1
  %vm667 = vcmp.eq.s32.totalorder %v603, 1
  %vm668 = vcmp.eq.s32.totalorder %v604, 1
  %vm669 = vcmp.eq.s32.totalorder %v605, 1
  %vm670 = vcmp.eq.s32.totalorder %v606, 1
  %vm671 = vcmp.eq.s32.totalorder %v607, 1
  %vm672 = vcmp.eq.s32.totalorder %v608, 1
  %vm673 = vcmp.eq.s32.totalorder %v609, 1
  %vm674 = vcmp.eq.s32.totalorder %v610, 1
  %vm675 = vcmp.eq.s32.totalorder %v611, 1
  %vm676 = vcmp.eq.s32.totalorder %v612, 1
  %vm677 = vcmp.eq.s32.totalorder %v613, 1
  %vm678 = vcmp.eq.s32.totalorder %v614, 1
  %vm679 = vcmp.eq.s32.totalorder %v615, 1
  %vm680 = vcmp.eq.s32.totalorder %v616, 1
  %vm681 = vcmp.eq.s32.totalorder %v617, 1
  %vm682 = vcmp.eq.s32.totalorder %v618, 1
  %vm683 = vcmp.eq.s32.totalorder %v619, 1
  %vm684 = vcmp.eq.s32.totalorder %v620, 1
  %v685 = vsel %vm621, %v429, 0.0
  %v686 = vsel %vm622, %v430, 0.0
  %v687 = vsel %vm623, %v431, 0.0
  %v688 = vsel %vm624, %v432, 0.0
  %v689 = vsel %vm625, %v433, 0.0
  %v690 = vsel %vm626, %v434, 0.0
  %v691 = vsel %vm627, %v435, 0.0
  %v692 = vsel %vm628, %v436, 0.0
  %v693 = vsel %vm629, %v437, 0.0
  %v694 = vsel %vm630, %v438, 0.0
  %v695 = vsel %vm631, %v439, 0.0
  %v696 = vsel %vm632, %v440, 0.0
  %v697 = vsel %vm633, %v441, 0.0
  %v698 = vsel %vm634, %v442, 0.0
  %v699 = vsel %vm635, %v443, 0.0
  %v700 = vsel %vm636, %v444, 0.0
  %v701 = vsel %vm637, %v445, 0.0
  %v702 = vsel %vm638, %v446, 0.0
  %v703 = vsel %vm639, %v447, 0.0
  %v704 = vsel %vm640, %v448, 0.0
  %v705 = vsel %vm641, %v449, 0.0
  %v706 = vsel %vm642, %v450, 0.0
  %v707 = vsel %vm643, %v451, 0.0
  %v708 = vsel %vm644, %v452, 0.0
  %v709 = vsel %vm645, %v453, 0.0
  %v710 = vsel %vm646, %v454, 0.0
  %v711 = vsel %vm647, %v455, 0.0
  %v712 = vsel %vm648, %v456, 0.0
  %v713 = vsel %vm649, %v457, 0.0
  %v714 = vsel %vm650, %v458, 0.0
  %v715 = vsel %vm651, %v459, 0.0
  %v716 = vsel %vm652, %v460, 0.0
  %v717 = vsel %vm653, %v461, 0.0
  %v718 = vsel %vm654, %v462, 0.0
  %v719 = vsel %vm655, %v463, 0.0
  %v720 = vsel %vm656, %v464, 0.0
  %v721 = vsel %vm657, %v465, 0.0
  %v722 = vsel %vm658, %v466, 0.0
  %v723 = vsel %vm659, %v467, 0.0
  %v724 = vsel %vm660, %v468, 0.0
  %v725 = vsel %vm661, %v469, 0.0
  %v726 = vsel %vm662, %v470, 0.0
  %v727 = vsel %vm663, %v471, 0.0
  %v728 = vsel %vm664, %v472, 0.0
  %v729 = vsel %vm665, %v473, 0.0
  %v730 = vsel %vm666, %v474, 0.0
  %v731 = vsel %vm667, %v475, 0.0
  %v732 = vsel %vm668, %v476, 0.0
  %v733 = vsel %vm669, %v477, 0.0
  %v734 = vsel %vm670, %v478, 0.0
  %v735 = vsel %vm671, %v479, 0.0
  %v736 = vsel %vm672, %v480, 0.0
  %v737 = vsel %vm673, %v481, 0.0
  %v738 = vsel %vm674, %v482, 0.0
  %v739 = vsel %vm675, %v483, 0.0
  %v740 = vsel %vm676, %v484, 0.0
  %v741 = vsel %vm677, %v485, 0.0
  %v742 = vsel %vm678, %v486, 0.0
  %v743 = vsel %vm679, %v487, 0.0
  %v744 = vsel %vm680, %v488, 0.0
  %v745 = vsel %vm681, %v489, 0.0
  %v746 = vsel %vm682, %v490, 0.0
  %v747 = vsel %vm683, %v491, 0.0
  %v748 = vsel %vm684, %v492, 0.0
  %v749 = vpack.c.bf16 %v686, %v685
  %v750 = vpack.c.bf16 %v688, %v687
  %v751 = vpack.c.bf16 %v690, %v689
  %v752 = vpack.c.bf16 %v692, %v691
  %v753 = vpack.c.bf16 %v694, %v693
  %v754 = vpack.c.bf16 %v696, %v695
  %v755 = vpack.c.bf16 %v698, %v697
  %v756 = vpack.c.bf16 %v700, %v699
  %v757 = vpack.c.bf16 %v702, %v701
  %v758 = vpack.c.bf16 %v704, %v703
  %v759 = vpack.c.bf16 %v706, %v705
  %v760 = vpack.c.bf16 %v708, %v707
  %v761 = vpack.c.bf16 %v710, %v709
  %v762 = vpack.c.bf16 %v712, %v711
  %v763 = vpack.c.bf16 %v714, %v713
  %v764 = vpack.c.bf16 %v716, %v715
  %v765 = vpack.c.bf16 %v718, %v717
  %v766 = vpack.c.bf16 %v720, %v719
  %v767 = vpack.c.bf16 %v722, %v721
  %v768 = vpack.c.bf16 %v724, %v723
  %v769 = vpack.c.bf16 %v726, %v725
  %v770 = vpack.c.bf16 %v728, %v727
  %v771 = vpack.c.bf16 %v730, %v729
  %v772 = vpack.c.bf16 %v732, %v731
  %v773 = vpack.c.bf16 %v734, %v733
  %v774 = vpack.c.bf16 %v736, %v735
  %v775 = vpack.c.bf16 %v738, %v737
  %v776 = vpack.c.bf16 %v740, %v739
  %v777 = vpack.c.bf16 %v742, %v741
  %v778 = vpack.c.bf16 %v744, %v743
  %v779 = vpack.c.bf16 %v746, %v745
  %v780 = vpack.c.bf16 %v748, %v747
  %v781 = vld [vmem:[%s3] sm:$0xf]
  %v782 = vld [vmem:[%s3 + $0x4] sm:$0xf]
  %v783 = vld [vmem:[%s3 + $0x8] sm:$0xf]
  %v784 = vld [vmem:[%s3 + $0xc] sm:$0xf]
  %v785 = vld [vmem:[%s3 + $0x10] sm:$0xf]
  %v786 = vld [vmem:[%s3 + $0x14] sm:$0xf]
  %v787 = vld [vmem:[%s3 + $0x18] sm:$0xf]
  %v788 = vld [vmem:[%s3 + $0x1c] sm:$0xf]
  %v789 = vld [vmem:[%s3 + $0x20] sm:$0xf]
  %v790 = vld [vmem:[%s3 + $0x24] sm:$0xf]
  %v791 = vld [vmem:[%s3 + $0x28] sm:$0xf]
  %v792 = vld [vmem:[%s3 + $0x2c] sm:$0xf]
  %v793 = vld [vmem:[%s3 + $0x30] sm:$0xf]
  %v794 = vld [vmem:[%s3 + $0x34] sm:$0xf]
  %v795 = vld [vmem:[%s3 + $0x38] sm:$0xf]
  %v796 = vld [vmem:[%s3 + $0x3c] sm:$0xf]
  %v813 = vunpack.c.l.b16 %v781
  %v814 = vunpack.c.l.b16 %v782
  %v815 = vunpack.c.l.b16 %v783
  %v816 = vunpack.c.l.b16 %v784
  %v817 = vunpack.c.l.b16 %v785
  %v818 = vunpack.c.l.b16 %v786
  %v819 = vunpack.c.l.b16 %v787
  %v820 = vunpack.c.l.b16 %v788
  %v821 = vunpack.c.l.b16 %v789
  %v822 = vunpack.c.l.b16 %v790
  %v823 = vunpack.c.l.b16 %v791
  %v824 = vunpack.c.l.b16 %v792
  %v825 = vunpack.c.l.b16 %v793
  %v826 = vunpack.c.l.b16 %v794
  %v827 = vunpack.c.l.b16 %v795
  %v828 = vunpack.c.l.b16 %v796
  %v829 = vpack.c.b16 %v814, %v813
  %v830 = vpack.c.b16 %v816, %v815
  %v831 = vpack.c.b16 %v818, %v817
  %v832 = vpack.c.b16 %v820, %v819
  %v833 = vpack.c.b16 %v822, %v821
  %v834 = vpack.c.b16 %v824, %v823
  %v835 = vpack.c.b16 %v826, %v825
  %v836 = vpack.c.b16 %v828, %v827
  %845 = vmatprep.subr.bf16.mxu0 0
  %846 = vmatpush1.bf16.msra.mxu0 %v829
  %847 = vmatprep.subr.bf16.mxu0 0
  %848 = vmatpush1.bf16.msra.mxu0 %v830
  %849 = vmatprep.subr.bf16.mxu0 0
  %850 = vmatpush1.bf16.msra.mxu0 %v831
  %851 = vmatprep.subr.bf16.mxu0 0
  %852 = vmatpush1.bf16.msra.mxu0 %v832
  %853 = vmatprep.subr.bf16.mxu0 0
  %854 = vmatpush1.bf16.msra.mxu0 %v833
  %855 = vmatprep.subr.bf16.mxu0 0
  %856 = vmatpush1.bf16.msra.mxu0 %v834
  %857 = vmatprep.subr.bf16.mxu0 0
  %858 = vmatpush1.bf16.msra.mxu0 %v835
  %859 = vmatprep.subr.bf16.mxu0 0
  %860 = vmatpush1.bf16.msra.mxu0 %v836
  %861 = vmatprep.subr.bf16.mxu0 0
  %862 = vmatpush1.bf16.msra.mxu0 0
  %863 = vmatprep.subr.bf16.mxu0 0
  %864 = vmatpush1.bf16.msra.mxu0 0
  %865 = vmatprep.subr.bf16.mxu0 0
  %866 = vmatpush1.bf16.msra.mxu0 0
  %867 = vmatprep.subr.bf16.mxu0 0
  %868 = vmatpush1.bf16.msra.mxu0 0
  %869 = vmatprep.subr.bf16.mxu0 0
  %870 = vmatpush1.bf16.msra.mxu0 0
  %871 = vmatprep.subr.bf16.mxu0 0
  %872 = vmatpush1.bf16.msra.mxu0 0
  %873 = vmatprep.subr.bf16.mxu0 0
  %874 = vmatpush1.bf16.msra.mxu0 0
  %875 = vmatprep.subr.bf16.mxu0 0
  %876 = vmatpush1.bf16.msra.mxu0 0
  %877 = vmatprep.mubr.bf16.mxu0 0
  %878 = vmatmul.mubr.bf16.gmra.mrb[0].mxu0 %v749
  %v879 = vpop.f32.mrb[0].mxu0
  %v880 = vadd.f32 0.0, %v879
  %v881 = vpop.f32.mrb[0].mxu0
  %v882 = vpop.f32.mrb[0].mxu0
  %v883 = vadd.f32 0.0, %v882
  %v884 = vpop.f32.mrb[0].mxu0
  %885 = vmatprep.mubr.bf16.mxu0 0
  %886 = vmatmul.mubr.bf16.gmra.mrb[0].mxu0 %v750
  %v887 = vpop.f32.mrb[0].mxu0
  %v888 = vadd.f32 0.0, %v887
  %v889 = vpop.f32.mrb[0].mxu0
  %v890 = vpop.f32.mrb[0].mxu0
  %v891 = vadd.f32 0.0, %v890
  %v892 = vpop.f32.mrb[0].mxu0
  %893 = vmatprep.mubr.bf16.mxu0 0
  %894 = vmatmul.mubr.bf16.gmra.mrb[0].mxu0 %v751
  %v895 = vpop.f32.mrb[0].mxu0
  %v896 = vadd.f32 0.0, %v895
  %v897 = vpop.f32.mrb[0].mxu0
  %v898 = vpop.f32.mrb[0].mxu0
  %v899 = vadd.f32 0.0, %v898
  %v900 = vpop.f32.mrb[0].mxu0
  %901 = vmatprep.mubr.bf16.mxu0 0
  %902 = vmatmul.mubr.bf16.gmra.mrb[0].mxu0 %v752
  %v903 = vpop.f32.mrb[0].mxu0
  %v904 = vadd.f32 0.0, %v903
  %v905 = vpop.f32.mrb[0].mxu0
  %v906 = vpop.f32.mrb[0].mxu0
  %v907 = vadd.f32 0.0, %v906
  %v908 = vpop.f32.mrb[0].mxu0
  %909 = vmatprep.mubr.bf16.mxu0 0
  %910 = vmatmul.mubr.bf16.gmra.mrb[0].mxu0 %v753
  %v911 = vpop.f32.mrb[0].mxu0
  %v912 = vadd.f32 0.0, %v911
  %v913 = vpop.f32.mrb[0].mxu0
  %v914 = vpop.f32.mrb[0].mxu0
  %v915 = vadd.f32 0.0, %v914
  %v916 = vpop.f32.mrb[0].mxu0
  %917 = vmatprep.mubr.bf16.mxu0 0
  %918 = vmatmul.mubr.bf16.gmra.mrb[0].mxu0 %v754
  %v919 = vpop.f32.mrb[0].mxu0
  %v920 = vadd.f32 0.0, %v919
  %v921 = vpop.f32.mrb[0].mxu0
  %v922 = vpop.f32.mrb[0].mxu0
  %v923 = vadd.f32 0.0, %v922
  %v924 = vpop.f32.mrb[0].mxu0
  %925 = vmatprep.mubr.bf16.mxu0 0
  %926 = vmatmul.mubr.bf16.gmra.mrb[0].mxu0 %v755
  %v927 = vpop.f32.mrb[0].mxu0
  %v928 = vadd.f32 0.0, %v927
  %v929 = vpop.f32.mrb[0].mxu0
  %v930 = vpop.f32.mrb[0].mxu0
  %v931 = vadd.f32 0.0, %v930
  %v932 = vpop.f32.mrb[0].mxu0
  %933 = vmatprep.mubr.bf16.mxu0 0
  %934 = vmatmul.mubr.bf16.gmra.mrb[0].mxu0 %v756
  %v935 = vpop.f32.mrb[0].mxu0
  %v936 = vadd.f32 0.0, %v935
  %v937 = vpop.f32.mrb[0].mxu0
  %v938 = vpop.f32.mrb[0].mxu0
  %v939 = vadd.f32 0.0, %v938
  %v940 = vpop.f32.mrb[0].mxu0
  %941 = vmatprep.mubr.bf16.mxu0 0
  %942 = vmatmul.mubr.bf16.gmra.mrb[0].mxu0 %v757
  %v943 = vpop.f32.mrb[0].mxu0
  %v944 = vadd.f32 0.0, %v943
  %v945 = vpop.f32.mrb[0].mxu0
  %v946 = vpop.f32.mrb[0].mxu0
  %v947 = vadd.f32 0.0, %v946
  %v948 = vpop.f32.mrb[0].mxu0
  %949 = vmatprep.mubr.bf16.mxu0 0
  %950 = vmatmul.mubr.bf16.gmra.mrb[0].mxu0 %v758
  %v951 = vpop.f32.mrb[0].mxu0
  %v952 = vadd.f32 0.0, %v951
  %v953 = vpop.f32.mrb[0].mxu0
  %v954 = vpop.f32.mrb[0].mxu0
  %v955 = vadd.f32 0.0, %v954
  %v956 = vpop.f32.mrb[0].mxu0
  %957 = vmatprep.mubr.bf16.mxu0 0
  %958 = vmatmul.mubr.bf16.gmra.mrb[0].mxu0 %v759
  %v959 = vpop.f32.mrb[0].mxu0
  %v960 = vadd.f32 0.0, %v959
  %v961 = vpop.f32.mrb[0].mxu0
  %v962 = vpop.f32.mrb[0].mxu0
  %v963 = vadd.f32 0.0, %v962
  %v964 = vpop.f32.mrb[0].mxu0
  %965 = vmatprep.mubr.bf16.mxu0 0
  %966 = vmatmul.mubr.bf16.gmra.mrb[0].mxu0 %v760
  %v967 = vpop.f32.mrb[0].mxu0
  %v968 = vadd.f32 0.0, %v967
  %v969 = vpop.f32.mrb[0].mxu0
  %v970 = vpop.f32.mrb[0].mxu0
  %v971 = vadd.f32 0.0, %v970
  %v972 = vpop.f32.mrb[0].mxu0
  %973 = vmatprep.mubr.bf16.mxu0 0
  %974 = vmatmul.mubr.bf16.gmra.mrb[0].mxu0 %v761
  %v975 = vpop.f32.mrb[0].mxu0
  %v976 = vadd.f32 0.0, %v975
  %v977 = vpop.f32.mrb[0].mxu0
  %v978 = vpop.f32.mrb[0].mxu0
  %v979 = vadd.f32 0.0, %v978
  %v980 = vpop.f32.mrb[0].mxu0
  %981 = vmatprep.mubr.bf16.mxu0 0
  %982 = vmatmul.mubr.bf16.gmra.mrb[0].mxu0 %v762
  %v983 = vpop.f32.mrb[0].mxu0
  %v984 = vadd.f32 0.0, %v983
  %v985 = vpop.f32.mrb[0].mxu0
  %v986 = vpop.f32.mrb[0].mxu0
  %v987 = vadd.f32 0.0, %v986
  %v988 = vpop.f32.mrb[0].mxu0
  %989 = vmatprep.mubr.bf16.mxu0 0
  %990 = vmatmul.mubr.bf16.gmra.mrb[0].mxu0 %v763
  %v991 = vpop.f32.mrb[0].mxu0
  %v992 = vadd.f32 0.0, %v991
  %v993 = vpop.f32.mrb[0].mxu0
  %v994 = vpop.f32.mrb[0].mxu0
  %v995 = vadd.f32 0.0, %v994
  %v996 = vpop.f32.mrb[0].mxu0
  %997 = vmatprep.mubr.bf16.mxu0 0
  %998 = vmatmul.mubr.bf16.gmra.mrb[0].mxu0 %v764
  %v999 = vpop.f32.mrb[0].mxu0
  %v1000 = vadd.f32 0.0, %v999
  %v1001 = vpop.f32.mrb[0].mxu0
  %v1002 = vpop.f32.mrb[0].mxu0
  %v1003 = vadd.f32 0.0, %v1002
  %v1004 = vpop.f32.mrb[0].mxu0
  %1005 = vmatprep.mubr.bf16.mxu0 0
  %1006 = vmatmul.mubr.bf16.gmra.mrb[0].mxu0 %v765
  %v1007 = vpop.f32.mrb[0].mxu0
  %v1008 = vadd.f32 0.0, %v1007
  %v1009 = vpop.f32.mrb[0].mxu0
  %v1010 = vpop.f32.mrb[0].mxu0
  %v1011 = vadd.f32 0.0, %v1010
  %v1012 = vpop.f32.mrb[0].mxu0
  %1013 = vmatprep.mubr.bf16.mxu0 0
  %1014 = vmatmul.mubr.bf16.gmra.mrb[0].mxu0 %v766
  %v1015 = vpop.f32.mrb[0].mxu0
  %v1016 = vadd.f32 0.0, %v1015
  %v1017 = vpop.f32.mrb[0].mxu0
  %v1018 = vpop.f32.mrb[0].mxu0
  %v1019 = vadd.f32 0.0, %v1018
  %v1020 = vpop.f32.mrb[0].mxu0
  %1021 = vmatprep.mubr.bf16.mxu0 0
  %1022 = vmatmul.mubr.bf16.gmra.mrb[0].mxu0 %v767
  %v1023 = vpop.f32.mrb[0].mxu0
  %v1024 = vadd.f32 0.0, %v1023
  %v1025 = vpop.f32.mrb[0].mxu0
  %v1026 = vpop.f32.mrb[0].mxu0
  %v1027 = vadd.f32 0.0, %v1026
  %v1028 = vpop.f32.mrb[0].mxu0
  %1029 = vmatprep.mubr.bf16.mxu0 0
  %1030 = vmatmul.mubr.bf16.gmra.mrb[0].mxu0 %v768
  %v1031 = vpop.f32.mrb[0].mxu0
  %v1032 = vadd.f32 0.0, %v1031
  %v1033 = vpop.f32.mrb[0].mxu0
  %v1034 = vpop.f32.mrb[0].mxu0
  %v1035 = vadd.f32 0.0, %v1034
  %v1036 = vpop.f32.mrb[0].mxu0
  %1037 = vmatprep.mubr.bf16.mxu0 0
  %1038 = vmatmul.mubr.bf16.gmra.mrb[0].mxu0 %v769
  %v1039 = vpop.f32.mrb[0].mxu0
  %v1040 = vadd.f32 0.0, %v1039
  %v1041 = vpop.f32.mrb[0].mxu0
  %v1042 = vpop.f32.mrb[0].mxu0
  %v1043 = vadd.f32 0.0, %v1042
  %v1044 = vpop.f32.mrb[0].mxu0
  %1045 = vmatprep.mubr.bf16.mxu0 0
  %1046 = vmatmul.mubr.bf16.gmra.mrb[0].mxu0 %v770
  %v1047 = vpop.f32.mrb[0].mxu0
  %v1048 = vadd.f32 0.0, %v1047
  %v1049 = vpop.f32.mrb[0].mxu0
  %v1050 = vpop.f32.mrb[0].mxu0
  %v1051 = vadd.f32 0.0, %v1050
  %v1052 = vpop.f32.mrb[0].mxu0
  %1053 = vmatprep.mubr.bf16.mxu0 0
  %1054 = vmatmul.mubr.bf16.gmra.mrb[0].mxu0 %v771
  %v1055 = vpop.f32.mrb[0].mxu0
  %v1056 = vadd.f32 0.0, %v1055
  %v1057 = vpop.f32.mrb[0].mxu0
  %v1058 = vpop.f32.mrb[0].mxu0
  %v1059 = vadd.f32 0.0, %v1058
  %v1060 = vpop.f32.mrb[0].mxu0
  %1061 = vmatprep.mubr.bf16.mxu0 0
  %1062 = vmatmul.mubr.bf16.gmra.mrb[0].mxu0 %v772
  %v1063 = vpop.f32.mrb[0].mxu0
  %v1064 = vadd.f32 0.0, %v1063
  %v1065 = vpop.f32.mrb[0].mxu0
  %v1066 = vpop.f32.mrb[0].mxu0
  %v1067 = vadd.f32 0.0, %v1066
  %v1068 = vpop.f32.mrb[0].mxu0
  %1069 = vmatprep.mubr.bf16.mxu0 0
  %1070 = vmatmul.mubr.bf16.gmra.mrb[0].mxu0 %v773
  %v1071 = vpop.f32.mrb[0].mxu0
  %v1072 = vadd.f32 0.0, %v1071
  %v1073 = vpop.f32.mrb[0].mxu0
  %v1074 = vpop.f32.mrb[0].mxu0
  %v1075 = vadd.f32 0.0, %v1074
  %v1076 = vpop.f32.mrb[0].mxu0
  %1077 = vmatprep.mubr.bf16.mxu0 0
  %1078 = vmatmul.mubr.bf16.gmra.mrb[0].mxu0 %v774
  %v1079 = vpop.f32.mrb[0].mxu0
  %v1080 = vadd.f32 0.0, %v1079
  %v1081 = vpop.f32.mrb[0].mxu0
  %v1082 = vpop.f32.mrb[0].mxu0
  %v1083 = vadd.f32 0.0, %v1082
  %v1084 = vpop.f32.mrb[0].mxu0
  %1085 = vmatprep.mubr.bf16.mxu0 0
  %1086 = vmatmul.mubr.bf16.gmra.mrb[0].mxu0 %v775
  %v1087 = vpop.f32.mrb[0].mxu0
  %v1088 = vadd.f32 0.0, %v1087
  %v1089 = vpop.f32.mrb[0].mxu0
  %v1090 = vpop.f32.mrb[0].mxu0
  %v1091 = vadd.f32 0.0, %v1090
  %v1092 = vpop.f32.mrb[0].mxu0
  %1093 = vmatprep.mubr.bf16.mxu0 0
  %1094 = vmatmul.mubr.bf16.gmra.mrb[0].mxu0 %v776
  %v1095 = vpop.f32.mrb[0].mxu0
  %v1096 = vadd.f32 0.0, %v1095
  %v1097 = vpop.f32.mrb[0].mxu0
  %v1098 = vpop.f32.mrb[0].mxu0
  %v1099 = vadd.f32 0.0, %v1098
  %v1100 = vpop.f32.mrb[0].mxu0
  %1101 = vmatprep.mubr.bf16.mxu0 0
  %1102 = vmatmul.mubr.bf16.gmra.mrb[0].mxu0 %v777
  %v1103 = vpop.f32.mrb[0].mxu0
  %v1104 = vadd.f32 0.0, %v1103
  %v1105 = vpop.f32.mrb[0].mxu0
  %v1106 = vpop.f32.mrb[0].mxu0
  %v1107 = vadd.f32 0.0, %v1106
  %v1108 = vpop.f32.mrb[0].mxu0
  %1109 = vmatprep.mubr.bf16.mxu0 0
  %1110 = vmatmul.mubr.bf16.gmra.mrb[0].mxu0 %v778
  %v1111 = vpop.f32.mrb[0].mxu0
  %v1112 = vadd.f32 0.0, %v1111
  %v1113 = vpop.f32.mrb[0].mxu0
  %v1114 = vpop.f32.mrb[0].mxu0
  %v1115 = vadd.f32 0.0, %v1114
  %v1116 = vpop.f32.mrb[0].mxu0
  %1117 = vmatprep.mubr.bf16.mxu0 0
  %1118 = vmatmul.mubr.bf16.gmra.mrb[0].mxu0 %v779
  %v1119 = vpop.f32.mrb[0].mxu0
  %v1120 = vadd.f32 0.0, %v1119
  %v1121 = vpop.f32.mrb[0].mxu0
  %v1122 = vpop.f32.mrb[0].mxu0
  %v1123 = vadd.f32 0.0, %v1122
  %v1124 = vpop.f32.mrb[0].mxu0
  %1125 = vmatprep.mubr.bf16.mxu0 0
  %1126 = vmatmul.mubr.bf16.gmra.mrb[0].mxu0 %v780
  %v1127 = vpop.f32.mrb[0].mxu0
  %v1128 = vadd.f32 0.0, %v1127
  %v1129 = vpop.f32.mrb[0].mxu0
  %v1130 = vpop.f32.mrb[0].mxu0
  %v1131 = vadd.f32 0.0, %v1130
  %v1132 = vpop.f32.mrb[0].mxu0
  %1133 = vdwg.mxu0
  %v1134 = vpack.c.bf16 %v883, %v880
  %v1135 = vpack.c.bf16 %v891, %v888
  %v1136 = vpack.c.bf16 %v899, %v896
  %v1137 = vpack.c.bf16 %v907, %v904
  %v1138 = vpack.c.bf16 %v915, %v912
  %v1139 = vpack.c.bf16 %v923, %v920
  %v1140 = vpack.c.bf16 %v931, %v928
  %v1141 = vpack.c.bf16 %v939, %v936
  %v1142 = vpack.c.bf16 %v947, %v944
  %v1143 = vpack.c.bf16 %v955, %v952
  %v1144 = vpack.c.bf16 %v963, %v960
  %v1145 = vpack.c.bf16 %v971, %v968
  %v1146 = vpack.c.bf16 %v979, %v976
  %v1147 = vpack.c.bf16 %v987, %v984
  %v1148 = vpack.c.bf16 %v995, %v992
  %v1149 = vpack.c.bf16 %v1003, %v1000
  %v1150 = vpack.c.bf16 %v1011, %v1008
  %v1151 = vpack.c.bf16 %v1019, %v1016
  %v1152 = vpack.c.bf16 %v1027, %v1024
  %v1153 = vpack.c.bf16 %v1035, %v1032
  %v1154 = vpack.c.bf16 %v1043, %v1040
  %v1155 = vpack.c.bf16 %v1051, %v1048
  %v1156 = vpack.c.bf16 %v1059, %v1056
  %v1157 = vpack.c.bf16 %v1067, %v1064
  %v1158 = vpack.c.bf16 %v1075, %v1072
  %v1159 = vpack.c.bf16 %v1083, %v1080
  %v1160 = vpack.c.bf16 %v1091, %v1088
  %v1161 = vpack.c.bf16 %v1099, %v1096
  %v1162 = vpack.c.bf16 %v1107, %v1104
  %v1163 = vpack.c.bf16 %v1115, %v1112
  %v1164 = vpack.c.bf16 %v1123, %v1120
  %v1165 = vpack.c.bf16 %v1131, %v1128
  %v1198 = vunpack.c.l.b16 %v1134
  %v1199 = vunpack.c.h.b16 %v1134
  %v1200 = vunpack.c.l.b16 %v1135
  %v1201 = vunpack.c.h.b16 %v1135
  %v1202 = vunpack.c.l.b16 %v1136
  %v1203 = vunpack.c.h.b16 %v1136
  %v1204 = vunpack.c.l.b16 %v1137
  %v1205 = vunpack.c.h.b16 %v1137
  %v1206 = vunpack.c.l.b16 %v1138
  %v1207 = vunpack.c.h.b16 %v1138
  %v1208 = vunpack.c.l.b16 %v1139
  %v1209 = vunpack.c.h.b16 %v1139
  %v1210 = vunpack.c.l.b16 %v1140
  %v1211 = vunpack.c.h.b16 %v1140
  %v1212 = vunpack.c.l.b16 %v1141
  %v1213 = vunpack.c.h.b16 %v1141
  %v1214 = vunpack.c.l.b16 %v1142
  %v1215 = vunpack.c.h.b16 %v1142
  %v1216 = vunpack.c.l.b16 %v1143
  %v1217 = vunpack.c.h.b16 %v1143
  %v1218 = vunpack.c.l.b16 %v1144
  %v1219 = vunpack.c.h.b16 %v1144
  %v1220 = vunpack.c.l.b16 %v1145
  %v1221 = vunpack.c.h.b16 %v1145
  %v1222 = vunpack.c.l.b16 %v1146
  %v1223 = vunpack.c.h.b16 %v1146
  %v1224 = vunpack.c.l.b16 %v1147
  %v1225 = vunpack.c.h.b16 %v1147
  %v1226 = vunpack.c.l.b16 %v1148
  %v1227 = vunpack.c.h.b16 %v1148
  %v1228 = vunpack.c.l.b16 %v1149
  %v1229 = vunpack.c.h.b16 %v1149
  %v1230 = vunpack.c.l.b16 %v1150
  %v1231 = vunpack.c.h.b16 %v1150
  %v1232 = vunpack.c.l.b16 %v1151
  %v1233 = vunpack.c.h.b16 %v1151
  %v1234 = vunpack.c.l.b16 %v1152
  %v1235 = vunpack.c.h.b16 %v1152
  %v1236 = vunpack.c.l.b16 %v1153
  %v1237 = vunpack.c.h.b16 %v1153
  %v1238 = vunpack.c.l.b16 %v1154
  %v1239 = vunpack.c.h.b16 %v1154
  %v1240 = vunpack.c.l.b16 %v1155
  %v1241 = vunpack.c.h.b16 %v1155
  %v1242 = vunpack.c.l.b16 %v1156
  %v1243 = vunpack.c.h.b16 %v1156
  %v1244 = vunpack.c.l.b16 %v1157
  %v1245 = vunpack.c.h.b16 %v1157
  %v1246 = vunpack.c.l.b16 %v1158
  %v1247 = vunpack.c.h.b16 %v1158
  %v1248 = vunpack.c.l.b16 %v1159
  %v1249 = vunpack.c.h.b16 %v1159
  %v1250 = vunpack.c.l.b16 %v1160
  %v1251 = vunpack.c.h.b16 %v1160
  %v1252 = vunpack.c.l.b16 %v1161
  %v1253 = vunpack.c.h.b16 %v1161
  %v1254 = vunpack.c.l.b16 %v1162
  %v1255 = vunpack.c.h.b16 %v1162
  %v1256 = vunpack.c.l.b16 %v1163
  %v1257 = vunpack.c.h.b16 %v1163
  %v1258 = vunpack.c.l.b16 %v1164
  %v1259 = vunpack.c.h.b16 %v1164
  %v1260 = vunpack.c.l.b16 %v1165
  %v1261 = vunpack.c.h.b16 %v1165
  %v1262 = vpack.c.b16 %v1198, %v1198
  %v1263 = vpack.c.b16 %v1199, %v1199
  %v1264 = vpack.c.b16 %v1200, %v1200
  %v1265 = vpack.c.b16 %v1201, %v1201
  %v1266 = vpack.c.b16 %v1202, %v1202
  %v1267 = vpack.c.b16 %v1203, %v1203
  %v1268 = vpack.c.b16 %v1204, %v1204
  %v1269 = vpack.c.b16 %v1205, %v1205
  %v1270 = vpack.c.b16 %v1206, %v1206
  %v1271 = vpack.c.b16 %v1207, %v1207
  %v1272 = vpack.c.b16 %v1208, %v1208
  %v1273 = vpack.c.b16 %v1209, %v1209
  %v1274 = vpack.c.b16 %v1210, %v1210
  %v1275 = vpack.c.b16 %v1211, %v1211
  %v1276 = vpack.c.b16 %v1212, %v1212
  %v1277 = vpack.c.b16 %v1213, %v1213
  %v1278 = vpack.c.b16 %v1214, %v1214
  %v1279 = vpack.c.b16 %v1215, %v1215
  %v1280 = vpack.c.b16 %v1216, %v1216
  %v1281 = vpack.c.b16 %v1217, %v1217
  %v1282 = vpack.c.b16 %v1218, %v1218
  %v1283 = vpack.c.b16 %v1219, %v1219
  %v1284 = vpack.c.b16 %v1220, %v1220
  %v1285 = vpack.c.b16 %v1221, %v1221
  %v1286 = vpack.c.b16 %v1222, %v1222
  %v1287 = vpack.c.b16 %v1223, %v1223
  %v1288 = vpack.c.b16 %v1224, %v1224
  %v1289 = vpack.c.b16 %v1225, %v1225
  %v1290 = vpack.c.b16 %v1226, %v1226
  %v1291 = vpack.c.b16 %v1227, %v1227
  %v1292 = vpack.c.b16 %v1228, %v1228
  %v1293 = vpack.c.b16 %v1229, %v1229
  %v1294 = vpack.c.b16 %v1230, %v1230
  %v1295 = vpack.c.b16 %v1231, %v1231
  %v1296 = vpack.c.b16 %v1232, %v1232
  %v1297 = vpack.c.b16 %v1233, %v1233
  %v1298 = vpack.c.b16 %v1234, %v1234
  %v1299 = vpack.c.b16 %v1235, %v1235
  %v1300 = vpack.c.b16 %v1236, %v1236
  %v1301 = vpack.c.b16 %v1237, %v1237
  %v1302 = vpack.c.b16 %v1238, %v1238
  %v1303 = vpack.c.b16 %v1239, %v1239
  %v1304 = vpack.c.b16 %v1240, %v1240
  %v1305 = vpack.c.b16 %v1241, %v1241
  %v1306 = vpack.c.b16 %v1242, %v1242
  %v1307 = vpack.c.b16 %v1243, %v1243
  %v1308 = vpack.c.b16 %v1244, %v1244
  %v1309 = vpack.c.b16 %v1245, %v1245
  %v1310 = vpack.c.b16 %v1246, %v1246
  %v1311 = vpack.c.b16 %v1247, %v1247
  %v1312 = vpack.c.b16 %v1248, %v1248
  %v1313 = vpack.c.b16 %v1249, %v1249
  %v1314 = vpack.c.b16 %v1250, %v1250
  %v1315 = vpack.c.b16 %v1251, %v1251
  %v1316 = vpack.c.b16 %v1252, %v1252
  %v1317 = vpack.c.b16 %v1253, %v1253
  %v1318 = vpack.c.b16 %v1254, %v1254
  %v1319 = vpack.c.b16 %v1255, %v1255
  %v1320 = vpack.c.b16 %v1256, %v1256
  %v1321 = vpack.c.b16 %v1257, %v1257
  %v1322 = vpack.c.b16 %v1258, %v1258
  %v1323 = vpack.c.b16 %v1259, %v1259
  %v1324 = vpack.c.b16 %v1260, %v1260
  %v1325 = vpack.c.b16 %v1261, %v1261
  %1390 = vst [vmem:[%s6] sm:$0xf] %v1262
  %1391 = vst [vmem:[%s6 + $0x4] sm:$0xf] %v1263
  %1392 = vst [vmem:[%s6 + $0x8] sm:$0xf] %v1264
  %1393 = vst [vmem:[%s6 + $0xc] sm:$0xf] %v1265
  %1394 = vst [vmem:[%s6 + $0x10] sm:$0xf] %v1266
  %1395 = vst [vmem:[%s6 + $0x14] sm:$0xf] %v1267
  %1396 = vst [vmem:[%s6 + $0x18] sm:$0xf] %v1268
  %1397 = vst [vmem:[%s6 + $0x1c] sm:$0xf] %v1269
  %1398 = vst [vmem:[%s6 + $0x20] sm:$0xf] %v1270
  %1399 = vst [vmem:[%s6 + $0x24] sm:$0xf] %v1271
  %1400 = vst [vmem:[%s6 + $0x28] sm:$0xf] %v1272
  %1401 = vst [vmem:[%s6 + $0x2c] sm:$0xf] %v1273
  %1402 = vst [vmem:[%s6 + $0x30] sm:$0xf] %v1274
  %1403 = vst [vmem:[%s6 + $0x34] sm:$0xf] %v1275
  %1404 = vst [vmem:[%s6 + $0x38] sm:$0xf] %v1276
  %1405 = vst [vmem:[%s6 + $0x3c] sm:$0xf] %v1277
  %1406 = vst [vmem:[%s6 + $0x40] sm:$0xf] %v1278
  %1407 = vst [vmem:[%s6 + $0x44] sm:$0xf] %v1279
  %1408 = vst [vmem:[%s6 + $0x48] sm:$0xf] %v1280
  %1409 = vst [vmem:[%s6 + $0x4c] sm:$0xf] %v1281
  %1410 = vst [vmem:[%s6 + $0x50] sm:$0xf] %v1282
  %1411 = vst [vmem:[%s6 + $0x54] sm:$0xf] %v1283
  %1412 = vst [vmem:[%s6 + $0x58] sm:$0xf] %v1284
  %1413 = vst [vmem:[%s6 + $0x5c] sm:$0xf] %v1285
  %1414 = vst [vmem:[%s6 + $0x60] sm:$0xf] %v1286
  %1415 = vst [vmem:[%s6 + $0x64] sm:$0xf] %v1287
  %1416 = vst [vmem:[%s6 + $0x68] sm:$0xf] %v1288
  %1417 = vst [vmem:[%s6 + $0x6c] sm:$0xf] %v1289
  %1418 = vst [vmem:[%s6 + $0x70] sm:$0xf] %v1290
  %1419 = vst [vmem:[%s6 + $0x74] sm:$0xf] %v1291
  %1420 = vst [vmem:[%s6 + $0x78] sm:$0xf] %v1292
  %1421 = vst [vmem:[%s6 + $0x7c] sm:$0xf] %v1293
  %1422 = vst [vmem:[%s6 + $0x80] sm:$0xf] %v1294
  %1423 = vst [vmem:[%s6 + $0x84] sm:$0xf] %v1295
  %1424 = vst [vmem:[%s6 + $0x88] sm:$0xf] %v1296
  %1425 = vst [vmem:[%s6 + $0x8c] sm:$0xf] %v1297
  %1426 = vst [vmem:[%s6 + $0x90] sm:$0xf] %v1298
  %1427 = vst [vmem:[%s6 + $0x94] sm:$0xf] %v1299
  %1428 = vst [vmem:[%s6 + $0x98] sm:$0xf] %v1300
  %1429 = vst [vmem:[%s6 + $0x9c] sm:$0xf] %v1301
  %1430 = vst [vmem:[%s6 + $0xa0] sm:$0xf] %v1302
  %1431 = vst [vmem:[%s6 + $0xa4] sm:$0xf] %v1303
  %1432 = vst [vmem:[%s6 + $0xa8] sm:$0xf] %v1304
  %1433 = vst [vmem:[%s6 + $0xac] sm:$0xf] %v1305
  %1434 = vst [vmem:[%s6 + $0xb0] sm:$0xf] %v1306
  %1435 = vst [vmem:[%s6 + $0xb4] sm:$0xf] %v1307
  %1436 = vst [vmem:[%s6 + $0xb8] sm:$0xf] %v1308
  %1437 = vst [vmem:[%s6 + $0xbc] sm:$0xf] %v1309
  %1438 = vst [vmem:[%s6 + $0xc0] sm:$0xf] %v1310
  %1439 = vst [vmem:[%s6 + $0xc4] sm:$0xf] %v1311
  %1440 = vst [vmem:[%s6 + $0xc8] sm:$0xf] %v1312
  %1441 = vst [vmem:[%s6 + $0xcc] sm:$0xf] %v1313
  %1442 = vst [vmem:[%s6 + $0xd0] sm:$0xf] %v1314
  %1443 = vst [vmem:[%s6 + $0xd4] sm:$0xf] %v1315
  %1444 = vst [vmem:[%s6 + $0xd8] sm:$0xf] %v1316
  %1445 = vst [vmem:[%s6 + $0xdc] sm:$0xf] %v1317
  %1446 = vst [vmem:[%s6 + $0xe0] sm:$0xf] %v1318
  %1447 = vst [vmem:[%s6 + $0xe4] sm:$0xf] %v1319
  %1448 = vst [vmem:[%s6 + $0xe8] sm:$0xf] %v1320
  %1449 = vst [vmem:[%s6 + $0xec] sm:$0xf] %v1321
  %1450 = vst [vmem:[%s6 + $0xf0] sm:$0xf] %v1322
  %1451 = vst [vmem:[%s6 + $0xf4] sm:$0xf] %v1323
  %1452 = vst [vmem:[%s6 + $0xf8] sm:$0xf] %v1324
  %1453 = vst [vmem:[%s6 + $0xfc] sm:$0xf] %v1325
  %v1454 = vadd.f32 %v880, %v883
  %v1455 = vadd.f32 %v1454, %v888
  %v1456 = vadd.f32 %v1455, %v891
  %v1457 = vadd.f32 %v1456, %v896
  %v1458 = vadd.f32 %v1457, %v899
  %v1459 = vadd.f32 %v1458, %v904
  %v1460 = vadd.f32 %v1459, %v907
  %v1461 = vadd.f32 %v1460, %v912
  %v1462 = vadd.f32 %v1461, %v915
  %v1463 = vadd.f32 %v1462, %v920
  %v1464 = vadd.f32 %v1463, %v923
  %v1465 = vadd.f32 %v1464, %v928
  %v1466 = vadd.f32 %v1465, %v931
  %v1467 = vadd.f32 %v1466, %v936
  %v1468 = vadd.f32 %v1467, %v939
  %v1469 = vadd.f32 %v1468, %v944
  %v1470 = vadd.f32 %v1469, %v947
  %v1471 = vadd.f32 %v1470, %v952
  %v1472 = vadd.f32 %v1471, %v955
  %v1473 = vadd.f32 %v1472, %v960
  %v1474 = vadd.f32 %v1473, %v963
  %v1475 = vadd.f32 %v1474, %v968
  %v1476 = vadd.f32 %v1475, %v971
  %v1477 = vadd.f32 %v1476, %v976
  %v1478 = vadd.f32 %v1477, %v979
  %v1479 = vadd.f32 %v1478, %v984
  %v1480 = vadd.f32 %v1479, %v987
  %v1481 = vadd.f32 %v1480, %v992
  %v1482 = vadd.f32 %v1481, %v995
  %v1483 = vadd.f32 %v1482, %v1000
  %v1484 = vadd.f32 %v1483, %v1003
  %v1485 = vadd.f32 %v1484, %v1008
  %v1486 = vadd.f32 %v1485, %v1011
  %v1487 = vadd.f32 %v1486, %v1016
  %v1488 = vadd.f32 %v1487, %v1019
  %v1489 = vadd.f32 %v1488, %v1024
  %v1490 = vadd.f32 %v1489, %v1027
  %v1491 = vadd.f32 %v1490, %v1032
  %v1492 = vadd.f32 %v1491, %v1035
  %v1493 = vadd.f32 %v1492, %v1040
  %v1494 = vadd.f32 %v1493, %v1043
  %v1495 = vadd.f32 %v1494, %v1048
  %v1496 = vadd.f32 %v1495, %v1051
  %v1497 = vadd.f32 %v1496, %v1056
  %v1498 = vadd.f32 %v1497, %v1059
  %v1499 = vadd.f32 %v1498, %v1064
  %v1500 = vadd.f32 %v1499, %v1067
  %v1501 = vadd.f32 %v1500, %v1072
  %v1502 = vadd.f32 %v1501, %v1075
  %v1503 = vadd.f32 %v1502, %v1080
  %v1504 = vadd.f32 %v1503, %v1083
  %v1505 = vadd.f32 %v1504, %v1088
  %v1506 = vadd.f32 %v1505, %v1091
  %v1507 = vadd.f32 %v1506, %v1096
  %v1508 = vadd.f32 %v1507, %v1099
  %v1509 = vadd.f32 %v1508, %v1104
  %v1510 = vadd.f32 %v1509, %v1107
  %v1511 = vadd.f32 %v1510, %v1112
  %v1512 = vadd.f32 %v1511, %v1115
  %v1513 = vadd.f32 %v1512, %v1120
  %v1514 = vadd.f32 %v1513, %v1123
  %v1515 = vadd.f32 %v1514, %v1128
  %v1516 = vadd.f32 %v1515, %v1131
  %v1517 = vrot.slane %v1516, 4
  %v1518 = vadd.f32 %v1516, %v1517
  %v1519 = vrot.slane %v1518, 2
  %v1520 = vadd.f32 %v1518, %v1519
  %v1521 = vrot.slane %v1520, 1
  %v1522 = vadd.f32 %v1520, %v1521
  %v1523 = vmul.f32 %v880, %v880
  %v1524 = vmul.f32 %v883, %v883
  %v1525 = vmul.f32 %v888, %v888
  %v1526 = vmul.f32 %v891, %v891
  %v1527 = vmul.f32 %v896, %v896
  %v1528 = vmul.f32 %v899, %v899
  %v1529 = vmul.f32 %v904, %v904
  %v1530 = vmul.f32 %v907, %v907
  %v1531 = vmul.f32 %v912, %v912
  %v1532 = vmul.f32 %v915, %v915
  %v1533 = vmul.f32 %v920, %v920
  %v1534 = vmul.f32 %v923, %v923
  %v1535 = vmul.f32 %v928, %v928
  %v1536 = vmul.f32 %v931, %v931
  %v1537 = vmul.f32 %v936, %v936
  %v1538 = vmul.f32 %v939, %v939
  %v1539 = vmul.f32 %v944, %v944
  %v1540 = vmul.f32 %v947, %v947
  %v1541 = vmul.f32 %v952, %v952
  %v1542 = vmul.f32 %v955, %v955
  %v1543 = vmul.f32 %v960, %v960
  %v1544 = vmul.f32 %v963, %v963
  %v1545 = vmul.f32 %v968, %v968
  %v1546 = vmul.f32 %v971, %v971
  %v1547 = vmul.f32 %v976, %v976
  %v1548 = vmul.f32 %v979, %v979
  %v1549 = vmul.f32 %v984, %v984
  %v1550 = vmul.f32 %v987, %v987
  %v1551 = vmul.f32 %v992, %v992
  %v1552 = vmul.f32 %v995, %v995
  %v1553 = vmul.f32 %v1000, %v1000
  %v1554 = vmul.f32 %v1003, %v1003
  %v1555 = vmul.f32 %v1008, %v1008
  %v1556 = vmul.f32 %v1011, %v1011
  %v1557 = vmul.f32 %v1016, %v1016
  %v1558 = vmul.f32 %v1019, %v1019
  %v1559 = vmul.f32 %v1024, %v1024
  %v1560 = vmul.f32 %v1027, %v1027
  %v1561 = vmul.f32 %v1032, %v1032
  %v1562 = vmul.f32 %v1035, %v1035
  %v1563 = vmul.f32 %v1040, %v1040
  %v1564 = vmul.f32 %v1043, %v1043
  %v1565 = vmul.f32 %v1048, %v1048
  %v1566 = vmul.f32 %v1051, %v1051
  %v1567 = vmul.f32 %v1056, %v1056
  %v1568 = vmul.f32 %v1059, %v1059
  %v1569 = vmul.f32 %v1064, %v1064
  %v1570 = vmul.f32 %v1067, %v1067
  %v1571 = vmul.f32 %v1072, %v1072
  %v1572 = vmul.f32 %v1075, %v1075
  %v1573 = vmul.f32 %v1080, %v1080
  %v1574 = vmul.f32 %v1083, %v1083
  %v1575 = vmul.f32 %v1088, %v1088
  %v1576 = vmul.f32 %v1091, %v1091
  %v1577 = vmul.f32 %v1096, %v1096
  %v1578 = vmul.f32 %v1099, %v1099
  %v1579 = vmul.f32 %v1104, %v1104
  %v1580 = vmul.f32 %v1107, %v1107
  %v1581 = vmul.f32 %v1112, %v1112
  %v1582 = vmul.f32 %v1115, %v1115
  %v1583 = vmul.f32 %v1120, %v1120
  %v1584 = vmul.f32 %v1123, %v1123
  %v1585 = vmul.f32 %v1128, %v1128
  %v1586 = vmul.f32 %v1131, %v1131
  %v1587 = vadd.f32 %v1523, %v1524
  %v1588 = vadd.f32 %v1587, %v1525
  %v1589 = vadd.f32 %v1588, %v1526
  %v1590 = vadd.f32 %v1589, %v1527
  %v1591 = vadd.f32 %v1590, %v1528
  %v1592 = vadd.f32 %v1591, %v1529
  %v1593 = vadd.f32 %v1592, %v1530
  %v1594 = vadd.f32 %v1593, %v1531
  %v1595 = vadd.f32 %v1594, %v1532
  %v1596 = vadd.f32 %v1595, %v1533
  %v1597 = vadd.f32 %v1596, %v1534
  %v1598 = vadd.f32 %v1597, %v1535
  %v1599 = vadd.f32 %v1598, %v1536
  %v1600 = vadd.f32 %v1599, %v1537
  %v1601 = vadd.f32 %v1600, %v1538
  %v1602 = vadd.f32 %v1601, %v1539
  %v1603 = vadd.f32 %v1602, %v1540
  %v1604 = vadd.f32 %v1603, %v1541
  %v1605 = vadd.f32 %v1604, %v1542
  %v1606 = vadd.f32 %v1605, %v1543
  %v1607 = vadd.f32 %v1606, %v1544
  %v1608 = vadd.f32 %v1607, %v1545
  %v1609 = vadd.f32 %v1608, %v1546
  %v1610 = vadd.f32 %v1609, %v1547
  %v1611 = vadd.f32 %v1610, %v1548
  %v1612 = vadd.f32 %v1611, %v1549
  %v1613 = vadd.f32 %v1612, %v1550
  %v1614 = vadd.f32 %v1613, %v1551
  %v1615 = vadd.f32 %v1614, %v1552
  %v1616 = vadd.f32 %v1615, %v1553
  %v1617 = vadd.f32 %v1616, %v1554
  %v1618 = vadd.f32 %v1617, %v1555
  %v1619 = vadd.f32 %v1618, %v1556
  %v1620 = vadd.f32 %v1619, %v1557
  %v1621 = vadd.f32 %v1620, %v1558
  %v1622 = vadd.f32 %v1621, %v1559
  %v1623 = vadd.f32 %v1622, %v1560
  %v1624 = vadd.f32 %v1623, %v1561
  %v1625 = vadd.f32 %v1624, %v1562
  %v1626 = vadd.f32 %v1625, %v1563
  %v1627 = vadd.f32 %v1626, %v1564
  %v1628 = vadd.f32 %v1627, %v1565
  %v1629 = vadd.f32 %v1628, %v1566
  %v1630 = vadd.f32 %v1629, %v1567
  %v1631 = vadd.f32 %v1630, %v1568
  %v1632 = vadd.f32 %v1631, %v1569
  %v1633 = vadd.f32 %v1632, %v1570
  %v1634 = vadd.f32 %v1633, %v1571
  %v1635 = vadd.f32 %v1634, %v1572
  %v1636 = vadd.f32 %v1635, %v1573
  %v1637 = vadd.f32 %v1636, %v1574
  %v1638 = vadd.f32 %v1637, %v1575
  %v1639 = vadd.f32 %v1638, %v1576
  %v1640 = vadd.f32 %v1639, %v1577
  %v1641 = vadd.f32 %v1640, %v1578
  %v1642 = vadd.f32 %v1641, %v1579
  %v1643 = vadd.f32 %v1642, %v1580
  %v1644 = vadd.f32 %v1643, %v1581
  %v1645 = vadd.f32 %v1644, %v1582
  %v1646 = vadd.f32 %v1645, %v1583
  %v1647 = vadd.f32 %v1646, %v1584
  %v1648 = vadd.f32 %v1647, %v1585
  %v1649 = vadd.f32 %v1648, %v1586
  %v1650 = vrot.slane %v1649, 4
  %v1651 = vadd.f32 %v1649, %v1650
  %v1652 = vrot.slane %v1651, 2
  %v1653 = vadd.f32 %v1651, %v1652
  %v1654 = vrot.slane %v1653, 1
  %v1655 = vadd.f32 %v1653, %v1654
  %vm1656 = vcmask 1040384
  %v1657 = vsel %vm1656, %v1522, %v1655
  %1658 = vst [vmem:[%s8] sm:$0x3] %v1657
  %v1659 = vld [vmem:[%s4] sm:$0xf]
  %v1660 = vld [vmem:[%s4 + $0x4] sm:$0xf]
  %v1661 = vld [vmem:[%s4 + $0x8] sm:$0xf]
  %v1662 = vld [vmem:[%s4 + $0xc] sm:$0xf]
  %v1663 = vld [vmem:[%s4 + $0x10] sm:$0xf]
  %v1664 = vld [vmem:[%s4 + $0x14] sm:$0xf]
  %v1665 = vld [vmem:[%s4 + $0x18] sm:$0xf]
  %v1666 = vld [vmem:[%s4 + $0x1c] sm:$0xf]
  %v1667 = vld [vmem:[%s4 + $0x20] sm:$0xf]
  %v1668 = vld [vmem:[%s4 + $0x24] sm:$0xf]
  %v1669 = vld [vmem:[%s4 + $0x28] sm:$0xf]
  %v1670 = vld [vmem:[%s4 + $0x2c] sm:$0xf]
  %v1671 = vld [vmem:[%s4 + $0x30] sm:$0xf]
  %v1672 = vld [vmem:[%s4 + $0x34] sm:$0xf]
  %v1673 = vld [vmem:[%s4 + $0x38] sm:$0xf]
  %v1674 = vld [vmem:[%s4 + $0x3c] sm:$0xf]
  %v1675 = vld [vmem:[%s4 + $0x40] sm:$0xf]
  %v1676 = vld [vmem:[%s4 + $0x44] sm:$0xf]
  %v1677 = vld [vmem:[%s4 + $0x48] sm:$0xf]
  %v1678 = vld [vmem:[%s4 + $0x4c] sm:$0xf]
  %v1679 = vld [vmem:[%s4 + $0x50] sm:$0xf]
  %v1680 = vld [vmem:[%s4 + $0x54] sm:$0xf]
  %v1681 = vld [vmem:[%s4 + $0x58] sm:$0xf]
  %v1682 = vld [vmem:[%s4 + $0x5c] sm:$0xf]
  %v1683 = vld [vmem:[%s4 + $0x60] sm:$0xf]
  %v1684 = vld [vmem:[%s4 + $0x64] sm:$0xf]
  %v1685 = vld [vmem:[%s4 + $0x68] sm:$0xf]
  %v1686 = vld [vmem:[%s4 + $0x6c] sm:$0xf]
  %v1687 = vld [vmem:[%s4 + $0x70] sm:$0xf]
  %v1688 = vld [vmem:[%s4 + $0x74] sm:$0xf]
  %v1689 = vld [vmem:[%s4 + $0x78] sm:$0xf]
  %v1690 = vld [vmem:[%s4 + $0x7c] sm:$0xf]
  %v1691 = vld [vmem:[%s4 + $0x80] sm:$0xf]
  %v1692 = vld [vmem:[%s4 + $0x84] sm:$0xf]
  %v1693 = vld [vmem:[%s4 + $0x88] sm:$0xf]
  %v1694 = vld [vmem:[%s4 + $0x8c] sm:$0xf]
  %v1695 = vld [vmem:[%s4 + $0x90] sm:$0xf]
  %v1696 = vld [vmem:[%s4 + $0x94] sm:$0xf]
  %v1697 = vld [vmem:[%s4 + $0x98] sm:$0xf]
  %v1698 = vld [vmem:[%s4 + $0x9c] sm:$0xf]
  %v1699 = vld [vmem:[%s4 + $0xa0] sm:$0xf]
  %v1700 = vld [vmem:[%s4 + $0xa4] sm:$0xf]
  %v1701 = vld [vmem:[%s4 + $0xa8] sm:$0xf]
  %v1702 = vld [vmem:[%s4 + $0xac] sm:$0xf]
  %v1703 = vld [vmem:[%s4 + $0xb0] sm:$0xf]
  %v1704 = vld [vmem:[%s4 + $0xb4] sm:$0xf]
  %v1705 = vld [vmem:[%s4 + $0xb8] sm:$0xf]
  %v1706 = vld [vmem:[%s4 + $0xbc] sm:$0xf]
  %v1707 = vld [vmem:[%s4 + $0xc0] sm:$0xf]
  %v1708 = vld [vmem:[%s4 + $0xc4] sm:$0xf]
  %v1709 = vld [vmem:[%s4 + $0xc8] sm:$0xf]
  %v1710 = vld [vmem:[%s4 + $0xcc] sm:$0xf]
  %v1711 = vld [vmem:[%s4 + $0xd0] sm:$0xf]
  %v1712 = vld [vmem:[%s4 + $0xd4] sm:$0xf]
  %v1713 = vld [vmem:[%s4 + $0xd8] sm:$0xf]
  %v1714 = vld [vmem:[%s4 + $0xdc] sm:$0xf]
  %v1715 = vld [vmem:[%s4 + $0xe0] sm:$0xf]
  %v1716 = vld [vmem:[%s4 + $0xe4] sm:$0xf]
  %v1717 = vld [vmem:[%s4 + $0xe8] sm:$0xf]
  %v1718 = vld [vmem:[%s4 + $0xec] sm:$0xf]
  %v1719 = vld [vmem:[%s4 + $0xf0] sm:$0xf]
  %v1720 = vld [vmem:[%s4 + $0xf4] sm:$0xf]
  %v1721 = vld [vmem:[%s4 + $0xf8] sm:$0xf]
  %v1722 = vld [vmem:[%s4 + $0xfc] sm:$0xf]
  %v1723 = vld [vmem:[%s5] sm:$0xf]
  %v1724 = vld [vmem:[%s5 + $0x4] sm:$0xf]
  %v1725 = vld [vmem:[%s5 + $0x8] sm:$0xf]
  %v1726 = vld [vmem:[%s5 + $0xc] sm:$0xf]
  %v1727 = vld [vmem:[%s5 + $0x10] sm:$0xf]
  %v1728 = vld [vmem:[%s5 + $0x14] sm:$0xf]
  %v1729 = vld [vmem:[%s5 + $0x18] sm:$0xf]
  %v1730 = vld [vmem:[%s5 + $0x1c] sm:$0xf]
  %v1731 = vld [vmem:[%s5 + $0x20] sm:$0xf]
  %v1732 = vld [vmem:[%s5 + $0x24] sm:$0xf]
  %v1733 = vld [vmem:[%s5 + $0x28] sm:$0xf]
  %v1734 = vld [vmem:[%s5 + $0x2c] sm:$0xf]
  %v1735 = vld [vmem:[%s5 + $0x30] sm:$0xf]
  %v1736 = vld [vmem:[%s5 + $0x34] sm:$0xf]
  %v1737 = vld [vmem:[%s5 + $0x38] sm:$0xf]
  %v1738 = vld [vmem:[%s5 + $0x3c] sm:$0xf]
  %v1803 = vunpack.c.l.b16 %v1659
  %v1804 = vunpack.c.l.b16 %v1660
  %v1805 = vunpack.c.l.b16 %v1661
  %v1806 = vunpack.c.l.b16 %v1662
  %v1807 = vunpack.c.l.b16 %v1663
  %v1808 = vunpack.c.l.b16 %v1664
  %v1809 = vunpack.c.l.b16 %v1665
  %v1810 = vunpack.c.l.b16 %v1666
  %v1811 = vunpack.c.l.b16 %v1667
  %v1812 = vunpack.c.l.b16 %v1668
  %v1813 = vunpack.c.l.b16 %v1669
  %v1814 = vunpack.c.l.b16 %v1670
  %v1815 = vunpack.c.l.b16 %v1671
  %v1816 = vunpack.c.l.b16 %v1672
  %v1817 = vunpack.c.l.b16 %v1673
  %v1818 = vunpack.c.l.b16 %v1674
  %v1819 = vunpack.c.l.b16 %v1675
  %v1820 = vunpack.c.l.b16 %v1676
  %v1821 = vunpack.c.l.b16 %v1677
  %v1822 = vunpack.c.l.b16 %v1678
  %v1823 = vunpack.c.l.b16 %v1679
  %v1824 = vunpack.c.l.b16 %v1680
  %v1825 = vunpack.c.l.b16 %v1681
  %v1826 = vunpack.c.l.b16 %v1682
  %v1827 = vunpack.c.l.b16 %v1683
  %v1828 = vunpack.c.l.b16 %v1684
  %v1829 = vunpack.c.l.b16 %v1685
  %v1830 = vunpack.c.l.b16 %v1686
  %v1831 = vunpack.c.l.b16 %v1687
  %v1832 = vunpack.c.l.b16 %v1688
  %v1833 = vunpack.c.l.b16 %v1689
  %v1834 = vunpack.c.l.b16 %v1690
  %v1835 = vunpack.c.l.b16 %v1691
  %v1836 = vunpack.c.l.b16 %v1692
  %v1837 = vunpack.c.l.b16 %v1693
  %v1838 = vunpack.c.l.b16 %v1694
  %v1839 = vunpack.c.l.b16 %v1695
  %v1840 = vunpack.c.l.b16 %v1696
  %v1841 = vunpack.c.l.b16 %v1697
  %v1842 = vunpack.c.l.b16 %v1698
  %v1843 = vunpack.c.l.b16 %v1699
  %v1844 = vunpack.c.l.b16 %v1700
  %v1845 = vunpack.c.l.b16 %v1701
  %v1846 = vunpack.c.l.b16 %v1702
  %v1847 = vunpack.c.l.b16 %v1703
  %v1848 = vunpack.c.l.b16 %v1704
  %v1849 = vunpack.c.l.b16 %v1705
  %v1850 = vunpack.c.l.b16 %v1706
  %v1851 = vunpack.c.l.b16 %v1707
  %v1852 = vunpack.c.l.b16 %v1708
  %v1853 = vunpack.c.l.b16 %v1709
  %v1854 = vunpack.c.l.b16 %v1710
  %v1855 = vunpack.c.l.b16 %v1711
  %v1856 = vunpack.c.l.b16 %v1712
  %v1857 = vunpack.c.l.b16 %v1713
  %v1858 = vunpack.c.l.b16 %v1714
  %v1859 = vunpack.c.l.b16 %v1715
  %v1860 = vunpack.c.l.b16 %v1716
  %v1861 = vunpack.c.l.b16 %v1717
  %v1862 = vunpack.c.l.b16 %v1718
  %v1863 = vunpack.c.l.b16 %v1719
  %v1864 = vunpack.c.l.b16 %v1720
  %v1865 = vunpack.c.l.b16 %v1721
  %v1866 = vunpack.c.l.b16 %v1722
  %v1867 = vpack.c.b16 %v1804, %v1803
  %v1868 = vpack.c.b16 %v1806, %v1805
  %v1869 = vpack.c.b16 %v1808, %v1807
  %v1870 = vpack.c.b16 %v1810, %v1809
  %v1871 = vpack.c.b16 %v1812, %v1811
  %v1872 = vpack.c.b16 %v1814, %v1813
  %v1873 = vpack.c.b16 %v1816, %v1815
  %v1874 = vpack.c.b16 %v1818, %v1817
  %v1875 = vpack.c.b16 %v1820, %v1819
  %v1876 = vpack.c.b16 %v1822, %v1821
  %v1877 = vpack.c.b16 %v1824, %v1823
  %v1878 = vpack.c.b16 %v1826, %v1825
  %v1879 = vpack.c.b16 %v1828, %v1827
  %v1880 = vpack.c.b16 %v1830, %v1829
  %v1881 = vpack.c.b16 %v1832, %v1831
  %v1882 = vpack.c.b16 %v1834, %v1833
  %v1883 = vpack.c.b16 %v1836, %v1835
  %v1884 = vpack.c.b16 %v1838, %v1837
  %v1885 = vpack.c.b16 %v1840, %v1839
  %v1886 = vpack.c.b16 %v1842, %v1841
  %v1887 = vpack.c.b16 %v1844, %v1843
  %v1888 = vpack.c.b16 %v1846, %v1845
  %v1889 = vpack.c.b16 %v1848, %v1847
  %v1890 = vpack.c.b16 %v1850, %v1849
  %v1891 = vpack.c.b16 %v1852, %v1851
  %v1892 = vpack.c.b16 %v1854, %v1853
  %v1893 = vpack.c.b16 %v1856, %v1855
  %v1894 = vpack.c.b16 %v1858, %v1857
  %v1895 = vpack.c.b16 %v1860, %v1859
  %v1896 = vpack.c.b16 %v1862, %v1861
  %v1897 = vpack.c.b16 %v1864, %v1863
  %v1898 = vpack.c.b16 %v1866, %v1865
  %v1947 = vunpack.c.l.b16 %v1723
  %v1948 = vunpack.c.l.b16 %v1724
  %v1949 = vunpack.c.l.b16 %v1725
  %v1950 = vunpack.c.l.b16 %v1726
  %v1951 = vunpack.c.l.b16 %v1727
  %v1952 = vunpack.c.l.b16 %v1728
  %v1953 = vunpack.c.l.b16 %v1729
  %v1954 = vunpack.c.l.b16 %v1730
  %v1955 = vunpack.c.l.b16 %v1731
  %v1956 = vunpack.c.l.b16 %v1732
  %v1957 = vunpack.c.l.b16 %v1733
  %v1958 = vunpack.c.l.b16 %v1734
  %v1959 = vunpack.c.l.b16 %v1735
  %v1960 = vunpack.c.l.b16 %v1736
  %v1961 = vunpack.c.l.b16 %v1737
  %v1962 = vunpack.c.l.b16 %v1738
  %v1963 = vpack.c.b16 %v1948, %v1947
  %v1964 = vpack.c.b16 %v1950, %v1949
  %v1965 = vpack.c.b16 %v1952, %v1951
  %v1966 = vpack.c.b16 %v1954, %v1953
  %v1967 = vpack.c.b16 %v1956, %v1955
  %v1968 = vpack.c.b16 %v1958, %v1957
  %v1969 = vpack.c.b16 %v1960, %v1959
  %v1970 = vpack.c.b16 %v1962, %v1961
  %1979 = vmatprep.subr.bf16.mxu0 0
  %1980 = vmatpush1.bf16.msra.mxu0 %v1963
  %1981 = vmatprep.subr.bf16.mxu0 0
  %1982 = vmatpush1.bf16.msra.mxu0 %v1964
  %1983 = vmatprep.subr.bf16.mxu0 0
  %1984 = vmatpush1.bf16.msra.mxu0 %v1965
  %1985 = vmatprep.subr.bf16.mxu0 0
  %1986 = vmatpush1.bf16.msra.mxu0 %v1966
  %1987 = vmatprep.subr.bf16.mxu0 0
  %1988 = vmatpush1.bf16.msra.mxu0 %v1967
  %1989 = vmatprep.subr.bf16.mxu0 0
  %1990 = vmatpush1.bf16.msra.mxu0 %v1968
  %1991 = vmatprep.subr.bf16.mxu0 0
  %1992 = vmatpush1.bf16.msra.mxu0 %v1969
  %1993 = vmatprep.subr.bf16.mxu0 0
  %1994 = vmatpush1.bf16.msra.mxu0 %v1970
  %1995 = vmatprep.subr.bf16.mxu0 0
  %1996 = vmatpush1.bf16.msra.mxu0 0
  %1997 = vmatprep.subr.bf16.mxu0 0
  %1998 = vmatpush1.bf16.msra.mxu0 0
  %1999 = vmatprep.subr.bf16.mxu0 0
  %2000 = vmatpush1.bf16.msra.mxu0 0
  %2001 = vmatprep.subr.bf16.mxu0 0
  %2002 = vmatpush1.bf16.msra.mxu0 0
  %2003 = vmatprep.subr.bf16.mxu0 0
  %2004 = vmatpush1.bf16.msra.mxu0 0
  %2005 = vmatprep.subr.bf16.mxu0 0
  %2006 = vmatpush1.bf16.msra.mxu0 0
  %2007 = vmatprep.subr.bf16.mxu0 0
  %2008 = vmatpush1.bf16.msra.mxu0 0
  %2009 = vmatprep.subr.bf16.mxu0 0
  %2010 = vmatpush1.bf16.msra.mxu0 0
  %2011 = vmatprep.mubr.bf16.mxu0 0
  %2012 = vmatmul.mubr.bf16.gmra.mrb[0].mxu0 %v1867
  %v2013 = vpop.f32.mrb[0].mxu0
  %v2014 = vadd.f32 0.0, %v2013
  %v2015 = vpop.f32.mrb[0].mxu0
  %v2016 = vpop.f32.mrb[0].mxu0
  %v2017 = vadd.f32 0.0, %v2016
  %v2018 = vpop.f32.mrb[0].mxu0
  %2019 = vmatprep.mubr.bf16.mxu0 0
  %2020 = vmatmul.mubr.bf16.gmra.mrb[0].mxu0 %v1868
  %v2021 = vpop.f32.mrb[0].mxu0
  %v2022 = vadd.f32 0.0, %v2021
  %v2023 = vpop.f32.mrb[0].mxu0
  %v2024 = vpop.f32.mrb[0].mxu0
  %v2025 = vadd.f32 0.0, %v2024
  %v2026 = vpop.f32.mrb[0].mxu0
  %2027 = vmatprep.mubr.bf16.mxu0 0
  %2028 = vmatmul.mubr.bf16.gmra.mrb[0].mxu0 %v1869
  %v2029 = vpop.f32.mrb[0].mxu0
  %v2030 = vadd.f32 0.0, %v2029
  %v2031 = vpop.f32.mrb[0].mxu0
  %v2032 = vpop.f32.mrb[0].mxu0
  %v2033 = vadd.f32 0.0, %v2032
  %v2034 = vpop.f32.mrb[0].mxu0
  %2035 = vmatprep.mubr.bf16.mxu0 0
  %2036 = vmatmul.mubr.bf16.gmra.mrb[0].mxu0 %v1870
  %v2037 = vpop.f32.mrb[0].mxu0
  %v2038 = vadd.f32 0.0, %v2037
  %v2039 = vpop.f32.mrb[0].mxu0
  %v2040 = vpop.f32.mrb[0].mxu0
  %v2041 = vadd.f32 0.0, %v2040
  %v2042 = vpop.f32.mrb[0].mxu0
  %2043 = vmatprep.mubr.bf16.mxu0 0
  %2044 = vmatmul.mubr.bf16.gmra.mrb[0].mxu0 %v1871
  %v2045 = vpop.f32.mrb[0].mxu0
  %v2046 = vadd.f32 0.0, %v2045
  %v2047 = vpop.f32.mrb[0].mxu0
  %v2048 = vpop.f32.mrb[0].mxu0
  %v2049 = vadd.f32 0.0, %v2048
  %v2050 = vpop.f32.mrb[0].mxu0
  %2051 = vmatprep.mubr.bf16.mxu0 0
  %2052 = vmatmul.mubr.bf16.gmra.mrb[0].mxu0 %v1872
  %v2053 = vpop.f32.mrb[0].mxu0
  %v2054 = vadd.f32 0.0, %v2053
  %v2055 = vpop.f32.mrb[0].mxu0
  %v2056 = vpop.f32.mrb[0].mxu0
  %v2057 = vadd.f32 0.0, %v2056
  %v2058 = vpop.f32.mrb[0].mxu0
  %2059 = vmatprep.mubr.bf16.mxu0 0
  %2060 = vmatmul.mubr.bf16.gmra.mrb[0].mxu0 %v1873
  %v2061 = vpop.f32.mrb[0].mxu0
  %v2062 = vadd.f32 0.0, %v2061
  %v2063 = vpop.f32.mrb[0].mxu0
  %v2064 = vpop.f32.mrb[0].mxu0
  %v2065 = vadd.f32 0.0, %v2064
  %v2066 = vpop.f32.mrb[0].mxu0
  %2067 = vmatprep.mubr.bf16.mxu0 0
  %2068 = vmatmul.mubr.bf16.gmra.mrb[0].mxu0 %v1874
  %v2069 = vpop.f32.mrb[0].mxu0
  %v2070 = vadd.f32 0.0, %v2069
  %v2071 = vpop.f32.mrb[0].mxu0
  %v2072 = vpop.f32.mrb[0].mxu0
  %v2073 = vadd.f32 0.0, %v2072
  %v2074 = vpop.f32.mrb[0].mxu0
  %2075 = vmatprep.mubr.bf16.mxu0 0
  %2076 = vmatmul.mubr.bf16.gmra.mrb[0].mxu0 %v1875
  %v2077 = vpop.f32.mrb[0].mxu0
  %v2078 = vadd.f32 0.0, %v2077
  %v2079 = vpop.f32.mrb[0].mxu0
  %v2080 = vpop.f32.mrb[0].mxu0
  %v2081 = vadd.f32 0.0, %v2080
  %v2082 = vpop.f32.mrb[0].mxu0
  %2083 = vmatprep.mubr.bf16.mxu0 0
  %2084 = vmatmul.mubr.bf16.gmra.mrb[0].mxu0 %v1876
  %v2085 = vpop.f32.mrb[0].mxu0
  %v2086 = vadd.f32 0.0, %v2085
  %v2087 = vpop.f32.mrb[0].mxu0
  %v2088 = vpop.f32.mrb[0].mxu0
  %v2089 = vadd.f32 0.0, %v2088
  %v2090 = vpop.f32.mrb[0].mxu0
  %2091 = vmatprep.mubr.bf16.mxu0 0
  %2092 = vmatmul.mubr.bf16.gmra.mrb[0].mxu0 %v1877
  %v2093 = vpop.f32.mrb[0].mxu0
  %v2094 = vadd.f32 0.0, %v2093
  %v2095 = vpop.f32.mrb[0].mxu0
  %v2096 = vpop.f32.mrb[0].mxu0
  %v2097 = vadd.f32 0.0, %v2096
  %v2098 = vpop.f32.mrb[0].mxu0
  %2099 = vmatprep.mubr.bf16.mxu0 0
  %2100 = vmatmul.mubr.bf16.gmra.mrb[0].mxu0 %v1878
  %v2101 = vpop.f32.mrb[0].mxu0
  %v2102 = vadd.f32 0.0, %v2101
  %v2103 = vpop.f32.mrb[0].mxu0
  %v2104 = vpop.f32.mrb[0].mxu0
  %v2105 = vadd.f32 0.0, %v2104
  %v2106 = vpop.f32.mrb[0].mxu0
  %2107 = vmatprep.mubr.bf16.mxu0 0
  %2108 = vmatmul.mubr.bf16.gmra.mrb[0].mxu0 %v1879
  %v2109 = vpop.f32.mrb[0].mxu0
  %v2110 = vadd.f32 0.0, %v2109
  %v2111 = vpop.f32.mrb[0].mxu0
  %v2112 = vpop.f32.mrb[0].mxu0
  %v2113 = vadd.f32 0.0, %v2112
  %v2114 = vpop.f32.mrb[0].mxu0
  %2115 = vmatprep.mubr.bf16.mxu0 0
  %2116 = vmatmul.mubr.bf16.gmra.mrb[0].mxu0 %v1880
  %v2117 = vpop.f32.mrb[0].mxu0
  %v2118 = vadd.f32 0.0, %v2117
  %v2119 = vpop.f32.mrb[0].mxu0
  %v2120 = vpop.f32.mrb[0].mxu0
  %v2121 = vadd.f32 0.0, %v2120
  %v2122 = vpop.f32.mrb[0].mxu0
  %2123 = vmatprep.mubr.bf16.mxu0 0
  %2124 = vmatmul.mubr.bf16.gmra.mrb[0].mxu0 %v1881
  %v2125 = vpop.f32.mrb[0].mxu0
  %v2126 = vadd.f32 0.0, %v2125
  %v2127 = vpop.f32.mrb[0].mxu0
  %v2128 = vpop.f32.mrb[0].mxu0
  %v2129 = vadd.f32 0.0, %v2128
  %v2130 = vpop.f32.mrb[0].mxu0
  %2131 = vmatprep.mubr.bf16.mxu0 0
  %2132 = vmatmul.mubr.bf16.gmra.mrb[0].mxu0 %v1882
  %v2133 = vpop.f32.mrb[0].mxu0
  %v2134 = vadd.f32 0.0, %v2133
  %v2135 = vpop.f32.mrb[0].mxu0
  %v2136 = vpop.f32.mrb[0].mxu0
  %v2137 = vadd.f32 0.0, %v2136
  %v2138 = vpop.f32.mrb[0].mxu0
  %2139 = vmatprep.mubr.bf16.mxu0 0
  %2140 = vmatmul.mubr.bf16.gmra.mrb[0].mxu0 %v1883
  %v2141 = vpop.f32.mrb[0].mxu0
  %v2142 = vadd.f32 0.0, %v2141
  %v2143 = vpop.f32.mrb[0].mxu0
  %v2144 = vpop.f32.mrb[0].mxu0
  %v2145 = vadd.f32 0.0, %v2144
  %v2146 = vpop.f32.mrb[0].mxu0
  %2147 = vmatprep.mubr.bf16.mxu0 0
  %2148 = vmatmul.mubr.bf16.gmra.mrb[0].mxu0 %v1884
  %v2149 = vpop.f32.mrb[0].mxu0
  %v2150 = vadd.f32 0.0, %v2149
  %v2151 = vpop.f32.mrb[0].mxu0
  %v2152 = vpop.f32.mrb[0].mxu0
  %v2153 = vadd.f32 0.0, %v2152
  %v2154 = vpop.f32.mrb[0].mxu0
  %2155 = vmatprep.mubr.bf16.mxu0 0
  %2156 = vmatmul.mubr.bf16.gmra.mrb[0].mxu0 %v1885
  %v2157 = vpop.f32.mrb[0].mxu0
  %v2158 = vadd.f32 0.0, %v2157
  %v2159 = vpop.f32.mrb[0].mxu0
  %v2160 = vpop.f32.mrb[0].mxu0
  %v2161 = vadd.f32 0.0, %v2160
  %v2162 = vpop.f32.mrb[0].mxu0
  %2163 = vmatprep.mubr.bf16.mxu0 0
  %2164 = vmatmul.mubr.bf16.gmra.mrb[0].mxu0 %v1886
  %v2165 = vpop.f32.mrb[0].mxu0
  %v2166 = vadd.f32 0.0, %v2165
  %v2167 = vpop.f32.mrb[0].mxu0
  %v2168 = vpop.f32.mrb[0].mxu0
  %v2169 = vadd.f32 0.0, %v2168
  %v2170 = vpop.f32.mrb[0].mxu0
  %2171 = vmatprep.mubr.bf16.mxu0 0
  %2172 = vmatmul.mubr.bf16.gmra.mrb[0].mxu0 %v1887
  %v2173 = vpop.f32.mrb[0].mxu0
  %v2174 = vadd.f32 0.0, %v2173
  %v2175 = vpop.f32.mrb[0].mxu0
  %v2176 = vpop.f32.mrb[0].mxu0
  %v2177 = vadd.f32 0.0, %v2176
  %v2178 = vpop.f32.mrb[0].mxu0
  %2179 = vmatprep.mubr.bf16.mxu0 0
  %2180 = vmatmul.mubr.bf16.gmra.mrb[0].mxu0 %v1888
  %v2181 = vpop.f32.mrb[0].mxu0
  %v2182 = vadd.f32 0.0, %v2181
  %v2183 = vpop.f32.mrb[0].mxu0
  %v2184 = vpop.f32.mrb[0].mxu0
  %v2185 = vadd.f32 0.0, %v2184
  %v2186 = vpop.f32.mrb[0].mxu0
  %2187 = vmatprep.mubr.bf16.mxu0 0
  %2188 = vmatmul.mubr.bf16.gmra.mrb[0].mxu0 %v1889
  %v2189 = vpop.f32.mrb[0].mxu0
  %v2190 = vadd.f32 0.0, %v2189
  %v2191 = vpop.f32.mrb[0].mxu0
  %v2192 = vpop.f32.mrb[0].mxu0
  %v2193 = vadd.f32 0.0, %v2192
  %v2194 = vpop.f32.mrb[0].mxu0
  %2195 = vmatprep.mubr.bf16.mxu0 0
  %2196 = vmatmul.mubr.bf16.gmra.mrb[0].mxu0 %v1890
  %v2197 = vpop.f32.mrb[0].mxu0
  %v2198 = vadd.f32 0.0, %v2197
  %v2199 = vpop.f32.mrb[0].mxu0
  %v2200 = vpop.f32.mrb[0].mxu0
  %v2201 = vadd.f32 0.0, %v2200
  %v2202 = vpop.f32.mrb[0].mxu0
  %2203 = vmatprep.mubr.bf16.mxu0 0
  %2204 = vmatmul.mubr.bf16.gmra.mrb[0].mxu0 %v1891
  %v2205 = vpop.f32.mrb[0].mxu0
  %v2206 = vadd.f32 0.0, %v2205
  %v2207 = vpop.f32.mrb[0].mxu0
  %v2208 = vpop.f32.mrb[0].mxu0
  %v2209 = vadd.f32 0.0, %v2208
  %v2210 = vpop.f32.mrb[0].mxu0
  %2211 = vmatprep.mubr.bf16.mxu0 0
  %2212 = vmatmul.mubr.bf16.gmra.mrb[0].mxu0 %v1892
  %v2213 = vpop.f32.mrb[0].mxu0
  %v2214 = vadd.f32 0.0, %v2213
  %v2215 = vpop.f32.mrb[0].mxu0
  %v2216 = vpop.f32.mrb[0].mxu0
  %v2217 = vadd.f32 0.0, %v2216
  %v2218 = vpop.f32.mrb[0].mxu0
  %2219 = vmatprep.mubr.bf16.mxu0 0
  %2220 = vmatmul.mubr.bf16.gmra.mrb[0].mxu0 %v1893
  %v2221 = vpop.f32.mrb[0].mxu0
  %v2222 = vadd.f32 0.0, %v2221
  %v2223 = vpop.f32.mrb[0].mxu0
  %v2224 = vpop.f32.mrb[0].mxu0
  %v2225 = vadd.f32 0.0, %v2224
  %v2226 = vpop.f32.mrb[0].mxu0
  %2227 = vmatprep.mubr.bf16.mxu0 0
  %2228 = vmatmul.mubr.bf16.gmra.mrb[0].mxu0 %v1894
  %v2229 = vpop.f32.mrb[0].mxu0
  %v2230 = vadd.f32 0.0, %v2229
  %v2231 = vpop.f32.mrb[0].mxu0
  %v2232 = vpop.f32.mrb[0].mxu0
  %v2233 = vadd.f32 0.0, %v2232
  %v2234 = vpop.f32.mrb[0].mxu0
  %2235 = vmatprep.mubr.bf16.mxu0 0
  %2236 = vmatmul.mubr.bf16.gmra.mrb[0].mxu0 %v1895
  %v2237 = vpop.f32.mrb[0].mxu0
  %v2238 = vadd.f32 0.0, %v2237
  %v2239 = vpop.f32.mrb[0].mxu0
  %v2240 = vpop.f32.mrb[0].mxu0
  %v2241 = vadd.f32 0.0, %v2240
  %v2242 = vpop.f32.mrb[0].mxu0
  %2243 = vmatprep.mubr.bf16.mxu0 0
  %2244 = vmatmul.mubr.bf16.gmra.mrb[0].mxu0 %v1896
  %v2245 = vpop.f32.mrb[0].mxu0
  %v2246 = vadd.f32 0.0, %v2245
  %v2247 = vpop.f32.mrb[0].mxu0
  %v2248 = vpop.f32.mrb[0].mxu0
  %v2249 = vadd.f32 0.0, %v2248
  %v2250 = vpop.f32.mrb[0].mxu0
  %2251 = vmatprep.mubr.bf16.mxu0 0
  %2252 = vmatmul.mubr.bf16.gmra.mrb[0].mxu0 %v1897
  %v2253 = vpop.f32.mrb[0].mxu0
  %v2254 = vadd.f32 0.0, %v2253
  %v2255 = vpop.f32.mrb[0].mxu0
  %v2256 = vpop.f32.mrb[0].mxu0
  %v2257 = vadd.f32 0.0, %v2256
  %v2258 = vpop.f32.mrb[0].mxu0
  %2259 = vmatprep.mubr.bf16.mxu0 0
  %2260 = vmatmul.mubr.bf16.gmra.mrb[0].mxu0 %v1898
  %v2261 = vpop.f32.mrb[0].mxu0
  %v2262 = vadd.f32 0.0, %v2261
  %v2263 = vpop.f32.mrb[0].mxu0
  %v2264 = vpop.f32.mrb[0].mxu0
  %v2265 = vadd.f32 0.0, %v2264
  %v2266 = vpop.f32.mrb[0].mxu0
  %2267 = vdwg.mxu0
  %v2268 = vpack.c.bf16 %v2017, %v2014
  %v2269 = vpack.c.bf16 %v2025, %v2022
  %v2270 = vpack.c.bf16 %v2033, %v2030
  %v2271 = vpack.c.bf16 %v2041, %v2038
  %v2272 = vpack.c.bf16 %v2049, %v2046
  %v2273 = vpack.c.bf16 %v2057, %v2054
  %v2274 = vpack.c.bf16 %v2065, %v2062
  %v2275 = vpack.c.bf16 %v2073, %v2070
  %v2276 = vpack.c.bf16 %v2081, %v2078
  %v2277 = vpack.c.bf16 %v2089, %v2086
  %v2278 = vpack.c.bf16 %v2097, %v2094
  %v2279 = vpack.c.bf16 %v2105, %v2102
  %v2280 = vpack.c.bf16 %v2113, %v2110
  %v2281 = vpack.c.bf16 %v2121, %v2118
  %v2282 = vpack.c.bf16 %v2129, %v2126
  %v2283 = vpack.c.bf16 %v2137, %v2134
  %v2284 = vpack.c.bf16 %v2145, %v2142
  %v2285 = vpack.c.bf16 %v2153, %v2150
  %v2286 = vpack.c.bf16 %v2161, %v2158
  %v2287 = vpack.c.bf16 %v2169, %v2166
  %v2288 = vpack.c.bf16 %v2177, %v2174
  %v2289 = vpack.c.bf16 %v2185, %v2182
  %v2290 = vpack.c.bf16 %v2193, %v2190
  %v2291 = vpack.c.bf16 %v2201, %v2198
  %v2292 = vpack.c.bf16 %v2209, %v2206
  %v2293 = vpack.c.bf16 %v2217, %v2214
  %v2294 = vpack.c.bf16 %v2225, %v2222
  %v2295 = vpack.c.bf16 %v2233, %v2230
  %v2296 = vpack.c.bf16 %v2241, %v2238
  %v2297 = vpack.c.bf16 %v2249, %v2246
  %v2298 = vpack.c.bf16 %v2257, %v2254
  %v2299 = vpack.c.bf16 %v2265, %v2262
  %v2332 = vunpack.c.l.b16 %v2268
  %v2333 = vunpack.c.h.b16 %v2268
  %v2334 = vunpack.c.l.b16 %v2269
  %v2335 = vunpack.c.h.b16 %v2269
  %v2336 = vunpack.c.l.b16 %v2270
  %v2337 = vunpack.c.h.b16 %v2270
  %v2338 = vunpack.c.l.b16 %v2271
  %v2339 = vunpack.c.h.b16 %v2271
  %v2340 = vunpack.c.l.b16 %v2272
  %v2341 = vunpack.c.h.b16 %v2272
  %v2342 = vunpack.c.l.b16 %v2273
  %v2343 = vunpack.c.h.b16 %v2273
  %v2344 = vunpack.c.l.b16 %v2274
  %v2345 = vunpack.c.h.b16 %v2274
  %v2346 = vunpack.c.l.b16 %v2275
  %v2347 = vunpack.c.h.b16 %v2275
  %v2348 = vunpack.c.l.b16 %v2276
  %v2349 = vunpack.c.h.b16 %v2276
  %v2350 = vunpack.c.l.b16 %v2277
  %v2351 = vunpack.c.h.b16 %v2277
  %v2352 = vunpack.c.l.b16 %v2278
  %v2353 = vunpack.c.h.b16 %v2278
  %v2354 = vunpack.c.l.b16 %v2279
  %v2355 = vunpack.c.h.b16 %v2279
  %v2356 = vunpack.c.l.b16 %v2280
  %v2357 = vunpack.c.h.b16 %v2280
  %v2358 = vunpack.c.l.b16 %v2281
  %v2359 = vunpack.c.h.b16 %v2281
  %v2360 = vunpack.c.l.b16 %v2282
  %v2361 = vunpack.c.h.b16 %v2282
  %v2362 = vunpack.c.l.b16 %v2283
  %v2363 = vunpack.c.h.b16 %v2283
  %v2364 = vunpack.c.l.b16 %v2284
  %v2365 = vunpack.c.h.b16 %v2284
  %v2366 = vunpack.c.l.b16 %v2285
  %v2367 = vunpack.c.h.b16 %v2285
  %v2368 = vunpack.c.l.b16 %v2286
  %v2369 = vunpack.c.h.b16 %v2286
  %v2370 = vunpack.c.l.b16 %v2287
  %v2371 = vunpack.c.h.b16 %v2287
  %v2372 = vunpack.c.l.b16 %v2288
  %v2373 = vunpack.c.h.b16 %v2288
  %v2374 = vunpack.c.l.b16 %v2289
  %v2375 = vunpack.c.h.b16 %v2289
  %v2376 = vunpack.c.l.b16 %v2290
  %v2377 = vunpack.c.h.b16 %v2290
  %v2378 = vunpack.c.l.b16 %v2291
  %v2379 = vunpack.c.h.b16 %v2291
  %v2380 = vunpack.c.l.b16 %v2292
  %v2381 = vunpack.c.h.b16 %v2292
  %v2382 = vunpack.c.l.b16 %v2293
  %v2383 = vunpack.c.h.b16 %v2293
  %v2384 = vunpack.c.l.b16 %v2294
  %v2385 = vunpack.c.h.b16 %v2294
  %v2386 = vunpack.c.l.b16 %v2295
  %v2387 = vunpack.c.h.b16 %v2295
  %v2388 = vunpack.c.l.b16 %v2296
  %v2389 = vunpack.c.h.b16 %v2296
  %v2390 = vunpack.c.l.b16 %v2297
  %v2391 = vunpack.c.h.b16 %v2297
  %v2392 = vunpack.c.l.b16 %v2298
  %v2393 = vunpack.c.h.b16 %v2298
  %v2394 = vunpack.c.l.b16 %v2299
  %v2395 = vunpack.c.h.b16 %v2299
  %v2396 = vpack.c.b16 %v2332, %v2332
  %v2397 = vpack.c.b16 %v2333, %v2333
  %v2398 = vpack.c.b16 %v2334, %v2334
  %v2399 = vpack.c.b16 %v2335, %v2335
  %v2400 = vpack.c.b16 %v2336, %v2336
  %v2401 = vpack.c.b16 %v2337, %v2337
  %v2402 = vpack.c.b16 %v2338, %v2338
  %v2403 = vpack.c.b16 %v2339, %v2339
  %v2404 = vpack.c.b16 %v2340, %v2340
  %v2405 = vpack.c.b16 %v2341, %v2341
  %v2406 = vpack.c.b16 %v2342, %v2342
  %v2407 = vpack.c.b16 %v2343, %v2343
  %v2408 = vpack.c.b16 %v2344, %v2344
  %v2409 = vpack.c.b16 %v2345, %v2345
  %v2410 = vpack.c.b16 %v2346, %v2346
  %v2411 = vpack.c.b16 %v2347, %v2347
  %v2412 = vpack.c.b16 %v2348, %v2348
  %v2413 = vpack.c.b16 %v2349, %v2349
  %v2414 = vpack.c.b16 %v2350, %v2350
  %v2415 = vpack.c.b16 %v2351, %v2351
  %v2416 = vpack.c.b16 %v2352, %v2352
  %v2417 = vpack.c.b16 %v2353, %v2353
  %v2418 = vpack.c.b16 %v2354, %v2354
  %v2419 = vpack.c.b16 %v2355, %v2355
  %v2420 = vpack.c.b16 %v2356, %v2356
  %v2421 = vpack.c.b16 %v2357, %v2357
  %v2422 = vpack.c.b16 %v2358, %v2358
  %v2423 = vpack.c.b16 %v2359, %v2359
  %v2424 = vpack.c.b16 %v2360, %v2360
  %v2425 = vpack.c.b16 %v2361, %v2361
  %v2426 = vpack.c.b16 %v2362, %v2362
  %v2427 = vpack.c.b16 %v2363, %v2363
  %v2428 = vpack.c.b16 %v2364, %v2364
  %v2429 = vpack.c.b16 %v2365, %v2365
  %v2430 = vpack.c.b16 %v2366, %v2366
  %v2431 = vpack.c.b16 %v2367, %v2367
  %v2432 = vpack.c.b16 %v2368, %v2368
  %v2433 = vpack.c.b16 %v2369, %v2369
  %v2434 = vpack.c.b16 %v2370, %v2370
  %v2435 = vpack.c.b16 %v2371, %v2371
  %v2436 = vpack.c.b16 %v2372, %v2372
  %v2437 = vpack.c.b16 %v2373, %v2373
  %v2438 = vpack.c.b16 %v2374, %v2374
  %v2439 = vpack.c.b16 %v2375, %v2375
  %v2440 = vpack.c.b16 %v2376, %v2376
  %v2441 = vpack.c.b16 %v2377, %v2377
  %v2442 = vpack.c.b16 %v2378, %v2378
  %v2443 = vpack.c.b16 %v2379, %v2379
  %v2444 = vpack.c.b16 %v2380, %v2380
  %v2445 = vpack.c.b16 %v2381, %v2381
  %v2446 = vpack.c.b16 %v2382, %v2382
  %v2447 = vpack.c.b16 %v2383, %v2383
  %v2448 = vpack.c.b16 %v2384, %v2384
  %v2449 = vpack.c.b16 %v2385, %v2385
  %v2450 = vpack.c.b16 %v2386, %v2386
  %v2451 = vpack.c.b16 %v2387, %v2387
  %v2452 = vpack.c.b16 %v2388, %v2388
  %v2453 = vpack.c.b16 %v2389, %v2389
  %v2454 = vpack.c.b16 %v2390, %v2390
  %v2455 = vpack.c.b16 %v2391, %v2391
  %v2456 = vpack.c.b16 %v2392, %v2392
  %v2457 = vpack.c.b16 %v2393, %v2393
  %v2458 = vpack.c.b16 %v2394, %v2394
  %v2459 = vpack.c.b16 %v2395, %v2395
  %2524 = vst [vmem:[%s7] sm:$0xf] %v2396
  %2525 = vst [vmem:[%s7 + $0x4] sm:$0xf] %v2397
  %2526 = vst [vmem:[%s7 + $0x8] sm:$0xf] %v2398
  %2527 = vst [vmem:[%s7 + $0xc] sm:$0xf] %v2399
  %2528 = vst [vmem:[%s7 + $0x10] sm:$0xf] %v2400
  %2529 = vst [vmem:[%s7 + $0x14] sm:$0xf] %v2401
  %2530 = vst [vmem:[%s7 + $0x18] sm:$0xf] %v2402
  %2531 = vst [vmem:[%s7 + $0x1c] sm:$0xf] %v2403
  %2532 = vst [vmem:[%s7 + $0x20] sm:$0xf] %v2404
  %2533 = vst [vmem:[%s7 + $0x24] sm:$0xf] %v2405
  %2534 = vst [vmem:[%s7 + $0x28] sm:$0xf] %v2406
  %2535 = vst [vmem:[%s7 + $0x2c] sm:$0xf] %v2407
  %2536 = vst [vmem:[%s7 + $0x30] sm:$0xf] %v2408
  %2537 = vst [vmem:[%s7 + $0x34] sm:$0xf] %v2409
  %2538 = vst [vmem:[%s7 + $0x38] sm:$0xf] %v2410
  %2539 = vst [vmem:[%s7 + $0x3c] sm:$0xf] %v2411
  %2540 = vst [vmem:[%s7 + $0x40] sm:$0xf] %v2412
  %2541 = vst [vmem:[%s7 + $0x44] sm:$0xf] %v2413
  %2542 = vst [vmem:[%s7 + $0x48] sm:$0xf] %v2414
  %2543 = vst [vmem:[%s7 + $0x4c] sm:$0xf] %v2415
  %2544 = vst [vmem:[%s7 + $0x50] sm:$0xf] %v2416
  %2545 = vst [vmem:[%s7 + $0x54] sm:$0xf] %v2417
  %2546 = vst [vmem:[%s7 + $0x58] sm:$0xf] %v2418
  %2547 = vst [vmem:[%s7 + $0x5c] sm:$0xf] %v2419
  %2548 = vst [vmem:[%s7 + $0x60] sm:$0xf] %v2420
  %2549 = vst [vmem:[%s7 + $0x64] sm:$0xf] %v2421
  %2550 = vst [vmem:[%s7 + $0x68] sm:$0xf] %v2422
  %2551 = vst [vmem:[%s7 + $0x6c] sm:$0xf] %v2423
  %2552 = vst [vmem:[%s7 + $0x70] sm:$0xf] %v2424
  %2553 = vst [vmem:[%s7 + $0x74] sm:$0xf] %v2425
  %2554 = vst [vmem:[%s7 + $0x78] sm:$0xf] %v2426
  %2555 = vst [vmem:[%s7 + $0x7c] sm:$0xf] %v2427
  %2556 = vst [vmem:[%s7 + $0x80] sm:$0xf] %v2428
  %2557 = vst [vmem:[%s7 + $0x84] sm:$0xf] %v2429
  %2558 = vst [vmem:[%s7 + $0x88] sm:$0xf] %v2430
  %2559 = vst [vmem:[%s7 + $0x8c] sm:$0xf] %v2431
  %2560 = vst [vmem:[%s7 + $0x90] sm:$0xf] %v2432
  %2561 = vst [vmem:[%s7 + $0x94] sm:$0xf] %v2433
  %2562 = vst [vmem:[%s7 + $0x98] sm:$0xf] %v2434
  %2563 = vst [vmem:[%s7 + $0x9c] sm:$0xf] %v2435
  %2564 = vst [vmem:[%s7 + $0xa0] sm:$0xf] %v2436
  %2565 = vst [vmem:[%s7 + $0xa4] sm:$0xf] %v2437
  %2566 = vst [vmem:[%s7 + $0xa8] sm:$0xf] %v2438
  %2567 = vst [vmem:[%s7 + $0xac] sm:$0xf] %v2439
  %2568 = vst [vmem:[%s7 + $0xb0] sm:$0xf] %v2440
  %2569 = vst [vmem:[%s7 + $0xb4] sm:$0xf] %v2441
  %2570 = vst [vmem:[%s7 + $0xb8] sm:$0xf] %v2442
  %2571 = vst [vmem:[%s7 + $0xbc] sm:$0xf] %v2443
  %2572 = vst [vmem:[%s7 + $0xc0] sm:$0xf] %v2444
  %2573 = vst [vmem:[%s7 + $0xc4] sm:$0xf] %v2445
  %2574 = vst [vmem:[%s7 + $0xc8] sm:$0xf] %v2446
  %2575 = vst [vmem:[%s7 + $0xcc] sm:$0xf] %v2447
  %2576 = vst [vmem:[%s7 + $0xd0] sm:$0xf] %v2448
  %2577 = vst [vmem:[%s7 + $0xd4] sm:$0xf] %v2449
  %2578 = vst [vmem:[%s7 + $0xd8] sm:$0xf] %v2450
  %2579 = vst [vmem:[%s7 + $0xdc] sm:$0xf] %v2451
  %2580 = vst [vmem:[%s7 + $0xe0] sm:$0xf] %v2452
  %2581 = vst [vmem:[%s7 + $0xe4] sm:$0xf] %v2453
  %2582 = vst [vmem:[%s7 + $0xe8] sm:$0xf] %v2454
  %2583 = vst [vmem:[%s7 + $0xec] sm:$0xf] %v2455
  %2584 = vst [vmem:[%s7 + $0xf0] sm:$0xf] %v2456
  %2585 = vst [vmem:[%s7 + $0xf4] sm:$0xf] %v2457
  %2586 = vst [vmem:[%s7 + $0xf8] sm:$0xf] %v2458
  %2587 = vst [vmem:[%s7 + $0xfc] sm:$0xf] %v2459
  %v2588 = vadd.f32 %v2014, %v2017
  %v2589 = vadd.f32 %v2588, %v2022
  %v2590 = vadd.f32 %v2589, %v2025
  %v2591 = vadd.f32 %v2590, %v2030
  %v2592 = vadd.f32 %v2591, %v2033
  %v2593 = vadd.f32 %v2592, %v2038
  %v2594 = vadd.f32 %v2593, %v2041
  %v2595 = vadd.f32 %v2594, %v2046
  %v2596 = vadd.f32 %v2595, %v2049
  %v2597 = vadd.f32 %v2596, %v2054
  %v2598 = vadd.f32 %v2597, %v2057
  %v2599 = vadd.f32 %v2598, %v2062
  %v2600 = vadd.f32 %v2599, %v2065
  %v2601 = vadd.f32 %v2600, %v2070
  %v2602 = vadd.f32 %v2601, %v2073
  %v2603 = vadd.f32 %v2602, %v2078
  %v2604 = vadd.f32 %v2603, %v2081
  %v2605 = vadd.f32 %v2604, %v2086
  %v2606 = vadd.f32 %v2605, %v2089
  %v2607 = vadd.f32 %v2606, %v2094
  %v2608 = vadd.f32 %v2607, %v2097
  %v2609 = vadd.f32 %v2608, %v2102
  %v2610 = vadd.f32 %v2609, %v2105
  %v2611 = vadd.f32 %v2610, %v2110
  %v2612 = vadd.f32 %v2611, %v2113
  %v2613 = vadd.f32 %v2612, %v2118
  %v2614 = vadd.f32 %v2613, %v2121
  %v2615 = vadd.f32 %v2614, %v2126
  %v2616 = vadd.f32 %v2615, %v2129
  %v2617 = vadd.f32 %v2616, %v2134
  %v2618 = vadd.f32 %v2617, %v2137
  %v2619 = vadd.f32 %v2618, %v2142
  %v2620 = vadd.f32 %v2619, %v2145
  %v2621 = vadd.f32 %v2620, %v2150
  %v2622 = vadd.f32 %v2621, %v2153
  %v2623 = vadd.f32 %v2622, %v2158
  %v2624 = vadd.f32 %v2623, %v2161
  %v2625 = vadd.f32 %v2624, %v2166
  %v2626 = vadd.f32 %v2625, %v2169
  %v2627 = vadd.f32 %v2626, %v2174
  %v2628 = vadd.f32 %v2627, %v2177
  %v2629 = vadd.f32 %v2628, %v2182
  %v2630 = vadd.f32 %v2629, %v2185
  %v2631 = vadd.f32 %v2630, %v2190
  %v2632 = vadd.f32 %v2631, %v2193
  %v2633 = vadd.f32 %v2632, %v2198
  %v2634 = vadd.f32 %v2633, %v2201
  %v2635 = vadd.f32 %v2634, %v2206
  %v2636 = vadd.f32 %v2635, %v2209
  %v2637 = vadd.f32 %v2636, %v2214
  %v2638 = vadd.f32 %v2637, %v2217
  %v2639 = vadd.f32 %v2638, %v2222
  %v2640 = vadd.f32 %v2639, %v2225
  %v2641 = vadd.f32 %v2640, %v2230
  %v2642 = vadd.f32 %v2641, %v2233
  %v2643 = vadd.f32 %v2642, %v2238
  %v2644 = vadd.f32 %v2643, %v2241
  %v2645 = vadd.f32 %v2644, %v2246
  %v2646 = vadd.f32 %v2645, %v2249
  %v2647 = vadd.f32 %v2646, %v2254
  %v2648 = vadd.f32 %v2647, %v2257
  %v2649 = vadd.f32 %v2648, %v2262
  %v2650 = vadd.f32 %v2649, %v2265
  %v2651 = vrot.slane %v2650, 4
  %v2652 = vadd.f32 %v2650, %v2651
  %v2653 = vrot.slane %v2652, 2
  %v2654 = vadd.f32 %v2652, %v2653
  %v2655 = vrot.slane %v2654, 1
  %v2656 = vadd.f32 %v2654, %v2655
  %v2657 = vmul.f32 %v2014, %v2014
  %v2658 = vmul.f32 %v2017, %v2017
  %v2659 = vmul.f32 %v2022, %v2022
  %v2660 = vmul.f32 %v2025, %v2025
  %v2661 = vmul.f32 %v2030, %v2030
  %v2662 = vmul.f32 %v2033, %v2033
  %v2663 = vmul.f32 %v2038, %v2038
  %v2664 = vmul.f32 %v2041, %v2041
  %v2665 = vmul.f32 %v2046, %v2046
  %v2666 = vmul.f32 %v2049, %v2049
  %v2667 = vmul.f32 %v2054, %v2054
  %v2668 = vmul.f32 %v2057, %v2057
  %v2669 = vmul.f32 %v2062, %v2062
  %v2670 = vmul.f32 %v2065, %v2065
  %v2671 = vmul.f32 %v2070, %v2070
  %v2672 = vmul.f32 %v2073, %v2073
  %v2673 = vmul.f32 %v2078, %v2078
  %v2674 = vmul.f32 %v2081, %v2081
  %v2675 = vmul.f32 %v2086, %v2086
  %v2676 = vmul.f32 %v2089, %v2089
  %v2677 = vmul.f32 %v2094, %v2094
  %v2678 = vmul.f32 %v2097, %v2097
  %v2679 = vmul.f32 %v2102, %v2102
  %v2680 = vmul.f32 %v2105, %v2105
  %v2681 = vmul.f32 %v2110, %v2110
  %v2682 = vmul.f32 %v2113, %v2113
  %v2683 = vmul.f32 %v2118, %v2118
  %v2684 = vmul.f32 %v2121, %v2121
  %v2685 = vmul.f32 %v2126, %v2126
  %v2686 = vmul.f32 %v2129, %v2129
  %v2687 = vmul.f32 %v2134, %v2134
  %v2688 = vmul.f32 %v2137, %v2137
  %v2689 = vmul.f32 %v2142, %v2142
  %v2690 = vmul.f32 %v2145, %v2145
  %v2691 = vmul.f32 %v2150, %v2150
  %v2692 = vmul.f32 %v2153, %v2153
  %v2693 = vmul.f32 %v2158, %v2158
  %v2694 = vmul.f32 %v2161, %v2161
  %v2695 = vmul.f32 %v2166, %v2166
  %v2696 = vmul.f32 %v2169, %v2169
  %v2697 = vmul.f32 %v2174, %v2174
  %v2698 = vmul.f32 %v2177, %v2177
  %v2699 = vmul.f32 %v2182, %v2182
  %v2700 = vmul.f32 %v2185, %v2185
  %v2701 = vmul.f32 %v2190, %v2190
  %v2702 = vmul.f32 %v2193, %v2193
  %v2703 = vmul.f32 %v2198, %v2198
  %v2704 = vmul.f32 %v2201, %v2201
  %v2705 = vmul.f32 %v2206, %v2206
  %v2706 = vmul.f32 %v2209, %v2209
  %v2707 = vmul.f32 %v2214, %v2214
  %v2708 = vmul.f32 %v2217, %v2217
  %v2709 = vmul.f32 %v2222, %v2222
  %v2710 = vmul.f32 %v2225, %v2225
  %v2711 = vmul.f32 %v2230, %v2230
  %v2712 = vmul.f32 %v2233, %v2233
  %v2713 = vmul.f32 %v2238, %v2238
  %v2714 = vmul.f32 %v2241, %v2241
  %v2715 = vmul.f32 %v2246, %v2246
  %v2716 = vmul.f32 %v2249, %v2249
  %v2717 = vmul.f32 %v2254, %v2254
  %v2718 = vmul.f32 %v2257, %v2257
  %v2719 = vmul.f32 %v2262, %v2262
  %v2720 = vmul.f32 %v2265, %v2265
  %v2721 = vadd.f32 %v2657, %v2658
  %v2722 = vadd.f32 %v2721, %v2659
  %v2723 = vadd.f32 %v2722, %v2660
  %v2724 = vadd.f32 %v2723, %v2661
  %v2725 = vadd.f32 %v2724, %v2662
  %v2726 = vadd.f32 %v2725, %v2663
  %v2727 = vadd.f32 %v2726, %v2664
  %v2728 = vadd.f32 %v2727, %v2665
  %v2729 = vadd.f32 %v2728, %v2666
  %v2730 = vadd.f32 %v2729, %v2667
  %v2731 = vadd.f32 %v2730, %v2668
  %v2732 = vadd.f32 %v2731, %v2669
  %v2733 = vadd.f32 %v2732, %v2670
  %v2734 = vadd.f32 %v2733, %v2671
  %v2735 = vadd.f32 %v2734, %v2672
  %v2736 = vadd.f32 %v2735, %v2673
  %v2737 = vadd.f32 %v2736, %v2674
  %v2738 = vadd.f32 %v2737, %v2675
  %v2739 = vadd.f32 %v2738, %v2676
  %v2740 = vadd.f32 %v2739, %v2677
  %v2741 = vadd.f32 %v2740, %v2678
  %v2742 = vadd.f32 %v2741, %v2679
  %v2743 = vadd.f32 %v2742, %v2680
  %v2744 = vadd.f32 %v2743, %v2681
  %v2745 = vadd.f32 %v2744, %v2682
  %v2746 = vadd.f32 %v2745, %v2683
  %v2747 = vadd.f32 %v2746, %v2684
  %v2748 = vadd.f32 %v2747, %v2685
  %v2749 = vadd.f32 %v2748, %v2686
  %v2750 = vadd.f32 %v2749, %v2687
  %v2751 = vadd.f32 %v2750, %v2688
  %v2752 = vadd.f32 %v2751, %v2689
  %v2753 = vadd.f32 %v2752, %v2690
  %v2754 = vadd.f32 %v2753, %v2691
  %v2755 = vadd.f32 %v2754, %v2692
  %v2756 = vadd.f32 %v2755, %v2693
  %v2757 = vadd.f32 %v2756, %v2694
  %v2758 = vadd.f32 %v2757, %v2695
  %v2759 = vadd.f32 %v2758, %v2696
  %v2760 = vadd.f32 %v2759, %v2697
  %v2761 = vadd.f32 %v2760, %v2698
  %v2762 = vadd.f32 %v2761, %v2699
  %v2763 = vadd.f32 %v2762, %v2700
  %v2764 = vadd.f32 %v2763, %v2701
  %v2765 = vadd.f32 %v2764, %v2702
  %v2766 = vadd.f32 %v2765, %v2703
  %v2767 = vadd.f32 %v2766, %v2704
  %v2768 = vadd.f32 %v2767, %v2705
  %v2769 = vadd.f32 %v2768, %v2706
  %v2770 = vadd.f32 %v2769, %v2707
  %v2771 = vadd.f32 %v2770, %v2708
  %v2772 = vadd.f32 %v2771, %v2709
  %v2773 = vadd.f32 %v2772, %v2710
  %v2774 = vadd.f32 %v2773, %v2711
  %v2775 = vadd.f32 %v2774, %v2712
  %v2776 = vadd.f32 %v2775, %v2713
  %v2777 = vadd.f32 %v2776, %v2714
  %v2778 = vadd.f32 %v2777, %v2715
  %v2779 = vadd.f32 %v2778, %v2716
  %v2780 = vadd.f32 %v2779, %v2717
  %v2781 = vadd.f32 %v2780, %v2718
  %v2782 = vadd.f32 %v2781, %v2719
  %v2783 = vadd.f32 %v2782, %v2720
  %v2784 = vrot.slane %v2783, 4
  %v2785 = vadd.f32 %v2783, %v2784
  %v2786 = vrot.slane %v2785, 2
  %v2787 = vadd.f32 %v2785, %v2786
  %v2788 = vrot.slane %v2787, 1
  %v2789 = vadd.f32 %v2787, %v2788
  %v2790 = vsel %vm1656, %v2656, %v2789
  %2791 = vst [vmem:[%s9] sm:$0x3] %v2790
  // Predicated region
  $region26: #{encoder_bottleneck_forward.6} parent=0 // pred_check
    _
  $region27: #{encoder_bottleneck_forward.6} parent=0 // pred_check_branch
    %2793 = sbr.rel (0) target = $region29
  $region28: #{encoder_bottleneck_forward.6} parent=0 // pred_region
    _
  $region29: #{encoder_bottleneck_forward.6} parent=0 // pred_fallthru
    _
  // Predicated region
  $region30: #{encoder_bottleneck_forward.6} parent=0 // pred_check
    _
  $region31: #{encoder_bottleneck_forward.6} parent=0 // pred_check_branch
    %2795 = sbr.rel (0) target = $region33
  $region32: #{encoder_bottleneck_forward.6} parent=0 // pred_region
    _
  $region33: #{encoder_bottleneck_forward.6} parent=0 // pred_fallthru
    _
  // Predicated region
  $region34: #{encoder_bottleneck_forward.6} parent=0 // pred_check
    _
  $region35: #{encoder_bottleneck_forward.6} parent=0 // pred_check_branch
    %2797 = sbr.rel (0) target = $region37
  $region36: #{encoder_bottleneck_forward.6} parent=0 // pred_region
    _
  $region37: #{encoder_bottleneck_forward.6} parent=0 // pred_fallthru
    _
  // Predicated region
  $region38: #{encoder_bottleneck_forward.6} parent=0 // pred_check
    _
  $region39: #{encoder_bottleneck_forward.6} parent=0 // pred_check_branch
    %2799 = sbr.rel (0) target = $region41
  $region40: #{encoder_bottleneck_forward.6} parent=0 // pred_region
    _
  $region41: #{encoder_bottleneck_forward.6} parent=0 // pred_fallthru
    _
  // Predicated region
  $region42: #{encoder_bottleneck_forward.6} parent=0 // pred_check
    _
  $region43: #{encoder_bottleneck_forward.6} parent=0 // pred_check_branch
    %2801 = sbr.rel (0) target = $region45
  $region44: #{encoder_bottleneck_forward.6} parent=0 // pred_region
    _
  $region45: #{encoder_bottleneck_forward.6} parent=0 // pred_fallthru
    _
  // Predicated region
  $region46: #{encoder_bottleneck_forward.6} parent=0 // pred_check
    _
  $region47: #{encoder_bottleneck_forward.6} parent=0 // pred_check_branch
    %2803 = sbr.rel (0) target = $region49
  $region48: #{encoder_bottleneck_forward.6} parent=0 // pred_region
    _
  $region49: #{encoder_bottleneck_forward.6} parent=0 // pred_fallthru
    _
  // Predicated region
  $region50: #{encoder_bottleneck_forward.6} parent=0 // pred_check
    _
  $region51: #{encoder_bottleneck_forward.6} parent=0 // pred_check_branch
    %2805 = sbr.rel (0) target = $region53
  $region52: #{encoder_bottleneck_forward.6} parent=0 // pred_region
    _
  $region53: #{encoder_bottleneck_forward.6} parent=0 // pred_fallthru
    _
  // Predicated region
  $region54: #{encoder_bottleneck_forward.6} parent=0 // pred_check
    _
  $region55: #{encoder_bottleneck_forward.6} parent=0 // pred_check_branch
    %2807 = sbr.rel (0) target = $region57
  $region56: #{encoder_bottleneck_forward.6} parent=0 // pred_region
    _
  $region57: #{encoder_bottleneck_forward.6} parent=0 // pred_fallthru
    _

</llo_original>
